<compile_context>
chip_gen: v7x
topology: tpu7x:2x2x1
jax: 0.10.0
libtpu: 0.0.40
codegen_flags: <defaults>
</compile_context>

<pallas_src>
import jax
import jax.numpy as jnp
from jax import lax
from jax.experimental import pallas as pl
from jax.experimental.pallas import tpu as pltpu

LANES = 128   # vreg lane width / padded output-channel width for every matmul
M1P = 200     # conv1 pooled spatial (14*14=196) padded to a multiple of 8
M2P = 32      # conv2 pooled spatial (5*5=25)    padded to a multiple of 8


# ---------------------------------------------------------------------------
# Small helpers
# ---------------------------------------------------------------------------
def _round_up(x, m):
    return (x + m - 1) // m * m


def _pad2d(m, rows, cols):
    """Zero-pad a 2D f32 matrix to (rows, cols)."""
    out = jnp.zeros((rows, cols), jnp.float32)
    return out.at[: m.shape[0], : m.shape[1]].set(m)


# ---------------------------------------------------------------------------
# Pallas kernels
# ---------------------------------------------------------------------------
def _conv_relu_pool_kernel(x_ref, w_ref, b_ref, o_ref):
    """Fused conv(valid,5x5) + bias + ReLU + MaxPool2d(2,2) for `bt` images.

    x_ref: (4, bt, M_pad, K_pad) bf16  im2col patches grouped by pool corner
    w_ref: (K_pad, 128)          bf16  packed conv weights (zero-padded)
    b_ref: (1, 128)              f32   packed bias
    o_ref: (bt, M_pad, 128)      bf16  pooled feature map
    Max over the 4 corner matmuls == max-pool (max commutes with +bias, ReLU).
    """
    _, bt, m, k = x_ref.shape
    w = w_ref[...]
    acc = jnp.dot(x_ref[0].reshape(bt * m, k), w,
                  preferred_element_type=jnp.float32)
    for corner in range(1, 4):
        acc = jnp.maximum(
            acc,
            jnp.dot(x_ref[corner].reshape(bt * m, k), w,
                    preferred_element_type=jnp.float32))
    y = jnp.maximum(acc + b_ref[...], 0.0)
    o_ref[...] = y.reshape(bt, m, LANES).astype(o_ref.dtype)


def _fc_fused_kernel(x_ref, w1_ref, b1_ref, w2_ref, b2_ref, w3_ref, b3_ref, o_ref):
    """fc1 -> ReLU -> fc2 -> ReLU -> fc3, all weights resident in VMEM."""
    h = jnp.dot(x_ref[...], w1_ref[...], preferred_element_type=jnp.float32) + b1_ref[...]
    h = jnp.maximum(h, 0.0).astype(jnp.bfloat16)
    h = jnp.dot(h, w2_ref[...], preferred_element_type=jnp.float32) + b2_ref[...]
    h = jnp.maximum(h, 0.0).astype(jnp.bfloat16)
    y = jnp.dot(h, w3_ref[...], preferred_element_type=jnp.float32) + b3_ref[...]
    o_ref[...] = y


# ---------------------------------------------------------------------------
# pallas_call wrappers
# ---------------------------------------------------------------------------
def conv_relu_pool(patches, w, b):
    """patches: (4, N, M_pad, K_pad) bf16; w: (K_pad, 128) bf16; b: (1, 128) f32.
    Returns (N, M_pad, 128) bf16 pooled feature map."""
    _, n, m, kpad = patches.shape
    if n <= 8:
        bt, n_pad = n, n
    else:
        bt = 8
        n_pad = _round_up(n, bt)
    if n_pad != n:
        patches = jnp.pad(patches, ((0, 0), (0, n_pad - n), (0, 0), (0, 0)))
    flops = 2 * n_pad * 4 * m * kpad * LANES
    bytes_accessed = (patches.size * 2 + w.size * 2 + b.size * 4
                      + n_pad * m * LANES * 2)
    out = pl.pallas_call(
        _conv_relu_pool_kernel,
        out_shape=jax.ShapeDtypeStruct((n_pad, m, LANES), jnp.bfloat16),
        grid_spec=pltpu.PrefetchScalarGridSpec(
            num_scalar_prefetch=0,
            grid=(n_pad // bt,),
            in_specs=[
                pl.BlockSpec((4, bt, m, kpad), lambda i: (0, i, 0, 0)),
                pl.BlockSpec((kpad, LANES), lambda i: (0, 0)),   # resident weights
                pl.BlockSpec((1, LANES), lambda i: (0, 0)),      # resident bias
            ],
            out_specs=pl.BlockSpec((bt, m, LANES), lambda i: (i, 0, 0)),
        ),
        compiler_params=pltpu.CompilerParams(
            dimension_semantics=("parallel",),          # megacore over batch
            vmem_limit_bytes=32 * 1024 * 1024),
        cost_estimate=pl.CostEstimate(flops=flops, transcendentals=0,
                                      bytes_accessed=bytes_accessed),
    )(patches, w, b)
    return out[:n]


def fc_fused(x, w1, b1, w2, b2, w3, b3):
    """x: (N, M2P*128) bf16 -> (N_pad, 128) f32 logits (cols >= 10 are padding)."""
    n, kin = x.shape
    if n <= 256:
        m_pad = _round_up(n, 8)
        tm = m_pad
    else:
        m_pad = _round_up(n, 256)
        tm = 256
    if m_pad != n:
        x = jnp.pad(x, ((0, m_pad - n), (0, 0)))
    flops = 2 * m_pad * (kin + LANES + LANES) * LANES
    bytes_accessed = x.size * 2 + (w1.size + w2.size + w3.size) * 2 + m_pad * LANES * 4
    return pl.pallas_call(
        _fc_fused_kernel,
        out_shape=jax.ShapeDtypeStruct((m_pad, LANES), jnp.float32),
        grid_spec=pltpu.PrefetchScalarGridSpec(
            num_scalar_prefetch=0,
            grid=(m_pad // tm,),
            in_specs=[
                pl.BlockSpec((tm, kin), lambda i: (i, 0)),
                pl.BlockSpec((kin, LANES), lambda i: (0, 0)),
                pl.BlockSpec((1, LANES), lambda i: (0, 0)),
                pl.BlockSpec((LANES, LANES), lambda i: (0, 0)),
                pl.BlockSpec((1, LANES), lambda i: (0, 0)),
                pl.BlockSpec((LANES, LANES), lambda i: (0, 0)),
                pl.BlockSpec((1, LANES), lambda i: (0, 0)),
            ],
            out_specs=pl.BlockSpec((tm, LANES), lambda i: (i, 0)),
        ),
        compiler_params=pltpu.CompilerParams(
            dimension_semantics=("parallel",),
            vmem_limit_bytes=32 * 1024 * 1024),
        cost_estimate=pl.CostEstimate(flops=flops, transcendentals=0,
                                      bytes_accessed=bytes_accessed),
    )(x, w1, b1, w2, b2, w3, b3)


# ---------------------------------------------------------------------------
# Patch extraction (wrapper glue) and one-time weight packing
# ---------------------------------------------------------------------------
def _corner_patches(x, kh, kw, k_pad, m_pad):
    """x: NCHW -> (4, N, m_pad, k_pad) bf16 im2col patches grouped by 2x2-pool
    corner.  Feature ordering is (C, KH, KW), matching torch w.reshape(OC, -1)."""
    n, c, h, w = x.shape
    oh, ow = h - kh + 1, w - kw + 1
    assert oh % 2 == 0 and ow % 2 == 0, "MaxPool2d(2,2) assumes even conv output"
    ph, pw = oh // 2, ow // 2
    k = c * kh * kw
    p = lax.conv_general_dilated_patches(
        x, (kh, kw), (1, 1), "VALID",
        dimension_numbers=("NCHW", "OIHW", "NCHW"))       # (N, K, OH, OW)
    p = p.reshape(n, k, ph, 2, pw, 2)
    p = p.transpose(3, 5, 0, 2, 4, 1)                     # (dh, dw, N, PH, PW, K)
    p = p.reshape(4, n, ph * pw, k)
    p = jnp.pad(p, ((0, 0), (0, 0), (0, m_pad - ph * pw), (0, k_pad - k)))
    return p.astype(jnp.bfloat16)


def pack_params(p):
    """One-time packing of torch-layout params into padded, bf16, kernel-ready
    layout (done outside the jitted forward)."""
    bf16 = jnp.bfloat16
    packed = {
        "c1_w": _pad2d(p["conv1_w"].reshape(6, -1).T, 128, LANES).astype(bf16),
        "c1_b": _pad2d(p["conv1_b"].reshape(1, -1), 1, LANES),
        "c2_w": _pad2d(p["conv2_w"].reshape(16, -1).T, 256, LANES).astype(bf16),
        "c2_b": _pad2d(p["conv2_b"].reshape(1, -1), 1, LANES),
        "f1_b": _pad2d(p["fc1_b"].reshape(1, -1), 1, LANES),
        "f2_w": _pad2d(p["fc2_w"].T, LANES, LANES).astype(bf16),
        "f2_b": _pad2d(p["fc2_b"].reshape(1, -1), 1, LANES),
        "f3_w": _pad2d(p["fc3_w"].T, LANES, LANES).astype(bf16),
        "f3_b": _pad2d(p["fc3_b"].reshape(1, -1), 1, LANES),
    }
    # fc1 consumes the conv2 output directly in its native (padded spatial s,
    # padded channel c) layout: activation feature index = s*128 + c (s < M2P),
    # torch's .view(-1, 400) index = c*25 + s.  Fold that permutation plus the
    # spatial/channel zero-padding into the fc1 weight once here.
    f1 = p["fc1_w"].reshape(120, 16, 25).transpose(2, 1, 0)   # (s, c, j)
    f1p = jnp.zeros((M2P, LANES, LANES), jnp.float32).at[:25, :16, :120].set(f1)
    packed["f1_w"] = f1p.reshape(M2P * LANES, LANES).astype(bf16)
    return packed


# ---------------------------------------------------------------------------
# Full forward pass (matches torch Net.forward)
# ---------------------------------------------------------------------------
@jax.jit
def net_forward(packed, x):
    n = x.shape[0]
    # conv1 (3->6, 5x5) + ReLU + 2x2 max-pool, fused:  (N,3,32,32) -> (N,200,128)
    p1 = _corner_patches(x, 5, 5, k_pad=128, m_pad=M1P)
    h1 = conv_relu_pool(p1, packed["c1_w"], packed["c1_b"])
    # back to compact NCHW (N,6,14,14) for the next layer's patch extraction
    h1 = h1[:, :196, :6].transpose(0, 2, 1).reshape(n, 6, 14, 14)
    # conv2 (6->16, 5x5) + ReLU + 2x2 max-pool, fused:  -> (N,32,128)
    p2 = _corner_patches(h1, 5, 5, k_pad=256, m_pad=M2P)
    h2 = conv_relu_pool(p2, packed["c2_w"], packed["c2_b"])
    # fc1 -> ReLU -> fc2 -> ReLU -> fc3, fused in one kernel.  The torch
    # flatten and the spatial/channel padding are folded into f1_w, so the
    # conv2 output feeds the FC kernel without any slicing.
    xf = h2.reshape(n, M2P * LANES)
    logits = fc_fused(xf, packed["f1_w"], packed["f1_b"],
                      packed["f2_w"], packed["f2_b"],
                      packed["f3_w"], packed["f3_b"])
    return logits[:n, :10]


# ---------------------------------------------------------------------------
# Deterministic parameter init (PyTorch-style uniform(-1/sqrt(fan_in), ...))
# ---------------------------------------------------------------------------
def _init_params(key):
    ks = jax.random.split(key, 10)

    def u(k, shape, fan_in):
        bound = 1.0 / (fan_in ** 0.5)
        return jax.random.uniform(k, shape, jnp.float32, -bound, bound)

    return {
        "conv1_w": u(ks[0], (6, 3, 5, 5), 3 * 5 * 5),
        "conv1_b": u(ks[1], (6,), 3 * 5 * 5),
        "conv2_w": u(ks[2], (16, 6, 5, 5), 6 * 5 * 5),
        "conv2_b": u(ks[3], (16,), 6 * 5 * 5),
        "fc1_w":   u(ks[4], (120, 400), 400),
        "fc1_b":   u(ks[5], (120,), 400),
        "fc2_w":   u(ks[6], (84, 120), 120),
        "fc2_b":   u(ks[7], (84,), 120),
        "fc3_w":   u(ks[8], (10, 84), 84),
        "fc3_b":   u(ks[9], (10,), 84),
    }


# Plain-JAX f32 reference of the torch module, used as a sanity check.
def reference_forward(params, x):
    dn = ("NCHW", "OIHW", "NCHW")

    def conv(x, w, b):
        y = lax.conv_general_dilated(x, w, (1, 1), "VALID", dimension_numbers=dn)
        return jax.nn.relu(y + b[None, :, None, None])

    def pool(x):
        return lax.reduce_window(x, -jnp.inf, lax.max,
                                 (1, 1, 2, 2), (1, 1, 2, 2), "VALID")

    h = pool(conv(x, params["conv1_w"], params["conv1_b"]))
    h = pool(conv(h, params["conv2_w"], params["conv2_b"]))
    h = h.reshape(h.shape[0], -1)
    h = jax.nn.relu(h @ params["fc1_w"].T + params["fc1_b"])
    h = jax.nn.relu(h @ params["fc2_w"].T + params["fc2_b"])
    return h @ params["fc3_w"].T + params["fc3_b"]


if __name__ == "__main__":
    root = jax.random.PRNGKey(0)
    pkey, xkey = jax.random.split(root)
    params = _init_params(pkey)
    packed = pack_params(params)
    # Input must be 32x32 so the flatten hits 16*5*5 = 400, like the torch model.
    x = jax.random.normal(xkey, (4, 3, 32, 32), jnp.float32)

    out = jax.block_until_ready(net_forward(packed, x))
    assert out.shape == (4, 10), out.shape

    ref = reference_forward(params, x)
    err = float(jnp.max(jnp.abs(out - ref.astype(jnp.float32))))
    assert err < 1e-1, f"mismatch vs reference, max abs err = {err}"
    print("KERNEL_OK")
</pallas_src>

<mosaic_0001>
module attributes {stable_mosaic.version = 11 : i64} {
  func.func @_conv_relu_pool_kernel(%arg0: i32, %arg1: memref<4x4x200x128xbf16, #tpu.memory_space<vmem>>, %arg2: memref<128x128xbf16, #tpu.memory_space<vmem>>, %arg3: memref<1x128xf32, #tpu.memory_space<vmem>>, %arg4: memref<4x200x128xbf16, #tpu.memory_space<vmem>>) attributes {dimension_semantics = [#tpu.dimension_semantics<parallel>], iteration_bounds = array<i64: 1>, scalar_prefetch = 0 : i64, scratch_operands = 0 : i64, tpu.core_type = #tpu.core_type<tc>, window_params = [{transform_indices = @transform_0, window_bounds = array<i64: 4, 4, 200, 128>}, {pipeline_mode = #tpu.pipeline_mode<synchronous>, transform_indices = @transform_1, window_bounds = array<i64: 128, 128>}, {pipeline_mode = #tpu.pipeline_mode<synchronous>, transform_indices = @transform_2, window_bounds = array<i64: 1, 128>}, {transform_indices = @transform_3, window_bounds = array<i64: 4, 200, 128>}]} {
    %c0 = arith.constant 0 : index
    %c0_0 = arith.constant 0 : index
    %0 = vector.load %arg2[%c0, %c0_0] : memref<128x128xbf16, #tpu.memory_space<vmem>>, vector<128x128xbf16>
    %c0_1 = arith.constant 0 : index
    %c0_2 = arith.constant 0 : index
    %c0_3 = arith.constant 0 : index
    %c0_4 = arith.constant 0 : index
    %1 = vector.load %arg1[%c0_1, %c0_2, %c0_3, %c0_4] : memref<4x4x200x128xbf16, #tpu.memory_space<vmem>>, vector<1x4x200x128xbf16>
    %2 = vector.shape_cast %1 : vector<1x4x200x128xbf16> to vector<4x200x128xbf16>
    %3 = vector.shape_cast %2 : vector<4x200x128xbf16> to vector<800x128xbf16>
    %cst = arith.constant dense<0.000000e+00> : vector<800x128xf32>
    %4 = tpu.matmul %3, %0, %cst {dimension_numbers = #tpu.dot_dimension_numbers<[1], [0], [0], [1], [0, 0, 1, 1], [], []>} : vector<800x128xbf16>, vector<128x128xbf16>, vector<800x128xf32> -> vector<800x128xf32>
    %c1 = arith.constant 1 : index
    %c0_5 = arith.constant 0 : index
    %c0_6 = arith.constant 0 : index
    %c0_7 = arith.constant 0 : index
    %5 = vector.load %arg1[%c1, %c0_5, %c0_6, %c0_7] : memref<4x4x200x128xbf16, #tpu.memory_space<vmem>>, vector<1x4x200x128xbf16>
    %6 = vector.shape_cast %5 : vector<1x4x200x128xbf16> to vector<4x200x128xbf16>
    %7 = vector.shape_cast %6 : vector<4x200x128xbf16> to vector<800x128xbf16>
    %cst_8 = arith.constant dense<0.000000e+00> : vector<800x128xf32>
    %8 = tpu.matmul %7, %0, %cst_8 {dimension_numbers = #tpu.dot_dimension_numbers<[1], [0], [0], [1], [0, 0, 1, 1], [], []>} : vector<800x128xbf16>, vector<128x128xbf16>, vector<800x128xf32> -> vector<800x128xf32>
    %9 = arith.maximumf %4, %8 : vector<800x128xf32>
    %c2 = arith.constant 2 : index
    %c0_9 = arith.constant 0 : index
    %c0_10 = arith.constant 0 : index
    %c0_11 = arith.constant 0 : index
    %10 = vector.load %arg1[%c2, %c0_9, %c0_10, %c0_11] : memref<4x4x200x128xbf16, #tpu.memory_space<vmem>>, vector<1x4x200x128xbf16>
    %11 = vector.shape_cast %10 : vector<1x4x200x128xbf16> to vector<4x200x128xbf16>
    %12 = vector.shape_cast %11 : vector<4x200x128xbf16> to vector<800x128xbf16>
    %cst_12 = arith.constant dense<0.000000e+00> : vector<800x128xf32>
    %13 = tpu.matmul %12, %0, %cst_12 {dimension_numbers = #tpu.dot_dimension_numbers<[1], [0], [0], [1], [0, 0, 1, 1], [], []>} : vector<800x128xbf16>, vector<128x128xbf16>, vector<800x128xf32> -> vector<800x128xf32>
    %14 = arith.maximumf %9, %13 : vector<800x128xf32>
    %c3 = arith.constant 3 : index
    %c0_13 = arith.constant 0 : index
    %c0_14 = arith.constant 0 : index
    %c0_15 = arith.constant 0 : index
    %15 = vector.load %arg1[%c3, %c0_13, %c0_14, %c0_15] : memref<4x4x200x128xbf16, #tpu.memory_space<vmem>>, vector<1x4x200x128xbf16>
    %16 = vector.shape_cast %15 : vector<1x4x200x128xbf16> to vector<4x200x128xbf16>
    %17 = vector.shape_cast %16 : vector<4x200x128xbf16> to vector<800x128xbf16>
    %cst_16 = arith.constant dense<0.000000e+00> : vector<800x128xf32>
    %18 = tpu.matmul %17, %0, %cst_16 {dimension_numbers = #tpu.dot_dimension_numbers<[1], [0], [0], [1], [0, 0, 1, 1], [], []>} : vector<800x128xbf16>, vector<128x128xbf16>, vector<800x128xf32> -> vector<800x128xf32>
    %19 = arith.maximumf %14, %18 : vector<800x128xf32>
    %c0_17 = arith.constant 0 : index
    %c0_18 = arith.constant 0 : index
    %20 = vector.load %arg3[%c0_17, %c0_18] : memref<1x128xf32, #tpu.memory_space<vmem>>, vector<1x128xf32>
    %21 = vector.broadcast %20 : vector<1x128xf32> to vector<800x128xf32>
    %22 = arith.addf %19, %21 : vector<800x128xf32>
    %cst_19 = arith.constant 0.000000e+00 : f32
    %23 = vector.broadcast %cst_19 : f32 to vector<800x128xf32>
    %24 = arith.maximumf %22, %23 : vector<800x128xf32>
    %25 = vector.shape_cast %24 : vector<800x128xf32> to vector<4x200x128xf32>
    %26 = arith.truncf %25 : vector<4x200x128xf32> to vector<4x200x128xbf16>
    %c0_20 = arith.constant 0 : index
    %c0_21 = arith.constant 0 : index
    %c0_22 = arith.constant 0 : index
    %27 = vector.load %arg4[%c0_20, %c0_21, %c0_22] : memref<4x200x128xbf16, #tpu.memory_space<vmem>>, vector<4x200x128xbf16>
    tpu.vector_store %arg4[%c0_20, %c0_21, %c0_22], %26 {strides = array<i32>} : memref<4x200x128xbf16, #tpu.memory_space<vmem>>, vector<4x200x128xbf16>,
    return
  }
  func.func @transform_0(%arg0: i32) -> (i32, i32, i32, i32) {
    %c0_i32 = arith.constant 0 : i32
    %c0_i32_0 = arith.constant 0 : i32
    %c0_i32_1 = arith.constant 0 : i32
    %c0_i32_2 = arith.constant 0 : i32
    return %c0_i32, %arg0, %c0_i32_0, %c0_i32_1 : i32, i32, i32, i32
  }
  func.func @transform_1(%arg0: i32) -> (i32, i32) {
    %c0_i32 = arith.constant 0 : i32
    %c0_i32_0 = arith.constant 0 : i32
    %c0_i32_1 = arith.constant 0 : i32
    return %c0_i32, %c0_i32_0 : i32, i32
  }
  func.func @transform_2(%arg0: i32) -> (i32, i32) {
    %c0_i32 = arith.constant 0 : i32
    %c0_i32_0 = arith.constant 0 : i32
    %c0_i32_1 = arith.constant 0 : i32
    return %c0_i32, %c0_i32_0 : i32, i32
  }
  func.func @transform_3(%arg0: i32) -> (i32, i32, i32) {
    %c0_i32 = arith.constant 0 : i32
    %c0_i32_0 = arith.constant 0 : i32
    %c0_i32_1 = arith.constant 0 : i32
    return %arg0, %c0_i32, %c0_i32_0 : i32, i32, i32
  }
}

module attributes {stable_mosaic.version = 11 : i64} {
  func.func @_conv_relu_pool_kernel(%arg0: i32, %arg1: memref<4x4x32x256xbf16, #tpu.memory_space<vmem>>, %arg2: memref<256x128xbf16, #tpu.memory_space<vmem>>, %arg3: memref<1x128xf32, #tpu.memory_space<vmem>>, %arg4: memref<4x32x128xbf16, #tpu.memory_space<vmem>>) attributes {dimension_semantics = [#tpu.dimension_semantics<parallel>], iteration_bounds = array<i64: 1>, scalar_prefetch = 0 : i64, scratch_operands = 0 : i64, tpu.core_type = #tpu.core_type<tc>, window_params = [{transform_indices = @transform_0, window_bounds = array<i64: 4, 4, 32, 256>}, {pipeline_mode = #tpu.pipeline_mode<synchronous>, transform_indices = @transform_1, window_bounds = array<i64: 256, 128>}, {pipeline_mode = #tpu.pipeline_mode<synchronous>, transform_indices = @transform_2, window_bounds = array<i64: 1, 128>}, {transform_indices = @transform_3, window_bounds = array<i64: 4, 32, 128>}]} {
    %c0 = arith.constant 0 : index
    %c0_0 = arith.constant 0 : index
    %0 = vector.load %arg2[%c0, %c0_0] : memref<256x128xbf16, #tpu.memory_space<vmem>>, vector<256x128xbf16>
    %c0_1 = arith.constant 0 : index
    %c0_2 = arith.constant 0 : index
    %c0_3 = arith.constant 0 : index
    %c0_4 = arith.constant 0 : index
    %1 = vector.load %arg1[%c0_1, %c0_2, %c0_3, %c0_4] : memref<4x4x32x256xbf16, #tpu.memory_space<vmem>>, vector<1x4x32x256xbf16>
    %2 = vector.shape_cast %1 : vector<1x4x32x256xbf16> to vector<4x32x256xbf16>
    %3 = vector.shape_cast %2 : vector<4x32x256xbf16> to vector<128x256xbf16>
    %cst = arith.constant dense<0.000000e+00> : vector<128x128xf32>
    %4 = tpu.matmul %3, %0, %cst {dimension_numbers = #tpu.dot_dimension_numbers<[1], [0], [0], [1], [0, 0, 1, 1], [], []>} : vector<128x256xbf16>, vector<256x128xbf16>, vector<128x128xf32> -> vector<128x128xf32>
    %c1 = arith.constant 1 : index
    %c0_5 = arith.constant 0 : index
    %c0_6 = arith.constant 0 : index
    %c0_7 = arith.constant 0 : index
    %5 = vector.load %arg1[%c1, %c0_5, %c0_6, %c0_7] : memref<4x4x32x256xbf16, #tpu.memory_space<vmem>>, vector<1x4x32x256xbf16>
    %6 = vector.shape_cast %5 : vector<1x4x32x256xbf16> to vector<4x32x256xbf16>
    %7 = vector.shape_cast %6 : vector<4x32x256xbf16> to vector<128x256xbf16>
    %cst_8 = arith.constant dense<0.000000e+00> : vector<128x128xf32>
    %8 = tpu.matmul %7, %0, %cst_8 {dimension_numbers = #tpu.dot_dimension_numbers<[1], [0], [0], [1], [0, 0, 1, 1], [], []>} : vector<128x256xbf16>, vector<256x128xbf16>, vector<128x128xf32> -> vector<128x128xf32>
    %9 = arith.maximumf %4, %8 : vector<128x128xf32>
    %c2 = arith.constant 2 : index
    %c0_9 = arith.constant 0 : index
    %c0_10 = arith.constant 0 : index
    %c0_11 = arith.constant 0 : index
    %10 = vector.load %arg1[%c2, %c0_9, %c0_10, %c0_11] : memref<4x4x32x256xbf16, #tpu.memory_space<vmem>>, vector<1x4x32x256xbf16>
    %11 = vector.shape_cast %10 : vector<1x4x32x256xbf16> to vector<4x32x256xbf16>
    %12 = vector.shape_cast %11 : vector<4x32x256xbf16> to vector<128x256xbf16>
    %cst_12 = arith.constant dense<0.000000e+00> : vector<128x128xf32>
    %13 = tpu.matmul %12, %0, %cst_12 {dimension_numbers = #tpu.dot_dimension_numbers<[1], [0], [0], [1], [0, 0, 1, 1], [], []>} : vector<128x256xbf16>, vector<256x128xbf16>, vector<128x128xf32> -> vector<128x128xf32>
    %14 = arith.maximumf %9, %13 : vector<128x128xf32>
    %c3 = arith.constant 3 : index
    %c0_13 = arith.constant 0 : index
    %c0_14 = arith.constant 0 : index
    %c0_15 = arith.constant 0 : index
    %15 = vector.load %arg1[%c3, %c0_13, %c0_14, %c0_15] : memref<4x4x32x256xbf16, #tpu.memory_space<vmem>>, vector<1x4x32x256xbf16>
    %16 = vector.shape_cast %15 : vector<1x4x32x256xbf16> to vector<4x32x256xbf16>
    %17 = vector.shape_cast %16 : vector<4x32x256xbf16> to vector<128x256xbf16>
    %cst_16 = arith.constant dense<0.000000e+00> : vector<128x128xf32>
    %18 = tpu.matmul %17, %0, %cst_16 {dimension_numbers = #tpu.dot_dimension_numbers<[1], [0], [0], [1], [0, 0, 1, 1], [], []>} : vector<128x256xbf16>, vector<256x128xbf16>, vector<128x128xf32> -> vector<128x128xf32>
    %19 = arith.maximumf %14, %18 : vector<128x128xf32>
    %c0_17 = arith.constant 0 : index
    %c0_18 = arith.constant 0 : index
    %20 = vector.load %arg3[%c0_17, %c0_18] : memref<1x128xf32, #tpu.memory_space<vmem>>, vector<1x128xf32>
    %21 = vector.broadcast %20 : vector<1x128xf32> to vector<128x128xf32>
    %22 = arith.addf %19, %21 : vector<128x128xf32>
    %cst_19 = arith.constant 0.000000e+00 : f32
    %23 = vector.broadcast %cst_19 : f32 to vector<128x128xf32>
    %24 = arith.maximumf %22, %23 : vector<128x128xf32>
    %25 = vector.shape_cast %24 : vector<128x128xf32> to vector<4x32x128xf32>
    %26 = arith.truncf %25 : vector<4x32x128xf32> to vector<4x32x128xbf16>
    %c0_20 = arith.constant 0 : index
    %c0_21 = arith.constant 0 : index
    %c0_22 = arith.constant 0 : index
    %27 = vector.load %arg4[%c0_20, %c0_21, %c0_22] : memref<4x32x128xbf16, #tpu.memory_space<vmem>>, vector<4x32x128xbf16>
    tpu.vector_store %arg4[%c0_20, %c0_21, %c0_22], %26 {strides = array<i32>} : memref<4x32x128xbf16, #tpu.memory_space<vmem>>, vector<4x32x128xbf16>,
    return
  }
  func.func @transform_0(%arg0: i32) -> (i32, i32, i32, i32) {
    %c0_i32 = arith.constant 0 : i32
    %c0_i32_0 = arith.constant 0 : i32
    %c0_i32_1 = arith.constant 0 : i32
    %c0_i32_2 = arith.constant 0 : i32
    return %c0_i32, %arg0, %c0_i32_0, %c0_i32_1 : i32, i32, i32, i32
  }
  func.func @transform_1(%arg0: i32) -> (i32, i32) {
    %c0_i32 = arith.constant 0 : i32
    %c0_i32_0 = arith.constant 0 : i32
    %c0_i32_1 = arith.constant 0 : i32
    return %c0_i32, %c0_i32_0 : i32, i32
  }
  func.func @transform_2(%arg0: i32) -> (i32, i32) {
    %c0_i32 = arith.constant 0 : i32
    %c0_i32_0 = arith.constant 0 : i32
    %c0_i32_1 = arith.constant 0 : i32
    return %c0_i32, %c0_i32_0 : i32, i32
  }
  func.func @transform_3(%arg0: i32) -> (i32, i32, i32) {
    %c0_i32 = arith.constant 0 : i32
    %c0_i32_0 = arith.constant 0 : i32
    %c0_i32_1 = arith.constant 0 : i32
    return %arg0, %c0_i32, %c0_i32_0 : i32, i32, i32
  }
}

module attributes {stable_mosaic.version = 11 : i64} {
  func.func @_fc_fused_kernel(%arg0: i32, %arg1: memref<8x4096xbf16, #tpu.memory_space<vmem>>, %arg2: memref<4096x128xbf16, #tpu.memory_space<vmem>>, %arg3: memref<1x128xf32, #tpu.memory_space<vmem>>, %arg4: memref<128x128xbf16, #tpu.memory_space<vmem>>, %arg5: memref<1x128xf32, #tpu.memory_space<vmem>>, %arg6: memref<128x128xbf16, #tpu.memory_space<vmem>>, %arg7: memref<1x128xf32, #tpu.memory_space<vmem>>, %arg8: memref<8x128xf32, #tpu.memory_space<vmem>>) attributes {dimension_semantics = [#tpu.dimension_semantics<parallel>], iteration_bounds = array<i64: 1>, scalar_prefetch = 0 : i64, scratch_operands = 0 : i64, tpu.core_type = #tpu.core_type<tc>, window_params = [{transform_indices = @transform_0, window_bounds = array<i64: 8, 4096>}, {pipeline_mode = #tpu.pipeline_mode<synchronous>, transform_indices = @transform_1, window_bounds = array<i64: 4096, 128>}, {pipeline_mode = #tpu.pipeline_mode<synchronous>, transform_indices = @transform_2, window_bounds = array<i64: 1, 128>}, {pipeline_mode = #tpu.pipeline_mode<synchronous>, transform_indices = @transform_3, window_bounds = array<i64: 128, 128>}, {pipeline_mode = #tpu.pipeline_mode<synchronous>, transform_indices = @transform_4, window_bounds = array<i64: 1, 128>}, {pipeline_mode = #tpu.pipeline_mode<synchronous>, transform_indices = @transform_5, window_bounds = array<i64: 128, 128>}, {pipeline_mode = #tpu.pipeline_mode<synchronous>, transform_indices = @transform_6, window_bounds = array<i64: 1, 128>}, {transform_indices = @transform_7, window_bounds = array<i64: 8, 128>}]} {
    %c0 = arith.constant 0 : index
    %c0_0 = arith.constant 0 : index
    %0 = vector.load %arg1[%c0, %c0_0] : memref<8x4096xbf16, #tpu.memory_space<vmem>>, vector<8x4096xbf16>
    %c0_1 = arith.constant 0 : index
    %c0_2 = arith.constant 0 : index
    %1 = vector.load %arg2[%c0_1, %c0_2] : memref<4096x128xbf16, #tpu.memory_space<vmem>>, vector<4096x128xbf16>
    %cst = arith.constant dense<0.000000e+00> : vector<8x128xf32>
    %2 = tpu.matmul %0, %1, %cst {dimension_numbers = #tpu.dot_dimension_numbers<[1], [0], [0], [1], [0, 0, 1, 1], [], []>} : vector<8x4096xbf16>, vector<4096x128xbf16>, vector<8x128xf32> -> vector<8x128xf32>
    %c0_3 = arith.constant 0 : index
    %c0_4 = arith.constant 0 : index
    %3 = vector.load %arg3[%c0_3, %c0_4] : memref<1x128xf32, #tpu.memory_space<vmem>>, vector<1x128xf32>
    %4 = vector.broadcast %3 : vector<1x128xf32> to vector<8x128xf32>
    %5 = arith.addf %2, %4 : vector<8x128xf32>
    %cst_5 = arith.constant 0.000000e+00 : f32
    %6 = vector.broadcast %cst_5 : f32 to vector<8x128xf32>
    %7 = arith.maximumf %5, %6 : vector<8x128xf32>
    %8 = arith.truncf %7 : vector<8x128xf32> to vector<8x128xbf16>
    %c0_6 = arith.constant 0 : index
    %c0_7 = arith.constant 0 : index
    %9 = vector.load %arg4[%c0_6, %c0_7] : memref<128x128xbf16, #tpu.memory_space<vmem>>, vector<128x128xbf16>
    %cst_8 = arith.constant dense<0.000000e+00> : vector<8x128xf32>
    %10 = tpu.matmul %8, %9, %cst_8 {dimension_numbers = #tpu.dot_dimension_numbers<[1], [0], [0], [1], [0, 0, 1, 1], [], []>} : vector<8x128xbf16>, vector<128x128xbf16>, vector<8x128xf32> -> vector<8x128xf32>
    %c0_9 = arith.constant 0 : index
    %c0_10 = arith.constant 0 : index
    %11 = vector.load %arg5[%c0_9, %c0_10] : memref<1x128xf32, #tpu.memory_space<vmem>>, vector<1x128xf32>
    %12 = vector.broadcast %11 : vector<1x128xf32> to vector<8x128xf32>
    %13 = arith.addf %10, %12 : vector<8x128xf32>
    %cst_11 = arith.constant 0.000000e+00 : f32
    %14 = vector.broadcast %cst_11 : f32 to vector<8x128xf32>
    %15 = arith.maximumf %13, %14 : vector<8x128xf32>
    %16 = arith.truncf %15 : vector<8x128xf32> to vector<8x128xbf16>
    %c0_12 = arith.constant 0 : index
    %c0_13 = arith.constant 0 : index
    %17 = vector.load %arg6[%c0_12, %c0_13] : memref<128x128xbf16, #tpu.memory_space<vmem>>, vector<128x128xbf16>
    %cst_14 = arith.constant dense<0.000000e+00> : vector<8x128xf32>
    %18 = tpu.matmul %16, %17, %cst_14 {dimension_numbers = #tpu.dot_dimension_numbers<[1], [0], [0], [1], [0, 0, 1, 1], [], []>} : vector<8x128xbf16>, vector<128x128xbf16>, vector<8x128xf32> -> vector<8x128xf32>
    %c0_15 = arith.constant 0 : index
    %c0_16 = arith.constant 0 : index
    %19 = vector.load %arg7[%c0_15, %c0_16] : memref<1x128xf32, #tpu.memory_space<vmem>>, vector<1x128xf32>
    %20 = vector.broadcast %19 : vector<1x128xf32> to vector<8x128xf32>
    %21 = arith.addf %18, %20 : vector<8x128xf32>
    %c0_17 = arith.constant 0 : index
    %c0_18 = arith.constant 0 : index
    %22 = vector.load %arg8[%c0_17, %c0_18] : memref<8x128xf32, #tpu.memory_space<vmem>>, vector<8x128xf32>
    tpu.vector_store %arg8[%c0_17, %c0_18], %21 {strides = array<i32>} : memref<8x128xf32, #tpu.memory_space<vmem>>, vector<8x128xf32>,
    return
  }
  func.func @transform_0(%arg0: i32) -> (i32, i32) {
    %c0_i32 = arith.constant 0 : i32
    %c0_i32_0 = arith.constant 0 : i32
    return %arg0, %c0_i32 : i32, i32
  }
  func.func @transform_1(%arg0: i32) -> (i32, i32) {
    %c0_i32 = arith.constant 0 : i32
    %c0_i32_0 = arith.constant 0 : i32
    %c0_i32_1 = arith.constant 0 : i32
    return %c0_i32, %c0_i32_0 : i32, i32
  }
  func.func @transform_2(%arg0: i32) -> (i32, i32) {
    %c0_i32 = arith.constant 0 : i32
    %c0_i32_0 = arith.constant 0 : i32
    %c0_i32_1 = arith.constant 0 : i32
    return %c0_i32, %c0_i32_0 : i32, i32
  }
  func.func @transform_3(%arg0: i32) -> (i32, i32) {
    %c0_i32 = arith.constant 0 : i32
    %c0_i32_0 = arith.constant 0 : i32
    %c0_i32_1 = arith.constant 0 : i32
    return %c0_i32, %c0_i32_0 : i32, i32
  }
  func.func @transform_4(%arg0: i32) -> (i32, i32) {
    %c0_i32 = arith.constant 0 : i32
    %c0_i32_0 = arith.constant 0 : i32
    %c0_i32_1 = arith.constant 0 : i32
    return %c0_i32, %c0_i32_0 : i32, i32
  }
  func.func @transform_5(%arg0: i32) -> (i32, i32) {
    %c0_i32 = arith.constant 0 : i32
    %c0_i32_0 = arith.constant 0 : i32
    %c0_i32_1 = arith.constant 0 : i32
    return %c0_i32, %c0_i32_0 : i32, i32
  }
  func.func @transform_6(%arg0: i32) -> (i32, i32) {
    %c0_i32 = arith.constant 0 : i32
    %c0_i32_0 = arith.constant 0 : i32
    %c0_i32_1 = arith.constant 0 : i32
    return %c0_i32, %c0_i32_0 : i32, i32
  }
  func.func @transform_7(%arg0: i32) -> (i32, i32) {
    %c0_i32 = arith.constant 0 : i32
    %c0_i32_0 = arith.constant 0 : i32
    return %arg0, %c0_i32 : i32, i32
  }
}

</mosaic_0001>

<llo_original>
// kernel: net_forward.3
$region0: #{net_forward.3}
  #allocation0 [shape = 'u32[]', space=smem, size = 0x4, offset = 0x4, fixed_abs, tag = 'smem constant byte address 0x4 - core index']
  #allocation1 [shape = 'u32[144,128]{1,0:T(1,128)}', space=vmem, size = 0x12000, scoped, tag = 'internal scratch']
  %s0 = inlined_call_operand.vmem [shape: bf16[4,4,200,128], index: 0, kind: input, shape index: {}]
  %s1 = inlined_call_operand.vmem [shape: bf16[128,128], index: 1, kind: input, shape index: {}]
  %s2 = inlined_call_operand.vmem [shape: f32[1,128], index: 2, kind: input, shape index: {}]
  %s3 = inlined_call_operand.vmem [shape: bf16[4,200,128], index: 3, kind: output, shape index: {}]
  %s4 = sld [smem:[#allocation0]]
  $region22: #{net_forward.3} parent=0
    _
  %s6 = ssub.s32 1, %s4
  %s7 = scalar_select 0, %s6, %s4
  // Predicated region
  $region2: #{net_forward.3} parent=0 // pred_check
    _
  $region3: #{net_forward.3} parent=0 // pred_check_branch
    %9 = sbr.rel (0) target = $region5
  $region4: #{net_forward.3} parent=0 // pred_region
    _
  $region5: #{net_forward.3} parent=0 // pred_fallthru
    _
  // Predicated region
  $region6: #{net_forward.3} parent=0 // pred_check
    _
  $region7: #{net_forward.3} parent=0 // pred_check_branch
    %11 = sbr.rel (0) target = $region9
  $region8: #{net_forward.3} parent=0 // pred_region
    _
  $region9: #{net_forward.3} parent=0 // pred_fallthru
    _
  // Predicated region
  $region10: #{net_forward.3} parent=0 // pred_check
    _
  $region11: #{net_forward.3} parent=0 // pred_check_branch
    %13 = sbr.rel (0) target = $region13
  $region12: #{net_forward.3} parent=0 // pred_region
    _
  $region13: #{net_forward.3} parent=0 // pred_fallthru
    _
  %v15 = vld [vmem:[%s1] sm:$0xf]
  %v16 = vld [vmem:[%s1 + $0x4] sm:$0xf]
  %v17 = vld [vmem:[%s1 + $0x8] sm:$0xf]
  %v18 = vld [vmem:[%s1 + $0xc] sm:$0xf]
  %v19 = vld [vmem:[%s1 + $0x10] sm:$0xf]
  %v20 = vld [vmem:[%s1 + $0x14] sm:$0xf]
  %v21 = vld [vmem:[%s1 + $0x18] sm:$0xf]
  %v22 = vld [vmem:[%s1 + $0x1c] sm:$0xf]
  %v23 = vld [vmem:[%s1 + $0x20] sm:$0xf]
  %v24 = vld [vmem:[%s1 + $0x24] sm:$0xf]
  %v25 = vld [vmem:[%s1 + $0x28] sm:$0xf]
  %v26 = vld [vmem:[%s1 + $0x2c] sm:$0xf]
  %v27 = vld [vmem:[%s1 + $0x30] sm:$0xf]
  %v28 = vld [vmem:[%s1 + $0x34] sm:$0xf]
  %v29 = vld [vmem:[%s1 + $0x38] sm:$0xf]
  %v30 = vld [vmem:[%s1 + $0x3c] sm:$0xf]
  %v31 = vld [vmem:[%s0] sm:$0xf]
  %v32 = vld [vmem:[%s0 + $0x4] sm:$0xf]
  %v33 = vld [vmem:[%s0 + $0x8] sm:$0xf]
  %v34 = vld [vmem:[%s0 + $0xc] sm:$0xf]
  %v35 = vld [vmem:[%s0 + $0x10] sm:$0xf]
  %v36 = vld [vmem:[%s0 + $0x14] sm:$0xf]
  %v37 = vld [vmem:[%s0 + $0x18] sm:$0xf]
  %v38 = vld [vmem:[%s0 + $0x1c] sm:$0xf]
  %v39 = vld [vmem:[%s0 + $0x20] sm:$0xf]
  %v40 = vld [vmem:[%s0 + $0x24] sm:$0xf]
  %v41 = vld [vmem:[%s0 + $0x28] sm:$0xf]
  %v42 = vld [vmem:[%s0 + $0x2c] sm:$0xf]
  %v43 = vld [vmem:[%s0 + $0x30] sm:$0xf]
  %v44 = vld [vmem:[%s0 + $0x34] sm:$0xf]
  %v45 = vld [vmem:[%s0 + $0x38] sm:$0xf]
  %v46 = vld [vmem:[%s0 + $0x3c] sm:$0xf]
  %v47 = vld [vmem:[%s0 + $0x40] sm:$0xf]
  %v48 = vld [vmem:[%s0 + $0x44] sm:$0xf]
  %v49 = vld [vmem:[%s0 + $0x48] sm:$0xf]
  %v50 = vld [vmem:[%s0 + $0x4c] sm:$0xf]
  %v51 = vld [vmem:[%s0 + $0x50] sm:$0xf]
  %v52 = vld [vmem:[%s0 + $0x54] sm:$0xf]
  %v53 = vld [vmem:[%s0 + $0x58] sm:$0xf]
  %v54 = vld [vmem:[%s0 + $0x5c] sm:$0xf]
  %v55 = vld [vmem:[%s0 + $0x60] sm:$0xf]
  %v56 = vld [vmem:[%s0 + $0x64] sm:$0xf]
  %v57 = vld [vmem:[%s0 + $0x68] sm:$0xf]
  %v58 = vld [vmem:[%s0 + $0x6c] sm:$0xf]
  %v59 = vld [vmem:[%s0 + $0x70] sm:$0xf]
  %v60 = vld [vmem:[%s0 + $0x74] sm:$0xf]
  %v61 = vld [vmem:[%s0 + $0x78] sm:$0xf]
  %v62 = vld [vmem:[%s0 + $0x7c] sm:$0xf]
  %v63 = vld [vmem:[%s0 + $0x80] sm:$0xf]
  %v64 = vld [vmem:[%s0 + $0x84] sm:$0xf]
  %v65 = vld [vmem:[%s0 + $0x88] sm:$0xf]
  %v66 = vld [vmem:[%s0 + $0x8c] sm:$0xf]
  %v67 = vld [vmem:[%s0 + $0x90] sm:$0xf]
  %v68 = vld [vmem:[%s0 + $0x94] sm:$0xf]
  %v69 = vld [vmem:[%s0 + $0x98] sm:$0xf]
  %v70 = vld [vmem:[%s0 + $0x9c] sm:$0xf]
  %v71 = vld [vmem:[%s0 + $0xa0] sm:$0xf]
  %v72 = vld [vmem:[%s0 + $0xa4] sm:$0xf]
  %v73 = vld [vmem:[%s0 + $0xa8] sm:$0xf]
  %v74 = vld [vmem:[%s0 + $0xac] sm:$0xf]
  %v75 = vld [vmem:[%s0 + $0xb0] sm:$0xf]
  %v76 = vld [vmem:[%s0 + $0xb4] sm:$0xf]
  %v77 = vld [vmem:[%s0 + $0xb8] sm:$0xf]
  %v78 = vld [vmem:[%s0 + $0xbc] sm:$0xf]
  %v79 = vld [vmem:[%s0 + $0xc0] sm:$0xf]
  %v80 = vld [vmem:[%s0 + $0xc4] sm:$0xf]
  %v81 = vld [vmem:[%s0 + $0xc8] sm:$0xf]
  %v82 = vld [vmem:[%s0 + $0xcc] sm:$0xf]
  %v83 = vld [vmem:[%s0 + $0xd0] sm:$0xf]
  %v84 = vld [vmem:[%s0 + $0xd4] sm:$0xf]
  %v85 = vld [vmem:[%s0 + $0xd8] sm:$0xf]
  %v86 = vld [vmem:[%s0 + $0xdc] sm:$0xf]
  %v87 = vld [vmem:[%s0 + $0xe0] sm:$0xf]
  %v88 = vld [vmem:[%s0 + $0xe4] sm:$0xf]
  %v89 = vld [vmem:[%s0 + $0xe8] sm:$0xf]
  %v90 = vld [vmem:[%s0 + $0xec] sm:$0xf]
  %v91 = vld [vmem:[%s0 + $0xf0] sm:$0xf]
  %v92 = vld [vmem:[%s0 + $0xf4] sm:$0xf]
  %v93 = vld [vmem:[%s0 + $0xf8] sm:$0xf]
  %v94 = vld [vmem:[%s0 + $0xfc] sm:$0xf]
  %v95 = vld [vmem:[%s0 + $0x100] sm:$0xf]
  %v96 = vld [vmem:[%s0 + $0x104] sm:$0xf]
  %v97 = vld [vmem:[%s0 + $0x108] sm:$0xf]
  %v98 = vld [vmem:[%s0 + $0x10c] sm:$0xf]
  %v99 = vld [vmem:[%s0 + $0x110] sm:$0xf]
  %v100 = vld [vmem:[%s0 + $0x114] sm:$0xf]
  %v101 = vld [vmem:[%s0 + $0x118] sm:$0xf]
  %v102 = vld [vmem:[%s0 + $0x11c] sm:$0xf]
  %v103 = vld [vmem:[%s0 + $0x120] sm:$0xf]
  %v104 = vld [vmem:[%s0 + $0x124] sm:$0xf]
  %v105 = vld [vmem:[%s0 + $0x128] sm:$0xf]
  %v106 = vld [vmem:[%s0 + $0x12c] sm:$0xf]
  %v107 = vld [vmem:[%s0 + $0x130] sm:$0xf]
  %v108 = vld [vmem:[%s0 + $0x134] sm:$0xf]
  %v109 = vld [vmem:[%s0 + $0x138] sm:$0xf]
  %v110 = vld [vmem:[%s0 + $0x13c] sm:$0xf]
  %v111 = vld [vmem:[%s0 + $0x140] sm:$0xf]
  %v112 = vld [vmem:[%s0 + $0x144] sm:$0xf]
  %v113 = vld [vmem:[%s0 + $0x148] sm:$0xf]
  %v114 = vld [vmem:[%s0 + $0x14c] sm:$0xf]
  %v115 = vld [vmem:[%s0 + $0x150] sm:$0xf]
  %v116 = vld [vmem:[%s0 + $0x154] sm:$0xf]
  %v117 = vld [vmem:[%s0 + $0x158] sm:$0xf]
  %v118 = vld [vmem:[%s0 + $0x15c] sm:$0xf]
  %v119 = vld [vmem:[%s0 + $0x160] sm:$0xf]
  %v120 = vld [vmem:[%s0 + $0x164] sm:$0xf]
  %v121 = vld [vmem:[%s0 + $0x168] sm:$0xf]
  %v122 = vld [vmem:[%s0 + $0x16c] sm:$0xf]
  %v123 = vld [vmem:[%s0 + $0x170] sm:$0xf]
  %v124 = vld [vmem:[%s0 + $0x174] sm:$0xf]
  %v125 = vld [vmem:[%s0 + $0x178] sm:$0xf]
  %v126 = vld [vmem:[%s0 + $0x17c] sm:$0xf]
  %v127 = vld [vmem:[%s0 + $0x180] sm:$0xf]
  %v128 = vld [vmem:[%s0 + $0x184] sm:$0xf]
  %v129 = vld [vmem:[%s0 + $0x188] sm:$0xf]
  %v130 = vld [vmem:[%s0 + $0x18c] sm:$0xf]
  %v231 = vunpack.c.l.b16 %v31
  %v232 = vunpack.c.l.b16 %v32
  %v233 = vunpack.c.l.b16 %v33
  %v234 = vunpack.c.l.b16 %v34
  %v235 = vunpack.c.l.b16 %v35
  %v236 = vunpack.c.l.b16 %v36
  %v237 = vunpack.c.l.b16 %v37
  %v238 = vunpack.c.l.b16 %v38
  %v239 = vunpack.c.l.b16 %v39
  %v240 = vunpack.c.l.b16 %v40
  %v241 = vunpack.c.l.b16 %v41
  %v242 = vunpack.c.l.b16 %v42
  %v243 = vunpack.c.l.b16 %v43
  %v244 = vunpack.c.l.b16 %v44
  %v245 = vunpack.c.l.b16 %v45
  %v246 = vunpack.c.l.b16 %v46
  %v247 = vunpack.c.l.b16 %v47
  %v248 = vunpack.c.l.b16 %v48
  %v249 = vunpack.c.l.b16 %v49
  %v250 = vunpack.c.l.b16 %v50
  %v251 = vunpack.c.l.b16 %v51
  %v252 = vunpack.c.l.b16 %v52
  %v253 = vunpack.c.l.b16 %v53
  %v254 = vunpack.c.l.b16 %v54
  %v255 = vunpack.c.l.b16 %v55
  %v256 = vunpack.c.l.b16 %v56
  %v257 = vunpack.c.l.b16 %v57
  %v258 = vunpack.c.l.b16 %v58
  %v259 = vunpack.c.l.b16 %v59
  %v260 = vunpack.c.l.b16 %v60
  %v261 = vunpack.c.l.b16 %v61
  %v262 = vunpack.c.l.b16 %v62
  %v263 = vunpack.c.l.b16 %v63
  %v264 = vunpack.c.l.b16 %v64
  %v265 = vunpack.c.l.b16 %v65
  %v266 = vunpack.c.l.b16 %v66
  %v267 = vunpack.c.l.b16 %v67
  %v268 = vunpack.c.l.b16 %v68
  %v269 = vunpack.c.l.b16 %v69
  %v270 = vunpack.c.l.b16 %v70
  %v271 = vunpack.c.l.b16 %v71
  %v272 = vunpack.c.l.b16 %v72
  %v273 = vunpack.c.l.b16 %v73
  %v274 = vunpack.c.l.b16 %v74
  %v275 = vunpack.c.l.b16 %v75
  %v276 = vunpack.c.l.b16 %v76
  %v277 = vunpack.c.l.b16 %v77
  %v278 = vunpack.c.l.b16 %v78
  %v279 = vunpack.c.l.b16 %v79
  %v280 = vunpack.c.l.b16 %v80
  %v281 = vunpack.c.l.b16 %v81
  %v282 = vunpack.c.l.b16 %v82
  %v283 = vunpack.c.l.b16 %v83
  %v284 = vunpack.c.l.b16 %v84
  %v285 = vunpack.c.l.b16 %v85
  %v286 = vunpack.c.l.b16 %v86
  %v287 = vunpack.c.l.b16 %v87
  %v288 = vunpack.c.l.b16 %v88
  %v289 = vunpack.c.l.b16 %v89
  %v290 = vunpack.c.l.b16 %v90
  %v291 = vunpack.c.l.b16 %v91
  %v292 = vunpack.c.l.b16 %v92
  %v293 = vunpack.c.l.b16 %v93
  %v294 = vunpack.c.l.b16 %v94
  %v295 = vunpack.c.l.b16 %v95
  %v296 = vunpack.c.l.b16 %v96
  %v297 = vunpack.c.l.b16 %v97
  %v298 = vunpack.c.l.b16 %v98
  %v299 = vunpack.c.l.b16 %v99
  %v300 = vunpack.c.l.b16 %v100
  %v301 = vunpack.c.l.b16 %v101
  %v302 = vunpack.c.l.b16 %v102
  %v303 = vunpack.c.l.b16 %v103
  %v304 = vunpack.c.l.b16 %v104
  %v305 = vunpack.c.l.b16 %v105
  %v306 = vunpack.c.l.b16 %v106
  %v307 = vunpack.c.l.b16 %v107
  %v308 = vunpack.c.l.b16 %v108
  %v309 = vunpack.c.l.b16 %v109
  %v310 = vunpack.c.l.b16 %v110
  %v311 = vunpack.c.l.b16 %v111
  %v312 = vunpack.c.l.b16 %v112
  %v313 = vunpack.c.l.b16 %v113
  %v314 = vunpack.c.l.b16 %v114
  %v315 = vunpack.c.l.b16 %v115
  %v316 = vunpack.c.l.b16 %v116
  %v317 = vunpack.c.l.b16 %v117
  %v318 = vunpack.c.l.b16 %v118
  %v319 = vunpack.c.l.b16 %v119
  %v320 = vunpack.c.l.b16 %v120
  %v321 = vunpack.c.l.b16 %v121
  %v322 = vunpack.c.l.b16 %v122
  %v323 = vunpack.c.l.b16 %v123
  %v324 = vunpack.c.l.b16 %v124
  %v325 = vunpack.c.l.b16 %v125
  %v326 = vunpack.c.l.b16 %v126
  %v327 = vunpack.c.l.b16 %v127
  %v328 = vunpack.c.l.b16 %v128
  %v329 = vunpack.c.l.b16 %v129
  %v330 = vunpack.c.l.b16 %v130
  %v331 = vpack.c.b16 %v232, %v231
  %v332 = vpack.c.b16 %v234, %v233
  %v333 = vpack.c.b16 %v236, %v235
  %v334 = vpack.c.b16 %v238, %v237
  %v335 = vpack.c.b16 %v240, %v239
  %v336 = vpack.c.b16 %v242, %v241
  %v337 = vpack.c.b16 %v244, %v243
  %v338 = vpack.c.b16 %v246, %v245
  %v339 = vpack.c.b16 %v248, %v247
  %v340 = vpack.c.b16 %v250, %v249
  %v341 = vpack.c.b16 %v252, %v251
  %v342 = vpack.c.b16 %v254, %v253
  %v343 = vpack.c.b16 %v256, %v255
  %v344 = vpack.c.b16 %v258, %v257
  %v345 = vpack.c.b16 %v260, %v259
  %v346 = vpack.c.b16 %v262, %v261
  %v347 = vpack.c.b16 %v264, %v263
  %v348 = vpack.c.b16 %v266, %v265
  %v349 = vpack.c.b16 %v268, %v267
  %v350 = vpack.c.b16 %v270, %v269
  %v351 = vpack.c.b16 %v272, %v271
  %v352 = vpack.c.b16 %v274, %v273
  %v353 = vpack.c.b16 %v276, %v275
  %v354 = vpack.c.b16 %v278, %v277
  %v355 = vpack.c.b16 %v280, %v279
  %v356 = vpack.c.b16 %v282, %v281
  %v357 = vpack.c.b16 %v284, %v283
  %v358 = vpack.c.b16 %v286, %v285
  %v359 = vpack.c.b16 %v288, %v287
  %v360 = vpack.c.b16 %v290, %v289
  %v361 = vpack.c.b16 %v292, %v291
  %v362 = vpack.c.b16 %v294, %v293
  %v363 = vpack.c.b16 %v296, %v295
  %v364 = vpack.c.b16 %v298, %v297
  %v365 = vpack.c.b16 %v300, %v299
  %v366 = vpack.c.b16 %v302, %v301
  %v367 = vpack.c.b16 %v304, %v303
  %v368 = vpack.c.b16 %v306, %v305
  %v369 = vpack.c.b16 %v308, %v307
  %v370 = vpack.c.b16 %v310, %v309
  %v371 = vpack.c.b16 %v312, %v311
  %v372 = vpack.c.b16 %v314, %v313
  %v373 = vpack.c.b16 %v316, %v315
  %v374 = vpack.c.b16 %v318, %v317
  %v375 = vpack.c.b16 %v320, %v319
  %v376 = vpack.c.b16 %v322, %v321
  %v377 = vpack.c.b16 %v324, %v323
  %v378 = vpack.c.b16 %v326, %v325
  %v379 = vpack.c.b16 %v328, %v327
  %v380 = vpack.c.b16 %v330, %v329
  %v447 = vunpack.c.l.b16 %v15
  %v448 = vunpack.c.l.b16 %v16
  %v449 = vunpack.c.l.b16 %v17
  %v450 = vunpack.c.l.b16 %v18
  %v451 = vunpack.c.l.b16 %v19
  %v452 = vunpack.c.l.b16 %v20
  %v453 = vunpack.c.l.b16 %v21
  %v454 = vunpack.c.l.b16 %v22
  %v455 = vunpack.c.l.b16 %v23
  %v456 = vunpack.c.l.b16 %v24
  %v457 = vunpack.c.l.b16 %v25
  %v458 = vunpack.c.l.b16 %v26
  %v459 = vunpack.c.l.b16 %v27
  %v460 = vunpack.c.l.b16 %v28
  %v461 = vunpack.c.l.b16 %v29
  %v462 = vunpack.c.l.b16 %v30
  %v463 = vpack.c.b16 %v448, %v447
  %v464 = vpack.c.b16 %v450, %v449
  %v465 = vpack.c.b16 %v452, %v451
  %v466 = vpack.c.b16 %v454, %v453
  %v467 = vpack.c.b16 %v456, %v455
  %v468 = vpack.c.b16 %v458, %v457
  %v469 = vpack.c.b16 %v460, %v459
  %v470 = vpack.c.b16 %v462, %v461
  %479 = vmatprep.subr.bf16.mxu0 0
  %480 = vmatpush1.bf16.msra.mxu0 %v463
  %481 = vmatprep.subr.bf16.mxu0 0
  %482 = vmatpush1.bf16.msra.mxu0 %v464
  %483 = vmatprep.subr.bf16.mxu0 0
  %484 = vmatpush1.bf16.msra.mxu0 %v465
  %485 = vmatprep.subr.bf16.mxu0 0
  %486 = vmatpush1.bf16.msra.mxu0 %v466
  %487 = vmatprep.subr.bf16.mxu0 0
  %488 = vmatpush1.bf16.msra.mxu0 %v467
  %489 = vmatprep.subr.bf16.mxu0 0
  %490 = vmatpush1.bf16.msra.mxu0 %v468
  %491 = vmatprep.subr.bf16.mxu0 0
  %492 = vmatpush1.bf16.msra.mxu0 %v469
  %493 = vmatprep.subr.bf16.mxu0 0
  %494 = vmatpush1.bf16.msra.mxu0 %v470
  %495 = vmatprep.subr.bf16.mxu0 0
  %496 = vmatpush1.bf16.msra.mxu0 0
  %497 = vmatprep.subr.bf16.mxu0 0
  %498 = vmatpush1.bf16.msra.mxu0 0
  %499 = vmatprep.subr.bf16.mxu0 0
  %500 = vmatpush1.bf16.msra.mxu0 0
  %501 = vmatprep.subr.bf16.mxu0 0
  %502 = vmatpush1.bf16.msra.mxu0 0
  %503 = vmatprep.subr.bf16.mxu0 0
  %504 = vmatpush1.bf16.msra.mxu0 0
  %505 = vmatprep.subr.bf16.mxu0 0
  %506 = vmatpush1.bf16.msra.mxu0 0
  %507 = vmatprep.subr.bf16.mxu0 0
  %508 = vmatpush1.bf16.msra.mxu0 0
  %509 = vmatprep.subr.bf16.mxu0 0
  %510 = vmatpush1.bf16.msra.mxu0 0
  %511 = vmatprep.mubr.bf16.mxu0 0
  %512 = vmatmul.mubr.bf16.gmra.mrb[0].mxu0 %v331
  %v513 = vpop.f32.mrb[0].mxu0
  %v514 = vadd.f32 0.0, %v513
  %v515 = vpop.f32.mrb[0].mxu0
  %v516 = vpop.f32.mrb[0].mxu0
  %v517 = vadd.f32 0.0, %v516
  %v518 = vpop.f32.mrb[0].mxu0
  %519 = vmatprep.mubr.bf16.mxu0 0
  %520 = vmatmul.mubr.bf16.gmra.mrb[0].mxu0 %v332
  %v521 = vpop.f32.mrb[0].mxu0
  %v522 = vadd.f32 0.0, %v521
  %v523 = vpop.f32.mrb[0].mxu0
  %v524 = vpop.f32.mrb[0].mxu0
  %v525 = vadd.f32 0.0, %v524
  %v526 = vpop.f32.mrb[0].mxu0
  %527 = vmatprep.mubr.bf16.mxu0 0
  %528 = vmatmul.mubr.bf16.gmra.mrb[0].mxu0 %v333
  %v529 = vpop.f32.mrb[0].mxu0
  %v530 = vadd.f32 0.0, %v529
  %v531 = vpop.f32.mrb[0].mxu0
  %v532 = vpop.f32.mrb[0].mxu0
  %v533 = vadd.f32 0.0, %v532
  %v534 = vpop.f32.mrb[0].mxu0
  %535 = vmatprep.mubr.bf16.mxu0 0
  %536 = vmatmul.mubr.bf16.gmra.mrb[0].mxu0 %v334
  %v537 = vpop.f32.mrb[0].mxu0
  %v538 = vadd.f32 0.0, %v537
  %v539 = vpop.f32.mrb[0].mxu0
  %v540 = vpop.f32.mrb[0].mxu0
  %v541 = vadd.f32 0.0, %v540
  %v542 = vpop.f32.mrb[0].mxu0
  %543 = vmatprep.mubr.bf16.mxu0 0
  %544 = vmatmul.mubr.bf16.gmra.mrb[0].mxu0 %v335
  %v545 = vpop.f32.mrb[0].mxu0
  %v546 = vadd.f32 0.0, %v545
  %v547 = vpop.f32.mrb[0].mxu0
  %v548 = vpop.f32.mrb[0].mxu0
  %v549 = vadd.f32 0.0, %v548
  %v550 = vpop.f32.mrb[0].mxu0
  %551 = vmatprep.mubr.bf16.mxu0 0
  %552 = vmatmul.mubr.bf16.gmra.mrb[0].mxu0 %v336
  %v553 = vpop.f32.mrb[0].mxu0
  %v554 = vadd.f32 0.0, %v553
  %v555 = vpop.f32.mrb[0].mxu0
  %v556 = vpop.f32.mrb[0].mxu0
  %v557 = vadd.f32 0.0, %v556
  %v558 = vpop.f32.mrb[0].mxu0
  %559 = vmatprep.mubr.bf16.mxu0 0
  %560 = vmatmul.mubr.bf16.gmra.mrb[0].mxu0 %v337
  %v561 = vpop.f32.mrb[0].mxu0
  %v562 = vadd.f32 0.0, %v561
  %v563 = vpop.f32.mrb[0].mxu0
  %v564 = vpop.f32.mrb[0].mxu0
  %v565 = vadd.f32 0.0, %v564
  %v566 = vpop.f32.mrb[0].mxu0
  %567 = vmatprep.mubr.bf16.mxu0 0
  %568 = vmatmul.mubr.bf16.gmra.mrb[0].mxu0 %v338
  %v569 = vpop.f32.mrb[0].mxu0
  %v570 = vadd.f32 0.0, %v569
  %v571 = vpop.f32.mrb[0].mxu0
  %v572 = vpop.f32.mrb[0].mxu0
  %v573 = vadd.f32 0.0, %v572
  %v574 = vpop.f32.mrb[0].mxu0
  %575 = vmatprep.mubr.bf16.mxu0 0
  %576 = vmatmul.mubr.bf16.gmra.mrb[0].mxu0 %v339
  %v577 = vpop.f32.mrb[0].mxu0
  %v578 = vadd.f32 0.0, %v577
  %v579 = vpop.f32.mrb[0].mxu0
  %v580 = vpop.f32.mrb[0].mxu0
  %v581 = vadd.f32 0.0, %v580
  %v582 = vpop.f32.mrb[0].mxu0
  %583 = vmatprep.mubr.bf16.mxu0 0
  %584 = vmatmul.mubr.bf16.gmra.mrb[0].mxu0 %v340
  %v585 = vpop.f32.mrb[0].mxu0
  %v586 = vadd.f32 0.0, %v585
  %v587 = vpop.f32.mrb[0].mxu0
  %v588 = vpop.f32.mrb[0].mxu0
  %v589 = vadd.f32 0.0, %v588
  %v590 = vpop.f32.mrb[0].mxu0
  %591 = vmatprep.mubr.bf16.mxu0 0
  %592 = vmatmul.mubr.bf16.gmra.mrb[0].mxu0 %v341
  %v593 = vpop.f32.mrb[0].mxu0
  %v594 = vadd.f32 0.0, %v593
  %v595 = vpop.f32.mrb[0].mxu0
  %v596 = vpop.f32.mrb[0].mxu0
  %v597 = vadd.f32 0.0, %v596
  %v598 = vpop.f32.mrb[0].mxu0
  %599 = vmatprep.mubr.bf16.mxu0 0
  %600 = vmatmul.mubr.bf16.gmra.mrb[0].mxu0 %v342
  %v601 = vpop.f32.mrb[0].mxu0
  %v602 = vadd.f32 0.0, %v601
  %v603 = vpop.f32.mrb[0].mxu0
  %v604 = vpop.f32.mrb[0].mxu0
  %v605 = vadd.f32 0.0, %v604
  %v606 = vpop.f32.mrb[0].mxu0
  %607 = vmatprep.mubr.bf16.mxu0 0
  %608 = vmatmul.mubr.bf16.gmra.mrb[0].mxu0 %v343
  %v609 = vpop.f32.mrb[0].mxu0
  %v610 = vadd.f32 0.0, %v609
  %v611 = vpop.f32.mrb[0].mxu0
  %v612 = vpop.f32.mrb[0].mxu0
  %v613 = vadd.f32 0.0, %v612
  %v614 = vpop.f32.mrb[0].mxu0
  %615 = vmatprep.mubr.bf16.mxu0 0
  %616 = vmatmul.mubr.bf16.gmra.mrb[0].mxu0 %v344
  %v617 = vpop.f32.mrb[0].mxu0
  %v618 = vadd.f32 0.0, %v617
  %v619 = vpop.f32.mrb[0].mxu0
  %v620 = vpop.f32.mrb[0].mxu0
  %v621 = vadd.f32 0.0, %v620
  %v622 = vpop.f32.mrb[0].mxu0
  %623 = vmatprep.mubr.bf16.mxu0 0
  %624 = vmatmul.mubr.bf16.gmra.mrb[0].mxu0 %v345
  %v625 = vpop.f32.mrb[0].mxu0
  %v626 = vadd.f32 0.0, %v625
  %v627 = vpop.f32.mrb[0].mxu0
  %v628 = vpop.f32.mrb[0].mxu0
  %v629 = vadd.f32 0.0, %v628
  %v630 = vpop.f32.mrb[0].mxu0
  %631 = vmatprep.mubr.bf16.mxu0 0
  %632 = vmatmul.mubr.bf16.gmra.mrb[0].mxu0 %v346
  %v633 = vpop.f32.mrb[0].mxu0
  %v634 = vadd.f32 0.0, %v633
  %v635 = vpop.f32.mrb[0].mxu0
  %v636 = vpop.f32.mrb[0].mxu0
  %v637 = vadd.f32 0.0, %v636
  %v638 = vpop.f32.mrb[0].mxu0
  %639 = vmatprep.mubr.bf16.mxu0 0
  %640 = vmatmul.mubr.bf16.gmra.mrb[0].mxu0 %v347
  %v641 = vpop.f32.mrb[0].mxu0
  %v642 = vadd.f32 0.0, %v641
  %v643 = vpop.f32.mrb[0].mxu0
  %v644 = vpop.f32.mrb[0].mxu0
  %v645 = vadd.f32 0.0, %v644
  %v646 = vpop.f32.mrb[0].mxu0
  %647 = vmatprep.mubr.bf16.mxu0 0
  %648 = vmatmul.mubr.bf16.gmra.mrb[0].mxu0 %v348
  %v649 = vpop.f32.mrb[0].mxu0
  %v650 = vadd.f32 0.0, %v649
  %v651 = vpop.f32.mrb[0].mxu0
  %v652 = vpop.f32.mrb[0].mxu0
  %v653 = vadd.f32 0.0, %v652
  %v654 = vpop.f32.mrb[0].mxu0
  %655 = vmatprep.mubr.bf16.mxu0 0
  %656 = vmatmul.mubr.bf16.gmra.mrb[0].mxu0 %v349
  %v657 = vpop.f32.mrb[0].mxu0
  %v658 = vadd.f32 0.0, %v657
  %v659 = vpop.f32.mrb[0].mxu0
  %v660 = vpop.f32.mrb[0].mxu0
  %v661 = vadd.f32 0.0, %v660
  %v662 = vpop.f32.mrb[0].mxu0
  %663 = vmatprep.mubr.bf16.mxu0 0
  %664 = vmatmul.mubr.bf16.gmra.mrb[0].mxu0 %v350
  %v665 = vpop.f32.mrb[0].mxu0
  %v666 = vadd.f32 0.0, %v665
  %v667 = vpop.f32.mrb[0].mxu0
  %v668 = vpop.f32.mrb[0].mxu0
  %v669 = vadd.f32 0.0, %v668
  %v670 = vpop.f32.mrb[0].mxu0
  %671 = vmatprep.mubr.bf16.mxu0 0
  %672 = vmatmul.mubr.bf16.gmra.mrb[0].mxu0 %v351
  %v673 = vpop.f32.mrb[0].mxu0
  %v674 = vadd.f32 0.0, %v673
  %v675 = vpop.f32.mrb[0].mxu0
  %v676 = vpop.f32.mrb[0].mxu0
  %v677 = vadd.f32 0.0, %v676
  %v678 = vpop.f32.mrb[0].mxu0
  %679 = vmatprep.mubr.bf16.mxu0 0
  %680 = vmatmul.mubr.bf16.gmra.mrb[0].mxu0 %v352
  %v681 = vpop.f32.mrb[0].mxu0
  %v682 = vadd.f32 0.0, %v681
  %v683 = vpop.f32.mrb[0].mxu0
  %v684 = vpop.f32.mrb[0].mxu0
  %v685 = vadd.f32 0.0, %v684
  %v686 = vpop.f32.mrb[0].mxu0
  %687 = vmatprep.mubr.bf16.mxu0 0
  %688 = vmatmul.mubr.bf16.gmra.mrb[0].mxu0 %v353
  %v689 = vpop.f32.mrb[0].mxu0
  %v690 = vadd.f32 0.0, %v689
  %v691 = vpop.f32.mrb[0].mxu0
  %v692 = vpop.f32.mrb[0].mxu0
  %v693 = vadd.f32 0.0, %v692
  %v694 = vpop.f32.mrb[0].mxu0
  %695 = vmatprep.mubr.bf16.mxu0 0
  %696 = vmatmul.mubr.bf16.gmra.mrb[0].mxu0 %v354
  %v697 = vpop.f32.mrb[0].mxu0
  %v698 = vadd.f32 0.0, %v697
  %v699 = vpop.f32.mrb[0].mxu0
  %v700 = vpop.f32.mrb[0].mxu0
  %v701 = vadd.f32 0.0, %v700
  %v702 = vpop.f32.mrb[0].mxu0
  %703 = vmatprep.mubr.bf16.mxu0 0
  %704 = vmatmul.mubr.bf16.gmra.mrb[0].mxu0 %v355
  %v705 = vpop.f32.mrb[0].mxu0
  %v706 = vadd.f32 0.0, %v705
  %v707 = vpop.f32.mrb[0].mxu0
  %v708 = vpop.f32.mrb[0].mxu0
  %v709 = vadd.f32 0.0, %v708
  %v710 = vpop.f32.mrb[0].mxu0
  %711 = vmatprep.mubr.bf16.mxu0 0
  %712 = vmatmul.mubr.bf16.gmra.mrb[0].mxu0 %v356
  %v713 = vpop.f32.mrb[0].mxu0
  %v714 = vadd.f32 0.0, %v713
  %v715 = vpop.f32.mrb[0].mxu0
  %v716 = vpop.f32.mrb[0].mxu0
  %v717 = vadd.f32 0.0, %v716
  %v718 = vpop.f32.mrb[0].mxu0
  %719 = vmatprep.mubr.bf16.mxu0 0
  %720 = vmatmul.mubr.bf16.gmra.mrb[0].mxu0 %v357
  %v721 = vpop.f32.mrb[0].mxu0
  %v722 = vadd.f32 0.0, %v721
  %v723 = vpop.f32.mrb[0].mxu0
  %v724 = vpop.f32.mrb[0].mxu0
  %v725 = vadd.f32 0.0, %v724
  %v726 = vpop.f32.mrb[0].mxu0
  %727 = vmatprep.mubr.bf16.mxu0 0
  %728 = vmatmul.mubr.bf16.gmra.mrb[0].mxu0 %v358
  %v729 = vpop.f32.mrb[0].mxu0
  %v730 = vadd.f32 0.0, %v729
  %v731 = vpop.f32.mrb[0].mxu0
  %v732 = vpop.f32.mrb[0].mxu0
  %v733 = vadd.f32 0.0, %v732
  %v734 = vpop.f32.mrb[0].mxu0
  %735 = vmatprep.mubr.bf16.mxu0 0
  %736 = vmatmul.mubr.bf16.gmra.mrb[0].mxu0 %v359
  %v737 = vpop.f32.mrb[0].mxu0
  %v738 = vadd.f32 0.0, %v737
  %v739 = vpop.f32.mrb[0].mxu0
  %v740 = vpop.f32.mrb[0].mxu0
  %v741 = vadd.f32 0.0, %v740
  %v742 = vpop.f32.mrb[0].mxu0
  %743 = vmatprep.mubr.bf16.mxu0 0
  %744 = vmatmul.mubr.bf16.gmra.mrb[0].mxu0 %v360
  %v745 = vpop.f32.mrb[0].mxu0
  %v746 = vadd.f32 0.0, %v745
  %v747 = vpop.f32.mrb[0].mxu0
  %v748 = vpop.f32.mrb[0].mxu0
  %v749 = vadd.f32 0.0, %v748
  %v750 = vpop.f32.mrb[0].mxu0
  %751 = vmatprep.mubr.bf16.mxu0 0
  %752 = vmatmul.mubr.bf16.gmra.mrb[0].mxu0 %v361
  %v753 = vpop.f32.mrb[0].mxu0
  %v754 = vadd.f32 0.0, %v753
  %v755 = vpop.f32.mrb[0].mxu0
  %v756 = vpop.f32.mrb[0].mxu0
  %v757 = vadd.f32 0.0, %v756
  %v758 = vpop.f32.mrb[0].mxu0
  %759 = vmatprep.mubr.bf16.mxu0 0
  %760 = vmatmul.mubr.bf16.gmra.mrb[0].mxu0 %v362
  %v761 = vpop.f32.mrb[0].mxu0
  %v762 = vadd.f32 0.0, %v761
  %v763 = vpop.f32.mrb[0].mxu0
  %v764 = vpop.f32.mrb[0].mxu0
  %v765 = vadd.f32 0.0, %v764
  %v766 = vpop.f32.mrb[0].mxu0
  %767 = vmatprep.mubr.bf16.mxu0 0
  %768 = vmatmul.mubr.bf16.gmra.mrb[0].mxu0 %v363
  %v769 = vpop.f32.mrb[0].mxu0
  %v770 = vadd.f32 0.0, %v769
  %v771 = vpop.f32.mrb[0].mxu0
  %v772 = vpop.f32.mrb[0].mxu0
  %v773 = vadd.f32 0.0, %v772
  %v774 = vpop.f32.mrb[0].mxu0
  %775 = vmatprep.mubr.bf16.mxu0 0
  %776 = vmatmul.mubr.bf16.gmra.mrb[0].mxu0 %v364
  %v777 = vpop.f32.mrb[0].mxu0
  %v778 = vadd.f32 0.0, %v777
  %v779 = vpop.f32.mrb[0].mxu0
  %v780 = vpop.f32.mrb[0].mxu0
  %v781 = vadd.f32 0.0, %v780
  %v782 = vpop.f32.mrb[0].mxu0
  %783 = vmatprep.mubr.bf16.mxu0 0
  %784 = vmatmul.mubr.bf16.gmra.mrb[0].mxu0 %v365
  %v785 = vpop.f32.mrb[0].mxu0
  %v786 = vadd.f32 0.0, %v785
  %v787 = vpop.f32.mrb[0].mxu0
  %v788 = vpop.f32.mrb[0].mxu0
  %v789 = vadd.f32 0.0, %v788
  %v790 = vpop.f32.mrb[0].mxu0
  %791 = vmatprep.mubr.bf16.mxu0 0
  %792 = vmatmul.mubr.bf16.gmra.mrb[0].mxu0 %v366
  %v793 = vpop.f32.mrb[0].mxu0
  %v794 = vadd.f32 0.0, %v793
  %v795 = vpop.f32.mrb[0].mxu0
  %v796 = vpop.f32.mrb[0].mxu0
  %v797 = vadd.f32 0.0, %v796
  %v798 = vpop.f32.mrb[0].mxu0
  %799 = vmatprep.mubr.bf16.mxu0 0
  %800 = vmatmul.mubr.bf16.gmra.mrb[0].mxu0 %v367
  %v801 = vpop.f32.mrb[0].mxu0
  %v802 = vadd.f32 0.0, %v801
  %v803 = vpop.f32.mrb[0].mxu0
  %v804 = vpop.f32.mrb[0].mxu0
  %v805 = vadd.f32 0.0, %v804
  %v806 = vpop.f32.mrb[0].mxu0
  %807 = vmatprep.mubr.bf16.mxu0 0
  %808 = vmatmul.mubr.bf16.gmra.mrb[0].mxu0 %v368
  %v809 = vpop.f32.mrb[0].mxu0
  %v810 = vadd.f32 0.0, %v809
  %v811 = vpop.f32.mrb[0].mxu0
  %v812 = vpop.f32.mrb[0].mxu0
  %v813 = vadd.f32 0.0, %v812
  %v814 = vpop.f32.mrb[0].mxu0
  %815 = vmatprep.mubr.bf16.mxu0 0
  %816 = vmatmul.mubr.bf16.gmra.mrb[0].mxu0 %v369
  %v817 = vpop.f32.mrb[0].mxu0
  %v818 = vadd.f32 0.0, %v817
  %v819 = vpop.f32.mrb[0].mxu0
  %v820 = vpop.f32.mrb[0].mxu0
  %v821 = vadd.f32 0.0, %v820
  %v822 = vpop.f32.mrb[0].mxu0
  %823 = vmatprep.mubr.bf16.mxu0 0
  %824 = vmatmul.mubr.bf16.gmra.mrb[0].mxu0 %v370
  %v825 = vpop.f32.mrb[0].mxu0
  %v826 = vadd.f32 0.0, %v825
  %v827 = vpop.f32.mrb[0].mxu0
  %v828 = vpop.f32.mrb[0].mxu0
  %v829 = vadd.f32 0.0, %v828
  %v830 = vpop.f32.mrb[0].mxu0
  %831 = vmatprep.mubr.bf16.mxu0 0
  %832 = vmatmul.mubr.bf16.gmra.mrb[0].mxu0 %v371
  %v833 = vpop.f32.mrb[0].mxu0
  %v834 = vadd.f32 0.0, %v833
  %v835 = vpop.f32.mrb[0].mxu0
  %v836 = vpop.f32.mrb[0].mxu0
  %v837 = vadd.f32 0.0, %v836
  %v838 = vpop.f32.mrb[0].mxu0
  %839 = vmatprep.mubr.bf16.mxu0 0
  %840 = vmatmul.mubr.bf16.gmra.mrb[0].mxu0 %v372
  %v841 = vpop.f32.mrb[0].mxu0
  %v842 = vadd.f32 0.0, %v841
  %v843 = vpop.f32.mrb[0].mxu0
  %v844 = vpop.f32.mrb[0].mxu0
  %v845 = vadd.f32 0.0, %v844
  %v846 = vpop.f32.mrb[0].mxu0
  %847 = vmatprep.mubr.bf16.mxu0 0
  %848 = vmatmul.mubr.bf16.gmra.mrb[0].mxu0 %v373
  %v849 = vpop.f32.mrb[0].mxu0
  %v850 = vadd.f32 0.0, %v849
  %v851 = vpop.f32.mrb[0].mxu0
  %v852 = vpop.f32.mrb[0].mxu0
  %v853 = vadd.f32 0.0, %v852
  %v854 = vpop.f32.mrb[0].mxu0
  %855 = vmatprep.mubr.bf16.mxu0 0
  %856 = vmatmul.mubr.bf16.gmra.mrb[0].mxu0 %v374
  %v857 = vpop.f32.mrb[0].mxu0
  %v858 = vadd.f32 0.0, %v857
  %v859 = vpop.f32.mrb[0].mxu0
  %v860 = vpop.f32.mrb[0].mxu0
  %v861 = vadd.f32 0.0, %v860
  %v862 = vpop.f32.mrb[0].mxu0
  %863 = vmatprep.mubr.bf16.mxu0 0
  %864 = vmatmul.mubr.bf16.gmra.mrb[0].mxu0 %v375
  %v865 = vpop.f32.mrb[0].mxu0
  %v866 = vadd.f32 0.0, %v865
  %v867 = vpop.f32.mrb[0].mxu0
  %v868 = vpop.f32.mrb[0].mxu0
  %v869 = vadd.f32 0.0, %v868
  %v870 = vpop.f32.mrb[0].mxu0
  %871 = vmatprep.mubr.bf16.mxu0 0
  %872 = vmatmul.mubr.bf16.gmra.mrb[0].mxu0 %v376
  %v873 = vpop.f32.mrb[0].mxu0
  %v874 = vadd.f32 0.0, %v873
  %v875 = vpop.f32.mrb[0].mxu0
  %v876 = vpop.f32.mrb[0].mxu0
  %v877 = vadd.f32 0.0, %v876
  %v878 = vpop.f32.mrb[0].mxu0
  %879 = vmatprep.mubr.bf16.mxu0 0
  %880 = vmatmul.mubr.bf16.gmra.mrb[0].mxu0 %v377
  %v881 = vpop.f32.mrb[0].mxu0
  %v882 = vadd.f32 0.0, %v881
  %v883 = vpop.f32.mrb[0].mxu0
  %v884 = vpop.f32.mrb[0].mxu0
  %v885 = vadd.f32 0.0, %v884
  %v886 = vpop.f32.mrb[0].mxu0
  %887 = vmatprep.mubr.bf16.mxu0 0
  %888 = vmatmul.mubr.bf16.gmra.mrb[0].mxu0 %v378
  %v889 = vpop.f32.mrb[0].mxu0
  %v890 = vadd.f32 0.0, %v889
  %v891 = vpop.f32.mrb[0].mxu0
  %v892 = vpop.f32.mrb[0].mxu0
  %v893 = vadd.f32 0.0, %v892
  %v894 = vpop.f32.mrb[0].mxu0
  %895 = vmatprep.mubr.bf16.mxu0 0
  %896 = vmatmul.mubr.bf16.gmra.mrb[0].mxu0 %v379
  %v897 = vpop.f32.mrb[0].mxu0
  %v898 = vadd.f32 0.0, %v897
  %v899 = vpop.f32.mrb[0].mxu0
  %v900 = vpop.f32.mrb[0].mxu0
  %v901 = vadd.f32 0.0, %v900
  %v902 = vpop.f32.mrb[0].mxu0
  %903 = vmatprep.mubr.bf16.mxu0 0
  %904 = vmatmul.mubr.bf16.gmra.mrb[0].mxu0 %v380
  %v905 = vpop.f32.mrb[0].mxu0
  %v906 = vadd.f32 0.0, %v905
  %v907 = vpop.f32.mrb[0].mxu0
  %v908 = vpop.f32.mrb[0].mxu0
  %v909 = vadd.f32 0.0, %v908
  %v910 = vpop.f32.mrb[0].mxu0
  %911 = vdwg.mxu0
  %s912 = scalar_lea.vmem %s0, 400
  %v913 = vld [vmem:[%s912] sm:$0xf]
  %v914 = vld [vmem:[%s912 + $0x4] sm:$0xf]
  %v915 = vld [vmem:[%s912 + $0x8] sm:$0xf]
  %v916 = vld [vmem:[%s912 + $0xc] sm:$0xf]
  %v917 = vld [vmem:[%s912 + $0x10] sm:$0xf]
  %v918 = vld [vmem:[%s912 + $0x14] sm:$0xf]
  %v919 = vld [vmem:[%s912 + $0x18] sm:$0xf]
  %v920 = vld [vmem:[%s912 + $0x1c] sm:$0xf]
  %v921 = vld [vmem:[%s912 + $0x20] sm:$0xf]
  %v922 = vld [vmem:[%s912 + $0x24] sm:$0xf]
  %v923 = vld [vmem:[%s912 + $0x28] sm:$0xf]
  %v924 = vld [vmem:[%s912 + $0x2c] sm:$0xf]
  %v925 = vld [vmem:[%s912 + $0x30] sm:$0xf]
  %v926 = vld [vmem:[%s912 + $0x34] sm:$0xf]
  %v927 = vld [vmem:[%s912 + $0x38] sm:$0xf]
  %v928 = vld [vmem:[%s912 + $0x3c] sm:$0xf]
  %v929 = vld [vmem:[%s912 + $0x40] sm:$0xf]
  %v930 = vld [vmem:[%s912 + $0x44] sm:$0xf]
  %v931 = vld [vmem:[%s912 + $0x48] sm:$0xf]
  %v932 = vld [vmem:[%s912 + $0x4c] sm:$0xf]
  %v933 = vld [vmem:[%s912 + $0x50] sm:$0xf]
  %v934 = vld [vmem:[%s912 + $0x54] sm:$0xf]
  %v935 = vld [vmem:[%s912 + $0x58] sm:$0xf]
  %v936 = vld [vmem:[%s912 + $0x5c] sm:$0xf]
  %v937 = vld [vmem:[%s912 + $0x60] sm:$0xf]
  %v938 = vld [vmem:[%s912 + $0x64] sm:$0xf]
  %v939 = vld [vmem:[%s912 + $0x68] sm:$0xf]
  %v940 = vld [vmem:[%s912 + $0x6c] sm:$0xf]
  %v941 = vld [vmem:[%s912 + $0x70] sm:$0xf]
  %v942 = vld [vmem:[%s912 + $0x74] sm:$0xf]
  %v943 = vld [vmem:[%s912 + $0x78] sm:$0xf]
  %v944 = vld [vmem:[%s912 + $0x7c] sm:$0xf]
  %v945 = vld [vmem:[%s912 + $0x80] sm:$0xf]
  %v946 = vld [vmem:[%s912 + $0x84] sm:$0xf]
  %v947 = vld [vmem:[%s912 + $0x88] sm:$0xf]
  %v948 = vld [vmem:[%s912 + $0x8c] sm:$0xf]
  %v949 = vld [vmem:[%s912 + $0x90] sm:$0xf]
  %v950 = vld [vmem:[%s912 + $0x94] sm:$0xf]
  %v951 = vld [vmem:[%s912 + $0x98] sm:$0xf]
  %v952 = vld [vmem:[%s912 + $0x9c] sm:$0xf]
  %v953 = vld [vmem:[%s912 + $0xa0] sm:$0xf]
  %v954 = vld [vmem:[%s912 + $0xa4] sm:$0xf]
  %v955 = vld [vmem:[%s912 + $0xa8] sm:$0xf]
  %v956 = vld [vmem:[%s912 + $0xac] sm:$0xf]
  %v957 = vld [vmem:[%s912 + $0xb0] sm:$0xf]
  %v958 = vld [vmem:[%s912 + $0xb4] sm:$0xf]
  %v959 = vld [vmem:[%s912 + $0xb8] sm:$0xf]
  %v960 = vld [vmem:[%s912 + $0xbc] sm:$0xf]
  %v961 = vld [vmem:[%s912 + $0xc0] sm:$0xf]
  %v962 = vld [vmem:[%s912 + $0xc4] sm:$0xf]
  %v963 = vld [vmem:[%s912 + $0xc8] sm:$0xf]
  %v964 = vld [vmem:[%s912 + $0xcc] sm:$0xf]
  %v965 = vld [vmem:[%s912 + $0xd0] sm:$0xf]
  %v966 = vld [vmem:[%s912 + $0xd4] sm:$0xf]
  %v967 = vld [vmem:[%s912 + $0xd8] sm:$0xf]
  %v968 = vld [vmem:[%s912 + $0xdc] sm:$0xf]
  %v969 = vld [vmem:[%s912 + $0xe0] sm:$0xf]
  %v970 = vld [vmem:[%s912 + $0xe4] sm:$0xf]
  %v971 = vld [vmem:[%s912 + $0xe8] sm:$0xf]
  %v972 = vld [vmem:[%s912 + $0xec] sm:$0xf]
  %v973 = vld [vmem:[%s912 + $0xf0] sm:$0xf]
  %v974 = vld [vmem:[%s912 + $0xf4] sm:$0xf]
  %v975 = vld [vmem:[%s912 + $0xf8] sm:$0xf]
  %v976 = vld [vmem:[%s912 + $0xfc] sm:$0xf]
  %v977 = vld [vmem:[%s912 + $0x100] sm:$0xf]
  %v978 = vld [vmem:[%s912 + $0x104] sm:$0xf]
  %v979 = vld [vmem:[%s912 + $0x108] sm:$0xf]
  %v980 = vld [vmem:[%s912 + $0x10c] sm:$0xf]
  %v981 = vld [vmem:[%s912 + $0x110] sm:$0xf]
  %v982 = vld [vmem:[%s912 + $0x114] sm:$0xf]
  %v983 = vld [vmem:[%s912 + $0x118] sm:$0xf]
  %v984 = vld [vmem:[%s912 + $0x11c] sm:$0xf]
  %v985 = vld [vmem:[%s912 + $0x120] sm:$0xf]
  %v986 = vld [vmem:[%s912 + $0x124] sm:$0xf]
  %v987 = vld [vmem:[%s912 + $0x128] sm:$0xf]
  %v988 = vld [vmem:[%s912 + $0x12c] sm:$0xf]
  %v989 = vld [vmem:[%s912 + $0x130] sm:$0xf]
  %v990 = vld [vmem:[%s912 + $0x134] sm:$0xf]
  %v991 = vld [vmem:[%s912 + $0x138] sm:$0xf]
  %v992 = vld [vmem:[%s912 + $0x13c] sm:$0xf]
  %v993 = vld [vmem:[%s912 + $0x140] sm:$0xf]
  %v994 = vld [vmem:[%s912 + $0x144] sm:$0xf]
  %v995 = vld [vmem:[%s912 + $0x148] sm:$0xf]
  %v996 = vld [vmem:[%s912 + $0x14c] sm:$0xf]
  %v997 = vld [vmem:[%s912 + $0x150] sm:$0xf]
  %v998 = vld [vmem:[%s912 + $0x154] sm:$0xf]
  %v999 = vld [vmem:[%s912 + $0x158] sm:$0xf]
  %v1000 = vld [vmem:[%s912 + $0x15c] sm:$0xf]
  %v1001 = vld [vmem:[%s912 + $0x160] sm:$0xf]
  %v1002 = vld [vmem:[%s912 + $0x164] sm:$0xf]
  %v1003 = vld [vmem:[%s912 + $0x168] sm:$0xf]
  %v1004 = vld [vmem:[%s912 + $0x16c] sm:$0xf]
  %v1005 = vld [vmem:[%s912 + $0x170] sm:$0xf]
  %v1006 = vld [vmem:[%s912 + $0x174] sm:$0xf]
  %v1007 = vld [vmem:[%s912 + $0x178] sm:$0xf]
  %v1008 = vld [vmem:[%s912 + $0x17c] sm:$0xf]
  %v1009 = vld [vmem:[%s912 + $0x180] sm:$0xf]
  %v1010 = vld [vmem:[%s912 + $0x184] sm:$0xf]
  %v1011 = vld [vmem:[%s912 + $0x188] sm:$0xf]
  %v1012 = vld [vmem:[%s912 + $0x18c] sm:$0xf]
  %v1113 = vunpack.c.l.b16 %v913
  %v1114 = vunpack.c.l.b16 %v914
  %v1115 = vunpack.c.l.b16 %v915
  %v1116 = vunpack.c.l.b16 %v916
  %v1117 = vunpack.c.l.b16 %v917
  %v1118 = vunpack.c.l.b16 %v918
  %v1119 = vunpack.c.l.b16 %v919
  %v1120 = vunpack.c.l.b16 %v920
  %v1121 = vunpack.c.l.b16 %v921
  %v1122 = vunpack.c.l.b16 %v922
  %v1123 = vunpack.c.l.b16 %v923
  %v1124 = vunpack.c.l.b16 %v924
  %v1125 = vunpack.c.l.b16 %v925
  %v1126 = vunpack.c.l.b16 %v926
  %v1127 = vunpack.c.l.b16 %v927
  %v1128 = vunpack.c.l.b16 %v928
  %v1129 = vunpack.c.l.b16 %v929
  %v1130 = vunpack.c.l.b16 %v930
  %v1131 = vunpack.c.l.b16 %v931
  %v1132 = vunpack.c.l.b16 %v932
  %v1133 = vunpack.c.l.b16 %v933
  %v1134 = vunpack.c.l.b16 %v934
  %v1135 = vunpack.c.l.b16 %v935
  %v1136 = vunpack.c.l.b16 %v936
  %v1137 = vunpack.c.l.b16 %v937
  %v1138 = vunpack.c.l.b16 %v938
  %v1139 = vunpack.c.l.b16 %v939
  %v1140 = vunpack.c.l.b16 %v940
  %v1141 = vunpack.c.l.b16 %v941
  %v1142 = vunpack.c.l.b16 %v942
  %v1143 = vunpack.c.l.b16 %v943
  %v1144 = vunpack.c.l.b16 %v944
  %v1145 = vunpack.c.l.b16 %v945
  %v1146 = vunpack.c.l.b16 %v946
  %v1147 = vunpack.c.l.b16 %v947
  %v1148 = vunpack.c.l.b16 %v948
  %v1149 = vunpack.c.l.b16 %v949
  %v1150 = vunpack.c.l.b16 %v950
  %v1151 = vunpack.c.l.b16 %v951
  %v1152 = vunpack.c.l.b16 %v952
  %v1153 = vunpack.c.l.b16 %v953
  %v1154 = vunpack.c.l.b16 %v954
  %v1155 = vunpack.c.l.b16 %v955
  %v1156 = vunpack.c.l.b16 %v956
  %v1157 = vunpack.c.l.b16 %v957
  %v1158 = vunpack.c.l.b16 %v958
  %v1159 = vunpack.c.l.b16 %v959
  %v1160 = vunpack.c.l.b16 %v960
  %v1161 = vunpack.c.l.b16 %v961
  %v1162 = vunpack.c.l.b16 %v962
  %v1163 = vunpack.c.l.b16 %v963
  %v1164 = vunpack.c.l.b16 %v964
  %v1165 = vunpack.c.l.b16 %v965
  %v1166 = vunpack.c.l.b16 %v966
  %v1167 = vunpack.c.l.b16 %v967
  %v1168 = vunpack.c.l.b16 %v968
  %v1169 = vunpack.c.l.b16 %v969
  %v1170 = vunpack.c.l.b16 %v970
  %v1171 = vunpack.c.l.b16 %v971
  %v1172 = vunpack.c.l.b16 %v972
  %v1173 = vunpack.c.l.b16 %v973
  %v1174 = vunpack.c.l.b16 %v974
  %v1175 = vunpack.c.l.b16 %v975
  %v1176 = vunpack.c.l.b16 %v976
  %v1177 = vunpack.c.l.b16 %v977
  %v1178 = vunpack.c.l.b16 %v978
  %v1179 = vunpack.c.l.b16 %v979
  %v1180 = vunpack.c.l.b16 %v980
  %v1181 = vunpack.c.l.b16 %v981
  %v1182 = vunpack.c.l.b16 %v982
  %v1183 = vunpack.c.l.b16 %v983
  %v1184 = vunpack.c.l.b16 %v984
  %v1185 = vunpack.c.l.b16 %v985
  %v1186 = vunpack.c.l.b16 %v986
  %v1187 = vunpack.c.l.b16 %v987
  %v1188 = vunpack.c.l.b16 %v988
  %v1189 = vunpack.c.l.b16 %v989
  %v1190 = vunpack.c.l.b16 %v990
  %v1191 = vunpack.c.l.b16 %v991
  %v1192 = vunpack.c.l.b16 %v992
  %v1193 = vunpack.c.l.b16 %v993
  %v1194 = vunpack.c.l.b16 %v994
  %v1195 = vunpack.c.l.b16 %v995
  %v1196 = vunpack.c.l.b16 %v996
  %v1197 = vunpack.c.l.b16 %v997
  %v1198 = vunpack.c.l.b16 %v998
  %v1199 = vunpack.c.l.b16 %v999
  %v1200 = vunpack.c.l.b16 %v1000
  %v1201 = vunpack.c.l.b16 %v1001
  %v1202 = vunpack.c.l.b16 %v1002
  %v1203 = vunpack.c.l.b16 %v1003
  %v1204 = vunpack.c.l.b16 %v1004
  %v1205 = vunpack.c.l.b16 %v1005
  %v1206 = vunpack.c.l.b16 %v1006
  %v1207 = vunpack.c.l.b16 %v1007
  %v1208 = vunpack.c.l.b16 %v1008
  %v1209 = vunpack.c.l.b16 %v1009
  %v1210 = vunpack.c.l.b16 %v1010
  %v1211 = vunpack.c.l.b16 %v1011
  %v1212 = vunpack.c.l.b16 %v1012
  %v1213 = vpack.c.b16 %v1114, %v1113
  %v1214 = vpack.c.b16 %v1116, %v1115
  %v1215 = vpack.c.b16 %v1118, %v1117
  %v1216 = vpack.c.b16 %v1120, %v1119
  %v1217 = vpack.c.b16 %v1122, %v1121
  %v1218 = vpack.c.b16 %v1124, %v1123
  %v1219 = vpack.c.b16 %v1126, %v1125
  %v1220 = vpack.c.b16 %v1128, %v1127
  %v1221 = vpack.c.b16 %v1130, %v1129
  %v1222 = vpack.c.b16 %v1132, %v1131
  %v1223 = vpack.c.b16 %v1134, %v1133
  %v1224 = vpack.c.b16 %v1136, %v1135
  %v1225 = vpack.c.b16 %v1138, %v1137
  %v1226 = vpack.c.b16 %v1140, %v1139
  %v1227 = vpack.c.b16 %v1142, %v1141
  %v1228 = vpack.c.b16 %v1144, %v1143
  %v1229 = vpack.c.b16 %v1146, %v1145
  %v1230 = vpack.c.b16 %v1148, %v1147
  %v1231 = vpack.c.b16 %v1150, %v1149
  %v1232 = vpack.c.b16 %v1152, %v1151
  %v1233 = vpack.c.b16 %v1154, %v1153
  %v1234 = vpack.c.b16 %v1156, %v1155
  %v1235 = vpack.c.b16 %v1158, %v1157
  %v1236 = vpack.c.b16 %v1160, %v1159
  %v1237 = vpack.c.b16 %v1162, %v1161
  %v1238 = vpack.c.b16 %v1164, %v1163
  %v1239 = vpack.c.b16 %v1166, %v1165
  %v1240 = vpack.c.b16 %v1168, %v1167
  %v1241 = vpack.c.b16 %v1170, %v1169
  %v1242 = vpack.c.b16 %v1172, %v1171
  %v1243 = vpack.c.b16 %v1174, %v1173
  %v1244 = vpack.c.b16 %v1176, %v1175
  %v1245 = vpack.c.b16 %v1178, %v1177
  %v1246 = vpack.c.b16 %v1180, %v1179
  %v1247 = vpack.c.b16 %v1182, %v1181
  %v1248 = vpack.c.b16 %v1184, %v1183
  %v1249 = vpack.c.b16 %v1186, %v1185
  %v1250 = vpack.c.b16 %v1188, %v1187
  %v1251 = vpack.c.b16 %v1190, %v1189
  %v1252 = vpack.c.b16 %v1192, %v1191
  %v1253 = vpack.c.b16 %v1194, %v1193
  %v1254 = vpack.c.b16 %v1196, %v1195
  %v1255 = vpack.c.b16 %v1198, %v1197
  %v1256 = vpack.c.b16 %v1200, %v1199
  %v1257 = vpack.c.b16 %v1202, %v1201
  %v1258 = vpack.c.b16 %v1204, %v1203
  %v1259 = vpack.c.b16 %v1206, %v1205
  %v1260 = vpack.c.b16 %v1208, %v1207
  %v1261 = vpack.c.b16 %v1210, %v1209
  %v1262 = vpack.c.b16 %v1212, %v1211
  %1313 = vmatprep.subr.bf16.mxu0 0
  %1314 = vmatpush1.bf16.msra.mxu0 %v463
  %1315 = vmatprep.subr.bf16.mxu0 0
  %1316 = vmatpush1.bf16.msra.mxu0 %v464
  %1317 = vmatprep.subr.bf16.mxu0 0
  %1318 = vmatpush1.bf16.msra.mxu0 %v465
  %1319 = vmatprep.subr.bf16.mxu0 0
  %1320 = vmatpush1.bf16.msra.mxu0 %v466
  %1321 = vmatprep.subr.bf16.mxu0 0
  %1322 = vmatpush1.bf16.msra.mxu0 %v467
  %1323 = vmatprep.subr.bf16.mxu0 0
  %1324 = vmatpush1.bf16.msra.mxu0 %v468
  %1325 = vmatprep.subr.bf16.mxu0 0
  %1326 = vmatpush1.bf16.msra.mxu0 %v469
  %1327 = vmatprep.subr.bf16.mxu0 0
  %1328 = vmatpush1.bf16.msra.mxu0 %v470
  %1329 = vmatprep.subr.bf16.mxu0 0
  %1330 = vmatpush1.bf16.msra.mxu0 0
  %1331 = vmatprep.subr.bf16.mxu0 0
  %1332 = vmatpush1.bf16.msra.mxu0 0
  %1333 = vmatprep.subr.bf16.mxu0 0
  %1334 = vmatpush1.bf16.msra.mxu0 0
  %1335 = vmatprep.subr.bf16.mxu0 0
  %1336 = vmatpush1.bf16.msra.mxu0 0
  %1337 = vmatprep.subr.bf16.mxu0 0
  %1338 = vmatpush1.bf16.msra.mxu0 0
  %1339 = vmatprep.subr.bf16.mxu0 0
  %1340 = vmatpush1.bf16.msra.mxu0 0
  %1341 = vmatprep.subr.bf16.mxu0 0
  %1342 = vmatpush1.bf16.msra.mxu0 0
  %1343 = vmatprep.subr.bf16.mxu0 0
  %1344 = vmatpush1.bf16.msra.mxu0 0
  %1345 = vmatprep.mubr.bf16.mxu0 0
  %1346 = vmatmul.mubr.bf16.gmra.mrb[0].mxu0 %v1213
  %v1347 = vpop.f32.mrb[0].mxu0
  %v1348 = vadd.f32 0.0, %v1347
  %v1349 = vpop.f32.mrb[0].mxu0
  %v1350 = vpop.f32.mrb[0].mxu0
  %v1351 = vadd.f32 0.0, %v1350
  %v1352 = vpop.f32.mrb[0].mxu0
  %1353 = vmatprep.mubr.bf16.mxu0 0
  %1354 = vmatmul.mubr.bf16.gmra.mrb[0].mxu0 %v1214
  %v1355 = vpop.f32.mrb[0].mxu0
  %v1356 = vadd.f32 0.0, %v1355
  %v1357 = vpop.f32.mrb[0].mxu0
  %v1358 = vpop.f32.mrb[0].mxu0
  %v1359 = vadd.f32 0.0, %v1358
  %v1360 = vpop.f32.mrb[0].mxu0
  %1361 = vmatprep.mubr.bf16.mxu0 0
  %1362 = vmatmul.mubr.bf16.gmra.mrb[0].mxu0 %v1215
  %v1363 = vpop.f32.mrb[0].mxu0
  %v1364 = vadd.f32 0.0, %v1363
  %v1365 = vpop.f32.mrb[0].mxu0
  %v1366 = vpop.f32.mrb[0].mxu0
  %v1367 = vadd.f32 0.0, %v1366
  %v1368 = vpop.f32.mrb[0].mxu0
  %1369 = vmatprep.mubr.bf16.mxu0 0
  %1370 = vmatmul.mubr.bf16.gmra.mrb[0].mxu0 %v1216
  %v1371 = vpop.f32.mrb[0].mxu0
  %v1372 = vadd.f32 0.0, %v1371
  %v1373 = vpop.f32.mrb[0].mxu0
  %v1374 = vpop.f32.mrb[0].mxu0
  %v1375 = vadd.f32 0.0, %v1374
  %v1376 = vpop.f32.mrb[0].mxu0
  %1377 = vmatprep.mubr.bf16.mxu0 0
  %1378 = vmatmul.mubr.bf16.gmra.mrb[0].mxu0 %v1217
  %v1379 = vpop.f32.mrb[0].mxu0
  %v1380 = vadd.f32 0.0, %v1379
  %v1381 = vpop.f32.mrb[0].mxu0
  %v1382 = vpop.f32.mrb[0].mxu0
  %v1383 = vadd.f32 0.0, %v1382
  %v1384 = vpop.f32.mrb[0].mxu0
  %1385 = vmatprep.mubr.bf16.mxu0 0
  %1386 = vmatmul.mubr.bf16.gmra.mrb[0].mxu0 %v1218
  %v1387 = vpop.f32.mrb[0].mxu0
  %v1388 = vadd.f32 0.0, %v1387
  %v1389 = vpop.f32.mrb[0].mxu0
  %v1390 = vpop.f32.mrb[0].mxu0
  %v1391 = vadd.f32 0.0, %v1390
  %v1392 = vpop.f32.mrb[0].mxu0
  %1393 = vmatprep.mubr.bf16.mxu0 0
  %1394 = vmatmul.mubr.bf16.gmra.mrb[0].mxu0 %v1219
  %v1395 = vpop.f32.mrb[0].mxu0
  %v1396 = vadd.f32 0.0, %v1395
  %v1397 = vpop.f32.mrb[0].mxu0
  %v1398 = vpop.f32.mrb[0].mxu0
  %v1399 = vadd.f32 0.0, %v1398
  %v1400 = vpop.f32.mrb[0].mxu0
  %1401 = vmatprep.mubr.bf16.mxu0 0
  %1402 = vmatmul.mubr.bf16.gmra.mrb[0].mxu0 %v1220
  %v1403 = vpop.f32.mrb[0].mxu0
  %v1404 = vadd.f32 0.0, %v1403
  %v1405 = vpop.f32.mrb[0].mxu0
  %v1406 = vpop.f32.mrb[0].mxu0
  %v1407 = vadd.f32 0.0, %v1406
  %v1408 = vpop.f32.mrb[0].mxu0
  %1409 = vmatprep.mubr.bf16.mxu0 0
  %1410 = vmatmul.mubr.bf16.gmra.mrb[0].mxu0 %v1221
  %v1411 = vpop.f32.mrb[0].mxu0
  %v1412 = vadd.f32 0.0, %v1411
  %v1413 = vpop.f32.mrb[0].mxu0
  %v1414 = vpop.f32.mrb[0].mxu0
  %v1415 = vadd.f32 0.0, %v1414
  %v1416 = vpop.f32.mrb[0].mxu0
  %1417 = vmatprep.mubr.bf16.mxu0 0
  %1418 = vmatmul.mubr.bf16.gmra.mrb[0].mxu0 %v1222
  %v1419 = vpop.f32.mrb[0].mxu0
  %v1420 = vadd.f32 0.0, %v1419
  %v1421 = vpop.f32.mrb[0].mxu0
  %v1422 = vpop.f32.mrb[0].mxu0
  %v1423 = vadd.f32 0.0, %v1422
  %v1424 = vpop.f32.mrb[0].mxu0
  %1425 = vmatprep.mubr.bf16.mxu0 0
  %1426 = vmatmul.mubr.bf16.gmra.mrb[0].mxu0 %v1223
  %v1427 = vpop.f32.mrb[0].mxu0
  %v1428 = vadd.f32 0.0, %v1427
  %v1429 = vpop.f32.mrb[0].mxu0
  %v1430 = vpop.f32.mrb[0].mxu0
  %v1431 = vadd.f32 0.0, %v1430
  %v1432 = vpop.f32.mrb[0].mxu0
  %1433 = vmatprep.mubr.bf16.mxu0 0
  %1434 = vmatmul.mubr.bf16.gmra.mrb[0].mxu0 %v1224
  %v1435 = vpop.f32.mrb[0].mxu0
  %v1436 = vadd.f32 0.0, %v1435
  %v1437 = vpop.f32.mrb[0].mxu0
  %v1438 = vpop.f32.mrb[0].mxu0
  %v1439 = vadd.f32 0.0, %v1438
  %v1440 = vpop.f32.mrb[0].mxu0
  %1441 = vmatprep.mubr.bf16.mxu0 0
  %1442 = vmatmul.mubr.bf16.gmra.mrb[0].mxu0 %v1225
  %v1443 = vpop.f32.mrb[0].mxu0
  %v1444 = vadd.f32 0.0, %v1443
  %v1445 = vpop.f32.mrb[0].mxu0
  %v1446 = vpop.f32.mrb[0].mxu0
  %v1447 = vadd.f32 0.0, %v1446
  %v1448 = vpop.f32.mrb[0].mxu0
  %1449 = vmatprep.mubr.bf16.mxu0 0
  %1450 = vmatmul.mubr.bf16.gmra.mrb[0].mxu0 %v1226
  %v1451 = vpop.f32.mrb[0].mxu0
  %v1452 = vadd.f32 0.0, %v1451
  %v1453 = vpop.f32.mrb[0].mxu0
  %v1454 = vpop.f32.mrb[0].mxu0
  %v1455 = vadd.f32 0.0, %v1454
  %v1456 = vpop.f32.mrb[0].mxu0
  %1457 = vmatprep.mubr.bf16.mxu0 0
  %1458 = vmatmul.mubr.bf16.gmra.mrb[0].mxu0 %v1227
  %v1459 = vpop.f32.mrb[0].mxu0
  %v1460 = vadd.f32 0.0, %v1459
  %v1461 = vpop.f32.mrb[0].mxu0
  %v1462 = vpop.f32.mrb[0].mxu0
  %v1463 = vadd.f32 0.0, %v1462
  %v1464 = vpop.f32.mrb[0].mxu0
  %1465 = vmatprep.mubr.bf16.mxu0 0
  %1466 = vmatmul.mubr.bf16.gmra.mrb[0].mxu0 %v1228
  %v1467 = vpop.f32.mrb[0].mxu0
  %v1468 = vadd.f32 0.0, %v1467
  %v1469 = vpop.f32.mrb[0].mxu0
  %v1470 = vpop.f32.mrb[0].mxu0
  %v1471 = vadd.f32 0.0, %v1470
  %v1472 = vpop.f32.mrb[0].mxu0
  %1473 = vmatprep.mubr.bf16.mxu0 0
  %1474 = vmatmul.mubr.bf16.gmra.mrb[0].mxu0 %v1229
  %v1475 = vpop.f32.mrb[0].mxu0
  %v1476 = vadd.f32 0.0, %v1475
  %v1477 = vpop.f32.mrb[0].mxu0
  %v1478 = vpop.f32.mrb[0].mxu0
  %v1479 = vadd.f32 0.0, %v1478
  %v1480 = vpop.f32.mrb[0].mxu0
  %1481 = vmatprep.mubr.bf16.mxu0 0
  %1482 = vmatmul.mubr.bf16.gmra.mrb[0].mxu0 %v1230
  %v1483 = vpop.f32.mrb[0].mxu0
  %v1484 = vadd.f32 0.0, %v1483
  %v1485 = vpop.f32.mrb[0].mxu0
  %v1486 = vpop.f32.mrb[0].mxu0
  %v1487 = vadd.f32 0.0, %v1486
  %v1488 = vpop.f32.mrb[0].mxu0
  %1489 = vmatprep.mubr.bf16.mxu0 0
  %1490 = vmatmul.mubr.bf16.gmra.mrb[0].mxu0 %v1231
  %v1491 = vpop.f32.mrb[0].mxu0
  %v1492 = vadd.f32 0.0, %v1491
  %v1493 = vpop.f32.mrb[0].mxu0
  %v1494 = vpop.f32.mrb[0].mxu0
  %v1495 = vadd.f32 0.0, %v1494
  %v1496 = vpop.f32.mrb[0].mxu0
  %1497 = vmatprep.mubr.bf16.mxu0 0
  %1498 = vmatmul.mubr.bf16.gmra.mrb[0].mxu0 %v1232
  %v1499 = vpop.f32.mrb[0].mxu0
  %v1500 = vadd.f32 0.0, %v1499
  %v1501 = vpop.f32.mrb[0].mxu0
  %v1502 = vpop.f32.mrb[0].mxu0
  %v1503 = vadd.f32 0.0, %v1502
  %v1504 = vpop.f32.mrb[0].mxu0
  %1505 = vmatprep.mubr.bf16.mxu0 0
  %1506 = vmatmul.mubr.bf16.gmra.mrb[0].mxu0 %v1233
  %v1507 = vpop.f32.mrb[0].mxu0
  %v1508 = vadd.f32 0.0, %v1507
  %v1509 = vpop.f32.mrb[0].mxu0
  %v1510 = vpop.f32.mrb[0].mxu0
  %v1511 = vadd.f32 0.0, %v1510
  %v1512 = vpop.f32.mrb[0].mxu0
  %1513 = vmatprep.mubr.bf16.mxu0 0
  %1514 = vmatmul.mubr.bf16.gmra.mrb[0].mxu0 %v1234
  %v1515 = vpop.f32.mrb[0].mxu0
  %v1516 = vadd.f32 0.0, %v1515
  %v1517 = vpop.f32.mrb[0].mxu0
  %v1518 = vpop.f32.mrb[0].mxu0
  %v1519 = vadd.f32 0.0, %v1518
  %v1520 = vpop.f32.mrb[0].mxu0
  %1521 = vmatprep.mubr.bf16.mxu0 0
  %1522 = vmatmul.mubr.bf16.gmra.mrb[0].mxu0 %v1235
  %v1523 = vpop.f32.mrb[0].mxu0
  %v1524 = vadd.f32 0.0, %v1523
  %v1525 = vpop.f32.mrb[0].mxu0
  %v1526 = vpop.f32.mrb[0].mxu0
  %v1527 = vadd.f32 0.0, %v1526
  %v1528 = vpop.f32.mrb[0].mxu0
  %1529 = vmatprep.mubr.bf16.mxu0 0
  %1530 = vmatmul.mubr.bf16.gmra.mrb[0].mxu0 %v1236
  %v1531 = vpop.f32.mrb[0].mxu0
  %v1532 = vadd.f32 0.0, %v1531
  %v1533 = vpop.f32.mrb[0].mxu0
  %v1534 = vpop.f32.mrb[0].mxu0
  %v1535 = vadd.f32 0.0, %v1534
  %v1536 = vpop.f32.mrb[0].mxu0
  %1537 = vmatprep.mubr.bf16.mxu0 0
  %1538 = vmatmul.mubr.bf16.gmra.mrb[0].mxu0 %v1237
  %v1539 = vpop.f32.mrb[0].mxu0
  %v1540 = vadd.f32 0.0, %v1539
  %v1541 = vpop.f32.mrb[0].mxu0
  %v1542 = vpop.f32.mrb[0].mxu0
  %v1543 = vadd.f32 0.0, %v1542
  %v1544 = vpop.f32.mrb[0].mxu0
  %1545 = vmatprep.mubr.bf16.mxu0 0
  %1546 = vmatmul.mubr.bf16.gmra.mrb[0].mxu0 %v1238
  %v1547 = vpop.f32.mrb[0].mxu0
  %v1548 = vadd.f32 0.0, %v1547
  %v1549 = vpop.f32.mrb[0].mxu0
  %v1550 = vpop.f32.mrb[0].mxu0
  %v1551 = vadd.f32 0.0, %v1550
  %v1552 = vpop.f32.mrb[0].mxu0
  %1553 = vmatprep.mubr.bf16.mxu0 0
  %1554 = vmatmul.mubr.bf16.gmra.mrb[0].mxu0 %v1239
  %v1555 = vpop.f32.mrb[0].mxu0
  %v1556 = vadd.f32 0.0, %v1555
  %v1557 = vpop.f32.mrb[0].mxu0
  %v1558 = vpop.f32.mrb[0].mxu0
  %v1559 = vadd.f32 0.0, %v1558
  %v1560 = vpop.f32.mrb[0].mxu0
  %1561 = vmatprep.mubr.bf16.mxu0 0
  %1562 = vmatmul.mubr.bf16.gmra.mrb[0].mxu0 %v1240
  %v1563 = vpop.f32.mrb[0].mxu0
  %v1564 = vadd.f32 0.0, %v1563
  %v1565 = vpop.f32.mrb[0].mxu0
  %v1566 = vpop.f32.mrb[0].mxu0
  %v1567 = vadd.f32 0.0, %v1566
  %v1568 = vpop.f32.mrb[0].mxu0
  %1569 = vmatprep.mubr.bf16.mxu0 0
  %1570 = vmatmul.mubr.bf16.gmra.mrb[0].mxu0 %v1241
  %v1571 = vpop.f32.mrb[0].mxu0
  %v1572 = vadd.f32 0.0, %v1571
  %v1573 = vpop.f32.mrb[0].mxu0
  %v1574 = vpop.f32.mrb[0].mxu0
  %v1575 = vadd.f32 0.0, %v1574
  %v1576 = vpop.f32.mrb[0].mxu0
  %1577 = vmatprep.mubr.bf16.mxu0 0
  %1578 = vmatmul.mubr.bf16.gmra.mrb[0].mxu0 %v1242
  %v1579 = vpop.f32.mrb[0].mxu0
  %v1580 = vadd.f32 0.0, %v1579
  %v1581 = vpop.f32.mrb[0].mxu0
  %v1582 = vpop.f32.mrb[0].mxu0
  %v1583 = vadd.f32 0.0, %v1582
  %v1584 = vpop.f32.mrb[0].mxu0
  %1585 = vmatprep.mubr.bf16.mxu0 0
  %1586 = vmatmul.mubr.bf16.gmra.mrb[0].mxu0 %v1243
  %v1587 = vpop.f32.mrb[0].mxu0
  %v1588 = vadd.f32 0.0, %v1587
  %v1589 = vpop.f32.mrb[0].mxu0
  %v1590 = vpop.f32.mrb[0].mxu0
  %v1591 = vadd.f32 0.0, %v1590
  %v1592 = vpop.f32.mrb[0].mxu0
  %1593 = vmatprep.mubr.bf16.mxu0 0
  %1594 = vmatmul.mubr.bf16.gmra.mrb[0].mxu0 %v1244
  %v1595 = vpop.f32.mrb[0].mxu0
  %v1596 = vadd.f32 0.0, %v1595
  %v1597 = vpop.f32.mrb[0].mxu0
  %v1598 = vpop.f32.mrb[0].mxu0
  %v1599 = vadd.f32 0.0, %v1598
  %v1600 = vpop.f32.mrb[0].mxu0
  %1601 = vmatprep.mubr.bf16.mxu0 0
  %1602 = vmatmul.mubr.bf16.gmra.mrb[0].mxu0 %v1245
  %v1603 = vpop.f32.mrb[0].mxu0
  %v1604 = vadd.f32 0.0, %v1603
  %v1605 = vpop.f32.mrb[0].mxu0
  %v1606 = vpop.f32.mrb[0].mxu0
  %v1607 = vadd.f32 0.0, %v1606
  %v1608 = vpop.f32.mrb[0].mxu0
  %1609 = vmatprep.mubr.bf16.mxu0 0
  %1610 = vmatmul.mubr.bf16.gmra.mrb[0].mxu0 %v1246
  %v1611 = vpop.f32.mrb[0].mxu0
  %v1612 = vadd.f32 0.0, %v1611
  %v1613 = vpop.f32.mrb[0].mxu0
  %v1614 = vpop.f32.mrb[0].mxu0
  %v1615 = vadd.f32 0.0, %v1614
  %v1616 = vpop.f32.mrb[0].mxu0
  %1617 = vmatprep.mubr.bf16.mxu0 0
  %1618 = vmatmul.mubr.bf16.gmra.mrb[0].mxu0 %v1247
  %v1619 = vpop.f32.mrb[0].mxu0
  %v1620 = vadd.f32 0.0, %v1619
  %v1621 = vpop.f32.mrb[0].mxu0
  %v1622 = vpop.f32.mrb[0].mxu0
  %v1623 = vadd.f32 0.0, %v1622
  %v1624 = vpop.f32.mrb[0].mxu0
  %1625 = vmatprep.mubr.bf16.mxu0 0
  %1626 = vmatmul.mubr.bf16.gmra.mrb[0].mxu0 %v1248
  %v1627 = vpop.f32.mrb[0].mxu0
  %v1628 = vadd.f32 0.0, %v1627
  %v1629 = vpop.f32.mrb[0].mxu0
  %v1630 = vpop.f32.mrb[0].mxu0
  %v1631 = vadd.f32 0.0, %v1630
  %v1632 = vpop.f32.mrb[0].mxu0
  %1633 = vmatprep.mubr.bf16.mxu0 0
  %1634 = vmatmul.mubr.bf16.gmra.mrb[0].mxu0 %v1249
  %v1635 = vpop.f32.mrb[0].mxu0
  %v1636 = vadd.f32 0.0, %v1635
  %v1637 = vpop.f32.mrb[0].mxu0
  %v1638 = vpop.f32.mrb[0].mxu0
  %v1639 = vadd.f32 0.0, %v1638
  %v1640 = vpop.f32.mrb[0].mxu0
  %1641 = vmatprep.mubr.bf16.mxu0 0
  %1642 = vmatmul.mubr.bf16.gmra.mrb[0].mxu0 %v1250
  %v1643 = vpop.f32.mrb[0].mxu0
  %v1644 = vadd.f32 0.0, %v1643
  %v1645 = vpop.f32.mrb[0].mxu0
  %v1646 = vpop.f32.mrb[0].mxu0
  %v1647 = vadd.f32 0.0, %v1646
  %v1648 = vpop.f32.mrb[0].mxu0
  %1649 = vmatprep.mubr.bf16.mxu0 0
  %1650 = vmatmul.mubr.bf16.gmra.mrb[0].mxu0 %v1251
  %v1651 = vpop.f32.mrb[0].mxu0
  %v1652 = vadd.f32 0.0, %v1651
  %v1653 = vpop.f32.mrb[0].mxu0
  %v1654 = vpop.f32.mrb[0].mxu0
  %v1655 = vadd.f32 0.0, %v1654
  %v1656 = vpop.f32.mrb[0].mxu0
  %1657 = vmatprep.mubr.bf16.mxu0 0
  %1658 = vmatmul.mubr.bf16.gmra.mrb[0].mxu0 %v1252
  %v1659 = vpop.f32.mrb[0].mxu0
  %v1660 = vadd.f32 0.0, %v1659
  %v1661 = vpop.f32.mrb[0].mxu0
  %v1662 = vpop.f32.mrb[0].mxu0
  %v1663 = vadd.f32 0.0, %v1662
  %v1664 = vpop.f32.mrb[0].mxu0
  %1665 = vmatprep.mubr.bf16.mxu0 0
  %1666 = vmatmul.mubr.bf16.gmra.mrb[0].mxu0 %v1253
  %v1667 = vpop.f32.mrb[0].mxu0
  %v1668 = vadd.f32 0.0, %v1667
  %v1669 = vpop.f32.mrb[0].mxu0
  %v1670 = vpop.f32.mrb[0].mxu0
  %v1671 = vadd.f32 0.0, %v1670
  %v1672 = vpop.f32.mrb[0].mxu0
  %1673 = vmatprep.mubr.bf16.mxu0 0
  %1674 = vmatmul.mubr.bf16.gmra.mrb[0].mxu0 %v1254
  %v1675 = vpop.f32.mrb[0].mxu0
  %v1676 = vadd.f32 0.0, %v1675
  %v1677 = vpop.f32.mrb[0].mxu0
  %v1678 = vpop.f32.mrb[0].mxu0
  %v1679 = vadd.f32 0.0, %v1678
  %v1680 = vpop.f32.mrb[0].mxu0
  %1681 = vmatprep.mubr.bf16.mxu0 0
  %1682 = vmatmul.mubr.bf16.gmra.mrb[0].mxu0 %v1255
  %v1683 = vpop.f32.mrb[0].mxu0
  %v1684 = vadd.f32 0.0, %v1683
  %v1685 = vpop.f32.mrb[0].mxu0
  %v1686 = vpop.f32.mrb[0].mxu0
  %v1687 = vadd.f32 0.0, %v1686
  %v1688 = vpop.f32.mrb[0].mxu0
  %1689 = vmatprep.mubr.bf16.mxu0 0
  %1690 = vmatmul.mubr.bf16.gmra.mrb[0].mxu0 %v1256
  %v1691 = vpop.f32.mrb[0].mxu0
  %v1692 = vadd.f32 0.0, %v1691
  %v1693 = vpop.f32.mrb[0].mxu0
  %v1694 = vpop.f32.mrb[0].mxu0
  %v1695 = vadd.f32 0.0, %v1694
  %v1696 = vpop.f32.mrb[0].mxu0
  %1697 = vmatprep.mubr.bf16.mxu0 0
  %1698 = vmatmul.mubr.bf16.gmra.mrb[0].mxu0 %v1257
  %v1699 = vpop.f32.mrb[0].mxu0
  %v1700 = vadd.f32 0.0, %v1699
  %v1701 = vpop.f32.mrb[0].mxu0
  %v1702 = vpop.f32.mrb[0].mxu0
  %v1703 = vadd.f32 0.0, %v1702
  %v1704 = vpop.f32.mrb[0].mxu0
  %1705 = vmatprep.mubr.bf16.mxu0 0
  %1706 = vmatmul.mubr.bf16.gmra.mrb[0].mxu0 %v1258
  %v1707 = vpop.f32.mrb[0].mxu0
  %v1708 = vadd.f32 0.0, %v1707
  %v1709 = vpop.f32.mrb[0].mxu0
  %v1710 = vpop.f32.mrb[0].mxu0
  %v1711 = vadd.f32 0.0, %v1710
  %v1712 = vpop.f32.mrb[0].mxu0
  %1713 = vmatprep.mubr.bf16.mxu0 0
  %1714 = vmatmul.mubr.bf16.gmra.mrb[0].mxu0 %v1259
  %v1715 = vpop.f32.mrb[0].mxu0
  %v1716 = vadd.f32 0.0, %v1715
  %v1717 = vpop.f32.mrb[0].mxu0
  %v1718 = vpop.f32.mrb[0].mxu0
  %v1719 = vadd.f32 0.0, %v1718
  %v1720 = vpop.f32.mrb[0].mxu0
  %1721 = vmatprep.mubr.bf16.mxu0 0
  %1722 = vmatmul.mubr.bf16.gmra.mrb[0].mxu0 %v1260
  %v1723 = vpop.f32.mrb[0].mxu0
  %v1724 = vadd.f32 0.0, %v1723
  %v1725 = vpop.f32.mrb[0].mxu0
  %v1726 = vpop.f32.mrb[0].mxu0
  %v1727 = vadd.f32 0.0, %v1726
  %v1728 = vpop.f32.mrb[0].mxu0
  %1729 = vmatprep.mubr.bf16.mxu0 0
  %1730 = vmatmul.mubr.bf16.gmra.mrb[0].mxu0 %v1261
  %v1731 = vpop.f32.mrb[0].mxu0
  %v1732 = vadd.f32 0.0, %v1731
  %v1733 = vpop.f32.mrb[0].mxu0
  %v1734 = vpop.f32.mrb[0].mxu0
  %v1735 = vadd.f32 0.0, %v1734
  %v1736 = vpop.f32.mrb[0].mxu0
  %1737 = vmatprep.mubr.bf16.mxu0 0
  %1738 = vmatmul.mubr.bf16.gmra.mrb[0].mxu0 %v1262
  %v1739 = vpop.f32.mrb[0].mxu0
  %v1740 = vadd.f32 0.0, %v1739
  %v1741 = vpop.f32.mrb[0].mxu0
  %v1742 = vpop.f32.mrb[0].mxu0
  %v1743 = vadd.f32 0.0, %v1742
  %v1744 = vpop.f32.mrb[0].mxu0
  %1745 = vdwg.mxu0
  %v1746 = vmax.f32 %v514, %v1348
  %v1747 = vmax.f32 %v517, %v1351
  %v1748 = vmax.f32 %v522, %v1356
  %v1749 = vmax.f32 %v525, %v1359
  %v1750 = vmax.f32 %v530, %v1364
  %v1751 = vmax.f32 %v533, %v1367
  %v1752 = vmax.f32 %v538, %v1372
  %v1753 = vmax.f32 %v541, %v1375
  %v1754 = vmax.f32 %v546, %v1380
  %v1755 = vmax.f32 %v549, %v1383
  %v1756 = vmax.f32 %v554, %v1388
  %v1757 = vmax.f32 %v557, %v1391
  %v1758 = vmax.f32 %v562, %v1396
  %v1759 = vmax.f32 %v565, %v1399
  %v1760 = vmax.f32 %v570, %v1404
  %v1761 = vmax.f32 %v573, %v1407
  %v1762 = vmax.f32 %v578, %v1412
  %v1763 = vmax.f32 %v581, %v1415
  %v1764 = vmax.f32 %v586, %v1420
  %v1765 = vmax.f32 %v589, %v1423
  %v1766 = vmax.f32 %v594, %v1428
  %v1767 = vmax.f32 %v597, %v1431
  %v1768 = vmax.f32 %v602, %v1436
  %v1769 = vmax.f32 %v605, %v1439
  %v1770 = vmax.f32 %v610, %v1444
  %v1771 = vmax.f32 %v613, %v1447
  %v1772 = vmax.f32 %v618, %v1452
  %v1773 = vmax.f32 %v621, %v1455
  %v1774 = vmax.f32 %v626, %v1460
  %v1775 = vmax.f32 %v629, %v1463
  %v1776 = vmax.f32 %v634, %v1468
  %v1777 = vmax.f32 %v637, %v1471
  %v1778 = vmax.f32 %v642, %v1476
  %v1779 = vmax.f32 %v645, %v1479
  %v1780 = vmax.f32 %v650, %v1484
  %v1781 = vmax.f32 %v653, %v1487
  %v1782 = vmax.f32 %v658, %v1492
  %v1783 = vmax.f32 %v661, %v1495
  %v1784 = vmax.f32 %v666, %v1500
  %v1785 = vmax.f32 %v669, %v1503
  %v1786 = vmax.f32 %v674, %v1508
  %v1787 = vmax.f32 %v677, %v1511
  %v1788 = vmax.f32 %v682, %v1516
  %v1789 = vmax.f32 %v685, %v1519
  %v1790 = vmax.f32 %v690, %v1524
  %v1791 = vmax.f32 %v693, %v1527
  %v1792 = vmax.f32 %v698, %v1532
  %v1793 = vmax.f32 %v701, %v1535
  %v1794 = vmax.f32 %v706, %v1540
  %v1795 = vmax.f32 %v709, %v1543
  %v1796 = vmax.f32 %v714, %v1548
  %v1797 = vmax.f32 %v717, %v1551
  %v1798 = vmax.f32 %v722, %v1556
  %v1799 = vmax.f32 %v725, %v1559
  %v1800 = vmax.f32 %v730, %v1564
  %v1801 = vmax.f32 %v733, %v1567
  %v1802 = vmax.f32 %v738, %v1572
  %v1803 = vmax.f32 %v741, %v1575
  %v1804 = vmax.f32 %v746, %v1580
  %v1805 = vmax.f32 %v749, %v1583
  %v1806 = vmax.f32 %v754, %v1588
  %v1807 = vmax.f32 %v757, %v1591
  %v1808 = vmax.f32 %v762, %v1596
  %v1809 = vmax.f32 %v765, %v1599
  %v1810 = vmax.f32 %v770, %v1604
  %v1811 = vmax.f32 %v773, %v1607
  %v1812 = vmax.f32 %v778, %v1612
  %v1813 = vmax.f32 %v781, %v1615
  %v1814 = vmax.f32 %v786, %v1620
  %v1815 = vmax.f32 %v789, %v1623
  %v1816 = vmax.f32 %v794, %v1628
  %v1817 = vmax.f32 %v797, %v1631
  %v1818 = vmax.f32 %v802, %v1636
  %v1819 = vmax.f32 %v805, %v1639
  %v1820 = vmax.f32 %v810, %v1644
  %v1821 = vmax.f32 %v813, %v1647
  %v1822 = vmax.f32 %v818, %v1652
  %v1823 = vmax.f32 %v821, %v1655
  %v1824 = vmax.f32 %v826, %v1660
  %v1825 = vmax.f32 %v829, %v1663
  %v1826 = vmax.f32 %v834, %v1668
  %v1827 = vmax.f32 %v837, %v1671
  %v1828 = vmax.f32 %v842, %v1676
  %v1829 = vmax.f32 %v845, %v1679
  %v1830 = vmax.f32 %v850, %v1684
  %v1831 = vmax.f32 %v853, %v1687
  %v1832 = vmax.f32 %v858, %v1692
  %v1833 = vmax.f32 %v861, %v1695
  %v1834 = vmax.f32 %v866, %v1700
  %v1835 = vmax.f32 %v869, %v1703
  %v1836 = vmax.f32 %v874, %v1708
  %v1837 = vmax.f32 %v877, %v1711
  %v1838 = vmax.f32 %v882, %v1716
  %v1839 = vmax.f32 %v885, %v1719
  %v1840 = vmax.f32 %v890, %v1724
  %v1841 = vmax.f32 %v893, %v1727
  %v1842 = vmax.f32 %v898, %v1732
  %v1843 = vmax.f32 %v901, %v1735
  %v1844 = vmax.f32 %v906, %v1740
  %v1845 = vmax.f32 %v909, %v1743
  %s1846 = scalar_lea.vmem %s0, 800
  %v1847 = vld [vmem:[%s1846] sm:$0xf]
  %v1848 = vld [vmem:[%s1846 + $0x4] sm:$0xf]
  %v1849 = vld [vmem:[%s1846 + $0x8] sm:$0xf]
  %v1850 = vld [vmem:[%s1846 + $0xc] sm:$0xf]
  %v1851 = vld [vmem:[%s1846 + $0x10] sm:$0xf]
  %v1852 = vld [vmem:[%s1846 + $0x14] sm:$0xf]
  %v1853 = vld [vmem:[%s1846 + $0x18] sm:$0xf]
  %v1854 = vld [vmem:[%s1846 + $0x1c] sm:$0xf]
  %v1855 = vld [vmem:[%s1846 + $0x20] sm:$0xf]
  %v1856 = vld [vmem:[%s1846 + $0x24] sm:$0xf]
  %v1857 = vld [vmem:[%s1846 + $0x28] sm:$0xf]
  %v1858 = vld [vmem:[%s1846 + $0x2c] sm:$0xf]
  %v1859 = vld [vmem:[%s1846 + $0x30] sm:$0xf]
  %v1860 = vld [vmem:[%s1846 + $0x34] sm:$0xf]
  %v1861 = vld [vmem:[%s1846 + $0x38] sm:$0xf]
  %v1862 = vld [vmem:[%s1846 + $0x3c] sm:$0xf]
  %v1863 = vld [vmem:[%s1846 + $0x40] sm:$0xf]
  %v1864 = vld [vmem:[%s1846 + $0x44] sm:$0xf]
  %v1865 = vld [vmem:[%s1846 + $0x48] sm:$0xf]
  %v1866 = vld [vmem:[%s1846 + $0x4c] sm:$0xf]
  %v1867 = vld [vmem:[%s1846 + $0x50] sm:$0xf]
  %v1868 = vld [vmem:[%s1846 + $0x54] sm:$0xf]
  %v1869 = vld [vmem:[%s1846 + $0x58] sm:$0xf]
  %v1870 = vld [vmem:[%s1846 + $0x5c] sm:$0xf]
  %v1871 = vld [vmem:[%s1846 + $0x60] sm:$0xf]
  %v1872 = vld [vmem:[%s1846 + $0x64] sm:$0xf]
  %v1873 = vld [vmem:[%s1846 + $0x68] sm:$0xf]
  %v1874 = vld [vmem:[%s1846 + $0x6c] sm:$0xf]
  %v1875 = vld [vmem:[%s1846 + $0x70] sm:$0xf]
  %v1876 = vld [vmem:[%s1846 + $0x74] sm:$0xf]
  %v1877 = vld [vmem:[%s1846 + $0x78] sm:$0xf]
  %v1878 = vld [vmem:[%s1846 + $0x7c] sm:$0xf]
  %v1879 = vld [vmem:[%s1846 + $0x80] sm:$0xf]
  %v1880 = vld [vmem:[%s1846 + $0x84] sm:$0xf]
  %v1881 = vld [vmem:[%s1846 + $0x88] sm:$0xf]
  %v1882 = vld [vmem:[%s1846 + $0x8c] sm:$0xf]
  %v1883 = vld [vmem:[%s1846 + $0x90] sm:$0xf]
  %v1884 = vld [vmem:[%s1846 + $0x94] sm:$0xf]
  %v1885 = vld [vmem:[%s1846 + $0x98] sm:$0xf]
  %v1886 = vld [vmem:[%s1846 + $0x9c] sm:$0xf]
  %v1887 = vld [vmem:[%s1846 + $0xa0] sm:$0xf]
  %v1888 = vld [vmem:[%s1846 + $0xa4] sm:$0xf]
  %v1889 = vld [vmem:[%s1846 + $0xa8] sm:$0xf]
  %v1890 = vld [vmem:[%s1846 + $0xac] sm:$0xf]
  %v1891 = vld [vmem:[%s1846 + $0xb0] sm:$0xf]
  %v1892 = vld [vmem:[%s1846 + $0xb4] sm:$0xf]
  %v1893 = vld [vmem:[%s1846 + $0xb8] sm:$0xf]
  %v1894 = vld [vmem:[%s1846 + $0xbc] sm:$0xf]
  %v1895 = vld [vmem:[%s1846 + $0xc0] sm:$0xf]
  %v1896 = vld [vmem:[%s1846 + $0xc4] sm:$0xf]
  %v1897 = vld [vmem:[%s1846 + $0xc8] sm:$0xf]
  %v1898 = vld [vmem:[%s1846 + $0xcc] sm:$0xf]
  %v1899 = vld [vmem:[%s1846 + $0xd0] sm:$0xf]
  %v1900 = vld [vmem:[%s1846 + $0xd4] sm:$0xf]
  %v1901 = vld [vmem:[%s1846 + $0xd8] sm:$0xf]
  %v1902 = vld [vmem:[%s1846 + $0xdc] sm:$0xf]
  %v1903 = vld [vmem:[%s1846 + $0xe0] sm:$0xf]
  %v1904 = vld [vmem:[%s1846 + $0xe4] sm:$0xf]
  %v1905 = vld [vmem:[%s1846 + $0xe8] sm:$0xf]
  %v1906 = vld [vmem:[%s1846 + $0xec] sm:$0xf]
  %v1907 = vld [vmem:[%s1846 + $0xf0] sm:$0xf]
  %v1908 = vld [vmem:[%s1846 + $0xf4] sm:$0xf]
  %v1909 = vld [vmem:[%s1846 + $0xf8] sm:$0xf]
  %v1910 = vld [vmem:[%s1846 + $0xfc] sm:$0xf]
  %v1911 = vld [vmem:[%s1846 + $0x100] sm:$0xf]
  %v1912 = vld [vmem:[%s1846 + $0x104] sm:$0xf]
  %v1913 = vld [vmem:[%s1846 + $0x108] sm:$0xf]
  %v1914 = vld [vmem:[%s1846 + $0x10c] sm:$0xf]
  %v1915 = vld [vmem:[%s1846 + $0x110] sm:$0xf]
  %v1916 = vld [vmem:[%s1846 + $0x114] sm:$0xf]
  %v1917 = vld [vmem:[%s1846 + $0x118] sm:$0xf]
  %v1918 = vld [vmem:[%s1846 + $0x11c] sm:$0xf]
  %v1919 = vld [vmem:[%s1846 + $0x120] sm:$0xf]
  %v1920 = vld [vmem:[%s1846 + $0x124] sm:$0xf]
  %v1921 = vld [vmem:[%s1846 + $0x128] sm:$0xf]
  %v1922 = vld [vmem:[%s1846 + $0x12c] sm:$0xf]
  %v1923 = vld [vmem:[%s1846 + $0x130] sm:$0xf]
  %v1924 = vld [vmem:[%s1846 + $0x134] sm:$0xf]
  %v1925 = vld [vmem:[%s1846 + $0x138] sm:$0xf]
  %v1926 = vld [vmem:[%s1846 + $0x13c] sm:$0xf]
  %v1927 = vld [vmem:[%s1846 + $0x140] sm:$0xf]
  %v1928 = vld [vmem:[%s1846 + $0x144] sm:$0xf]
  %v1929 = vld [vmem:[%s1846 + $0x148] sm:$0xf]
  %v1930 = vld [vmem:[%s1846 + $0x14c] sm:$0xf]
  %v1931 = vld [vmem:[%s1846 + $0x150] sm:$0xf]
  %v1932 = vld [vmem:[%s1846 + $0x154] sm:$0xf]
  %v1933 = vld [vmem:[%s1846 + $0x158] sm:$0xf]
  %v1934 = vld [vmem:[%s1846 + $0x15c] sm:$0xf]
  %v1935 = vld [vmem:[%s1846 + $0x160] sm:$0xf]
  %v1936 = vld [vmem:[%s1846 + $0x164] sm:$0xf]
  %v1937 = vld [vmem:[%s1846 + $0x168] sm:$0xf]
  %v1938 = vld [vmem:[%s1846 + $0x16c] sm:$0xf]
  %v1939 = vld [vmem:[%s1846 + $0x170] sm:$0xf]
  %v1940 = vld [vmem:[%s1846 + $0x174] sm:$0xf]
  %v1941 = vld [vmem:[%s1846 + $0x178] sm:$0xf]
  %v1942 = vld [vmem:[%s1846 + $0x17c] sm:$0xf]
  %v1943 = vld [vmem:[%s1846 + $0x180] sm:$0xf]
  %v1944 = vld [vmem:[%s1846 + $0x184] sm:$0xf]
  %v1945 = vld [vmem:[%s1846 + $0x188] sm:$0xf]
  %v1946 = vld [vmem:[%s1846 + $0x18c] sm:$0xf]
  %v2047 = vunpack.c.l.b16 %v1847
  %v2048 = vunpack.c.l.b16 %v1848
  %v2049 = vunpack.c.l.b16 %v1849
  %v2050 = vunpack.c.l.b16 %v1850
  %v2051 = vunpack.c.l.b16 %v1851
  %v2052 = vunpack.c.l.b16 %v1852
  %v2053 = vunpack.c.l.b16 %v1853
  %v2054 = vunpack.c.l.b16 %v1854
  %v2055 = vunpack.c.l.b16 %v1855
  %v2056 = vunpack.c.l.b16 %v1856
  %v2057 = vunpack.c.l.b16 %v1857
  %v2058 = vunpack.c.l.b16 %v1858
  %v2059 = vunpack.c.l.b16 %v1859
  %v2060 = vunpack.c.l.b16 %v1860
  %v2061 = vunpack.c.l.b16 %v1861
  %v2062 = vunpack.c.l.b16 %v1862
  %v2063 = vunpack.c.l.b16 %v1863
  %v2064 = vunpack.c.l.b16 %v1864
  %v2065 = vunpack.c.l.b16 %v1865
  %v2066 = vunpack.c.l.b16 %v1866
  %v2067 = vunpack.c.l.b16 %v1867
  %v2068 = vunpack.c.l.b16 %v1868
  %v2069 = vunpack.c.l.b16 %v1869
  %v2070 = vunpack.c.l.b16 %v1870
  %v2071 = vunpack.c.l.b16 %v1871
  %v2072 = vunpack.c.l.b16 %v1872
  %v2073 = vunpack.c.l.b16 %v1873
  %v2074 = vunpack.c.l.b16 %v1874
  %v2075 = vunpack.c.l.b16 %v1875
  %v2076 = vunpack.c.l.b16 %v1876
  %v2077 = vunpack.c.l.b16 %v1877
  %v2078 = vunpack.c.l.b16 %v1878
  %v2079 = vunpack.c.l.b16 %v1879
  %v2080 = vunpack.c.l.b16 %v1880
  %v2081 = vunpack.c.l.b16 %v1881
  %v2082 = vunpack.c.l.b16 %v1882
  %v2083 = vunpack.c.l.b16 %v1883
  %v2084 = vunpack.c.l.b16 %v1884
  %v2085 = vunpack.c.l.b16 %v1885
  %v2086 = vunpack.c.l.b16 %v1886
  %v2087 = vunpack.c.l.b16 %v1887
  %v2088 = vunpack.c.l.b16 %v1888
  %v2089 = vunpack.c.l.b16 %v1889
  %v2090 = vunpack.c.l.b16 %v1890
  %v2091 = vunpack.c.l.b16 %v1891
  %v2092 = vunpack.c.l.b16 %v1892
  %v2093 = vunpack.c.l.b16 %v1893
  %v2094 = vunpack.c.l.b16 %v1894
  %v2095 = vunpack.c.l.b16 %v1895
  %v2096 = vunpack.c.l.b16 %v1896
  %v2097 = vunpack.c.l.b16 %v1897
  %v2098 = vunpack.c.l.b16 %v1898
  %v2099 = vunpack.c.l.b16 %v1899
  %v2100 = vunpack.c.l.b16 %v1900
  %v2101 = vunpack.c.l.b16 %v1901
  %v2102 = vunpack.c.l.b16 %v1902
  %v2103 = vunpack.c.l.b16 %v1903
  %v2104 = vunpack.c.l.b16 %v1904
  %v2105 = vunpack.c.l.b16 %v1905
  %v2106 = vunpack.c.l.b16 %v1906
  %v2107 = vunpack.c.l.b16 %v1907
  %v2108 = vunpack.c.l.b16 %v1908
  %v2109 = vunpack.c.l.b16 %v1909
  %v2110 = vunpack.c.l.b16 %v1910
  %v2111 = vunpack.c.l.b16 %v1911
  %v2112 = vunpack.c.l.b16 %v1912
  %v2113 = vunpack.c.l.b16 %v1913
  %v2114 = vunpack.c.l.b16 %v1914
  %v2115 = vunpack.c.l.b16 %v1915
  %v2116 = vunpack.c.l.b16 %v1916
  %v2117 = vunpack.c.l.b16 %v1917
  %v2118 = vunpack.c.l.b16 %v1918
  %v2119 = vunpack.c.l.b16 %v1919
  %v2120 = vunpack.c.l.b16 %v1920
  %v2121 = vunpack.c.l.b16 %v1921
  %v2122 = vunpack.c.l.b16 %v1922
  %v2123 = vunpack.c.l.b16 %v1923
  %v2124 = vunpack.c.l.b16 %v1924
  %v2125 = vunpack.c.l.b16 %v1925
  %v2126 = vunpack.c.l.b16 %v1926
  %v2127 = vunpack.c.l.b16 %v1927
  %v2128 = vunpack.c.l.b16 %v1928
  %v2129 = vunpack.c.l.b16 %v1929
  %v2130 = vunpack.c.l.b16 %v1930
  %v2131 = vunpack.c.l.b16 %v1931
  %v2132 = vunpack.c.l.b16 %v1932
  %v2133 = vunpack.c.l.b16 %v1933
  %v2134 = vunpack.c.l.b16 %v1934
  %v2135 = vunpack.c.l.b16 %v1935
  %v2136 = vunpack.c.l.b16 %v1936
  %v2137 = vunpack.c.l.b16 %v1937
  %v2138 = vunpack.c.l.b16 %v1938
  %v2139 = vunpack.c.l.b16 %v1939
  %v2140 = vunpack.c.l.b16 %v1940
  %v2141 = vunpack.c.l.b16 %v1941
  %v2142 = vunpack.c.l.b16 %v1942
  %v2143 = vunpack.c.l.b16 %v1943
  %v2144 = vunpack.c.l.b16 %v1944
  %v2145 = vunpack.c.l.b16 %v1945
  %v2146 = vunpack.c.l.b16 %v1946
  %v2147 = vpack.c.b16 %v2048, %v2047
  %v2148 = vpack.c.b16 %v2050, %v2049
  %v2149 = vpack.c.b16 %v2052, %v2051
  %v2150 = vpack.c.b16 %v2054, %v2053
  %v2151 = vpack.c.b16 %v2056, %v2055
  %v2152 = vpack.c.b16 %v2058, %v2057
  %v2153 = vpack.c.b16 %v2060, %v2059
  %v2154 = vpack.c.b16 %v2062, %v2061
  %v2155 = vpack.c.b16 %v2064, %v2063
  %v2156 = vpack.c.b16 %v2066, %v2065
  %v2157 = vpack.c.b16 %v2068, %v2067
  %v2158 = vpack.c.b16 %v2070, %v2069
  %v2159 = vpack.c.b16 %v2072, %v2071
  %v2160 = vpack.c.b16 %v2074, %v2073
  %v2161 = vpack.c.b16 %v2076, %v2075
  %v2162 = vpack.c.b16 %v2078, %v2077
  %v2163 = vpack.c.b16 %v2080, %v2079
  %v2164 = vpack.c.b16 %v2082, %v2081
  %v2165 = vpack.c.b16 %v2084, %v2083
  %v2166 = vpack.c.b16 %v2086, %v2085
  %v2167 = vpack.c.b16 %v2088, %v2087
  %v2168 = vpack.c.b16 %v2090, %v2089
  %v2169 = vpack.c.b16 %v2092, %v2091
  %v2170 = vpack.c.b16 %v2094, %v2093
  %v2171 = vpack.c.b16 %v2096, %v2095
  %v2172 = vpack.c.b16 %v2098, %v2097
  %v2173 = vpack.c.b16 %v2100, %v2099
  %v2174 = vpack.c.b16 %v2102, %v2101
  %v2175 = vpack.c.b16 %v2104, %v2103
  %v2176 = vpack.c.b16 %v2106, %v2105
  %v2177 = vpack.c.b16 %v2108, %v2107
  %v2178 = vpack.c.b16 %v2110, %v2109
  %v2179 = vpack.c.b16 %v2112, %v2111
  %v2180 = vpack.c.b16 %v2114, %v2113
  %v2181 = vpack.c.b16 %v2116, %v2115
  %v2182 = vpack.c.b16 %v2118, %v2117
  %v2183 = vpack.c.b16 %v2120, %v2119
  %v2184 = vpack.c.b16 %v2122, %v2121
  %v2185 = vpack.c.b16 %v2124, %v2123
  %v2186 = vpack.c.b16 %v2126, %v2125
  %v2187 = vpack.c.b16 %v2128, %v2127
  %v2188 = vpack.c.b16 %v2130, %v2129
  %v2189 = vpack.c.b16 %v2132, %v2131
  %v2190 = vpack.c.b16 %v2134, %v2133
  %v2191 = vpack.c.b16 %v2136, %v2135
  %v2192 = vpack.c.b16 %v2138, %v2137
  %v2193 = vpack.c.b16 %v2140, %v2139
  %v2194 = vpack.c.b16 %v2142, %v2141
  %v2195 = vpack.c.b16 %v2144, %v2143
  %v2196 = vpack.c.b16 %v2146, %v2145
  %2247 = vmatprep.subr.bf16.mxu0 0
  %2248 = vmatpush1.bf16.msra.mxu0 %v463
  %2249 = vmatprep.subr.bf16.mxu0 0
  %2250 = vmatpush1.bf16.msra.mxu0 %v464
  %2251 = vmatprep.subr.bf16.mxu0 0
  %2252 = vmatpush1.bf16.msra.mxu0 %v465
  %2253 = vmatprep.subr.bf16.mxu0 0
  %2254 = vmatpush1.bf16.msra.mxu0 %v466
  %2255 = vmatprep.subr.bf16.mxu0 0
  %2256 = vmatpush1.bf16.msra.mxu0 %v467
  %2257 = vmatprep.subr.bf16.mxu0 0
  %2258 = vmatpush1.bf16.msra.mxu0 %v468
  %2259 = vmatprep.subr.bf16.mxu0 0
  %2260 = vmatpush1.bf16.msra.mxu0 %v469
  %2261 = vmatprep.subr.bf16.mxu0 0
  %2262 = vmatpush1.bf16.msra.mxu0 %v470
  %2263 = vmatprep.subr.bf16.mxu0 0
  %2264 = vmatpush1.bf16.msra.mxu0 0
  %2265 = vmatprep.subr.bf16.mxu0 0
  %2266 = vmatpush1.bf16.msra.mxu0 0
  %2267 = vmatprep.subr.bf16.mxu0 0
  %2268 = vmatpush1.bf16.msra.mxu0 0
  %2269 = vmatprep.subr.bf16.mxu0 0
  %2270 = vmatpush1.bf16.msra.mxu0 0
  %2271 = vmatprep.subr.bf16.mxu0 0
  %2272 = vmatpush1.bf16.msra.mxu0 0
  %2273 = vmatprep.subr.bf16.mxu0 0
  %2274 = vmatpush1.bf16.msra.mxu0 0
  %2275 = vmatprep.subr.bf16.mxu0 0
  %2276 = vmatpush1.bf16.msra.mxu0 0
  %2277 = vmatprep.subr.bf16.mxu0 0
  %2278 = vmatpush1.bf16.msra.mxu0 0
  %2279 = vmatprep.mubr.bf16.mxu0 0
  %2280 = vmatmul.mubr.bf16.gmra.mrb[0].mxu0 %v2147
  %v2281 = vpop.f32.mrb[0].mxu0
  %v2282 = vadd.f32 0.0, %v2281
  %v2283 = vpop.f32.mrb[0].mxu0
  %v2284 = vpop.f32.mrb[0].mxu0
  %v2285 = vadd.f32 0.0, %v2284
  %v2286 = vpop.f32.mrb[0].mxu0
  %2287 = vmatprep.mubr.bf16.mxu0 0
  %2288 = vmatmul.mubr.bf16.gmra.mrb[0].mxu0 %v2148
  %v2289 = vpop.f32.mrb[0].mxu0
  %v2290 = vadd.f32 0.0, %v2289
  %v2291 = vpop.f32.mrb[0].mxu0
  %v2292 = vpop.f32.mrb[0].mxu0
  %v2293 = vadd.f32 0.0, %v2292
  %v2294 = vpop.f32.mrb[0].mxu0
  %2295 = vmatprep.mubr.bf16.mxu0 0
  %2296 = vmatmul.mubr.bf16.gmra.mrb[0].mxu0 %v2149
  %v2297 = vpop.f32.mrb[0].mxu0
  %v2298 = vadd.f32 0.0, %v2297
  %v2299 = vpop.f32.mrb[0].mxu0
  %v2300 = vpop.f32.mrb[0].mxu0
  %v2301 = vadd.f32 0.0, %v2300
  %v2302 = vpop.f32.mrb[0].mxu0
  %2303 = vmatprep.mubr.bf16.mxu0 0
  %2304 = vmatmul.mubr.bf16.gmra.mrb[0].mxu0 %v2150
  %v2305 = vpop.f32.mrb[0].mxu0
  %v2306 = vadd.f32 0.0, %v2305
  %v2307 = vpop.f32.mrb[0].mxu0
  %v2308 = vpop.f32.mrb[0].mxu0
  %v2309 = vadd.f32 0.0, %v2308
  %v2310 = vpop.f32.mrb[0].mxu0
  %2311 = vmatprep.mubr.bf16.mxu0 0
  %2312 = vmatmul.mubr.bf16.gmra.mrb[0].mxu0 %v2151
  %v2313 = vpop.f32.mrb[0].mxu0
  %v2314 = vadd.f32 0.0, %v2313
  %v2315 = vpop.f32.mrb[0].mxu0
  %v2316 = vpop.f32.mrb[0].mxu0
  %v2317 = vadd.f32 0.0, %v2316
  %v2318 = vpop.f32.mrb[0].mxu0
  %2319 = vmatprep.mubr.bf16.mxu0 0
  %2320 = vmatmul.mubr.bf16.gmra.mrb[0].mxu0 %v2152
  %v2321 = vpop.f32.mrb[0].mxu0
  %v2322 = vadd.f32 0.0, %v2321
  %v2323 = vpop.f32.mrb[0].mxu0
  %v2324 = vpop.f32.mrb[0].mxu0
  %v2325 = vadd.f32 0.0, %v2324
  %v2326 = vpop.f32.mrb[0].mxu0
  %2327 = vmatprep.mubr.bf16.mxu0 0
  %2328 = vmatmul.mubr.bf16.gmra.mrb[0].mxu0 %v2153
  %v2329 = vpop.f32.mrb[0].mxu0
  %v2330 = vadd.f32 0.0, %v2329
  %v2331 = vpop.f32.mrb[0].mxu0
  %v2332 = vpop.f32.mrb[0].mxu0
  %v2333 = vadd.f32 0.0, %v2332
  %v2334 = vpop.f32.mrb[0].mxu0
  %2335 = vmatprep.mubr.bf16.mxu0 0
  %2336 = vmatmul.mubr.bf16.gmra.mrb[0].mxu0 %v2154
  %v2337 = vpop.f32.mrb[0].mxu0
  %v2338 = vadd.f32 0.0, %v2337
  %v2339 = vpop.f32.mrb[0].mxu0
  %v2340 = vpop.f32.mrb[0].mxu0
  %v2341 = vadd.f32 0.0, %v2340
  %v2342 = vpop.f32.mrb[0].mxu0
  %2343 = vmatprep.mubr.bf16.mxu0 0
  %2344 = vmatmul.mubr.bf16.gmra.mrb[0].mxu0 %v2155
  %v2345 = vpop.f32.mrb[0].mxu0
  %v2346 = vadd.f32 0.0, %v2345
  %v2347 = vpop.f32.mrb[0].mxu0
  %v2348 = vpop.f32.mrb[0].mxu0
  %v2349 = vadd.f32 0.0, %v2348
  %v2350 = vpop.f32.mrb[0].mxu0
  %2351 = vmatprep.mubr.bf16.mxu0 0
  %2352 = vmatmul.mubr.bf16.gmra.mrb[0].mxu0 %v2156
  %v2353 = vpop.f32.mrb[0].mxu0
  %v2354 = vadd.f32 0.0, %v2353
  %v2355 = vpop.f32.mrb[0].mxu0
  %v2356 = vpop.f32.mrb[0].mxu0
  %v2357 = vadd.f32 0.0, %v2356
  %v2358 = vpop.f32.mrb[0].mxu0
  %2359 = vmatprep.mubr.bf16.mxu0 0
  %2360 = vmatmul.mubr.bf16.gmra.mrb[0].mxu0 %v2157
  %v2361 = vpop.f32.mrb[0].mxu0
  %v2362 = vadd.f32 0.0, %v2361
  %v2363 = vpop.f32.mrb[0].mxu0
  %v2364 = vpop.f32.mrb[0].mxu0
  %v2365 = vadd.f32 0.0, %v2364
  %v2366 = vpop.f32.mrb[0].mxu0
  %2367 = vmatprep.mubr.bf16.mxu0 0
  %2368 = vmatmul.mubr.bf16.gmra.mrb[0].mxu0 %v2158
  %v2369 = vpop.f32.mrb[0].mxu0
  %v2370 = vadd.f32 0.0, %v2369
  %v2371 = vpop.f32.mrb[0].mxu0
  %v2372 = vpop.f32.mrb[0].mxu0
  %v2373 = vadd.f32 0.0, %v2372
  %v2374 = vpop.f32.mrb[0].mxu0
  %2375 = vmatprep.mubr.bf16.mxu0 0
  %2376 = vmatmul.mubr.bf16.gmra.mrb[0].mxu0 %v2159
  %v2377 = vpop.f32.mrb[0].mxu0
  %v2378 = vadd.f32 0.0, %v2377
  %v2379 = vpop.f32.mrb[0].mxu0
  %v2380 = vpop.f32.mrb[0].mxu0
  %v2381 = vadd.f32 0.0, %v2380
  %v2382 = vpop.f32.mrb[0].mxu0
  %2383 = vmatprep.mubr.bf16.mxu0 0
  %2384 = vmatmul.mubr.bf16.gmra.mrb[0].mxu0 %v2160
  %v2385 = vpop.f32.mrb[0].mxu0
  %v2386 = vadd.f32 0.0, %v2385
  %v2387 = vpop.f32.mrb[0].mxu0
  %v2388 = vpop.f32.mrb[0].mxu0
  %v2389 = vadd.f32 0.0, %v2388
  %v2390 = vpop.f32.mrb[0].mxu0
  %2391 = vmatprep.mubr.bf16.mxu0 0
  %2392 = vmatmul.mubr.bf16.gmra.mrb[0].mxu0 %v2161
  %v2393 = vpop.f32.mrb[0].mxu0
  %v2394 = vadd.f32 0.0, %v2393
  %v2395 = vpop.f32.mrb[0].mxu0
  %v2396 = vpop.f32.mrb[0].mxu0
  %v2397 = vadd.f32 0.0, %v2396
  %v2398 = vpop.f32.mrb[0].mxu0
  %2399 = vmatprep.mubr.bf16.mxu0 0
  %2400 = vmatmul.mubr.bf16.gmra.mrb[0].mxu0 %v2162
  %v2401 = vpop.f32.mrb[0].mxu0
  %v2402 = vadd.f32 0.0, %v2401
  %v2403 = vpop.f32.mrb[0].mxu0
  %v2404 = vpop.f32.mrb[0].mxu0
  %v2405 = vadd.f32 0.0, %v2404
  %v2406 = vpop.f32.mrb[0].mxu0
  %2407 = vmatprep.mubr.bf16.mxu0 0
  %2408 = vmatmul.mubr.bf16.gmra.mrb[0].mxu0 %v2163
  %v2409 = vpop.f32.mrb[0].mxu0
  %v2410 = vadd.f32 0.0, %v2409
  %v2411 = vpop.f32.mrb[0].mxu0
  %v2412 = vpop.f32.mrb[0].mxu0
  %v2413 = vadd.f32 0.0, %v2412
  %v2414 = vpop.f32.mrb[0].mxu0
  %2415 = vmatprep.mubr.bf16.mxu0 0
  %2416 = vmatmul.mubr.bf16.gmra.mrb[0].mxu0 %v2164
  %v2417 = vpop.f32.mrb[0].mxu0
  %v2418 = vadd.f32 0.0, %v2417
  %v2419 = vpop.f32.mrb[0].mxu0
  %v2420 = vpop.f32.mrb[0].mxu0
  %v2421 = vadd.f32 0.0, %v2420
  %v2422 = vpop.f32.mrb[0].mxu0
  %2423 = vmatprep.mubr.bf16.mxu0 0
  %2424 = vmatmul.mubr.bf16.gmra.mrb[0].mxu0 %v2165
  %v2425 = vpop.f32.mrb[0].mxu0
  %v2426 = vadd.f32 0.0, %v2425
  %v2427 = vpop.f32.mrb[0].mxu0
  %v2428 = vpop.f32.mrb[0].mxu0
  %v2429 = vadd.f32 0.0, %v2428
  %v2430 = vpop.f32.mrb[0].mxu0
  %2431 = vmatprep.mubr.bf16.mxu0 0
  %2432 = vmatmul.mubr.bf16.gmra.mrb[0].mxu0 %v2166
  %v2433 = vpop.f32.mrb[0].mxu0
  %v2434 = vadd.f32 0.0, %v2433
  %v2435 = vpop.f32.mrb[0].mxu0
  %v2436 = vpop.f32.mrb[0].mxu0
  %v2437 = vadd.f32 0.0, %v2436
  %v2438 = vpop.f32.mrb[0].mxu0
  %2439 = vmatprep.mubr.bf16.mxu0 0
  %2440 = vmatmul.mubr.bf16.gmra.mrb[0].mxu0 %v2167
  %v2441 = vpop.f32.mrb[0].mxu0
  %v2442 = vadd.f32 0.0, %v2441
  %v2443 = vpop.f32.mrb[0].mxu0
  %v2444 = vpop.f32.mrb[0].mxu0
  %v2445 = vadd.f32 0.0, %v2444
  %v2446 = vpop.f32.mrb[0].mxu0
  %2447 = vmatprep.mubr.bf16.mxu0 0
  %2448 = vmatmul.mubr.bf16.gmra.mrb[0].mxu0 %v2168
  %v2449 = vpop.f32.mrb[0].mxu0
  %v2450 = vadd.f32 0.0, %v2449
  %v2451 = vpop.f32.mrb[0].mxu0
  %v2452 = vpop.f32.mrb[0].mxu0
  %v2453 = vadd.f32 0.0, %v2452
  %v2454 = vpop.f32.mrb[0].mxu0
  %2455 = vmatprep.mubr.bf16.mxu0 0
  %2456 = vmatmul.mubr.bf16.gmra.mrb[0].mxu0 %v2169
  %v2457 = vpop.f32.mrb[0].mxu0
  %v2458 = vadd.f32 0.0, %v2457
  %v2459 = vpop.f32.mrb[0].mxu0
  %v2460 = vpop.f32.mrb[0].mxu0
  %v2461 = vadd.f32 0.0, %v2460
  %v2462 = vpop.f32.mrb[0].mxu0
  %2463 = vmatprep.mubr.bf16.mxu0 0
  %2464 = vmatmul.mubr.bf16.gmra.mrb[0].mxu0 %v2170
  %v2465 = vpop.f32.mrb[0].mxu0
  %v2466 = vadd.f32 0.0, %v2465
  %v2467 = vpop.f32.mrb[0].mxu0
  %v2468 = vpop.f32.mrb[0].mxu0
  %v2469 = vadd.f32 0.0, %v2468
  %v2470 = vpop.f32.mrb[0].mxu0
  %2471 = vmatprep.mubr.bf16.mxu0 0
  %2472 = vmatmul.mubr.bf16.gmra.mrb[0].mxu0 %v2171
  %v2473 = vpop.f32.mrb[0].mxu0
  %v2474 = vadd.f32 0.0, %v2473
  %v2475 = vpop.f32.mrb[0].mxu0
  %v2476 = vpop.f32.mrb[0].mxu0
  %v2477 = vadd.f32 0.0, %v2476
  %v2478 = vpop.f32.mrb[0].mxu0
  %2479 = vmatprep.mubr.bf16.mxu0 0
  %2480 = vmatmul.mubr.bf16.gmra.mrb[0].mxu0 %v2172
  %v2481 = vpop.f32.mrb[0].mxu0
  %v2482 = vadd.f32 0.0, %v2481
  %v2483 = vpop.f32.mrb[0].mxu0
  %v2484 = vpop.f32.mrb[0].mxu0
  %v2485 = vadd.f32 0.0, %v2484
  %v2486 = vpop.f32.mrb[0].mxu0
  %2487 = vmatprep.mubr.bf16.mxu0 0
  %2488 = vmatmul.mubr.bf16.gmra.mrb[0].mxu0 %v2173
  %v2489 = vpop.f32.mrb[0].mxu0
  %v2490 = vadd.f32 0.0, %v2489
  %v2491 = vpop.f32.mrb[0].mxu0
  %v2492 = vpop.f32.mrb[0].mxu0
  %v2493 = vadd.f32 0.0, %v2492
  %v2494 = vpop.f32.mrb[0].mxu0
  %2495 = vmatprep.mubr.bf16.mxu0 0
  %2496 = vmatmul.mubr.bf16.gmra.mrb[0].mxu0 %v2174
  %v2497 = vpop.f32.mrb[0].mxu0
  %v2498 = vadd.f32 0.0, %v2497
  %v2499 = vpop.f32.mrb[0].mxu0
  %v2500 = vpop.f32.mrb[0].mxu0
  %v2501 = vadd.f32 0.0, %v2500
  %v2502 = vpop.f32.mrb[0].mxu0
  %2503 = vmatprep.mubr.bf16.mxu0 0
  %2504 = vmatmul.mubr.bf16.gmra.mrb[0].mxu0 %v2175
  %v2505 = vpop.f32.mrb[0].mxu0
  %v2506 = vadd.f32 0.0, %v2505
  %v2507 = vpop.f32.mrb[0].mxu0
  %v2508 = vpop.f32.mrb[0].mxu0
  %v2509 = vadd.f32 0.0, %v2508
  %v2510 = vpop.f32.mrb[0].mxu0
  %2511 = vmatprep.mubr.bf16.mxu0 0
  %2512 = vmatmul.mubr.bf16.gmra.mrb[0].mxu0 %v2176
  %v2513 = vpop.f32.mrb[0].mxu0
  %v2514 = vadd.f32 0.0, %v2513
  %v2515 = vpop.f32.mrb[0].mxu0
  %v2516 = vpop.f32.mrb[0].mxu0
  %v2517 = vadd.f32 0.0, %v2516
  %v2518 = vpop.f32.mrb[0].mxu0
  %2519 = vmatprep.mubr.bf16.mxu0 0
  %2520 = vmatmul.mubr.bf16.gmra.mrb[0].mxu0 %v2177
  %v2521 = vpop.f32.mrb[0].mxu0
  %v2522 = vadd.f32 0.0, %v2521
  %v2523 = vpop.f32.mrb[0].mxu0
  %v2524 = vpop.f32.mrb[0].mxu0
  %v2525 = vadd.f32 0.0, %v2524
  %v2526 = vpop.f32.mrb[0].mxu0
  %2527 = vmatprep.mubr.bf16.mxu0 0
  %2528 = vmatmul.mubr.bf16.gmra.mrb[0].mxu0 %v2178
  %v2529 = vpop.f32.mrb[0].mxu0
  %v2530 = vadd.f32 0.0, %v2529
  %v2531 = vpop.f32.mrb[0].mxu0
  %v2532 = vpop.f32.mrb[0].mxu0
  %v2533 = vadd.f32 0.0, %v2532
  %v2534 = vpop.f32.mrb[0].mxu0
  %2535 = vmatprep.mubr.bf16.mxu0 0
  %2536 = vmatmul.mubr.bf16.gmra.mrb[0].mxu0 %v2179
  %v2537 = vpop.f32.mrb[0].mxu0
  %v2538 = vadd.f32 0.0, %v2537
  %v2539 = vpop.f32.mrb[0].mxu0
  %v2540 = vpop.f32.mrb[0].mxu0
  %v2541 = vadd.f32 0.0, %v2540
  %v2542 = vpop.f32.mrb[0].mxu0
  %2543 = vmatprep.mubr.bf16.mxu0 0
  %2544 = vmatmul.mubr.bf16.gmra.mrb[0].mxu0 %v2180
  %v2545 = vpop.f32.mrb[0].mxu0
  %v2546 = vadd.f32 0.0, %v2545
  %v2547 = vpop.f32.mrb[0].mxu0
  %v2548 = vpop.f32.mrb[0].mxu0
  %v2549 = vadd.f32 0.0, %v2548
  %v2550 = vpop.f32.mrb[0].mxu0
  %2551 = vmatprep.mubr.bf16.mxu0 0
  %2552 = vmatmul.mubr.bf16.gmra.mrb[0].mxu0 %v2181
  %v2553 = vpop.f32.mrb[0].mxu0
  %v2554 = vadd.f32 0.0, %v2553
  %v2555 = vpop.f32.mrb[0].mxu0
  %v2556 = vpop.f32.mrb[0].mxu0
  %v2557 = vadd.f32 0.0, %v2556
  %v2558 = vpop.f32.mrb[0].mxu0
  %2559 = vmatprep.mubr.bf16.mxu0 0
  %2560 = vmatmul.mubr.bf16.gmra.mrb[0].mxu0 %v2182
  %v2561 = vpop.f32.mrb[0].mxu0
  %v2562 = vadd.f32 0.0, %v2561
  %v2563 = vpop.f32.mrb[0].mxu0
  %v2564 = vpop.f32.mrb[0].mxu0
  %v2565 = vadd.f32 0.0, %v2564
  %v2566 = vpop.f32.mrb[0].mxu0
  %2567 = vmatprep.mubr.bf16.mxu0 0
  %2568 = vmatmul.mubr.bf16.gmra.mrb[0].mxu0 %v2183
  %v2569 = vpop.f32.mrb[0].mxu0
  %v2570 = vadd.f32 0.0, %v2569
  %v2571 = vpop.f32.mrb[0].mxu0
  %v2572 = vpop.f32.mrb[0].mxu0
  %v2573 = vadd.f32 0.0, %v2572
  %v2574 = vpop.f32.mrb[0].mxu0
  %2575 = vmatprep.mubr.bf16.mxu0 0
  %2576 = vmatmul.mubr.bf16.gmra.mrb[0].mxu0 %v2184
  %v2577 = vpop.f32.mrb[0].mxu0
  %v2578 = vadd.f32 0.0, %v2577
  %v2579 = vpop.f32.mrb[0].mxu0
  %v2580 = vpop.f32.mrb[0].mxu0
  %v2581 = vadd.f32 0.0, %v2580
  %v2582 = vpop.f32.mrb[0].mxu0
  %2583 = vmatprep.mubr.bf16.mxu0 0
  %2584 = vmatmul.mubr.bf16.gmra.mrb[0].mxu0 %v2185
  %v2585 = vpop.f32.mrb[0].mxu0
  %v2586 = vadd.f32 0.0, %v2585
  %v2587 = vpop.f32.mrb[0].mxu0
  %v2588 = vpop.f32.mrb[0].mxu0
  %v2589 = vadd.f32 0.0, %v2588
  %v2590 = vpop.f32.mrb[0].mxu0
  %2591 = vmatprep.mubr.bf16.mxu0 0
  %2592 = vmatmul.mubr.bf16.gmra.mrb[0].mxu0 %v2186
  %v2593 = vpop.f32.mrb[0].mxu0
  %v2594 = vadd.f32 0.0, %v2593
  %v2595 = vpop.f32.mrb[0].mxu0
  %v2596 = vpop.f32.mrb[0].mxu0
  %v2597 = vadd.f32 0.0, %v2596
  %v2598 = vpop.f32.mrb[0].mxu0
  %2599 = vmatprep.mubr.bf16.mxu0 0
  %2600 = vmatmul.mubr.bf16.gmra.mrb[0].mxu0 %v2187
  %v2601 = vpop.f32.mrb[0].mxu0
  %v2602 = vadd.f32 0.0, %v2601
  %v2603 = vpop.f32.mrb[0].mxu0
  %v2604 = vpop.f32.mrb[0].mxu0
  %v2605 = vadd.f32 0.0, %v2604
  %v2606 = vpop.f32.mrb[0].mxu0
  %2607 = vmatprep.mubr.bf16.mxu0 0
  %2608 = vmatmul.mubr.bf16.gmra.mrb[0].mxu0 %v2188
  %v2609 = vpop.f32.mrb[0].mxu0
  %v2610 = vadd.f32 0.0, %v2609
  %v2611 = vpop.f32.mrb[0].mxu0
  %v2612 = vpop.f32.mrb[0].mxu0
  %v2613 = vadd.f32 0.0, %v2612
  %v2614 = vpop.f32.mrb[0].mxu0
  %2615 = vmatprep.mubr.bf16.mxu0 0
  %2616 = vmatmul.mubr.bf16.gmra.mrb[0].mxu0 %v2189
  %v2617 = vpop.f32.mrb[0].mxu0
  %v2618 = vadd.f32 0.0, %v2617
  %v2619 = vpop.f32.mrb[0].mxu0
  %v2620 = vpop.f32.mrb[0].mxu0
  %v2621 = vadd.f32 0.0, %v2620
  %v2622 = vpop.f32.mrb[0].mxu0
  %2623 = vmatprep.mubr.bf16.mxu0 0
  %2624 = vmatmul.mubr.bf16.gmra.mrb[0].mxu0 %v2190
  %v2625 = vpop.f32.mrb[0].mxu0
  %v2626 = vadd.f32 0.0, %v2625
  %v2627 = vpop.f32.mrb[0].mxu0
  %v2628 = vpop.f32.mrb[0].mxu0
  %v2629 = vadd.f32 0.0, %v2628
  %v2630 = vpop.f32.mrb[0].mxu0
  %2631 = vmatprep.mubr.bf16.mxu0 0
  %2632 = vmatmul.mubr.bf16.gmra.mrb[0].mxu0 %v2191
  %v2633 = vpop.f32.mrb[0].mxu0
  %v2634 = vadd.f32 0.0, %v2633
  %v2635 = vpop.f32.mrb[0].mxu0
  %v2636 = vpop.f32.mrb[0].mxu0
  %v2637 = vadd.f32 0.0, %v2636
  %v2638 = vpop.f32.mrb[0].mxu0
  %2639 = vmatprep.mubr.bf16.mxu0 0
  %2640 = vmatmul.mubr.bf16.gmra.mrb[0].mxu0 %v2192
  %v2641 = vpop.f32.mrb[0].mxu0
  %v2642 = vadd.f32 0.0, %v2641
  %v2643 = vpop.f32.mrb[0].mxu0
  %v2644 = vpop.f32.mrb[0].mxu0
  %v2645 = vadd.f32 0.0, %v2644
  %v2646 = vpop.f32.mrb[0].mxu0
  %2647 = vmatprep.mubr.bf16.mxu0 0
  %2648 = vmatmul.mubr.bf16.gmra.mrb[0].mxu0 %v2193
  %v2649 = vpop.f32.mrb[0].mxu0
  %v2650 = vadd.f32 0.0, %v2649
  %v2651 = vpop.f32.mrb[0].mxu0
  %v2652 = vpop.f32.mrb[0].mxu0
  %v2653 = vadd.f32 0.0, %v2652
  %v2654 = vpop.f32.mrb[0].mxu0
  %2655 = vmatprep.mubr.bf16.mxu0 0
  %2656 = vmatmul.mubr.bf16.gmra.mrb[0].mxu0 %v2194
  %v2657 = vpop.f32.mrb[0].mxu0
  %v2658 = vadd.f32 0.0, %v2657
  %v2659 = vpop.f32.mrb[0].mxu0
  %v2660 = vpop.f32.mrb[0].mxu0
  %v2661 = vadd.f32 0.0, %v2660
  %v2662 = vpop.f32.mrb[0].mxu0
  %2663 = vmatprep.mubr.bf16.mxu0 0
  %2664 = vmatmul.mubr.bf16.gmra.mrb[0].mxu0 %v2195
  %v2665 = vpop.f32.mrb[0].mxu0
  %v2666 = vadd.f32 0.0, %v2665
  %v2667 = vpop.f32.mrb[0].mxu0
  %v2668 = vpop.f32.mrb[0].mxu0
  %v2669 = vadd.f32 0.0, %v2668
  %v2670 = vpop.f32.mrb[0].mxu0
  %2671 = vmatprep.mubr.bf16.mxu0 0
  %2672 = vmatmul.mubr.bf16.gmra.mrb[0].mxu0 %v2196
  %v2673 = vpop.f32.mrb[0].mxu0
  %v2674 = vadd.f32 0.0, %v2673
  %v2675 = vpop.f32.mrb[0].mxu0
  %v2676 = vpop.f32.mrb[0].mxu0
  %v2677 = vadd.f32 0.0, %v2676
  %v2678 = vpop.f32.mrb[0].mxu0
  %2679 = vdwg.mxu0
  %v2680 = vmax.f32 %v1746, %v2282
  %v2681 = vmax.f32 %v1747, %v2285
  %v2682 = vmax.f32 %v1748, %v2290
  %v2683 = vmax.f32 %v1749, %v2293
  %v2684 = vmax.f32 %v1750, %v2298
  %v2685 = vmax.f32 %v1751, %v2301
  %v2686 = vmax.f32 %v1752, %v2306
  %v2687 = vmax.f32 %v1753, %v2309
  %v2688 = vmax.f32 %v1754, %v2314
  %v2689 = vmax.f32 %v1755, %v2317
  %v2690 = vmax.f32 %v1756, %v2322
  %v2691 = vmax.f32 %v1757, %v2325
  %v2692 = vmax.f32 %v1758, %v2330
  %v2693 = vmax.f32 %v1759, %v2333
  %v2694 = vmax.f32 %v1760, %v2338
  %v2695 = vmax.f32 %v1761, %v2341
  %v2696 = vmax.f32 %v1762, %v2346
  %v2697 = vmax.f32 %v1763, %v2349
  %v2698 = vmax.f32 %v1764, %v2354
  %v2699 = vmax.f32 %v1765, %v2357
  %v2700 = vmax.f32 %v1766, %v2362
  %v2701 = vmax.f32 %v1767, %v2365
  %v2702 = vmax.f32 %v1768, %v2370
  %v2703 = vmax.f32 %v1769, %v2373
  %v2704 = vmax.f32 %v1770, %v2378
  %v2705 = vmax.f32 %v1771, %v2381
  %v2706 = vmax.f32 %v1772, %v2386
  %v2707 = vmax.f32 %v1773, %v2389
  %v2708 = vmax.f32 %v1774, %v2394
  %v2709 = vmax.f32 %v1775, %v2397
  %v2710 = vmax.f32 %v1776, %v2402
  %v2711 = vmax.f32 %v1777, %v2405
  %v2712 = vmax.f32 %v1778, %v2410
  %v2713 = vmax.f32 %v1779, %v2413
  %v2714 = vmax.f32 %v1780, %v2418
  %v2715 = vmax.f32 %v1781, %v2421
  %v2716 = vmax.f32 %v1782, %v2426
  %v2717 = vmax.f32 %v1783, %v2429
  %v2718 = vmax.f32 %v1784, %v2434
  %v2719 = vmax.f32 %v1785, %v2437
  %v2720 = vmax.f32 %v1786, %v2442
  %v2721 = vmax.f32 %v1787, %v2445
  %v2722 = vmax.f32 %v1788, %v2450
  %v2723 = vmax.f32 %v1789, %v2453
  %v2724 = vmax.f32 %v1790, %v2458
  %v2725 = vmax.f32 %v1791, %v2461
  %v2726 = vmax.f32 %v1792, %v2466
  %v2727 = vmax.f32 %v1793, %v2469
  %v2728 = vmax.f32 %v1794, %v2474
  %v2729 = vmax.f32 %v1795, %v2477
  %v2730 = vmax.f32 %v1796, %v2482
  %v2731 = vmax.f32 %v1797, %v2485
  %v2732 = vmax.f32 %v1798, %v2490
  %v2733 = vmax.f32 %v1799, %v2493
  %v2734 = vmax.f32 %v1800, %v2498
  %v2735 = vmax.f32 %v1801, %v2501
  %v2736 = vmax.f32 %v1802, %v2506
  %v2737 = vmax.f32 %v1803, %v2509
  %v2738 = vmax.f32 %v1804, %v2514
  %v2739 = vmax.f32 %v1805, %v2517
  %v2740 = vmax.f32 %v1806, %v2522
  %v2741 = vmax.f32 %v1807, %v2525
  %v2742 = vmax.f32 %v1808, %v2530
  %v2743 = vmax.f32 %v1809, %v2533
  %v2744 = vmax.f32 %v1810, %v2538
  %v2745 = vmax.f32 %v1811, %v2541
  %v2746 = vmax.f32 %v1812, %v2546
  %v2747 = vmax.f32 %v1813, %v2549
  %v2748 = vmax.f32 %v1814, %v2554
  %v2749 = vmax.f32 %v1815, %v2557
  %v2750 = vmax.f32 %v1816, %v2562
  %v2751 = vmax.f32 %v1817, %v2565
  %v2752 = vmax.f32 %v1818, %v2570
  %v2753 = vmax.f32 %v1819, %v2573
  %v2754 = vmax.f32 %v1820, %v2578
  %v2755 = vmax.f32 %v1821, %v2581
  %v2756 = vmax.f32 %v1822, %v2586
  %v2757 = vmax.f32 %v1823, %v2589
  %v2758 = vmax.f32 %v1824, %v2594
  %v2759 = vmax.f32 %v1825, %v2597
  %v2760 = vmax.f32 %v1826, %v2602
  %v2761 = vmax.f32 %v1827, %v2605
  %v2762 = vmax.f32 %v1828, %v2610
  %v2763 = vmax.f32 %v1829, %v2613
  %v2764 = vmax.f32 %v1830, %v2618
  %v2765 = vmax.f32 %v1831, %v2621
  %v2766 = vmax.f32 %v1832, %v2626
  %v2767 = vmax.f32 %v1833, %v2629
  %v2768 = vmax.f32 %v1834, %v2634
  %v2769 = vmax.f32 %v1835, %v2637
  %v2770 = vmax.f32 %v1836, %v2642
  %v2771 = vmax.f32 %v1837, %v2645
  %v2772 = vmax.f32 %v1838, %v2650
  %v2773 = vmax.f32 %v1839, %v2653
  %v2774 = vmax.f32 %v1840, %v2658
  %v2775 = vmax.f32 %v1841, %v2661
  %v2776 = vmax.f32 %v1842, %v2666
  %v2777 = vmax.f32 %v1843, %v2669
  %v2778 = vmax.f32 %v1844, %v2674
  %v2779 = vmax.f32 %v1845, %v2677
  %s2780 = scalar_lea.vmem %s0, 1200
  %v2781 = vld [vmem:[%s2780] sm:$0xf]
  %v2782 = vld [vmem:[%s2780 + $0x4] sm:$0xf]
  %v2783 = vld [vmem:[%s2780 + $0x8] sm:$0xf]
  %v2784 = vld [vmem:[%s2780 + $0xc] sm:$0xf]
  %v2785 = vld [vmem:[%s2780 + $0x10] sm:$0xf]
  %v2786 = vld [vmem:[%s2780 + $0x14] sm:$0xf]
  %v2787 = vld [vmem:[%s2780 + $0x18] sm:$0xf]
  %v2788 = vld [vmem:[%s2780 + $0x1c] sm:$0xf]
  %v2789 = vld [vmem:[%s2780 + $0x20] sm:$0xf]
  %v2790 = vld [vmem:[%s2780 + $0x24] sm:$0xf]
  %v2791 = vld [vmem:[%s2780 + $0x28] sm:$0xf]
  %v2792 = vld [vmem:[%s2780 + $0x2c] sm:$0xf]
  %v2793 = vld [vmem:[%s2780 + $0x30] sm:$0xf]
  %v2794 = vld [vmem:[%s2780 + $0x34] sm:$0xf]
  %v2795 = vld [vmem:[%s2780 + $0x38] sm:$0xf]
  %v2796 = vld [vmem:[%s2780 + $0x3c] sm:$0xf]
  %v2797 = vld [vmem:[%s2780 + $0x40] sm:$0xf]
  %v2798 = vld [vmem:[%s2780 + $0x44] sm:$0xf]
  %v2799 = vld [vmem:[%s2780 + $0x48] sm:$0xf]
  %v2800 = vld [vmem:[%s2780 + $0x4c] sm:$0xf]
  %v2801 = vld [vmem:[%s2780 + $0x50] sm:$0xf]
  %v2802 = vld [vmem:[%s2780 + $0x54] sm:$0xf]
  %v2803 = vld [vmem:[%s2780 + $0x58] sm:$0xf]
  %v2804 = vld [vmem:[%s2780 + $0x5c] sm:$0xf]
  %v2805 = vld [vmem:[%s2780 + $0x60] sm:$0xf]
  %v2806 = vld [vmem:[%s2780 + $0x64] sm:$0xf]
  %v2807 = vld [vmem:[%s2780 + $0x68] sm:$0xf]
  %v2808 = vld [vmem:[%s2780 + $0x6c] sm:$0xf]
  %v2809 = vld [vmem:[%s2780 + $0x70] sm:$0xf]
  %v2810 = vld [vmem:[%s2780 + $0x74] sm:$0xf]
  %v2811 = vld [vmem:[%s2780 + $0x78] sm:$0xf]
  %v2812 = vld [vmem:[%s2780 + $0x7c] sm:$0xf]
  %v2813 = vld [vmem:[%s2780 + $0x80] sm:$0xf]
  %v2814 = vld [vmem:[%s2780 + $0x84] sm:$0xf]
  %v2815 = vld [vmem:[%s2780 + $0x88] sm:$0xf]
  %v2816 = vld [vmem:[%s2780 + $0x8c] sm:$0xf]
  %v2817 = vld [vmem:[%s2780 + $0x90] sm:$0xf]
  %v2818 = vld [vmem:[%s2780 + $0x94] sm:$0xf]
  %v2819 = vld [vmem:[%s2780 + $0x98] sm:$0xf]
  %v2820 = vld [vmem:[%s2780 + $0x9c] sm:$0xf]
  %v2821 = vld [vmem:[%s2780 + $0xa0] sm:$0xf]
  %v2822 = vld [vmem:[%s2780 + $0xa4] sm:$0xf]
  %v2823 = vld [vmem:[%s2780 + $0xa8] sm:$0xf]
  %v2824 = vld [vmem:[%s2780 + $0xac] sm:$0xf]
  %v2825 = vld [vmem:[%s2780 + $0xb0] sm:$0xf]
  %v2826 = vld [vmem:[%s2780 + $0xb4] sm:$0xf]
  %v2827 = vld [vmem:[%s2780 + $0xb8] sm:$0xf]
  %v2828 = vld [vmem:[%s2780 + $0xbc] sm:$0xf]
  %v2829 = vld [vmem:[%s2780 + $0xc0] sm:$0xf]
  %v2830 = vld [vmem:[%s2780 + $0xc4] sm:$0xf]
  %v2831 = vld [vmem:[%s2780 + $0xc8] sm:$0xf]
  %v2832 = vld [vmem:[%s2780 + $0xcc] sm:$0xf]
  %v2833 = vld [vmem:[%s2780 + $0xd0] sm:$0xf]
  %v2834 = vld [vmem:[%s2780 + $0xd4] sm:$0xf]
  %v2835 = vld [vmem:[%s2780 + $0xd8] sm:$0xf]
  %v2836 = vld [vmem:[%s2780 + $0xdc] sm:$0xf]
  %v2837 = vld [vmem:[%s2780 + $0xe0] sm:$0xf]
  %v2838 = vld [vmem:[%s2780 + $0xe4] sm:$0xf]
  %v2839 = vld [vmem:[%s2780 + $0xe8] sm:$0xf]
  %v2840 = vld [vmem:[%s2780 + $0xec] sm:$0xf]
  %v2841 = vld [vmem:[%s2780 + $0xf0] sm:$0xf]
  %v2842 = vld [vmem:[%s2780 + $0xf4] sm:$0xf]
  %v2843 = vld [vmem:[%s2780 + $0xf8] sm:$0xf]
  %v2844 = vld [vmem:[%s2780 + $0xfc] sm:$0xf]
  %v2845 = vld [vmem:[%s2780 + $0x100] sm:$0xf]
  %v2846 = vld [vmem:[%s2780 + $0x104] sm:$0xf]
  %v2847 = vld [vmem:[%s2780 + $0x108] sm:$0xf]
  %v2848 = vld [vmem:[%s2780 + $0x10c] sm:$0xf]
  %v2849 = vld [vmem:[%s2780 + $0x110] sm:$0xf]
  %v2850 = vld [vmem:[%s2780 + $0x114] sm:$0xf]
  %v2851 = vld [vmem:[%s2780 + $0x118] sm:$0xf]
  %v2852 = vld [vmem:[%s2780 + $0x11c] sm:$0xf]
  %v2853 = vld [vmem:[%s2780 + $0x120] sm:$0xf]
  %v2854 = vld [vmem:[%s2780 + $0x124] sm:$0xf]
  %v2855 = vld [vmem:[%s2780 + $0x128] sm:$0xf]
  %v2856 = vld [vmem:[%s2780 + $0x12c] sm:$0xf]
  %v2857 = vld [vmem:[%s2780 + $0x130] sm:$0xf]
  %v2858 = vld [vmem:[%s2780 + $0x134] sm:$0xf]
  %v2859 = vld [vmem:[%s2780 + $0x138] sm:$0xf]
  %v2860 = vld [vmem:[%s2780 + $0x13c] sm:$0xf]
  %v2861 = vld [vmem:[%s2780 + $0x140] sm:$0xf]
  %v2862 = vld [vmem:[%s2780 + $0x144] sm:$0xf]
  %v2863 = vld [vmem:[%s2780 + $0x148] sm:$0xf]
  %v2864 = vld [vmem:[%s2780 + $0x14c] sm:$0xf]
  %v2865 = vld [vmem:[%s2780 + $0x150] sm:$0xf]
  %v2866 = vld [vmem:[%s2780 + $0x154] sm:$0xf]
  %v2867 = vld [vmem:[%s2780 + $0x158] sm:$0xf]
  %v2868 = vld [vmem:[%s2780 + $0x15c] sm:$0xf]
  %v2869 = vld [vmem:[%s2780 + $0x160] sm:$0xf]
  %v2870 = vld [vmem:[%s2780 + $0x164] sm:$0xf]
  %v2871 = vld [vmem:[%s2780 + $0x168] sm:$0xf]
  %v2872 = vld [vmem:[%s2780 + $0x16c] sm:$0xf]
  %v2873 = vld [vmem:[%s2780 + $0x170] sm:$0xf]
  %v2874 = vld [vmem:[%s2780 + $0x174] sm:$0xf]
  %v2875 = vld [vmem:[%s2780 + $0x178] sm:$0xf]
  %v2876 = vld [vmem:[%s2780 + $0x17c] sm:$0xf]
  %v2877 = vld [vmem:[%s2780 + $0x180] sm:$0xf]
  %v2878 = vld [vmem:[%s2780 + $0x184] sm:$0xf]
  %v2879 = vld [vmem:[%s2780 + $0x188] sm:$0xf]
  %v2880 = vld [vmem:[%s2780 + $0x18c] sm:$0xf]
  %v2981 = vunpack.c.l.b16 %v2781
  %v2982 = vunpack.c.l.b16 %v2782
  %v2983 = vunpack.c.l.b16 %v2783
  %v2984 = vunpack.c.l.b16 %v2784
  %v2985 = vunpack.c.l.b16 %v2785
  %v2986 = vunpack.c.l.b16 %v2786
  %v2987 = vunpack.c.l.b16 %v2787
  %v2988 = vunpack.c.l.b16 %v2788
  %v2989 = vunpack.c.l.b16 %v2789
  %v2990 = vunpack.c.l.b16 %v2790
  %v2991 = vunpack.c.l.b16 %v2791
  %v2992 = vunpack.c.l.b16 %v2792
  %v2993 = vunpack.c.l.b16 %v2793
  %v2994 = vunpack.c.l.b16 %v2794
  %v2995 = vunpack.c.l.b16 %v2795
  %v2996 = vunpack.c.l.b16 %v2796
  %v2997 = vunpack.c.l.b16 %v2797
  %v2998 = vunpack.c.l.b16 %v2798
  %v2999 = vunpack.c.l.b16 %v2799
  %v3000 = vunpack.c.l.b16 %v2800
  %v3001 = vunpack.c.l.b16 %v2801
  %v3002 = vunpack.c.l.b16 %v2802
  %v3003 = vunpack.c.l.b16 %v2803
  %v3004 = vunpack.c.l.b16 %v2804
  %v3005 = vunpack.c.l.b16 %v2805
  %v3006 = vunpack.c.l.b16 %v2806
  %v3007 = vunpack.c.l.b16 %v2807
  %v3008 = vunpack.c.l.b16 %v2808
  %v3009 = vunpack.c.l.b16 %v2809
  %v3010 = vunpack.c.l.b16 %v2810
  %v3011 = vunpack.c.l.b16 %v2811
  %v3012 = vunpack.c.l.b16 %v2812
  %v3013 = vunpack.c.l.b16 %v2813
  %v3014 = vunpack.c.l.b16 %v2814
  %v3015 = vunpack.c.l.b16 %v2815
  %v3016 = vunpack.c.l.b16 %v2816
  %v3017 = vunpack.c.l.b16 %v2817
  %v3018 = vunpack.c.l.b16 %v2818
  %v3019 = vunpack.c.l.b16 %v2819
  %v3020 = vunpack.c.l.b16 %v2820
  %v3021 = vunpack.c.l.b16 %v2821
  %v3022 = vunpack.c.l.b16 %v2822
  %v3023 = vunpack.c.l.b16 %v2823
  %v3024 = vunpack.c.l.b16 %v2824
  %v3025 = vunpack.c.l.b16 %v2825
  %v3026 = vunpack.c.l.b16 %v2826
  %v3027 = vunpack.c.l.b16 %v2827
  %v3028 = vunpack.c.l.b16 %v2828
  %v3029 = vunpack.c.l.b16 %v2829
  %v3030 = vunpack.c.l.b16 %v2830
  %v3031 = vunpack.c.l.b16 %v2831
  %v3032 = vunpack.c.l.b16 %v2832
  %v3033 = vunpack.c.l.b16 %v2833
  %v3034 = vunpack.c.l.b16 %v2834
  %v3035 = vunpack.c.l.b16 %v2835
  %v3036 = vunpack.c.l.b16 %v2836
  %v3037 = vunpack.c.l.b16 %v2837
  %v3038 = vunpack.c.l.b16 %v2838
  %v3039 = vunpack.c.l.b16 %v2839
  %v3040 = vunpack.c.l.b16 %v2840
  %v3041 = vunpack.c.l.b16 %v2841
  %v3042 = vunpack.c.l.b16 %v2842
  %v3043 = vunpack.c.l.b16 %v2843
  %v3044 = vunpack.c.l.b16 %v2844
  %v3045 = vunpack.c.l.b16 %v2845
  %v3046 = vunpack.c.l.b16 %v2846
  %v3047 = vunpack.c.l.b16 %v2847
  %v3048 = vunpack.c.l.b16 %v2848
  %v3049 = vunpack.c.l.b16 %v2849
  %v3050 = vunpack.c.l.b16 %v2850
  %v3051 = vunpack.c.l.b16 %v2851
  %v3052 = vunpack.c.l.b16 %v2852
  %v3053 = vunpack.c.l.b16 %v2853
  %v3054 = vunpack.c.l.b16 %v2854
  %v3055 = vunpack.c.l.b16 %v2855
  %v3056 = vunpack.c.l.b16 %v2856
  %v3057 = vunpack.c.l.b16 %v2857
  %v3058 = vunpack.c.l.b16 %v2858
  %v3059 = vunpack.c.l.b16 %v2859
  %v3060 = vunpack.c.l.b16 %v2860
  %v3061 = vunpack.c.l.b16 %v2861
  %v3062 = vunpack.c.l.b16 %v2862
  %v3063 = vunpack.c.l.b16 %v2863
  %v3064 = vunpack.c.l.b16 %v2864
  %v3065 = vunpack.c.l.b16 %v2865
  %v3066 = vunpack.c.l.b16 %v2866
  %v3067 = vunpack.c.l.b16 %v2867
  %v3068 = vunpack.c.l.b16 %v2868
  %v3069 = vunpack.c.l.b16 %v2869
  %v3070 = vunpack.c.l.b16 %v2870
  %v3071 = vunpack.c.l.b16 %v2871
  %v3072 = vunpack.c.l.b16 %v2872
  %v3073 = vunpack.c.l.b16 %v2873
  %v3074 = vunpack.c.l.b16 %v2874
  %v3075 = vunpack.c.l.b16 %v2875
  %v3076 = vunpack.c.l.b16 %v2876
  %v3077 = vunpack.c.l.b16 %v2877
  %v3078 = vunpack.c.l.b16 %v2878
  %v3079 = vunpack.c.l.b16 %v2879
  %v3080 = vunpack.c.l.b16 %v2880
  %v3081 = vpack.c.b16 %v2982, %v2981
  %v3082 = vpack.c.b16 %v2984, %v2983
  %v3083 = vpack.c.b16 %v2986, %v2985
  %v3084 = vpack.c.b16 %v2988, %v2987
  %v3085 = vpack.c.b16 %v2990, %v2989
  %v3086 = vpack.c.b16 %v2992, %v2991
  %v3087 = vpack.c.b16 %v2994, %v2993
  %v3088 = vpack.c.b16 %v2996, %v2995
  %v3089 = vpack.c.b16 %v2998, %v2997
  %v3090 = vpack.c.b16 %v3000, %v2999
  %v3091 = vpack.c.b16 %v3002, %v3001
  %v3092 = vpack.c.b16 %v3004, %v3003
  %v3093 = vpack.c.b16 %v3006, %v3005
  %v3094 = vpack.c.b16 %v3008, %v3007
  %v3095 = vpack.c.b16 %v3010, %v3009
  %v3096 = vpack.c.b16 %v3012, %v3011
  %v3097 = vpack.c.b16 %v3014, %v3013
  %v3098 = vpack.c.b16 %v3016, %v3015
  %v3099 = vpack.c.b16 %v3018, %v3017
  %v3100 = vpack.c.b16 %v3020, %v3019
  %v3101 = vpack.c.b16 %v3022, %v3021
  %v3102 = vpack.c.b16 %v3024, %v3023
  %v3103 = vpack.c.b16 %v3026, %v3025
  %v3104 = vpack.c.b16 %v3028, %v3027
  %v3105 = vpack.c.b16 %v3030, %v3029
  %v3106 = vpack.c.b16 %v3032, %v3031
  %v3107 = vpack.c.b16 %v3034, %v3033
  %v3108 = vpack.c.b16 %v3036, %v3035
  %v3109 = vpack.c.b16 %v3038, %v3037
  %v3110 = vpack.c.b16 %v3040, %v3039
  %v3111 = vpack.c.b16 %v3042, %v3041
  %v3112 = vpack.c.b16 %v3044, %v3043
  %v3113 = vpack.c.b16 %v3046, %v3045
  %v3114 = vpack.c.b16 %v3048, %v3047
  %v3115 = vpack.c.b16 %v3050, %v3049
  %v3116 = vpack.c.b16 %v3052, %v3051
  %v3117 = vpack.c.b16 %v3054, %v3053
  %v3118 = vpack.c.b16 %v3056, %v3055
  %v3119 = vpack.c.b16 %v3058, %v3057
  %v3120 = vpack.c.b16 %v3060, %v3059
  %v3121 = vpack.c.b16 %v3062, %v3061
  %v3122 = vpack.c.b16 %v3064, %v3063
  %v3123 = vpack.c.b16 %v3066, %v3065
  %v3124 = vpack.c.b16 %v3068, %v3067
  %v3125 = vpack.c.b16 %v3070, %v3069
  %v3126 = vpack.c.b16 %v3072, %v3071
  %v3127 = vpack.c.b16 %v3074, %v3073
  %v3128 = vpack.c.b16 %v3076, %v3075
  %v3129 = vpack.c.b16 %v3078, %v3077
  %v3130 = vpack.c.b16 %v3080, %v3079
  %3181 = vmatprep.subr.bf16.mxu0 0
  %3182 = vmatpush1.bf16.msra.mxu0 %v463
  %3183 = vmatprep.subr.bf16.mxu0 0
  %3184 = vmatpush1.bf16.msra.mxu0 %v464
  %3185 = vmatprep.subr.bf16.mxu0 0
  %3186 = vmatpush1.bf16.msra.mxu0 %v465
  %3187 = vmatprep.subr.bf16.mxu0 0
  %3188 = vmatpush1.bf16.msra.mxu0 %v466
  %3189 = vmatprep.subr.bf16.mxu0 0
  %3190 = vmatpush1.bf16.msra.mxu0 %v467
  %3191 = vmatprep.subr.bf16.mxu0 0
  %3192 = vmatpush1.bf16.msra.mxu0 %v468
  %3193 = vmatprep.subr.bf16.mxu0 0
  %3194 = vmatpush1.bf16.msra.mxu0 %v469
  %3195 = vmatprep.subr.bf16.mxu0 0
  %3196 = vmatpush1.bf16.msra.mxu0 %v470
  %3197 = vmatprep.subr.bf16.mxu0 0
  %3198 = vmatpush1.bf16.msra.mxu0 0
  %3199 = vmatprep.subr.bf16.mxu0 0
  %3200 = vmatpush1.bf16.msra.mxu0 0
  %3201 = vmatprep.subr.bf16.mxu0 0
  %3202 = vmatpush1.bf16.msra.mxu0 0
  %3203 = vmatprep.subr.bf16.mxu0 0
  %3204 = vmatpush1.bf16.msra.mxu0 0
  %3205 = vmatprep.subr.bf16.mxu0 0
  %3206 = vmatpush1.bf16.msra.mxu0 0
  %3207 = vmatprep.subr.bf16.mxu0 0
  %3208 = vmatpush1.bf16.msra.mxu0 0
  %3209 = vmatprep.subr.bf16.mxu0 0
  %3210 = vmatpush1.bf16.msra.mxu0 0
  %3211 = vmatprep.subr.bf16.mxu0 0
  %3212 = vmatpush1.bf16.msra.mxu0 0
  %3213 = vmatprep.mubr.bf16.mxu0 0
  %3214 = vmatmul.mubr.bf16.gmra.mrb[0].mxu0 %v3081
  %v3215 = vpop.f32.mrb[0].mxu0
  %v3216 = vadd.f32 0.0, %v3215
  %v3217 = vpop.f32.mrb[0].mxu0
  %v3218 = vpop.f32.mrb[0].mxu0
  %v3219 = vadd.f32 0.0, %v3218
  %v3220 = vpop.f32.mrb[0].mxu0
  %3221 = vmatprep.mubr.bf16.mxu0 0
  %3222 = vmatmul.mubr.bf16.gmra.mrb[0].mxu0 %v3082
  %v3223 = vpop.f32.mrb[0].mxu0
  %v3224 = vadd.f32 0.0, %v3223
  %v3225 = vpop.f32.mrb[0].mxu0
  %v3226 = vpop.f32.mrb[0].mxu0
  %v3227 = vadd.f32 0.0, %v3226
  %v3228 = vpop.f32.mrb[0].mxu0
  %3229 = vmatprep.mubr.bf16.mxu0 0
  %3230 = vmatmul.mubr.bf16.gmra.mrb[0].mxu0 %v3083
  %v3231 = vpop.f32.mrb[0].mxu0
  %v3232 = vadd.f32 0.0, %v3231
  %v3233 = vpop.f32.mrb[0].mxu0
  %v3234 = vpop.f32.mrb[0].mxu0
  %v3235 = vadd.f32 0.0, %v3234
  %v3236 = vpop.f32.mrb[0].mxu0
  %3237 = vmatprep.mubr.bf16.mxu0 0
  %3238 = vmatmul.mubr.bf16.gmra.mrb[0].mxu0 %v3084
  %v3239 = vpop.f32.mrb[0].mxu0
  %v3240 = vadd.f32 0.0, %v3239
  %v3241 = vpop.f32.mrb[0].mxu0
  %v3242 = vpop.f32.mrb[0].mxu0
  %v3243 = vadd.f32 0.0, %v3242
  %v3244 = vpop.f32.mrb[0].mxu0
  %3245 = vmatprep.mubr.bf16.mxu0 0
  %3246 = vmatmul.mubr.bf16.gmra.mrb[0].mxu0 %v3085
  %v3247 = vpop.f32.mrb[0].mxu0
  %v3248 = vadd.f32 0.0, %v3247
  %v3249 = vpop.f32.mrb[0].mxu0
  %v3250 = vpop.f32.mrb[0].mxu0
  %v3251 = vadd.f32 0.0, %v3250
  %v3252 = vpop.f32.mrb[0].mxu0
  %3253 = vmatprep.mubr.bf16.mxu0 0
  %3254 = vmatmul.mubr.bf16.gmra.mrb[0].mxu0 %v3086
  %v3255 = vpop.f32.mrb[0].mxu0
  %v3256 = vadd.f32 0.0, %v3255
  %v3257 = vpop.f32.mrb[0].mxu0
  %v3258 = vpop.f32.mrb[0].mxu0
  %v3259 = vadd.f32 0.0, %v3258
  %v3260 = vpop.f32.mrb[0].mxu0
  %3261 = vmatprep.mubr.bf16.mxu0 0
  %3262 = vmatmul.mubr.bf16.gmra.mrb[0].mxu0 %v3087
  %v3263 = vpop.f32.mrb[0].mxu0
  %v3264 = vadd.f32 0.0, %v3263
  %v3265 = vpop.f32.mrb[0].mxu0
  %v3266 = vpop.f32.mrb[0].mxu0
  %v3267 = vadd.f32 0.0, %v3266
  %v3268 = vpop.f32.mrb[0].mxu0
  %3269 = vmatprep.mubr.bf16.mxu0 0
  %3270 = vmatmul.mubr.bf16.gmra.mrb[0].mxu0 %v3088
  %v3271 = vpop.f32.mrb[0].mxu0
  %v3272 = vadd.f32 0.0, %v3271
  %v3273 = vpop.f32.mrb[0].mxu0
  %v3274 = vpop.f32.mrb[0].mxu0
  %v3275 = vadd.f32 0.0, %v3274
  %v3276 = vpop.f32.mrb[0].mxu0
  %3277 = vmatprep.mubr.bf16.mxu0 0
  %3278 = vmatmul.mubr.bf16.gmra.mrb[0].mxu0 %v3089
  %v3279 = vpop.f32.mrb[0].mxu0
  %v3280 = vadd.f32 0.0, %v3279
  %v3281 = vpop.f32.mrb[0].mxu0
  %v3282 = vpop.f32.mrb[0].mxu0
  %v3283 = vadd.f32 0.0, %v3282
  %v3284 = vpop.f32.mrb[0].mxu0
  %3285 = vmatprep.mubr.bf16.mxu0 0
  %3286 = vmatmul.mubr.bf16.gmra.mrb[0].mxu0 %v3090
  %v3287 = vpop.f32.mrb[0].mxu0
  %v3288 = vadd.f32 0.0, %v3287
  %v3289 = vpop.f32.mrb[0].mxu0
  %v3290 = vpop.f32.mrb[0].mxu0
  %v3291 = vadd.f32 0.0, %v3290
  %v3292 = vpop.f32.mrb[0].mxu0
  %3293 = vmatprep.mubr.bf16.mxu0 0
  %3294 = vmatmul.mubr.bf16.gmra.mrb[0].mxu0 %v3091
  %v3295 = vpop.f32.mrb[0].mxu0
  %v3296 = vadd.f32 0.0, %v3295
  %v3297 = vpop.f32.mrb[0].mxu0
  %v3298 = vpop.f32.mrb[0].mxu0
  %v3299 = vadd.f32 0.0, %v3298
  %v3300 = vpop.f32.mrb[0].mxu0
  %3301 = vmatprep.mubr.bf16.mxu0 0
  %3302 = vmatmul.mubr.bf16.gmra.mrb[0].mxu0 %v3092
  %v3303 = vpop.f32.mrb[0].mxu0
  %v3304 = vadd.f32 0.0, %v3303
  %v3305 = vpop.f32.mrb[0].mxu0
  %v3306 = vpop.f32.mrb[0].mxu0
  %v3307 = vadd.f32 0.0, %v3306
  %v3308 = vpop.f32.mrb[0].mxu0
  %3309 = vmatprep.mubr.bf16.mxu0 0
  %3310 = vmatmul.mubr.bf16.gmra.mrb[0].mxu0 %v3093
  %v3311 = vpop.f32.mrb[0].mxu0
  %v3312 = vadd.f32 0.0, %v3311
  %v3313 = vpop.f32.mrb[0].mxu0
  %v3314 = vpop.f32.mrb[0].mxu0
  %v3315 = vadd.f32 0.0, %v3314
  %v3316 = vpop.f32.mrb[0].mxu0
  %3317 = vmatprep.mubr.bf16.mxu0 0
  %3318 = vmatmul.mubr.bf16.gmra.mrb[0].mxu0 %v3094
  %v3319 = vpop.f32.mrb[0].mxu0
  %v3320 = vadd.f32 0.0, %v3319
  %v3321 = vpop.f32.mrb[0].mxu0
  %v3322 = vpop.f32.mrb[0].mxu0
  %v3323 = vadd.f32 0.0, %v3322
  %v3324 = vpop.f32.mrb[0].mxu0
  %3325 = vmatprep.mubr.bf16.mxu0 0
  %3326 = vmatmul.mubr.bf16.gmra.mrb[0].mxu0 %v3095
  %v3327 = vpop.f32.mrb[0].mxu0
  %v3328 = vadd.f32 0.0, %v3327
  %v3329 = vpop.f32.mrb[0].mxu0
  %v3330 = vpop.f32.mrb[0].mxu0
  %v3331 = vadd.f32 0.0, %v3330
  %v3332 = vpop.f32.mrb[0].mxu0
  %3333 = vmatprep.mubr.bf16.mxu0 0
  %3334 = vmatmul.mubr.bf16.gmra.mrb[0].mxu0 %v3096
  %v3335 = vpop.f32.mrb[0].mxu0
  %v3336 = vadd.f32 0.0, %v3335
  %v3337 = vpop.f32.mrb[0].mxu0
  %v3338 = vpop.f32.mrb[0].mxu0
  %v3339 = vadd.f32 0.0, %v3338
  %v3340 = vpop.f32.mrb[0].mxu0
  %3341 = vmatprep.mubr.bf16.mxu0 0
  %3342 = vmatmul.mubr.bf16.gmra.mrb[0].mxu0 %v3097
  %v3343 = vpop.f32.mrb[0].mxu0
  %v3344 = vadd.f32 0.0, %v3343
  %v3345 = vpop.f32.mrb[0].mxu0
  %v3346 = vpop.f32.mrb[0].mxu0
  %v3347 = vadd.f32 0.0, %v3346
  %v3348 = vpop.f32.mrb[0].mxu0
  %3349 = vmatprep.mubr.bf16.mxu0 0
  %3350 = vmatmul.mubr.bf16.gmra.mrb[0].mxu0 %v3098
  %v3351 = vpop.f32.mrb[0].mxu0
  %v3352 = vadd.f32 0.0, %v3351
  %v3353 = vpop.f32.mrb[0].mxu0
  %v3354 = vpop.f32.mrb[0].mxu0
  %v3355 = vadd.f32 0.0, %v3354
  %v3356 = vpop.f32.mrb[0].mxu0
  %3357 = vmatprep.mubr.bf16.mxu0 0
  %3358 = vmatmul.mubr.bf16.gmra.mrb[0].mxu0 %v3099
  %v3359 = vpop.f32.mrb[0].mxu0
  %v3360 = vadd.f32 0.0, %v3359
  %v3361 = vpop.f32.mrb[0].mxu0
  %v3362 = vpop.f32.mrb[0].mxu0
  %v3363 = vadd.f32 0.0, %v3362
  %v3364 = vpop.f32.mrb[0].mxu0
  %3365 = vmatprep.mubr.bf16.mxu0 0
  %3366 = vmatmul.mubr.bf16.gmra.mrb[0].mxu0 %v3100
  %v3367 = vpop.f32.mrb[0].mxu0
  %v3368 = vadd.f32 0.0, %v3367
  %v3369 = vpop.f32.mrb[0].mxu0
  %v3370 = vpop.f32.mrb[0].mxu0
  %v3371 = vadd.f32 0.0, %v3370
  %v3372 = vpop.f32.mrb[0].mxu0
  %3373 = vmatprep.mubr.bf16.mxu0 0
  %3374 = vmatmul.mubr.bf16.gmra.mrb[0].mxu0 %v3101
  %v3375 = vpop.f32.mrb[0].mxu0
  %v3376 = vadd.f32 0.0, %v3375
  %v3377 = vpop.f32.mrb[0].mxu0
  %v3378 = vpop.f32.mrb[0].mxu0
  %v3379 = vadd.f32 0.0, %v3378
  %v3380 = vpop.f32.mrb[0].mxu0
  %3381 = vmatprep.mubr.bf16.mxu0 0
  %3382 = vmatmul.mubr.bf16.gmra.mrb[0].mxu0 %v3102
  %v3383 = vpop.f32.mrb[0].mxu0
  %v3384 = vadd.f32 0.0, %v3383
  %v3385 = vpop.f32.mrb[0].mxu0
  %v3386 = vpop.f32.mrb[0].mxu0
  %v3387 = vadd.f32 0.0, %v3386
  %v3388 = vpop.f32.mrb[0].mxu0
  %3389 = vmatprep.mubr.bf16.mxu0 0
  %3390 = vmatmul.mubr.bf16.gmra.mrb[0].mxu0 %v3103
  %v3391 = vpop.f32.mrb[0].mxu0
  %v3392 = vadd.f32 0.0, %v3391
  %v3393 = vpop.f32.mrb[0].mxu0
  %v3394 = vpop.f32.mrb[0].mxu0
  %v3395 = vadd.f32 0.0, %v3394
  %v3396 = vpop.f32.mrb[0].mxu0
  %3397 = vmatprep.mubr.bf16.mxu0 0
  %3398 = vmatmul.mubr.bf16.gmra.mrb[0].mxu0 %v3104
  %v3399 = vpop.f32.mrb[0].mxu0
  %v3400 = vadd.f32 0.0, %v3399
  %v3401 = vpop.f32.mrb[0].mxu0
  %v3402 = vpop.f32.mrb[0].mxu0
  %v3403 = vadd.f32 0.0, %v3402
  %v3404 = vpop.f32.mrb[0].mxu0
  %3405 = vmatprep.mubr.bf16.mxu0 0
  %3406 = vmatmul.mubr.bf16.gmra.mrb[0].mxu0 %v3105
  %v3407 = vpop.f32.mrb[0].mxu0
  %v3408 = vadd.f32 0.0, %v3407
  %v3409 = vpop.f32.mrb[0].mxu0
  %v3410 = vpop.f32.mrb[0].mxu0
  %v3411 = vadd.f32 0.0, %v3410
  %v3412 = vpop.f32.mrb[0].mxu0
  %3413 = vmatprep.mubr.bf16.mxu0 0
  %3414 = vmatmul.mubr.bf16.gmra.mrb[0].mxu0 %v3106
  %v3415 = vpop.f32.mrb[0].mxu0
  %v3416 = vadd.f32 0.0, %v3415
  %v3417 = vpop.f32.mrb[0].mxu0
  %v3418 = vpop.f32.mrb[0].mxu0
  %v3419 = vadd.f32 0.0, %v3418
  %v3420 = vpop.f32.mrb[0].mxu0
  %3421 = vmatprep.mubr.bf16.mxu0 0
  %3422 = vmatmul.mubr.bf16.gmra.mrb[0].mxu0 %v3107
  %v3423 = vpop.f32.mrb[0].mxu0
  %v3424 = vadd.f32 0.0, %v3423
  %v3425 = vpop.f32.mrb[0].mxu0
  %v3426 = vpop.f32.mrb[0].mxu0
  %v3427 = vadd.f32 0.0, %v3426
  %v3428 = vpop.f32.mrb[0].mxu0
  %3429 = vmatprep.mubr.bf16.mxu0 0
  %3430 = vmatmul.mubr.bf16.gmra.mrb[0].mxu0 %v3108
  %v3431 = vpop.f32.mrb[0].mxu0
  %v3432 = vadd.f32 0.0, %v3431
  %v3433 = vpop.f32.mrb[0].mxu0
  %v3434 = vpop.f32.mrb[0].mxu0
  %v3435 = vadd.f32 0.0, %v3434
  %v3436 = vpop.f32.mrb[0].mxu0
  %3437 = vmatprep.mubr.bf16.mxu0 0
  %3438 = vmatmul.mubr.bf16.gmra.mrb[0].mxu0 %v3109
  %v3439 = vpop.f32.mrb[0].mxu0
  %v3440 = vadd.f32 0.0, %v3439
  %v3441 = vpop.f32.mrb[0].mxu0
  %v3442 = vpop.f32.mrb[0].mxu0
  %v3443 = vadd.f32 0.0, %v3442
  %v3444 = vpop.f32.mrb[0].mxu0
  %3445 = vmatprep.mubr.bf16.mxu0 0
  %3446 = vmatmul.mubr.bf16.gmra.mrb[0].mxu0 %v3110
  %v3447 = vpop.f32.mrb[0].mxu0
  %v3448 = vadd.f32 0.0, %v3447
  %v3449 = vpop.f32.mrb[0].mxu0
  %v3450 = vpop.f32.mrb[0].mxu0
  %v3451 = vadd.f32 0.0, %v3450
  %v3452 = vpop.f32.mrb[0].mxu0
  %3453 = vmatprep.mubr.bf16.mxu0 0
  %3454 = vmatmul.mubr.bf16.gmra.mrb[0].mxu0 %v3111
  %v3455 = vpop.f32.mrb[0].mxu0
  %v3456 = vadd.f32 0.0, %v3455
  %v3457 = vpop.f32.mrb[0].mxu0
  %v3458 = vpop.f32.mrb[0].mxu0
  %v3459 = vadd.f32 0.0, %v3458
  %v3460 = vpop.f32.mrb[0].mxu0
  %3461 = vmatprep.mubr.bf16.mxu0 0
  %3462 = vmatmul.mubr.bf16.gmra.mrb[0].mxu0 %v3112
  %v3463 = vpop.f32.mrb[0].mxu0
  %v3464 = vadd.f32 0.0, %v3463
  %v3465 = vpop.f32.mrb[0].mxu0
  %v3466 = vpop.f32.mrb[0].mxu0
  %v3467 = vadd.f32 0.0, %v3466
  %v3468 = vpop.f32.mrb[0].mxu0
  %3469 = vmatprep.mubr.bf16.mxu0 0
  %3470 = vmatmul.mubr.bf16.gmra.mrb[0].mxu0 %v3113
  %v3471 = vpop.f32.mrb[0].mxu0
  %v3472 = vadd.f32 0.0, %v3471
  %v3473 = vpop.f32.mrb[0].mxu0
  %v3474 = vpop.f32.mrb[0].mxu0
  %v3475 = vadd.f32 0.0, %v3474
  %v3476 = vpop.f32.mrb[0].mxu0
  %3477 = vmatprep.mubr.bf16.mxu0 0
  %3478 = vmatmul.mubr.bf16.gmra.mrb[0].mxu0 %v3114
  %v3479 = vpop.f32.mrb[0].mxu0
  %v3480 = vadd.f32 0.0, %v3479
  %v3481 = vpop.f32.mrb[0].mxu0
  %v3482 = vpop.f32.mrb[0].mxu0
  %v3483 = vadd.f32 0.0, %v3482
  %v3484 = vpop.f32.mrb[0].mxu0
  %3485 = vmatprep.mubr.bf16.mxu0 0
  %3486 = vmatmul.mubr.bf16.gmra.mrb[0].mxu0 %v3115
  %v3487 = vpop.f32.mrb[0].mxu0
  %v3488 = vadd.f32 0.0, %v3487
  %v3489 = vpop.f32.mrb[0].mxu0
  %v3490 = vpop.f32.mrb[0].mxu0
  %v3491 = vadd.f32 0.0, %v3490
  %v3492 = vpop.f32.mrb[0].mxu0
  %3493 = vmatprep.mubr.bf16.mxu0 0
  %3494 = vmatmul.mubr.bf16.gmra.mrb[0].mxu0 %v3116
  %v3495 = vpop.f32.mrb[0].mxu0
  %v3496 = vadd.f32 0.0, %v3495
  %v3497 = vpop.f32.mrb[0].mxu0
  %v3498 = vpop.f32.mrb[0].mxu0
  %v3499 = vadd.f32 0.0, %v3498
  %v3500 = vpop.f32.mrb[0].mxu0
  %3501 = vmatprep.mubr.bf16.mxu0 0
  %3502 = vmatmul.mubr.bf16.gmra.mrb[0].mxu0 %v3117
  %v3503 = vpop.f32.mrb[0].mxu0
  %v3504 = vadd.f32 0.0, %v3503
  %v3505 = vpop.f32.mrb[0].mxu0
  %v3506 = vpop.f32.mrb[0].mxu0
  %v3507 = vadd.f32 0.0, %v3506
  %v3508 = vpop.f32.mrb[0].mxu0
  %3509 = vmatprep.mubr.bf16.mxu0 0
  %3510 = vmatmul.mubr.bf16.gmra.mrb[0].mxu0 %v3118
  %v3511 = vpop.f32.mrb[0].mxu0
  %v3512 = vadd.f32 0.0, %v3511
  %v3513 = vpop.f32.mrb[0].mxu0
  %v3514 = vpop.f32.mrb[0].mxu0
  %v3515 = vadd.f32 0.0, %v3514
  %v3516 = vpop.f32.mrb[0].mxu0
  %3517 = vmatprep.mubr.bf16.mxu0 0
  %3518 = vmatmul.mubr.bf16.gmra.mrb[0].mxu0 %v3119
  %v3519 = vpop.f32.mrb[0].mxu0
  %v3520 = vadd.f32 0.0, %v3519
  %v3521 = vpop.f32.mrb[0].mxu0
  %v3522 = vpop.f32.mrb[0].mxu0
  %v3523 = vadd.f32 0.0, %v3522
  %v3524 = vpop.f32.mrb[0].mxu0
  %3525 = vmatprep.mubr.bf16.mxu0 0
  %3526 = vmatmul.mubr.bf16.gmra.mrb[0].mxu0 %v3120
  %v3527 = vpop.f32.mrb[0].mxu0
  %v3528 = vadd.f32 0.0, %v3527
  %v3529 = vpop.f32.mrb[0].mxu0
  %v3530 = vpop.f32.mrb[0].mxu0
  %v3531 = vadd.f32 0.0, %v3530
  %v3532 = vpop.f32.mrb[0].mxu0
  %3533 = vmatprep.mubr.bf16.mxu0 0
  %3534 = vmatmul.mubr.bf16.gmra.mrb[0].mxu0 %v3121
  %v3535 = vpop.f32.mrb[0].mxu0
  %v3536 = vadd.f32 0.0, %v3535
  %v3537 = vpop.f32.mrb[0].mxu0
  %v3538 = vpop.f32.mrb[0].mxu0
  %v3539 = vadd.f32 0.0, %v3538
  %v3540 = vpop.f32.mrb[0].mxu0
  %3541 = vmatprep.mubr.bf16.mxu0 0
  %3542 = vmatmul.mubr.bf16.gmra.mrb[0].mxu0 %v3122
  %v3543 = vpop.f32.mrb[0].mxu0
  %v3544 = vadd.f32 0.0, %v3543
  %v3545 = vpop.f32.mrb[0].mxu0
  %v3546 = vpop.f32.mrb[0].mxu0
  %v3547 = vadd.f32 0.0, %v3546
  %v3548 = vpop.f32.mrb[0].mxu0
  %3549 = vmatprep.mubr.bf16.mxu0 0
  %3550 = vmatmul.mubr.bf16.gmra.mrb[0].mxu0 %v3123
  %v3551 = vpop.f32.mrb[0].mxu0
  %v3552 = vadd.f32 0.0, %v3551
  %v3553 = vpop.f32.mrb[0].mxu0
  %v3554 = vpop.f32.mrb[0].mxu0
  %v3555 = vadd.f32 0.0, %v3554
  %v3556 = vpop.f32.mrb[0].mxu0
  %3557 = vmatprep.mubr.bf16.mxu0 0
  %3558 = vmatmul.mubr.bf16.gmra.mrb[0].mxu0 %v3124
  %v3559 = vpop.f32.mrb[0].mxu0
  %v3560 = vadd.f32 0.0, %v3559
  %v3561 = vpop.f32.mrb[0].mxu0
  %v3562 = vpop.f32.mrb[0].mxu0
  %v3563 = vadd.f32 0.0, %v3562
  %v3564 = vpop.f32.mrb[0].mxu0
  %3565 = vmatprep.mubr.bf16.mxu0 0
  %3566 = vmatmul.mubr.bf16.gmra.mrb[0].mxu0 %v3125
  %v3567 = vpop.f32.mrb[0].mxu0
  %v3568 = vadd.f32 0.0, %v3567
  %v3569 = vpop.f32.mrb[0].mxu0
  %v3570 = vpop.f32.mrb[0].mxu0
  %v3571 = vadd.f32 0.0, %v3570
  %v3572 = vpop.f32.mrb[0].mxu0
  %3573 = vmatprep.mubr.bf16.mxu0 0
  %3574 = vmatmul.mubr.bf16.gmra.mrb[0].mxu0 %v3126
  %v3575 = vpop.f32.mrb[0].mxu0
  %v3576 = vadd.f32 0.0, %v3575
  %v3577 = vpop.f32.mrb[0].mxu0
  %v3578 = vpop.f32.mrb[0].mxu0
  %v3579 = vadd.f32 0.0, %v3578
  %v3580 = vpop.f32.mrb[0].mxu0
  %3581 = vmatprep.mubr.bf16.mxu0 0
  %3582 = vmatmul.mubr.bf16.gmra.mrb[0].mxu0 %v3127
  %v3583 = vpop.f32.mrb[0].mxu0
  %v3584 = vadd.f32 0.0, %v3583
  %v3585 = vpop.f32.mrb[0].mxu0
  %v3586 = vpop.f32.mrb[0].mxu0
  %v3587 = vadd.f32 0.0, %v3586
  %v3588 = vpop.f32.mrb[0].mxu0
  %3589 = vmatprep.mubr.bf16.mxu0 0
  %3590 = vmatmul.mubr.bf16.gmra.mrb[0].mxu0 %v3128
  %v3591 = vpop.f32.mrb[0].mxu0
  %v3592 = vadd.f32 0.0, %v3591
  %v3593 = vpop.f32.mrb[0].mxu0
  %v3594 = vpop.f32.mrb[0].mxu0
  %v3595 = vadd.f32 0.0, %v3594
  %v3596 = vpop.f32.mrb[0].mxu0
  %3597 = vmatprep.mubr.bf16.mxu0 0
  %3598 = vmatmul.mubr.bf16.gmra.mrb[0].mxu0 %v3129
  %v3599 = vpop.f32.mrb[0].mxu0
  %v3600 = vadd.f32 0.0, %v3599
  %v3601 = vpop.f32.mrb[0].mxu0
  %v3602 = vpop.f32.mrb[0].mxu0
  %v3603 = vadd.f32 0.0, %v3602
  %v3604 = vpop.f32.mrb[0].mxu0
  %3605 = vmatprep.mubr.bf16.mxu0 0
  %3606 = vmatmul.mubr.bf16.gmra.mrb[0].mxu0 %v3130
  %v3607 = vpop.f32.mrb[0].mxu0
  %v3608 = vadd.f32 0.0, %v3607
  %v3609 = vpop.f32.mrb[0].mxu0
  %v3610 = vpop.f32.mrb[0].mxu0
  %v3611 = vadd.f32 0.0, %v3610
  %v3612 = vpop.f32.mrb[0].mxu0
  %3613 = vdwg.mxu0
  %v3614 = vmax.f32 %v2680, %v3216
  %v3615 = vmax.f32 %v2681, %v3219
  %v3616 = vmax.f32 %v2682, %v3224
  %v3617 = vmax.f32 %v2683, %v3227
  %v3618 = vmax.f32 %v2684, %v3232
  %v3619 = vmax.f32 %v2685, %v3235
  %v3620 = vmax.f32 %v2686, %v3240
  %v3621 = vmax.f32 %v2687, %v3243
  %v3622 = vmax.f32 %v2688, %v3248
  %v3623 = vmax.f32 %v2689, %v3251
  %v3624 = vmax.f32 %v2690, %v3256
  %v3625 = vmax.f32 %v2691, %v3259
  %v3626 = vmax.f32 %v2692, %v3264
  %v3627 = vmax.f32 %v2693, %v3267
  %v3628 = vmax.f32 %v2694, %v3272
  %v3629 = vmax.f32 %v2695, %v3275
  %v3630 = vmax.f32 %v2696, %v3280
  %v3631 = vmax.f32 %v2697, %v3283
  %v3632 = vmax.f32 %v2698, %v3288
  %v3633 = vmax.f32 %v2699, %v3291
  %v3634 = vmax.f32 %v2700, %v3296
  %v3635 = vmax.f32 %v2701, %v3299
  %v3636 = vmax.f32 %v2702, %v3304
  %v3637 = vmax.f32 %v2703, %v3307
  %v3638 = vmax.f32 %v2704, %v3312
  %v3639 = vmax.f32 %v2705, %v3315
  %v3640 = vmax.f32 %v2706, %v3320
  %v3641 = vmax.f32 %v2707, %v3323
  %v3642 = vmax.f32 %v2708, %v3328
  %v3643 = vmax.f32 %v2709, %v3331
  %v3644 = vmax.f32 %v2710, %v3336
  %v3645 = vmax.f32 %v2711, %v3339
  %v3646 = vmax.f32 %v2712, %v3344
  %v3647 = vmax.f32 %v2713, %v3347
  %v3648 = vmax.f32 %v2714, %v3352
  %v3649 = vmax.f32 %v2715, %v3355
  %v3650 = vmax.f32 %v2716, %v3360
  %v3651 = vmax.f32 %v2717, %v3363
  %v3652 = vmax.f32 %v2718, %v3368
  %v3653 = vmax.f32 %v2719, %v3371
  %v3654 = vmax.f32 %v2720, %v3376
  %v3655 = vmax.f32 %v2721, %v3379
  %v3656 = vmax.f32 %v2722, %v3384
  %v3657 = vmax.f32 %v2723, %v3387
  %v3658 = vmax.f32 %v2724, %v3392
  %v3659 = vmax.f32 %v2725, %v3395
  %v3660 = vmax.f32 %v2726, %v3400
  %v3661 = vmax.f32 %v2727, %v3403
  %v3662 = vmax.f32 %v2728, %v3408
  %v3663 = vmax.f32 %v2729, %v3411
  %v3664 = vmax.f32 %v2730, %v3416
  %v3665 = vmax.f32 %v2731, %v3419
  %v3666 = vmax.f32 %v2732, %v3424
  %v3667 = vmax.f32 %v2733, %v3427
  %v3668 = vmax.f32 %v2734, %v3432
  %v3669 = vmax.f32 %v2735, %v3435
  %v3670 = vmax.f32 %v2736, %v3440
  %v3671 = vmax.f32 %v2737, %v3443
  %v3672 = vmax.f32 %v2738, %v3448
  %v3673 = vmax.f32 %v2739, %v3451
  %v3674 = vmax.f32 %v2740, %v3456
  %v3675 = vmax.f32 %v2741, %v3459
  %v3676 = vmax.f32 %v2742, %v3464
  %v3677 = vmax.f32 %v2743, %v3467
  %v3678 = vmax.f32 %v2744, %v3472
  %v3679 = vmax.f32 %v2745, %v3475
  %v3680 = vmax.f32 %v2746, %v3480
  %v3681 = vmax.f32 %v2747, %v3483
  %v3682 = vmax.f32 %v2748, %v3488
  %v3683 = vmax.f32 %v2749, %v3491
  %v3684 = vmax.f32 %v2750, %v3496
  %v3685 = vmax.f32 %v2751, %v3499
  %v3686 = vmax.f32 %v2752, %v3504
  %v3687 = vmax.f32 %v2753, %v3507
  %v3688 = vmax.f32 %v2754, %v3512
  %v3689 = vmax.f32 %v2755, %v3515
  %v3690 = vmax.f32 %v2756, %v3520
  %v3691 = vmax.f32 %v2757, %v3523
  %v3692 = vmax.f32 %v2758, %v3528
  %v3693 = vmax.f32 %v2759, %v3531
  %v3694 = vmax.f32 %v2760, %v3536
  %v3695 = vmax.f32 %v2761, %v3539
  %v3696 = vmax.f32 %v2762, %v3544
  %v3697 = vmax.f32 %v2763, %v3547
  %v3698 = vmax.f32 %v2764, %v3552
  %v3699 = vmax.f32 %v2765, %v3555
  %v3700 = vmax.f32 %v2766, %v3560
  %v3701 = vmax.f32 %v2767, %v3563
  %v3702 = vmax.f32 %v2768, %v3568
  %v3703 = vmax.f32 %v2769, %v3571
  %v3704 = vmax.f32 %v2770, %v3576
  %v3705 = vmax.f32 %v2771, %v3579
  %v3706 = vmax.f32 %v2772, %v3584
  %v3707 = vmax.f32 %v2773, %v3587
  %v3708 = vmax.f32 %v2774, %v3592
  %v3709 = vmax.f32 %v2775, %v3595
  %v3710 = vmax.f32 %v2776, %v3600
  %v3711 = vmax.f32 %v2777, %v3603
  %v3712 = vmax.f32 %v2778, %v3608
  %v3713 = vmax.f32 %v2779, %v3611
  %v3714 = vld [vmem:[%s2] sm:$0x1]
  %v3716 = vlaneseq
  %v3717 = vshrl.u32 %v3716, 7
  %v3718 = vsub.s32 0, %v3717
  %v3719 = vrot.slane %v3714, %v3718
  %v3721 = vadd.f32 %v3614, %v3719
  %v3722 = vadd.f32 %v3615, %v3719
  %v3723 = vadd.f32 %v3616, %v3719
  %v3724 = vadd.f32 %v3617, %v3719
  %v3725 = vadd.f32 %v3618, %v3719
  %v3726 = vadd.f32 %v3619, %v3719
  %v3727 = vadd.f32 %v3620, %v3719
  %v3728 = vadd.f32 %v3621, %v3719
  %v3729 = vadd.f32 %v3622, %v3719
  %v3730 = vadd.f32 %v3623, %v3719
  %v3731 = vadd.f32 %v3624, %v3719
  %v3732 = vadd.f32 %v3625, %v3719
  %v3733 = vadd.f32 %v3626, %v3719
  %v3734 = vadd.f32 %v3627, %v3719
  %v3735 = vadd.f32 %v3628, %v3719
  %v3736 = vadd.f32 %v3629, %v3719
  %v3737 = vadd.f32 %v3630, %v3719
  %v3738 = vadd.f32 %v3631, %v3719
  %v3739 = vadd.f32 %v3632, %v3719
  %v3740 = vadd.f32 %v3633, %v3719
  %v3741 = vadd.f32 %v3634, %v3719
  %v3742 = vadd.f32 %v3635, %v3719
  %v3743 = vadd.f32 %v3636, %v3719
  %v3744 = vadd.f32 %v3637, %v3719
  %v3745 = vadd.f32 %v3638, %v3719
  %v3746 = vadd.f32 %v3639, %v3719
  %v3747 = vadd.f32 %v3640, %v3719
  %v3748 = vadd.f32 %v3641, %v3719
  %v3749 = vadd.f32 %v3642, %v3719
  %v3750 = vadd.f32 %v3643, %v3719
  %v3751 = vadd.f32 %v3644, %v3719
  %v3752 = vadd.f32 %v3645, %v3719
  %v3753 = vadd.f32 %v3646, %v3719
  %v3754 = vadd.f32 %v3647, %v3719
  %v3755 = vadd.f32 %v3648, %v3719
  %v3756 = vadd.f32 %v3649, %v3719
  %v3757 = vadd.f32 %v3650, %v3719
  %v3758 = vadd.f32 %v3651, %v3719
  %v3759 = vadd.f32 %v3652, %v3719
  %v3760 = vadd.f32 %v3653, %v3719
  %v3761 = vadd.f32 %v3654, %v3719
  %v3762 = vadd.f32 %v3655, %v3719
  %v3763 = vadd.f32 %v3656, %v3719
  %v3764 = vadd.f32 %v3657, %v3719
  %v3765 = vadd.f32 %v3658, %v3719
  %v3766 = vadd.f32 %v3659, %v3719
  %v3767 = vadd.f32 %v3660, %v3719
  %v3768 = vadd.f32 %v3661, %v3719
  %v3769 = vadd.f32 %v3662, %v3719
  %v3770 = vadd.f32 %v3663, %v3719
  %v3771 = vadd.f32 %v3664, %v3719
  %v3772 = vadd.f32 %v3665, %v3719
  %v3773 = vadd.f32 %v3666, %v3719
  %v3774 = vadd.f32 %v3667, %v3719
  %v3775 = vadd.f32 %v3668, %v3719
  %v3776 = vadd.f32 %v3669, %v3719
  %v3777 = vadd.f32 %v3670, %v3719
  %v3778 = vadd.f32 %v3671, %v3719
  %v3779 = vadd.f32 %v3672, %v3719
  %v3780 = vadd.f32 %v3673, %v3719
  %v3781 = vadd.f32 %v3674, %v3719
  %v3782 = vadd.f32 %v3675, %v3719
  %v3783 = vadd.f32 %v3676, %v3719
  %v3784 = vadd.f32 %v3677, %v3719
  %v3785 = vadd.f32 %v3678, %v3719
  %v3786 = vadd.f32 %v3679, %v3719
  %v3787 = vadd.f32 %v3680, %v3719
  %v3788 = vadd.f32 %v3681, %v3719
  %v3789 = vadd.f32 %v3682, %v3719
  %v3790 = vadd.f32 %v3683, %v3719
  %v3791 = vadd.f32 %v3684, %v3719
  %v3792 = vadd.f32 %v3685, %v3719
  %v3793 = vadd.f32 %v3686, %v3719
  %v3794 = vadd.f32 %v3687, %v3719
  %v3795 = vadd.f32 %v3688, %v3719
  %v3796 = vadd.f32 %v3689, %v3719
  %v3797 = vadd.f32 %v3690, %v3719
  %v3798 = vadd.f32 %v3691, %v3719
  %v3799 = vadd.f32 %v3692, %v3719
  %v3800 = vadd.f32 %v3693, %v3719
  %v3801 = vadd.f32 %v3694, %v3719
  %v3802 = vadd.f32 %v3695, %v3719
  %v3803 = vadd.f32 %v3696, %v3719
  %v3804 = vadd.f32 %v3697, %v3719
  %v3805 = vadd.f32 %v3698, %v3719
  %v3806 = vadd.f32 %v3699, %v3719
  %v3807 = vadd.f32 %v3700, %v3719
  %v3808 = vadd.f32 %v3701, %v3719
  %v3809 = vadd.f32 %v3702, %v3719
  %v3810 = vadd.f32 %v3703, %v3719
  %v3811 = vadd.f32 %v3704, %v3719
  %v3812 = vadd.f32 %v3705, %v3719
  %v3813 = vadd.f32 %v3706, %v3719
  %v3814 = vadd.f32 %v3707, %v3719
  %v3815 = vadd.f32 %v3708, %v3719
  %v3816 = vadd.f32 %v3709, %v3719
  %v3817 = vadd.f32 %v3710, %v3719
  %v3818 = vadd.f32 %v3711, %v3719
  %v3819 = vadd.f32 %v3712, %v3719
  %v3820 = vadd.f32 %v3713, %v3719
  %v3821 = vmax.f32 %v3721, 0.0
  %v3822 = vmax.f32 %v3722, 0.0
  %v3823 = vmax.f32 %v3723, 0.0
  %v3824 = vmax.f32 %v3724, 0.0
  %v3825 = vmax.f32 %v3725, 0.0
  %v3826 = vmax.f32 %v3726, 0.0
  %v3827 = vmax.f32 %v3727, 0.0
  %v3828 = vmax.f32 %v3728, 0.0
  %v3829 = vmax.f32 %v3729, 0.0
  %v3830 = vmax.f32 %v3730, 0.0
  %v3831 = vmax.f32 %v3731, 0.0
  %v3832 = vmax.f32 %v3732, 0.0
  %v3833 = vmax.f32 %v3733, 0.0
  %v3834 = vmax.f32 %v3734, 0.0
  %v3835 = vmax.f32 %v3735, 0.0
  %v3836 = vmax.f32 %v3736, 0.0
  %v3837 = vmax.f32 %v3737, 0.0
  %v3838 = vmax.f32 %v3738, 0.0
  %v3839 = vmax.f32 %v3739, 0.0
  %v3840 = vmax.f32 %v3740, 0.0
  %v3841 = vmax.f32 %v3741, 0.0
  %v3842 = vmax.f32 %v3742, 0.0
  %v3843 = vmax.f32 %v3743, 0.0
  %v3844 = vmax.f32 %v3744, 0.0
  %v3845 = vmax.f32 %v3745, 0.0
  %v3846 = vmax.f32 %v3746, 0.0
  %v3847 = vmax.f32 %v3747, 0.0
  %v3848 = vmax.f32 %v3748, 0.0
  %v3849 = vmax.f32 %v3749, 0.0
  %v3850 = vmax.f32 %v3750, 0.0
  %v3851 = vmax.f32 %v3751, 0.0
  %v3852 = vmax.f32 %v3752, 0.0
  %v3853 = vmax.f32 %v3753, 0.0
  %v3854 = vmax.f32 %v3754, 0.0
  %v3855 = vmax.f32 %v3755, 0.0
  %v3856 = vmax.f32 %v3756, 0.0
  %v3857 = vmax.f32 %v3757, 0.0
  %v3858 = vmax.f32 %v3758, 0.0
  %v3859 = vmax.f32 %v3759, 0.0
  %v3860 = vmax.f32 %v3760, 0.0
  %v3861 = vmax.f32 %v3761, 0.0
  %v3862 = vmax.f32 %v3762, 0.0
  %v3863 = vmax.f32 %v3763, 0.0
  %v3864 = vmax.f32 %v3764, 0.0
  %v3865 = vmax.f32 %v3765, 0.0
  %v3866 = vmax.f32 %v3766, 0.0
  %v3867 = vmax.f32 %v3767, 0.0
  %v3868 = vmax.f32 %v3768, 0.0
  %v3869 = vmax.f32 %v3769, 0.0
  %v3870 = vmax.f32 %v3770, 0.0
  %v3871 = vmax.f32 %v3771, 0.0
  %v3872 = vmax.f32 %v3772, 0.0
  %v3873 = vmax.f32 %v3773, 0.0
  %v3874 = vmax.f32 %v3774, 0.0
  %v3875 = vmax.f32 %v3775, 0.0
  %v3876 = vmax.f32 %v3776, 0.0
  %v3877 = vmax.f32 %v3777, 0.0
  %v3878 = vmax.f32 %v3778, 0.0
  %v3879 = vmax.f32 %v3779, 0.0
  %v3880 = vmax.f32 %v3780, 0.0
  %v3881 = vmax.f32 %v3781, 0.0
  %v3882 = vmax.f32 %v3782, 0.0
  %v3883 = vmax.f32 %v3783, 0.0
  %v3884 = vmax.f32 %v3784, 0.0
  %v3885 = vmax.f32 %v3785, 0.0
  %v3886 = vmax.f32 %v3786, 0.0
  %v3887 = vmax.f32 %v3787, 0.0
  %v3888 = vmax.f32 %v3788, 0.0
  %v3889 = vmax.f32 %v3789, 0.0
  %v3890 = vmax.f32 %v3790, 0.0
  %v3891 = vmax.f32 %v3791, 0.0
  %v3892 = vmax.f32 %v3792, 0.0
  %v3893 = vmax.f32 %v3793, 0.0
  %v3894 = vmax.f32 %v3794, 0.0
  %v3895 = vmax.f32 %v3795, 0.0
  %v3896 = vmax.f32 %v3796, 0.0
  %v3897 = vmax.f32 %v3797, 0.0
  %v3898 = vmax.f32 %v3798, 0.0
  %v3899 = vmax.f32 %v3799, 0.0
  %v3900 = vmax.f32 %v3800, 0.0
  %v3901 = vmax.f32 %v3801, 0.0
  %v3902 = vmax.f32 %v3802, 0.0
  %v3903 = vmax.f32 %v3803, 0.0
  %v3904 = vmax.f32 %v3804, 0.0
  %v3905 = vmax.f32 %v3805, 0.0
  %v3906 = vmax.f32 %v3806, 0.0
  %v3907 = vmax.f32 %v3807, 0.0
  %v3908 = vmax.f32 %v3808, 0.0
  %v3909 = vmax.f32 %v3809, 0.0
  %v3910 = vmax.f32 %v3810, 0.0
  %v3911 = vmax.f32 %v3811, 0.0
  %v3912 = vmax.f32 %v3812, 0.0
  %v3913 = vmax.f32 %v3813, 0.0
  %v3914 = vmax.f32 %v3814, 0.0
  %v3915 = vmax.f32 %v3815, 0.0
  %v3916 = vmax.f32 %v3816, 0.0
  %v3917 = vmax.f32 %v3817, 0.0
  %v3918 = vmax.f32 %v3818, 0.0
  %v3919 = vmax.f32 %v3819, 0.0
  %v3920 = vmax.f32 %v3820, 0.0
  %v3921 = vpack.c.bf16 %v3822, %v3821
  %v3922 = vpack.c.bf16 %v3824, %v3823
  %v3923 = vpack.c.bf16 %v3826, %v3825
  %v3924 = vpack.c.bf16 %v3828, %v3827
  %v3925 = vpack.c.bf16 %v3830, %v3829
  %v3926 = vpack.c.bf16 %v3832, %v3831
  %v3927 = vpack.c.bf16 %v3834, %v3833
  %v3928 = vpack.c.bf16 %v3836, %v3835
  %v3929 = vpack.c.bf16 %v3838, %v3837
  %v3930 = vpack.c.bf16 %v3840, %v3839
  %v3931 = vpack.c.bf16 %v3842, %v3841
  %v3932 = vpack.c.bf16 %v3844, %v3843
  %v3933 = vpack.c.bf16 %v3845, %v3845
  %v3934 = vpack.c.bf16 %v3847, %v3846
  %v3935 = vpack.c.bf16 %v3849, %v3848
  %v3936 = vpack.c.bf16 %v3851, %v3850
  %v3937 = vpack.c.bf16 %v3853, %v3852
  %v3938 = vpack.c.bf16 %v3855, %v3854
  %v3939 = vpack.c.bf16 %v3857, %v3856
  %v3940 = vpack.c.bf16 %v3859, %v3858
  %v3941 = vpack.c.bf16 %v3861, %v3860
  %v3942 = vpack.c.bf16 %v3863, %v3862
  %v3943 = vpack.c.bf16 %v3865, %v3864
  %v3944 = vpack.c.bf16 %v3867, %v3866
  %v3945 = vpack.c.bf16 %v3869, %v3868
  %v3946 = vpack.c.bf16 %v3870, %v3870
  %v3947 = vpack.c.bf16 %v3872, %v3871
  %v3948 = vpack.c.bf16 %v3874, %v3873
  %v3949 = vpack.c.bf16 %v3876, %v3875
  %v3950 = vpack.c.bf16 %v3878, %v3877
  %v3951 = vpack.c.bf16 %v3880, %v3879
  %v3952 = vpack.c.bf16 %v3882, %v3881
  %v3953 = vpack.c.bf16 %v3884, %v3883
  %v3954 = vpack.c.bf16 %v3886, %v3885
  %v3955 = vpack.c.bf16 %v3888, %v3887
  %v3956 = vpack.c.bf16 %v3890, %v3889
  %v3957 = vpack.c.bf16 %v3892, %v3891
  %v3958 = vpack.c.bf16 %v3894, %v3893
  %v3959 = vpack.c.bf16 %v3895, %v3895
  %v3960 = vpack.c.bf16 %v3897, %v3896
  %v3961 = vpack.c.bf16 %v3899, %v3898
  %v3962 = vpack.c.bf16 %v3901, %v3900
  %v3963 = vpack.c.bf16 %v3903, %v3902
  %v3964 = vpack.c.bf16 %v3905, %v3904
  %v3965 = vpack.c.bf16 %v3907, %v3906
  %v3966 = vpack.c.bf16 %v3909, %v3908
  %v3967 = vpack.c.bf16 %v3911, %v3910
  %v3968 = vpack.c.bf16 %v3913, %v3912
  %v3969 = vpack.c.bf16 %v3915, %v3914
  %v3970 = vpack.c.bf16 %v3917, %v3916
  %v3971 = vpack.c.bf16 %v3919, %v3918
  %v3972 = vpack.c.bf16 %v3920, %v3920
  %v4025 = vunpack.c.l.b16 %v3921
  %v4026 = vunpack.c.h.b16 %v3921
  %v4027 = vunpack.c.l.b16 %v3922
  %v4028 = vunpack.c.h.b16 %v3922
  %v4029 = vunpack.c.l.b16 %v3923
  %v4030 = vunpack.c.h.b16 %v3923
  %v4031 = vunpack.c.l.b16 %v3924
  %v4032 = vunpack.c.h.b16 %v3924
  %v4033 = vunpack.c.l.b16 %v3925
  %v4034 = vunpack.c.h.b16 %v3925
  %v4035 = vunpack.c.l.b16 %v3926
  %v4036 = vunpack.c.h.b16 %v3926
  %v4037 = vunpack.c.l.b16 %v3927
  %v4038 = vunpack.c.h.b16 %v3927
  %v4039 = vunpack.c.l.b16 %v3928
  %v4040 = vunpack.c.h.b16 %v3928
  %v4041 = vunpack.c.l.b16 %v3929
  %v4042 = vunpack.c.h.b16 %v3929
  %v4043 = vunpack.c.l.b16 %v3930
  %v4044 = vunpack.c.h.b16 %v3930
  %v4045 = vunpack.c.l.b16 %v3931
  %v4046 = vunpack.c.h.b16 %v3931
  %v4047 = vunpack.c.l.b16 %v3932
  %v4048 = vunpack.c.h.b16 %v3932
  %v4049 = vunpack.c.l.b16 %v3933
  %v4050 = vunpack.c.l.b16 %v3934
  %v4051 = vunpack.c.h.b16 %v3934
  %v4052 = vunpack.c.l.b16 %v3935
  %v4053 = vunpack.c.h.b16 %v3935
  %v4054 = vunpack.c.l.b16 %v3936
  %v4055 = vunpack.c.h.b16 %v3936
  %v4056 = vunpack.c.l.b16 %v3937
  %v4057 = vunpack.c.h.b16 %v3937
  %v4058 = vunpack.c.l.b16 %v3938
  %v4059 = vunpack.c.h.b16 %v3938
  %v4060 = vunpack.c.l.b16 %v3939
  %v4061 = vunpack.c.h.b16 %v3939
  %v4062 = vunpack.c.l.b16 %v3940
  %v4063 = vunpack.c.h.b16 %v3940
  %v4064 = vunpack.c.l.b16 %v3941
  %v4065 = vunpack.c.h.b16 %v3941
  %v4066 = vunpack.c.l.b16 %v3942
  %v4067 = vunpack.c.h.b16 %v3942
  %v4068 = vunpack.c.l.b16 %v3943
  %v4069 = vunpack.c.h.b16 %v3943
  %v4070 = vunpack.c.l.b16 %v3944
  %v4071 = vunpack.c.h.b16 %v3944
  %v4072 = vunpack.c.l.b16 %v3945
  %v4073 = vunpack.c.h.b16 %v3945
  %v4074 = vunpack.c.l.b16 %v3946
  %v4075 = vunpack.c.l.b16 %v3947
  %v4076 = vunpack.c.h.b16 %v3947
  %v4077 = vunpack.c.l.b16 %v3948
  %v4078 = vunpack.c.h.b16 %v3948
  %v4079 = vunpack.c.l.b16 %v3949
  %v4080 = vunpack.c.h.b16 %v3949
  %v4081 = vunpack.c.l.b16 %v3950
  %v4082 = vunpack.c.h.b16 %v3950
  %v4083 = vunpack.c.l.b16 %v3951
  %v4084 = vunpack.c.h.b16 %v3951
  %v4085 = vunpack.c.l.b16 %v3952
  %v4086 = vunpack.c.h.b16 %v3952
  %v4087 = vunpack.c.l.b16 %v3953
  %v4088 = vunpack.c.h.b16 %v3953
  %v4089 = vunpack.c.l.b16 %v3954
  %v4090 = vunpack.c.h.b16 %v3954
  %v4091 = vunpack.c.l.b16 %v3955
  %v4092 = vunpack.c.h.b16 %v3955
  %v4093 = vunpack.c.l.b16 %v3956
  %v4094 = vunpack.c.h.b16 %v3956
  %v4095 = vunpack.c.l.b16 %v3957
  %v4096 = vunpack.c.h.b16 %v3957
  %v4097 = vunpack.c.l.b16 %v3958
  %v4098 = vunpack.c.h.b16 %v3958
  %v4099 = vunpack.c.l.b16 %v3959
  %v4100 = vunpack.c.l.b16 %v3960
  %v4101 = vunpack.c.h.b16 %v3960
  %v4102 = vunpack.c.l.b16 %v3961
  %v4103 = vunpack.c.h.b16 %v3961
  %v4104 = vunpack.c.l.b16 %v3962
  %v4105 = vunpack.c.h.b16 %v3962
  %v4106 = vunpack.c.l.b16 %v3963
  %v4107 = vunpack.c.h.b16 %v3963
  %v4108 = vunpack.c.l.b16 %v3964
  %v4109 = vunpack.c.h.b16 %v3964
  %v4110 = vunpack.c.l.b16 %v3965
  %v4111 = vunpack.c.h.b16 %v3965
  %v4112 = vunpack.c.l.b16 %v3966
  %v4113 = vunpack.c.h.b16 %v3966
  %v4114 = vunpack.c.l.b16 %v3967
  %v4115 = vunpack.c.h.b16 %v3967
  %v4116 = vunpack.c.l.b16 %v3968
  %v4117 = vunpack.c.h.b16 %v3968
  %v4118 = vunpack.c.l.b16 %v3969
  %v4119 = vunpack.c.h.b16 %v3969
  %v4120 = vunpack.c.l.b16 %v3970
  %v4121 = vunpack.c.h.b16 %v3970
  %v4122 = vunpack.c.l.b16 %v3971
  %v4123 = vunpack.c.h.b16 %v3971
  %v4124 = vunpack.c.l.b16 %v3972
  %v4125 = vpack.c.b16 %v4025, %v4025
  %v4126 = vpack.c.b16 %v4026, %v4026
  %v4127 = vpack.c.b16 %v4027, %v4027
  %v4128 = vpack.c.b16 %v4028, %v4028
  %v4129 = vpack.c.b16 %v4029, %v4029
  %v4130 = vpack.c.b16 %v4030, %v4030
  %v4131 = vpack.c.b16 %v4031, %v4031
  %v4132 = vpack.c.b16 %v4032, %v4032
  %v4133 = vpack.c.b16 %v4033, %v4033
  %v4134 = vpack.c.b16 %v4034, %v4034
  %v4135 = vpack.c.b16 %v4035, %v4035
  %v4136 = vpack.c.b16 %v4036, %v4036
  %v4137 = vpack.c.b16 %v4037, %v4037
  %v4138 = vpack.c.b16 %v4038, %v4038
  %v4139 = vpack.c.b16 %v4039, %v4039
  %v4140 = vpack.c.b16 %v4040, %v4040
  %v4141 = vpack.c.b16 %v4041, %v4041
  %v4142 = vpack.c.b16 %v4042, %v4042
  %v4143 = vpack.c.b16 %v4043, %v4043
  %v4144 = vpack.c.b16 %v4044, %v4044
  %v4145 = vpack.c.b16 %v4045, %v4045
  %v4146 = vpack.c.b16 %v4046, %v4046
  %v4147 = vpack.c.b16 %v4047, %v4047
  %v4148 = vpack.c.b16 %v4048, %v4048
  %v4149 = vpack.c.b16 %v4049, %v4049
  %v4150 = vpack.c.b16 %v4050, %v4050
  %v4151 = vpack.c.b16 %v4051, %v4051
  %v4152 = vpack.c.b16 %v4052, %v4052
  %v4153 = vpack.c.b16 %v4053, %v4053
  %v4154 = vpack.c.b16 %v4054, %v4054
  %v4155 = vpack.c.b16 %v4055, %v4055
  %v4156 = vpack.c.b16 %v4056, %v4056
  %v4157 = vpack.c.b16 %v4057, %v4057
  %v4158 = vpack.c.b16 %v4058, %v4058
  %v4159 = vpack.c.b16 %v4059, %v4059
  %v4160 = vpack.c.b16 %v4060, %v4060
  %v4161 = vpack.c.b16 %v4061, %v4061
  %v4162 = vpack.c.b16 %v4062, %v4062
  %v4163 = vpack.c.b16 %v4063, %v4063
  %v4164 = vpack.c.b16 %v4064, %v4064
  %v4165 = vpack.c.b16 %v4065, %v4065
  %v4166 = vpack.c.b16 %v4066, %v4066
  %v4167 = vpack.c.b16 %v4067, %v4067
  %v4168 = vpack.c.b16 %v4068, %v4068
  %v4169 = vpack.c.b16 %v4069, %v4069
  %v4170 = vpack.c.b16 %v4070, %v4070
  %v4171 = vpack.c.b16 %v4071, %v4071
  %v4172 = vpack.c.b16 %v4072, %v4072
  %v4173 = vpack.c.b16 %v4073, %v4073
  %v4174 = vpack.c.b16 %v4074, %v4074
  %v4175 = vpack.c.b16 %v4075, %v4075
  %v4176 = vpack.c.b16 %v4076, %v4076
  %v4177 = vpack.c.b16 %v4077, %v4077
  %v4178 = vpack.c.b16 %v4078, %v4078
  %v4179 = vpack.c.b16 %v4079, %v4079
  %v4180 = vpack.c.b16 %v4080, %v4080
  %v4181 = vpack.c.b16 %v4081, %v4081
  %v4182 = vpack.c.b16 %v4082, %v4082
  %v4183 = vpack.c.b16 %v4083, %v4083
  %v4184 = vpack.c.b16 %v4084, %v4084
  %v4185 = vpack.c.b16 %v4085, %v4085
  %v4186 = vpack.c.b16 %v4086, %v4086
  %v4187 = vpack.c.b16 %v4087, %v4087
  %v4188 = vpack.c.b16 %v4088, %v4088
  %v4189 = vpack.c.b16 %v4089, %v4089
  %v4190 = vpack.c.b16 %v4090, %v4090
  %v4191 = vpack.c.b16 %v4091, %v4091
  %v4192 = vpack.c.b16 %v4092, %v4092
  %v4193 = vpack.c.b16 %v4093, %v4093
  %v4194 = vpack.c.b16 %v4094, %v4094
  %v4195 = vpack.c.b16 %v4095, %v4095
  %v4196 = vpack.c.b16 %v4096, %v4096
  %v4197 = vpack.c.b16 %v4097, %v4097
  %v4198 = vpack.c.b16 %v4098, %v4098
  %v4199 = vpack.c.b16 %v4099, %v4099
  %v4200 = vpack.c.b16 %v4100, %v4100
  %v4201 = vpack.c.b16 %v4101, %v4101
  %v4202 = vpack.c.b16 %v4102, %v4102
  %v4203 = vpack.c.b16 %v4103, %v4103
  %v4204 = vpack.c.b16 %v4104, %v4104
  %v4205 = vpack.c.b16 %v4105, %v4105
  %v4206 = vpack.c.b16 %v4106, %v4106
  %v4207 = vpack.c.b16 %v4107, %v4107
  %v4208 = vpack.c.b16 %v4108, %v4108
  %v4209 = vpack.c.b16 %v4109, %v4109
  %v4210 = vpack.c.b16 %v4110, %v4110
  %v4211 = vpack.c.b16 %v4111, %v4111
  %v4212 = vpack.c.b16 %v4112, %v4112
  %v4213 = vpack.c.b16 %v4113, %v4113
  %v4214 = vpack.c.b16 %v4114, %v4114
  %v4215 = vpack.c.b16 %v4115, %v4115
  %v4216 = vpack.c.b16 %v4116, %v4116
  %v4217 = vpack.c.b16 %v4117, %v4117
  %v4218 = vpack.c.b16 %v4118, %v4118
  %v4219 = vpack.c.b16 %v4119, %v4119
  %v4220 = vpack.c.b16 %v4120, %v4120
  %v4221 = vpack.c.b16 %v4121, %v4121
  %v4222 = vpack.c.b16 %v4122, %v4122
  %v4223 = vpack.c.b16 %v4123, %v4123
  %v4224 = vpack.c.b16 %v4124, %v4124
  %4325 = vst [vmem:[%s3] sm:$0xf] %v4125
  %4326 = vst [vmem:[%s3 + $0x4] sm:$0xf] %v4126
  %4327 = vst [vmem:[%s3 + $0x8] sm:$0xf] %v4127
  %4328 = vst [vmem:[%s3 + $0xc] sm:$0xf] %v4128
  %4329 = vst [vmem:[%s3 + $0x10] sm:$0xf] %v4129
  %4330 = vst [vmem:[%s3 + $0x14] sm:$0xf] %v4130
  %4331 = vst [vmem:[%s3 + $0x18] sm:$0xf] %v4131
  %4332 = vst [vmem:[%s3 + $0x1c] sm:$0xf] %v4132
  %4333 = vst [vmem:[%s3 + $0x20] sm:$0xf] %v4133
  %4334 = vst [vmem:[%s3 + $0x24] sm:$0xf] %v4134
  %4335 = vst [vmem:[%s3 + $0x28] sm:$0xf] %v4135
  %4336 = vst [vmem:[%s3 + $0x2c] sm:$0xf] %v4136
  %4337 = vst [vmem:[%s3 + $0x30] sm:$0xf] %v4137
  %4338 = vst [vmem:[%s3 + $0x34] sm:$0xf] %v4138
  %4339 = vst [vmem:[%s3 + $0x38] sm:$0xf] %v4139
  %4340 = vst [vmem:[%s3 + $0x3c] sm:$0xf] %v4140
  %4341 = vst [vmem:[%s3 + $0x40] sm:$0xf] %v4141
  %4342 = vst [vmem:[%s3 + $0x44] sm:$0xf] %v4142
  %4343 = vst [vmem:[%s3 + $0x48] sm:$0xf] %v4143
  %4344 = vst [vmem:[%s3 + $0x4c] sm:$0xf] %v4144
  %4345 = vst [vmem:[%s3 + $0x50] sm:$0xf] %v4145
  %4346 = vst [vmem:[%s3 + $0x54] sm:$0xf] %v4146
  %4347 = vst [vmem:[%s3 + $0x58] sm:$0xf] %v4147
  %4348 = vst [vmem:[%s3 + $0x5c] sm:$0xf] %v4148
  %4349 = vst [vmem:[%s3 + $0x60] sm:$0xf] %v4149
  %4350 = vst [vmem:[%s3 + $0x64] sm:$0xf] %v4150
  %4351 = vst [vmem:[%s3 + $0x68] sm:$0xf] %v4151
  %4352 = vst [vmem:[%s3 + $0x6c] sm:$0xf] %v4152
  %4353 = vst [vmem:[%s3 + $0x70] sm:$0xf] %v4153
  %4354 = vst [vmem:[%s3 + $0x74] sm:$0xf] %v4154
  %4355 = vst [vmem:[%s3 + $0x78] sm:$0xf] %v4155
  %4356 = vst [vmem:[%s3 + $0x7c] sm:$0xf] %v4156
  %4357 = vst [vmem:[%s3 + $0x80] sm:$0xf] %v4157
  %4358 = vst [vmem:[%s3 + $0x84] sm:$0xf] %v4158
  %4359 = vst [vmem:[%s3 + $0x88] sm:$0xf] %v4159
  %4360 = vst [vmem:[%s3 + $0x8c] sm:$0xf] %v4160
  %4361 = vst [vmem:[%s3 + $0x90] sm:$0xf] %v4161
  %4362 = vst [vmem:[%s3 + $0x94] sm:$0xf] %v4162
  %4363 = vst [vmem:[%s3 + $0x98] sm:$0xf] %v4163
  %4364 = vst [vmem:[%s3 + $0x9c] sm:$0xf] %v4164
  %4365 = vst [vmem:[%s3 + $0xa0] sm:$0xf] %v4165
  %4366 = vst [vmem:[%s3 + $0xa4] sm:$0xf] %v4166
  %4367 = vst [vmem:[%s3 + $0xa8] sm:$0xf] %v4167
  %4368 = vst [vmem:[%s3 + $0xac] sm:$0xf] %v4168
  %4369 = vst [vmem:[%s3 + $0xb0] sm:$0xf] %v4169
  %4370 = vst [vmem:[%s3 + $0xb4] sm:$0xf] %v4170
  %4371 = vst [vmem:[%s3 + $0xb8] sm:$0xf] %v4171
  %4372 = vst [vmem:[%s3 + $0xbc] sm:$0xf] %v4172
  %4373 = vst [vmem:[%s3 + $0xc0] sm:$0xf] %v4173
  %4374 = vst [vmem:[%s3 + $0xc4] sm:$0xf] %v4174
  %4375 = vst [vmem:[%s3 + $0xc8] sm:$0xf] %v4175
  %4376 = vst [vmem:[%s3 + $0xcc] sm:$0xf] %v4176
  %4377 = vst [vmem:[%s3 + $0xd0] sm:$0xf] %v4177
  %4378 = vst [vmem:[%s3 + $0xd4] sm:$0xf] %v4178
  %4379 = vst [vmem:[%s3 + $0xd8] sm:$0xf] %v4179
  %4380 = vst [vmem:[%s3 + $0xdc] sm:$0xf] %v4180
  %4381 = vst [vmem:[%s3 + $0xe0] sm:$0xf] %v4181
  %4382 = vst [vmem:[%s3 + $0xe4] sm:$0xf] %v4182
  %4383 = vst [vmem:[%s3 + $0xe8] sm:$0xf] %v4183
  %4384 = vst [vmem:[%s3 + $0xec] sm:$0xf] %v4184
  %4385 = vst [vmem:[%s3 + $0xf0] sm:$0xf] %v4185
  %4386 = vst [vmem:[%s3 + $0xf4] sm:$0xf] %v4186
  %4387 = vst [vmem:[%s3 + $0xf8] sm:$0xf] %v4187
  %4388 = vst [vmem:[%s3 + $0xfc] sm:$0xf] %v4188
  %4389 = vst [vmem:[%s3 + $0x100] sm:$0xf] %v4189
  %4390 = vst [vmem:[%s3 + $0x104] sm:$0xf] %v4190
  %4391 = vst [vmem:[%s3 + $0x108] sm:$0xf] %v4191
  %4392 = vst [vmem:[%s3 + $0x10c] sm:$0xf] %v4192
  %4393 = vst [vmem:[%s3 + $0x110] sm:$0xf] %v4193
  %4394 = vst [vmem:[%s3 + $0x114] sm:$0xf] %v4194
  %4395 = vst [vmem:[%s3 + $0x118] sm:$0xf] %v4195
  %4396 = vst [vmem:[%s3 + $0x11c] sm:$0xf] %v4196
  %4397 = vst [vmem:[%s3 + $0x120] sm:$0xf] %v4197
  %4398 = vst [vmem:[%s3 + $0x124] sm:$0xf] %v4198
  %4399 = vst [vmem:[%s3 + $0x128] sm:$0xf] %v4199
  %4400 = vst [vmem:[%s3 + $0x12c] sm:$0xf] %v4200
  %4401 = vst [vmem:[%s3 + $0x130] sm:$0xf] %v4201
  %4402 = vst [vmem:[%s3 + $0x134] sm:$0xf] %v4202
  %4403 = vst [vmem:[%s3 + $0x138] sm:$0xf] %v4203
  %4404 = vst [vmem:[%s3 + $0x13c] sm:$0xf] %v4204
  %4405 = vst [vmem:[%s3 + $0x140] sm:$0xf] %v4205
  %4406 = vst [vmem:[%s3 + $0x144] sm:$0xf] %v4206
  %4407 = vst [vmem:[%s3 + $0x148] sm:$0xf] %v4207
  %4408 = vst [vmem:[%s3 + $0x14c] sm:$0xf] %v4208
  %4409 = vst [vmem:[%s3 + $0x150] sm:$0xf] %v4209
  %4410 = vst [vmem:[%s3 + $0x154] sm:$0xf] %v4210
  %4411 = vst [vmem:[%s3 + $0x158] sm:$0xf] %v4211
  %4412 = vst [vmem:[%s3 + $0x15c] sm:$0xf] %v4212
  %4413 = vst [vmem:[%s3 + $0x160] sm:$0xf] %v4213
  %4414 = vst [vmem:[%s3 + $0x164] sm:$0xf] %v4214
  %4415 = vst [vmem:[%s3 + $0x168] sm:$0xf] %v4215
  %4416 = vst [vmem:[%s3 + $0x16c] sm:$0xf] %v4216
  %4417 = vst [vmem:[%s3 + $0x170] sm:$0xf] %v4217
  %4418 = vst [vmem:[%s3 + $0x174] sm:$0xf] %v4218
  %4419 = vst [vmem:[%s3 + $0x178] sm:$0xf] %v4219
  %4420 = vst [vmem:[%s3 + $0x17c] sm:$0xf] %v4220
  %4421 = vst [vmem:[%s3 + $0x180] sm:$0xf] %v4221
  %4422 = vst [vmem:[%s3 + $0x184] sm:$0xf] %v4222
  %4423 = vst [vmem:[%s3 + $0x188] sm:$0xf] %v4223
  %4424 = vst [vmem:[%s3 + $0x18c] sm:$0xf] %v4224
  // Predicated region
  $region14: #{net_forward.3} parent=0 // pred_check
    _
  $region15: #{net_forward.3} parent=0 // pred_check_branch
    %4426 = sbr.rel (0) target = $region17
  $region16: #{net_forward.3} parent=0 // pred_region
    _
  $region17: #{net_forward.3} parent=0 // pred_fallthru
    _
  // Predicated region
  $region18: #{net_forward.3} parent=0 // pred_check
    _
  $region19: #{net_forward.3} parent=0 // pred_check_branch
    %4428 = sbr.rel (0) target = $region21
  $region20: #{net_forward.3} parent=0 // pred_region
    _
  $region21: #{net_forward.3} parent=0 // pred_fallthru
    _

// kernel: net_forward.4
$region0: #{net_forward.4}
  #allocation0 [shape = 'u32[]', space=smem, size = 0x4, offset = 0x4, fixed_abs, tag = 'smem constant byte address 0x4 - core index']
  #allocation1 [shape = 'u32[144,128]{1,0:T(1,128)}', space=vmem, size = 0x12000, scoped, tag = 'internal scratch']
  %s0 = inlined_call_operand.vmem [shape: bf16[4,4,32,256], index: 0, kind: input, shape index: {}]
  %s1 = inlined_call_operand.vmem [shape: bf16[256,128], index: 1, kind: input, shape index: {}]
  %s2 = inlined_call_operand.vmem [shape: f32[1,128], index: 2, kind: input, shape index: {}]
  %s3 = inlined_call_operand.vmem [shape: bf16[4,32,128], index: 3, kind: output, shape index: {}]
  %s4 = sld [smem:[#allocation0]]
  $region22: #{net_forward.4} parent=0
    _
  %s6 = ssub.s32 1, %s4
  %s7 = scalar_select 0, %s6, %s4
  // Predicated region
  $region2: #{net_forward.4} parent=0 // pred_check
    _
  $region3: #{net_forward.4} parent=0 // pred_check_branch
    %9 = sbr.rel (0) target = $region5
  $region4: #{net_forward.4} parent=0 // pred_region
    _
  $region5: #{net_forward.4} parent=0 // pred_fallthru
    _
  // Predicated region
  $region6: #{net_forward.4} parent=0 // pred_check
    _
  $region7: #{net_forward.4} parent=0 // pred_check_branch
    %11 = sbr.rel (0) target = $region9
  $region8: #{net_forward.4} parent=0 // pred_region
    _
  $region9: #{net_forward.4} parent=0 // pred_fallthru
    _
  // Predicated region
  $region10: #{net_forward.4} parent=0 // pred_check
    _
  $region11: #{net_forward.4} parent=0 // pred_check_branch
    %13 = sbr.rel (0) target = $region13
  $region12: #{net_forward.4} parent=0 // pred_region
    _
  $region13: #{net_forward.4} parent=0 // pred_fallthru
    _
  %v15 = vld [vmem:[%s1] sm:$0xf]
  %v16 = vld [vmem:[%s1 + $0x4] sm:$0xf]
  %v17 = vld [vmem:[%s1 + $0x8] sm:$0xf]
  %v18 = vld [vmem:[%s1 + $0xc] sm:$0xf]
  %v19 = vld [vmem:[%s1 + $0x10] sm:$0xf]
  %v20 = vld [vmem:[%s1 + $0x14] sm:$0xf]
  %v21 = vld [vmem:[%s1 + $0x18] sm:$0xf]
  %v22 = vld [vmem:[%s1 + $0x1c] sm:$0xf]
  %v23 = vld [vmem:[%s1 + $0x20] sm:$0xf]
  %v24 = vld [vmem:[%s1 + $0x24] sm:$0xf]
  %v25 = vld [vmem:[%s1 + $0x28] sm:$0xf]
  %v26 = vld [vmem:[%s1 + $0x2c] sm:$0xf]
  %v27 = vld [vmem:[%s1 + $0x30] sm:$0xf]
  %v28 = vld [vmem:[%s1 + $0x34] sm:$0xf]
  %v29 = vld [vmem:[%s1 + $0x38] sm:$0xf]
  %v30 = vld [vmem:[%s1 + $0x3c] sm:$0xf]
  %v31 = vld [vmem:[%s1 + $0x40] sm:$0xf]
  %v32 = vld [vmem:[%s1 + $0x44] sm:$0xf]
  %v33 = vld [vmem:[%s1 + $0x48] sm:$0xf]
  %v34 = vld [vmem:[%s1 + $0x4c] sm:$0xf]
  %v35 = vld [vmem:[%s1 + $0x50] sm:$0xf]
  %v36 = vld [vmem:[%s1 + $0x54] sm:$0xf]
  %v37 = vld [vmem:[%s1 + $0x58] sm:$0xf]
  %v38 = vld [vmem:[%s1 + $0x5c] sm:$0xf]
  %v39 = vld [vmem:[%s1 + $0x60] sm:$0xf]
  %v40 = vld [vmem:[%s1 + $0x64] sm:$0xf]
  %v41 = vld [vmem:[%s1 + $0x68] sm:$0xf]
  %v42 = vld [vmem:[%s1 + $0x6c] sm:$0xf]
  %v43 = vld [vmem:[%s1 + $0x70] sm:$0xf]
  %v44 = vld [vmem:[%s1 + $0x74] sm:$0xf]
  %v45 = vld [vmem:[%s1 + $0x78] sm:$0xf]
  %v46 = vld [vmem:[%s1 + $0x7c] sm:$0xf]
  %v47 = vld [vmem:[%s0] sm:$0xff]
  %v48 = vld [vmem:[%s0 + $0x8] sm:$0xff]
  %v49 = vld [vmem:[%s0 + $0x10] sm:$0xff]
  %v50 = vld [vmem:[%s0 + $0x18] sm:$0xff]
  %v51 = vld [vmem:[%s0 + $0x20] sm:$0xff]
  %v52 = vld [vmem:[%s0 + $0x28] sm:$0xff]
  %v53 = vld [vmem:[%s0 + $0x30] sm:$0xff]
  %v54 = vld [vmem:[%s0 + $0x38] sm:$0xff]
  %v55 = vld [vmem:[%s0 + $0x40] sm:$0xff]
  %v56 = vld [vmem:[%s0 + $0x48] sm:$0xff]
  %v57 = vld [vmem:[%s0 + $0x50] sm:$0xff]
  %v58 = vld [vmem:[%s0 + $0x58] sm:$0xff]
  %v59 = vld [vmem:[%s0 + $0x60] sm:$0xff]
  %v60 = vld [vmem:[%s0 + $0x68] sm:$0xff]
  %v61 = vld [vmem:[%s0 + $0x70] sm:$0xff]
  %v62 = vld [vmem:[%s0 + $0x78] sm:$0xff]
  %v79 = vunpack.c.l.b16 %v47
  %v80 = vunpack.c.h.b16 %v47
  %v81 = vunpack.c.l.b16 %v48
  %v82 = vunpack.c.h.b16 %v48
  %v83 = vunpack.c.l.b16 %v49
  %v84 = vunpack.c.h.b16 %v49
  %v85 = vunpack.c.l.b16 %v50
  %v86 = vunpack.c.h.b16 %v50
  %v87 = vunpack.c.l.b16 %v51
  %v88 = vunpack.c.h.b16 %v51
  %v89 = vunpack.c.l.b16 %v52
  %v90 = vunpack.c.h.b16 %v52
  %v91 = vunpack.c.l.b16 %v53
  %v92 = vunpack.c.h.b16 %v53
  %v93 = vunpack.c.l.b16 %v54
  %v94 = vunpack.c.h.b16 %v54
  %v95 = vunpack.c.l.b16 %v55
  %v96 = vunpack.c.h.b16 %v55
  %v97 = vunpack.c.l.b16 %v56
  %v98 = vunpack.c.h.b16 %v56
  %v99 = vunpack.c.l.b16 %v57
  %v100 = vunpack.c.h.b16 %v57
  %v101 = vunpack.c.l.b16 %v58
  %v102 = vunpack.c.h.b16 %v58
  %v103 = vunpack.c.l.b16 %v59
  %v104 = vunpack.c.h.b16 %v59
  %v105 = vunpack.c.l.b16 %v60
  %v106 = vunpack.c.h.b16 %v60
  %v107 = vunpack.c.l.b16 %v61
  %v108 = vunpack.c.h.b16 %v61
  %v109 = vunpack.c.l.b16 %v62
  %v110 = vunpack.c.h.b16 %v62
  %v111 = vpack.c.b16 %v81, %v79
  %v112 = vpack.c.b16 %v82, %v80
  %v113 = vpack.c.b16 %v85, %v83
  %v114 = vpack.c.b16 %v86, %v84
  %v115 = vpack.c.b16 %v89, %v87
  %v116 = vpack.c.b16 %v90, %v88
  %v117 = vpack.c.b16 %v93, %v91
  %v118 = vpack.c.b16 %v94, %v92
  %v119 = vpack.c.b16 %v97, %v95
  %v120 = vpack.c.b16 %v98, %v96
  %v121 = vpack.c.b16 %v101, %v99
  %v122 = vpack.c.b16 %v102, %v100
  %v123 = vpack.c.b16 %v105, %v103
  %v124 = vpack.c.b16 %v106, %v104
  %v125 = vpack.c.b16 %v109, %v107
  %v126 = vpack.c.b16 %v110, %v108
  %v175 = vunpack.c.l.b16 %v15
  %v176 = vunpack.c.l.b16 %v16
  %v177 = vunpack.c.l.b16 %v17
  %v178 = vunpack.c.l.b16 %v18
  %v179 = vunpack.c.l.b16 %v19
  %v180 = vunpack.c.l.b16 %v20
  %v181 = vunpack.c.l.b16 %v21
  %v182 = vunpack.c.l.b16 %v22
  %v183 = vunpack.c.l.b16 %v23
  %v184 = vunpack.c.l.b16 %v24
  %v185 = vunpack.c.l.b16 %v25
  %v186 = vunpack.c.l.b16 %v26
  %v187 = vunpack.c.l.b16 %v27
  %v188 = vunpack.c.l.b16 %v28
  %v189 = vunpack.c.l.b16 %v29
  %v190 = vunpack.c.l.b16 %v30
  %v191 = vunpack.c.l.b16 %v31
  %v192 = vunpack.c.l.b16 %v32
  %v193 = vunpack.c.l.b16 %v33
  %v194 = vunpack.c.l.b16 %v34
  %v195 = vunpack.c.l.b16 %v35
  %v196 = vunpack.c.l.b16 %v36
  %v197 = vunpack.c.l.b16 %v37
  %v198 = vunpack.c.l.b16 %v38
  %v199 = vunpack.c.l.b16 %v39
  %v200 = vunpack.c.l.b16 %v40
  %v201 = vunpack.c.l.b16 %v41
  %v202 = vunpack.c.l.b16 %v42
  %v203 = vunpack.c.l.b16 %v43
  %v204 = vunpack.c.l.b16 %v44
  %v205 = vunpack.c.l.b16 %v45
  %v206 = vunpack.c.l.b16 %v46
  %v207 = vpack.c.b16 %v176, %v175
  %v208 = vpack.c.b16 %v178, %v177
  %v209 = vpack.c.b16 %v180, %v179
  %v210 = vpack.c.b16 %v182, %v181
  %v211 = vpack.c.b16 %v184, %v183
  %v212 = vpack.c.b16 %v186, %v185
  %v213 = vpack.c.b16 %v188, %v187
  %v214 = vpack.c.b16 %v190, %v189
  %v215 = vpack.c.b16 %v192, %v191
  %v216 = vpack.c.b16 %v194, %v193
  %v217 = vpack.c.b16 %v196, %v195
  %v218 = vpack.c.b16 %v198, %v197
  %v219 = vpack.c.b16 %v200, %v199
  %v220 = vpack.c.b16 %v202, %v201
  %v221 = vpack.c.b16 %v204, %v203
  %v222 = vpack.c.b16 %v206, %v205
  %239 = vmatprep.subr.bf16.mxu0 0
  %240 = vmatpush1.bf16.msra.mxu0 %v207
  %241 = vmatprep.subr.bf16.mxu0 0
  %242 = vmatpush1.bf16.msra.mxu0 %v208
  %243 = vmatprep.subr.bf16.mxu0 0
  %244 = vmatpush1.bf16.msra.mxu0 %v209
  %245 = vmatprep.subr.bf16.mxu0 0
  %246 = vmatpush1.bf16.msra.mxu0 %v210
  %247 = vmatprep.subr.bf16.mxu0 0
  %248 = vmatpush1.bf16.msra.mxu0 %v211
  %249 = vmatprep.subr.bf16.mxu0 0
  %250 = vmatpush1.bf16.msra.mxu0 %v212
  %251 = vmatprep.subr.bf16.mxu0 0
  %252 = vmatpush1.bf16.msra.mxu0 %v213
  %253 = vmatprep.subr.bf16.mxu0 0
  %254 = vmatpush1.bf16.msra.mxu0 %v214
  %255 = vmatprep.subr.bf16.mxu0 0
  %256 = vmatpush1.bf16.msra.mxu0 %v215
  %257 = vmatprep.subr.bf16.mxu0 0
  %258 = vmatpush1.bf16.msra.mxu0 %v216
  %259 = vmatprep.subr.bf16.mxu0 0
  %260 = vmatpush1.bf16.msra.mxu0 %v217
  %261 = vmatprep.subr.bf16.mxu0 0
  %262 = vmatpush1.bf16.msra.mxu0 %v218
  %263 = vmatprep.subr.bf16.mxu0 0
  %264 = vmatpush1.bf16.msra.mxu0 %v219
  %265 = vmatprep.subr.bf16.mxu0 0
  %266 = vmatpush1.bf16.msra.mxu0 %v220
  %267 = vmatprep.subr.bf16.mxu0 0
  %268 = vmatpush1.bf16.msra.mxu0 %v221
  %269 = vmatprep.subr.bf16.mxu0 0
  %270 = vmatpush1.bf16.msra.mxu0 %v222
  %271 = vmatprep.mubr.bf16.mxu0 %v112
  %272 = vmatmul.mubr.bf16.gmra.mrb[0].mxu0 %v111
  %v273 = vpop.f32.mrb[0].mxu0
  %v274 = vadd.f32 0.0, %v273
  %v275 = vpop.f32.mrb[0].mxu0
  %v276 = vpop.f32.mrb[0].mxu0
  %v277 = vadd.f32 0.0, %v276
  %v278 = vpop.f32.mrb[0].mxu0
  %279 = vmatprep.mubr.bf16.mxu0 %v114
  %280 = vmatmul.mubr.bf16.gmra.mrb[0].mxu0 %v113
  %v281 = vpop.f32.mrb[0].mxu0
  %v282 = vadd.f32 0.0, %v281
  %v283 = vpop.f32.mrb[0].mxu0
  %v284 = vpop.f32.mrb[0].mxu0
  %v285 = vadd.f32 0.0, %v284
  %v286 = vpop.f32.mrb[0].mxu0
  %287 = vmatprep.mubr.bf16.mxu0 %v116
  %288 = vmatmul.mubr.bf16.gmra.mrb[0].mxu0 %v115
  %v289 = vpop.f32.mrb[0].mxu0
  %v290 = vadd.f32 0.0, %v289
  %v291 = vpop.f32.mrb[0].mxu0
  %v292 = vpop.f32.mrb[0].mxu0
  %v293 = vadd.f32 0.0, %v292
  %v294 = vpop.f32.mrb[0].mxu0
  %295 = vmatprep.mubr.bf16.mxu0 %v118
  %296 = vmatmul.mubr.bf16.gmra.mrb[0].mxu0 %v117
  %v297 = vpop.f32.mrb[0].mxu0
  %v298 = vadd.f32 0.0, %v297
  %v299 = vpop.f32.mrb[0].mxu0
  %v300 = vpop.f32.mrb[0].mxu0
  %v301 = vadd.f32 0.0, %v300
  %v302 = vpop.f32.mrb[0].mxu0
  %303 = vmatprep.mubr.bf16.mxu0 %v120
  %304 = vmatmul.mubr.bf16.gmra.mrb[0].mxu0 %v119
  %v305 = vpop.f32.mrb[0].mxu0
  %v306 = vadd.f32 0.0, %v305
  %v307 = vpop.f32.mrb[0].mxu0
  %v308 = vpop.f32.mrb[0].mxu0
  %v309 = vadd.f32 0.0, %v308
  %v310 = vpop.f32.mrb[0].mxu0
  %311 = vmatprep.mubr.bf16.mxu0 %v122
  %312 = vmatmul.mubr.bf16.gmra.mrb[0].mxu0 %v121
  %v313 = vpop.f32.mrb[0].mxu0
  %v314 = vadd.f32 0.0, %v313
  %v315 = vpop.f32.mrb[0].mxu0
  %v316 = vpop.f32.mrb[0].mxu0
  %v317 = vadd.f32 0.0, %v316
  %v318 = vpop.f32.mrb[0].mxu0
  %319 = vmatprep.mubr.bf16.mxu0 %v124
  %320 = vmatmul.mubr.bf16.gmra.mrb[0].mxu0 %v123
  %v321 = vpop.f32.mrb[0].mxu0
  %v322 = vadd.f32 0.0, %v321
  %v323 = vpop.f32.mrb[0].mxu0
  %v324 = vpop.f32.mrb[0].mxu0
  %v325 = vadd.f32 0.0, %v324
  %v326 = vpop.f32.mrb[0].mxu0
  %327 = vmatprep.mubr.bf16.mxu0 %v126
  %328 = vmatmul.mubr.bf16.gmra.mrb[0].mxu0 %v125
  %v329 = vpop.f32.mrb[0].mxu0
  %v330 = vadd.f32 0.0, %v329
  %v331 = vpop.f32.mrb[0].mxu0
  %v332 = vpop.f32.mrb[0].mxu0
  %v333 = vadd.f32 0.0, %v332
  %v334 = vpop.f32.mrb[0].mxu0
  %335 = vdwg.mxu0
  %s336 = scalar_lea.vmem %s0, 128
  %v337 = vld [vmem:[%s336] sm:$0xff]
  %v338 = vld [vmem:[%s336 + $0x8] sm:$0xff]
  %v339 = vld [vmem:[%s336 + $0x10] sm:$0xff]
  %v340 = vld [vmem:[%s336 + $0x18] sm:$0xff]
  %v341 = vld [vmem:[%s336 + $0x20] sm:$0xff]
  %v342 = vld [vmem:[%s336 + $0x28] sm:$0xff]
  %v343 = vld [vmem:[%s336 + $0x30] sm:$0xff]
  %v344 = vld [vmem:[%s336 + $0x38] sm:$0xff]
  %v345 = vld [vmem:[%s336 + $0x40] sm:$0xff]
  %v346 = vld [vmem:[%s336 + $0x48] sm:$0xff]
  %v347 = vld [vmem:[%s336 + $0x50] sm:$0xff]
  %v348 = vld [vmem:[%s336 + $0x58] sm:$0xff]
  %v349 = vld [vmem:[%s336 + $0x60] sm:$0xff]
  %v350 = vld [vmem:[%s336 + $0x68] sm:$0xff]
  %v351 = vld [vmem:[%s336 + $0x70] sm:$0xff]
  %v352 = vld [vmem:[%s336 + $0x78] sm:$0xff]
  %v369 = vunpack.c.l.b16 %v337
  %v370 = vunpack.c.h.b16 %v337
  %v371 = vunpack.c.l.b16 %v338
  %v372 = vunpack.c.h.b16 %v338
  %v373 = vunpack.c.l.b16 %v339
  %v374 = vunpack.c.h.b16 %v339
  %v375 = vunpack.c.l.b16 %v340
  %v376 = vunpack.c.h.b16 %v340
  %v377 = vunpack.c.l.b16 %v341
  %v378 = vunpack.c.h.b16 %v341
  %v379 = vunpack.c.l.b16 %v342
  %v380 = vunpack.c.h.b16 %v342
  %v381 = vunpack.c.l.b16 %v343
  %v382 = vunpack.c.h.b16 %v343
  %v383 = vunpack.c.l.b16 %v344
  %v384 = vunpack.c.h.b16 %v344
  %v385 = vunpack.c.l.b16 %v345
  %v386 = vunpack.c.h.b16 %v345
  %v387 = vunpack.c.l.b16 %v346
  %v388 = vunpack.c.h.b16 %v346
  %v389 = vunpack.c.l.b16 %v347
  %v390 = vunpack.c.h.b16 %v347
  %v391 = vunpack.c.l.b16 %v348
  %v392 = vunpack.c.h.b16 %v348
  %v393 = vunpack.c.l.b16 %v349
  %v394 = vunpack.c.h.b16 %v349
  %v395 = vunpack.c.l.b16 %v350
  %v396 = vunpack.c.h.b16 %v350
  %v397 = vunpack.c.l.b16 %v351
  %v398 = vunpack.c.h.b16 %v351
  %v399 = vunpack.c.l.b16 %v352
  %v400 = vunpack.c.h.b16 %v352
  %v401 = vpack.c.b16 %v371, %v369
  %v402 = vpack.c.b16 %v372, %v370
  %v403 = vpack.c.b16 %v375, %v373
  %v404 = vpack.c.b16 %v376, %v374
  %v405 = vpack.c.b16 %v379, %v377
  %v406 = vpack.c.b16 %v380, %v378
  %v407 = vpack.c.b16 %v383, %v381
  %v408 = vpack.c.b16 %v384, %v382
  %v409 = vpack.c.b16 %v387, %v385
  %v410 = vpack.c.b16 %v388, %v386
  %v411 = vpack.c.b16 %v391, %v389
  %v412 = vpack.c.b16 %v392, %v390
  %v413 = vpack.c.b16 %v395, %v393
  %v414 = vpack.c.b16 %v396, %v394
  %v415 = vpack.c.b16 %v399, %v397
  %v416 = vpack.c.b16 %v400, %v398
  %433 = vmatprep.subr.bf16.mxu0 0
  %434 = vmatpush1.bf16.msra.mxu0 %v207
  %435 = vmatprep.subr.bf16.mxu0 0
  %436 = vmatpush1.bf16.msra.mxu0 %v208
  %437 = vmatprep.subr.bf16.mxu0 0
  %438 = vmatpush1.bf16.msra.mxu0 %v209
  %439 = vmatprep.subr.bf16.mxu0 0
  %440 = vmatpush1.bf16.msra.mxu0 %v210
  %441 = vmatprep.subr.bf16.mxu0 0
  %442 = vmatpush1.bf16.msra.mxu0 %v211
  %443 = vmatprep.subr.bf16.mxu0 0
  %444 = vmatpush1.bf16.msra.mxu0 %v212
  %445 = vmatprep.subr.bf16.mxu0 0
  %446 = vmatpush1.bf16.msra.mxu0 %v213
  %447 = vmatprep.subr.bf16.mxu0 0
  %448 = vmatpush1.bf16.msra.mxu0 %v214
  %449 = vmatprep.subr.bf16.mxu0 0
  %450 = vmatpush1.bf16.msra.mxu0 %v215
  %451 = vmatprep.subr.bf16.mxu0 0
  %452 = vmatpush1.bf16.msra.mxu0 %v216
  %453 = vmatprep.subr.bf16.mxu0 0
  %454 = vmatpush1.bf16.msra.mxu0 %v217
  %455 = vmatprep.subr.bf16.mxu0 0
  %456 = vmatpush1.bf16.msra.mxu0 %v218
  %457 = vmatprep.subr.bf16.mxu0 0
  %458 = vmatpush1.bf16.msra.mxu0 %v219
  %459 = vmatprep.subr.bf16.mxu0 0
  %460 = vmatpush1.bf16.msra.mxu0 %v220
  %461 = vmatprep.subr.bf16.mxu0 0
  %462 = vmatpush1.bf16.msra.mxu0 %v221
  %463 = vmatprep.subr.bf16.mxu0 0
  %464 = vmatpush1.bf16.msra.mxu0 %v222
  %465 = vmatprep.mubr.bf16.mxu0 %v402
  %466 = vmatmul.mubr.bf16.gmra.mrb[0].mxu0 %v401
  %v467 = vpop.f32.mrb[0].mxu0
  %v468 = vadd.f32 0.0, %v467
  %v469 = vpop.f32.mrb[0].mxu0
  %v470 = vpop.f32.mrb[0].mxu0
  %v471 = vadd.f32 0.0, %v470
  %v472 = vpop.f32.mrb[0].mxu0
  %473 = vmatprep.mubr.bf16.mxu0 %v404
  %474 = vmatmul.mubr.bf16.gmra.mrb[0].mxu0 %v403
  %v475 = vpop.f32.mrb[0].mxu0
  %v476 = vadd.f32 0.0, %v475
  %v477 = vpop.f32.mrb[0].mxu0
  %v478 = vpop.f32.mrb[0].mxu0
  %v479 = vadd.f32 0.0, %v478
  %v480 = vpop.f32.mrb[0].mxu0
  %481 = vmatprep.mubr.bf16.mxu0 %v406
  %482 = vmatmul.mubr.bf16.gmra.mrb[0].mxu0 %v405
  %v483 = vpop.f32.mrb[0].mxu0
  %v484 = vadd.f32 0.0, %v483
  %v485 = vpop.f32.mrb[0].mxu0
  %v486 = vpop.f32.mrb[0].mxu0
  %v487 = vadd.f32 0.0, %v486
  %v488 = vpop.f32.mrb[0].mxu0
  %489 = vmatprep.mubr.bf16.mxu0 %v408
  %490 = vmatmul.mubr.bf16.gmra.mrb[0].mxu0 %v407
  %v491 = vpop.f32.mrb[0].mxu0
  %v492 = vadd.f32 0.0, %v491
  %v493 = vpop.f32.mrb[0].mxu0
  %v494 = vpop.f32.mrb[0].mxu0
  %v495 = vadd.f32 0.0, %v494
  %v496 = vpop.f32.mrb[0].mxu0
  %497 = vmatprep.mubr.bf16.mxu0 %v410
  %498 = vmatmul.mubr.bf16.gmra.mrb[0].mxu0 %v409
  %v499 = vpop.f32.mrb[0].mxu0
  %v500 = vadd.f32 0.0, %v499
  %v501 = vpop.f32.mrb[0].mxu0
  %v502 = vpop.f32.mrb[0].mxu0
  %v503 = vadd.f32 0.0, %v502
  %v504 = vpop.f32.mrb[0].mxu0
  %505 = vmatprep.mubr.bf16.mxu0 %v412
  %506 = vmatmul.mubr.bf16.gmra.mrb[0].mxu0 %v411
  %v507 = vpop.f32.mrb[0].mxu0
  %v508 = vadd.f32 0.0, %v507
  %v509 = vpop.f32.mrb[0].mxu0
  %v510 = vpop.f32.mrb[0].mxu0
  %v511 = vadd.f32 0.0, %v510
  %v512 = vpop.f32.mrb[0].mxu0
  %513 = vmatprep.mubr.bf16.mxu0 %v414
  %514 = vmatmul.mubr.bf16.gmra.mrb[0].mxu0 %v413
  %v515 = vpop.f32.mrb[0].mxu0
  %v516 = vadd.f32 0.0, %v515
  %v517 = vpop.f32.mrb[0].mxu0
  %v518 = vpop.f32.mrb[0].mxu0
  %v519 = vadd.f32 0.0, %v518
  %v520 = vpop.f32.mrb[0].mxu0
  %521 = vmatprep.mubr.bf16.mxu0 %v416
  %522 = vmatmul.mubr.bf16.gmra.mrb[0].mxu0 %v415
  %v523 = vpop.f32.mrb[0].mxu0
  %v524 = vadd.f32 0.0, %v523
  %v525 = vpop.f32.mrb[0].mxu0
  %v526 = vpop.f32.mrb[0].mxu0
  %v527 = vadd.f32 0.0, %v526
  %v528 = vpop.f32.mrb[0].mxu0
  %529 = vdwg.mxu0
  %v530 = vmax.f32 %v274, %v468
  %v531 = vmax.f32 %v277, %v471
  %v532 = vmax.f32 %v282, %v476
  %v533 = vmax.f32 %v285, %v479
  %v534 = vmax.f32 %v290, %v484
  %v535 = vmax.f32 %v293, %v487
  %v536 = vmax.f32 %v298, %v492
  %v537 = vmax.f32 %v301, %v495
  %v538 = vmax.f32 %v306, %v500
  %v539 = vmax.f32 %v309, %v503
  %v540 = vmax.f32 %v314, %v508
  %v541 = vmax.f32 %v317, %v511
  %v542 = vmax.f32 %v322, %v516
  %v543 = vmax.f32 %v325, %v519
  %v544 = vmax.f32 %v330, %v524
  %v545 = vmax.f32 %v333, %v527
  %s546 = scalar_lea.vmem %s0, 256
  %v547 = vld [vmem:[%s546] sm:$0xff]
  %v548 = vld [vmem:[%s546 + $0x8] sm:$0xff]
  %v549 = vld [vmem:[%s546 + $0x10] sm:$0xff]
  %v550 = vld [vmem:[%s546 + $0x18] sm:$0xff]
  %v551 = vld [vmem:[%s546 + $0x20] sm:$0xff]
  %v552 = vld [vmem:[%s546 + $0x28] sm:$0xff]
  %v553 = vld [vmem:[%s546 + $0x30] sm:$0xff]
  %v554 = vld [vmem:[%s546 + $0x38] sm:$0xff]
  %v555 = vld [vmem:[%s546 + $0x40] sm:$0xff]
  %v556 = vld [vmem:[%s546 + $0x48] sm:$0xff]
  %v557 = vld [vmem:[%s546 + $0x50] sm:$0xff]
  %v558 = vld [vmem:[%s546 + $0x58] sm:$0xff]
  %v559 = vld [vmem:[%s546 + $0x60] sm:$0xff]
  %v560 = vld [vmem:[%s546 + $0x68] sm:$0xff]
  %v561 = vld [vmem:[%s546 + $0x70] sm:$0xff]
  %v562 = vld [vmem:[%s546 + $0x78] sm:$0xff]
  %v579 = vunpack.c.l.b16 %v547
  %v580 = vunpack.c.h.b16 %v547
  %v581 = vunpack.c.l.b16 %v548
  %v582 = vunpack.c.h.b16 %v548
  %v583 = vunpack.c.l.b16 %v549
  %v584 = vunpack.c.h.b16 %v549
  %v585 = vunpack.c.l.b16 %v550
  %v586 = vunpack.c.h.b16 %v550
  %v587 = vunpack.c.l.b16 %v551
  %v588 = vunpack.c.h.b16 %v551
  %v589 = vunpack.c.l.b16 %v552
  %v590 = vunpack.c.h.b16 %v552
  %v591 = vunpack.c.l.b16 %v553
  %v592 = vunpack.c.h.b16 %v553
  %v593 = vunpack.c.l.b16 %v554
  %v594 = vunpack.c.h.b16 %v554
  %v595 = vunpack.c.l.b16 %v555
  %v596 = vunpack.c.h.b16 %v555
  %v597 = vunpack.c.l.b16 %v556
  %v598 = vunpack.c.h.b16 %v556
  %v599 = vunpack.c.l.b16 %v557
  %v600 = vunpack.c.h.b16 %v557
  %v601 = vunpack.c.l.b16 %v558
  %v602 = vunpack.c.h.b16 %v558
  %v603 = vunpack.c.l.b16 %v559
  %v604 = vunpack.c.h.b16 %v559
  %v605 = vunpack.c.l.b16 %v560
  %v606 = vunpack.c.h.b16 %v560
  %v607 = vunpack.c.l.b16 %v561
  %v608 = vunpack.c.h.b16 %v561
  %v609 = vunpack.c.l.b16 %v562
  %v610 = vunpack.c.h.b16 %v562
  %v611 = vpack.c.b16 %v581, %v579
  %v612 = vpack.c.b16 %v582, %v580
  %v613 = vpack.c.b16 %v585, %v583
  %v614 = vpack.c.b16 %v586, %v584
  %v615 = vpack.c.b16 %v589, %v587
  %v616 = vpack.c.b16 %v590, %v588
  %v617 = vpack.c.b16 %v593, %v591
  %v618 = vpack.c.b16 %v594, %v592
  %v619 = vpack.c.b16 %v597, %v595
  %v620 = vpack.c.b16 %v598, %v596
  %v621 = vpack.c.b16 %v601, %v599
  %v622 = vpack.c.b16 %v602, %v600
  %v623 = vpack.c.b16 %v605, %v603
  %v624 = vpack.c.b16 %v606, %v604
  %v625 = vpack.c.b16 %v609, %v607
  %v626 = vpack.c.b16 %v610, %v608
  %643 = vmatprep.subr.bf16.mxu0 0
  %644 = vmatpush1.bf16.msra.mxu0 %v207
  %645 = vmatprep.subr.bf16.mxu0 0
  %646 = vmatpush1.bf16.msra.mxu0 %v208
  %647 = vmatprep.subr.bf16.mxu0 0
  %648 = vmatpush1.bf16.msra.mxu0 %v209
  %649 = vmatprep.subr.bf16.mxu0 0
  %650 = vmatpush1.bf16.msra.mxu0 %v210
  %651 = vmatprep.subr.bf16.mxu0 0
  %652 = vmatpush1.bf16.msra.mxu0 %v211
  %653 = vmatprep.subr.bf16.mxu0 0
  %654 = vmatpush1.bf16.msra.mxu0 %v212
  %655 = vmatprep.subr.bf16.mxu0 0
  %656 = vmatpush1.bf16.msra.mxu0 %v213
  %657 = vmatprep.subr.bf16.mxu0 0
  %658 = vmatpush1.bf16.msra.mxu0 %v214
  %659 = vmatprep.subr.bf16.mxu0 0
  %660 = vmatpush1.bf16.msra.mxu0 %v215
  %661 = vmatprep.subr.bf16.mxu0 0
  %662 = vmatpush1.bf16.msra.mxu0 %v216
  %663 = vmatprep.subr.bf16.mxu0 0
  %664 = vmatpush1.bf16.msra.mxu0 %v217
  %665 = vmatprep.subr.bf16.mxu0 0
  %666 = vmatpush1.bf16.msra.mxu0 %v218
  %667 = vmatprep.subr.bf16.mxu0 0
  %668 = vmatpush1.bf16.msra.mxu0 %v219
  %669 = vmatprep.subr.bf16.mxu0 0
  %670 = vmatpush1.bf16.msra.mxu0 %v220
  %671 = vmatprep.subr.bf16.mxu0 0
  %672 = vmatpush1.bf16.msra.mxu0 %v221
  %673 = vmatprep.subr.bf16.mxu0 0
  %674 = vmatpush1.bf16.msra.mxu0 %v222
  %675 = vmatprep.mubr.bf16.mxu0 %v612
  %676 = vmatmul.mubr.bf16.gmra.mrb[0].mxu0 %v611
  %v677 = vpop.f32.mrb[0].mxu0
  %v678 = vadd.f32 0.0, %v677
  %v679 = vpop.f32.mrb[0].mxu0
  %v680 = vpop.f32.mrb[0].mxu0
  %v681 = vadd.f32 0.0, %v680
  %v682 = vpop.f32.mrb[0].mxu0
  %683 = vmatprep.mubr.bf16.mxu0 %v614
  %684 = vmatmul.mubr.bf16.gmra.mrb[0].mxu0 %v613
  %v685 = vpop.f32.mrb[0].mxu0
  %v686 = vadd.f32 0.0, %v685
  %v687 = vpop.f32.mrb[0].mxu0
  %v688 = vpop.f32.mrb[0].mxu0
  %v689 = vadd.f32 0.0, %v688
  %v690 = vpop.f32.mrb[0].mxu0
  %691 = vmatprep.mubr.bf16.mxu0 %v616
  %692 = vmatmul.mubr.bf16.gmra.mrb[0].mxu0 %v615
  %v693 = vpop.f32.mrb[0].mxu0
  %v694 = vadd.f32 0.0, %v693
  %v695 = vpop.f32.mrb[0].mxu0
  %v696 = vpop.f32.mrb[0].mxu0
  %v697 = vadd.f32 0.0, %v696
  %v698 = vpop.f32.mrb[0].mxu0
  %699 = vmatprep.mubr.bf16.mxu0 %v618
  %700 = vmatmul.mubr.bf16.gmra.mrb[0].mxu0 %v617
  %v701 = vpop.f32.mrb[0].mxu0
  %v702 = vadd.f32 0.0, %v701
  %v703 = vpop.f32.mrb[0].mxu0
  %v704 = vpop.f32.mrb[0].mxu0
  %v705 = vadd.f32 0.0, %v704
  %v706 = vpop.f32.mrb[0].mxu0
  %707 = vmatprep.mubr.bf16.mxu0 %v620
  %708 = vmatmul.mubr.bf16.gmra.mrb[0].mxu0 %v619
  %v709 = vpop.f32.mrb[0].mxu0
  %v710 = vadd.f32 0.0, %v709
  %v711 = vpop.f32.mrb[0].mxu0
  %v712 = vpop.f32.mrb[0].mxu0
  %v713 = vadd.f32 0.0, %v712
  %v714 = vpop.f32.mrb[0].mxu0
  %715 = vmatprep.mubr.bf16.mxu0 %v622
  %716 = vmatmul.mubr.bf16.gmra.mrb[0].mxu0 %v621
  %v717 = vpop.f32.mrb[0].mxu0
  %v718 = vadd.f32 0.0, %v717
  %v719 = vpop.f32.mrb[0].mxu0
  %v720 = vpop.f32.mrb[0].mxu0
  %v721 = vadd.f32 0.0, %v720
  %v722 = vpop.f32.mrb[0].mxu0
  %723 = vmatprep.mubr.bf16.mxu0 %v624
  %724 = vmatmul.mubr.bf16.gmra.mrb[0].mxu0 %v623
  %v725 = vpop.f32.mrb[0].mxu0
  %v726 = vadd.f32 0.0, %v725
  %v727 = vpop.f32.mrb[0].mxu0
  %v728 = vpop.f32.mrb[0].mxu0
  %v729 = vadd.f32 0.0, %v728
  %v730 = vpop.f32.mrb[0].mxu0
  %731 = vmatprep.mubr.bf16.mxu0 %v626
  %732 = vmatmul.mubr.bf16.gmra.mrb[0].mxu0 %v625
  %v733 = vpop.f32.mrb[0].mxu0
  %v734 = vadd.f32 0.0, %v733
  %v735 = vpop.f32.mrb[0].mxu0
  %v736 = vpop.f32.mrb[0].mxu0
  %v737 = vadd.f32 0.0, %v736
  %v738 = vpop.f32.mrb[0].mxu0
  %739 = vdwg.mxu0
  %v740 = vmax.f32 %v530, %v678
  %v741 = vmax.f32 %v531, %v681
  %v742 = vmax.f32 %v532, %v686
  %v743 = vmax.f32 %v533, %v689
  %v744 = vmax.f32 %v534, %v694
  %v745 = vmax.f32 %v535, %v697
  %v746 = vmax.f32 %v536, %v702
  %v747 = vmax.f32 %v537, %v705
  %v748 = vmax.f32 %v538, %v710
  %v749 = vmax.f32 %v539, %v713
  %v750 = vmax.f32 %v540, %v718
  %v751 = vmax.f32 %v541, %v721
  %v752 = vmax.f32 %v542, %v726
  %v753 = vmax.f32 %v543, %v729
  %v754 = vmax.f32 %v544, %v734
  %v755 = vmax.f32 %v545, %v737
  %s756 = scalar_lea.vmem %s0, 384
  %v757 = vld [vmem:[%s756] sm:$0xff]
  %v758 = vld [vmem:[%s756 + $0x8] sm:$0xff]
  %v759 = vld [vmem:[%s756 + $0x10] sm:$0xff]
  %v760 = vld [vmem:[%s756 + $0x18] sm:$0xff]
  %v761 = vld [vmem:[%s756 + $0x20] sm:$0xff]
  %v762 = vld [vmem:[%s756 + $0x28] sm:$0xff]
  %v763 = vld [vmem:[%s756 + $0x30] sm:$0xff]
  %v764 = vld [vmem:[%s756 + $0x38] sm:$0xff]
  %v765 = vld [vmem:[%s756 + $0x40] sm:$0xff]
  %v766 = vld [vmem:[%s756 + $0x48] sm:$0xff]
  %v767 = vld [vmem:[%s756 + $0x50] sm:$0xff]
  %v768 = vld [vmem:[%s756 + $0x58] sm:$0xff]
  %v769 = vld [vmem:[%s756 + $0x60] sm:$0xff]
  %v770 = vld [vmem:[%s756 + $0x68] sm:$0xff]
  %v771 = vld [vmem:[%s756 + $0x70] sm:$0xff]
  %v772 = vld [vmem:[%s756 + $0x78] sm:$0xff]
  %v789 = vunpack.c.l.b16 %v757
  %v790 = vunpack.c.h.b16 %v757
  %v791 = vunpack.c.l.b16 %v758
  %v792 = vunpack.c.h.b16 %v758
  %v793 = vunpack.c.l.b16 %v759
  %v794 = vunpack.c.h.b16 %v759
  %v795 = vunpack.c.l.b16 %v760
  %v796 = vunpack.c.h.b16 %v760
  %v797 = vunpack.c.l.b16 %v761
  %v798 = vunpack.c.h.b16 %v761
  %v799 = vunpack.c.l.b16 %v762
  %v800 = vunpack.c.h.b16 %v762
  %v801 = vunpack.c.l.b16 %v763
  %v802 = vunpack.c.h.b16 %v763
  %v803 = vunpack.c.l.b16 %v764
  %v804 = vunpack.c.h.b16 %v764
  %v805 = vunpack.c.l.b16 %v765
  %v806 = vunpack.c.h.b16 %v765
  %v807 = vunpack.c.l.b16 %v766
  %v808 = vunpack.c.h.b16 %v766
  %v809 = vunpack.c.l.b16 %v767
  %v810 = vunpack.c.h.b16 %v767
  %v811 = vunpack.c.l.b16 %v768
  %v812 = vunpack.c.h.b16 %v768
  %v813 = vunpack.c.l.b16 %v769
  %v814 = vunpack.c.h.b16 %v769
  %v815 = vunpack.c.l.b16 %v770
  %v816 = vunpack.c.h.b16 %v770
  %v817 = vunpack.c.l.b16 %v771
  %v818 = vunpack.c.h.b16 %v771
  %v819 = vunpack.c.l.b16 %v772
  %v820 = vunpack.c.h.b16 %v772
  %v821 = vpack.c.b16 %v791, %v789
  %v822 = vpack.c.b16 %v792, %v790
  %v823 = vpack.c.b16 %v795, %v793
  %v824 = vpack.c.b16 %v796, %v794
  %v825 = vpack.c.b16 %v799, %v797
  %v826 = vpack.c.b16 %v800, %v798
  %v827 = vpack.c.b16 %v803, %v801
  %v828 = vpack.c.b16 %v804, %v802
  %v829 = vpack.c.b16 %v807, %v805
  %v830 = vpack.c.b16 %v808, %v806
  %v831 = vpack.c.b16 %v811, %v809
  %v832 = vpack.c.b16 %v812, %v810
  %v833 = vpack.c.b16 %v815, %v813
  %v834 = vpack.c.b16 %v816, %v814
  %v835 = vpack.c.b16 %v819, %v817
  %v836 = vpack.c.b16 %v820, %v818
  %853 = vmatprep.subr.bf16.mxu0 0
  %854 = vmatpush1.bf16.msra.mxu0 %v207
  %855 = vmatprep.subr.bf16.mxu0 0
  %856 = vmatpush1.bf16.msra.mxu0 %v208
  %857 = vmatprep.subr.bf16.mxu0 0
  %858 = vmatpush1.bf16.msra.mxu0 %v209
  %859 = vmatprep.subr.bf16.mxu0 0
  %860 = vmatpush1.bf16.msra.mxu0 %v210
  %861 = vmatprep.subr.bf16.mxu0 0
  %862 = vmatpush1.bf16.msra.mxu0 %v211
  %863 = vmatprep.subr.bf16.mxu0 0
  %864 = vmatpush1.bf16.msra.mxu0 %v212
  %865 = vmatprep.subr.bf16.mxu0 0
  %866 = vmatpush1.bf16.msra.mxu0 %v213
  %867 = vmatprep.subr.bf16.mxu0 0
  %868 = vmatpush1.bf16.msra.mxu0 %v214
  %869 = vmatprep.subr.bf16.mxu0 0
  %870 = vmatpush1.bf16.msra.mxu0 %v215
  %871 = vmatprep.subr.bf16.mxu0 0
  %872 = vmatpush1.bf16.msra.mxu0 %v216
  %873 = vmatprep.subr.bf16.mxu0 0
  %874 = vmatpush1.bf16.msra.mxu0 %v217
  %875 = vmatprep.subr.bf16.mxu0 0
  %876 = vmatpush1.bf16.msra.mxu0 %v218
  %877 = vmatprep.subr.bf16.mxu0 0
  %878 = vmatpush1.bf16.msra.mxu0 %v219
  %879 = vmatprep.subr.bf16.mxu0 0
  %880 = vmatpush1.bf16.msra.mxu0 %v220
  %881 = vmatprep.subr.bf16.mxu0 0
  %882 = vmatpush1.bf16.msra.mxu0 %v221
  %883 = vmatprep.subr.bf16.mxu0 0
  %884 = vmatpush1.bf16.msra.mxu0 %v222
  %885 = vmatprep.mubr.bf16.mxu0 %v822
  %886 = vmatmul.mubr.bf16.gmra.mrb[0].mxu0 %v821
  %v887 = vpop.f32.mrb[0].mxu0
  %v888 = vadd.f32 0.0, %v887
  %v889 = vpop.f32.mrb[0].mxu0
  %v890 = vpop.f32.mrb[0].mxu0
  %v891 = vadd.f32 0.0, %v890
  %v892 = vpop.f32.mrb[0].mxu0
  %893 = vmatprep.mubr.bf16.mxu0 %v824
  %894 = vmatmul.mubr.bf16.gmra.mrb[0].mxu0 %v823
  %v895 = vpop.f32.mrb[0].mxu0
  %v896 = vadd.f32 0.0, %v895
  %v897 = vpop.f32.mrb[0].mxu0
  %v898 = vpop.f32.mrb[0].mxu0
  %v899 = vadd.f32 0.0, %v898
  %v900 = vpop.f32.mrb[0].mxu0
  %901 = vmatprep.mubr.bf16.mxu0 %v826
  %902 = vmatmul.mubr.bf16.gmra.mrb[0].mxu0 %v825
  %v903 = vpop.f32.mrb[0].mxu0
  %v904 = vadd.f32 0.0, %v903
  %v905 = vpop.f32.mrb[0].mxu0
  %v906 = vpop.f32.mrb[0].mxu0
  %v907 = vadd.f32 0.0, %v906
  %v908 = vpop.f32.mrb[0].mxu0
  %909 = vmatprep.mubr.bf16.mxu0 %v828
  %910 = vmatmul.mubr.bf16.gmra.mrb[0].mxu0 %v827
  %v911 = vpop.f32.mrb[0].mxu0
  %v912 = vadd.f32 0.0, %v911
  %v913 = vpop.f32.mrb[0].mxu0
  %v914 = vpop.f32.mrb[0].mxu0
  %v915 = vadd.f32 0.0, %v914
  %v916 = vpop.f32.mrb[0].mxu0
  %917 = vmatprep.mubr.bf16.mxu0 %v830
  %918 = vmatmul.mubr.bf16.gmra.mrb[0].mxu0 %v829
  %v919 = vpop.f32.mrb[0].mxu0
  %v920 = vadd.f32 0.0, %v919
  %v921 = vpop.f32.mrb[0].mxu0
  %v922 = vpop.f32.mrb[0].mxu0
  %v923 = vadd.f32 0.0, %v922
  %v924 = vpop.f32.mrb[0].mxu0
  %925 = vmatprep.mubr.bf16.mxu0 %v832
  %926 = vmatmul.mubr.bf16.gmra.mrb[0].mxu0 %v831
  %v927 = vpop.f32.mrb[0].mxu0
  %v928 = vadd.f32 0.0, %v927
  %v929 = vpop.f32.mrb[0].mxu0
  %v930 = vpop.f32.mrb[0].mxu0
  %v931 = vadd.f32 0.0, %v930
  %v932 = vpop.f32.mrb[0].mxu0
  %933 = vmatprep.mubr.bf16.mxu0 %v834
  %934 = vmatmul.mubr.bf16.gmra.mrb[0].mxu0 %v833
  %v935 = vpop.f32.mrb[0].mxu0
  %v936 = vadd.f32 0.0, %v935
  %v937 = vpop.f32.mrb[0].mxu0
  %v938 = vpop.f32.mrb[0].mxu0
  %v939 = vadd.f32 0.0, %v938
  %v940 = vpop.f32.mrb[0].mxu0
  %941 = vmatprep.mubr.bf16.mxu0 %v836
  %942 = vmatmul.mubr.bf16.gmra.mrb[0].mxu0 %v835
  %v943 = vpop.f32.mrb[0].mxu0
  %v944 = vadd.f32 0.0, %v943
  %v945 = vpop.f32.mrb[0].mxu0
  %v946 = vpop.f32.mrb[0].mxu0
  %v947 = vadd.f32 0.0, %v946
  %v948 = vpop.f32.mrb[0].mxu0
  %949 = vdwg.mxu0
  %v950 = vmax.f32 %v740, %v888
  %v951 = vmax.f32 %v741, %v891
  %v952 = vmax.f32 %v742, %v896
  %v953 = vmax.f32 %v743, %v899
  %v954 = vmax.f32 %v744, %v904
  %v955 = vmax.f32 %v745, %v907
  %v956 = vmax.f32 %v746, %v912
  %v957 = vmax.f32 %v747, %v915
  %v958 = vmax.f32 %v748, %v920
  %v959 = vmax.f32 %v749, %v923
  %v960 = vmax.f32 %v750, %v928
  %v961 = vmax.f32 %v751, %v931
  %v962 = vmax.f32 %v752, %v936
  %v963 = vmax.f32 %v753, %v939
  %v964 = vmax.f32 %v754, %v944
  %v965 = vmax.f32 %v755, %v947
  %v966 = vld [vmem:[%s2] sm:$0x1]
  %v968 = vlaneseq
  %v969 = vshrl.u32 %v968, 7
  %v970 = vsub.s32 0, %v969
  %v971 = vrot.slane %v966, %v970
  %v973 = vadd.f32 %v950, %v971
  %v974 = vadd.f32 %v951, %v971
  %v975 = vadd.f32 %v952, %v971
  %v976 = vadd.f32 %v953, %v971
  %v977 = vadd.f32 %v954, %v971
  %v978 = vadd.f32 %v955, %v971
  %v979 = vadd.f32 %v956, %v971
  %v980 = vadd.f32 %v957, %v971
  %v981 = vadd.f32 %v958, %v971
  %v982 = vadd.f32 %v959, %v971
  %v983 = vadd.f32 %v960, %v971
  %v984 = vadd.f32 %v961, %v971
  %v985 = vadd.f32 %v962, %v971
  %v986 = vadd.f32 %v963, %v971
  %v987 = vadd.f32 %v964, %v971
  %v988 = vadd.f32 %v965, %v971
  %v989 = vmax.f32 %v973, 0.0
  %v990 = vmax.f32 %v974, 0.0
  %v991 = vmax.f32 %v975, 0.0
  %v992 = vmax.f32 %v976, 0.0
  %v993 = vmax.f32 %v977, 0.0
  %v994 = vmax.f32 %v978, 0.0
  %v995 = vmax.f32 %v979, 0.0
  %v996 = vmax.f32 %v980, 0.0
  %v997 = vmax.f32 %v981, 0.0
  %v998 = vmax.f32 %v982, 0.0
  %v999 = vmax.f32 %v983, 0.0
  %v1000 = vmax.f32 %v984, 0.0
  %v1001 = vmax.f32 %v985, 0.0
  %v1002 = vmax.f32 %v986, 0.0
  %v1003 = vmax.f32 %v987, 0.0
  %v1004 = vmax.f32 %v988, 0.0
  %v1005 = vpack.c.bf16 %v990, %v989
  %v1006 = vpack.c.bf16 %v992, %v991
  %v1007 = vpack.c.bf16 %v994, %v993
  %v1008 = vpack.c.bf16 %v996, %v995
  %v1009 = vpack.c.bf16 %v998, %v997
  %v1010 = vpack.c.bf16 %v1000, %v999
  %v1011 = vpack.c.bf16 %v1002, %v1001
  %v1012 = vpack.c.bf16 %v1004, %v1003
  %v1021 = vunpack.c.l.b16 %v1005
  %v1022 = vunpack.c.h.b16 %v1005
  %v1023 = vunpack.c.l.b16 %v1006
  %v1024 = vunpack.c.h.b16 %v1006
  %v1025 = vunpack.c.l.b16 %v1007
  %v1026 = vunpack.c.h.b16 %v1007
  %v1027 = vunpack.c.l.b16 %v1008
  %v1028 = vunpack.c.h.b16 %v1008
  %v1029 = vunpack.c.l.b16 %v1009
  %v1030 = vunpack.c.h.b16 %v1009
  %v1031 = vunpack.c.l.b16 %v1010
  %v1032 = vunpack.c.h.b16 %v1010
  %v1033 = vunpack.c.l.b16 %v1011
  %v1034 = vunpack.c.h.b16 %v1011
  %v1035 = vunpack.c.l.b16 %v1012
  %v1036 = vunpack.c.h.b16 %v1012
  %v1037 = vpack.c.b16 %v1021, %v1021
  %v1038 = vpack.c.b16 %v1022, %v1022
  %v1039 = vpack.c.b16 %v1023, %v1023
  %v1040 = vpack.c.b16 %v1024, %v1024
  %v1041 = vpack.c.b16 %v1025, %v1025
  %v1042 = vpack.c.b16 %v1026, %v1026
  %v1043 = vpack.c.b16 %v1027, %v1027
  %v1044 = vpack.c.b16 %v1028, %v1028
  %v1045 = vpack.c.b16 %v1029, %v1029
  %v1046 = vpack.c.b16 %v1030, %v1030
  %v1047 = vpack.c.b16 %v1031, %v1031
  %v1048 = vpack.c.b16 %v1032, %v1032
  %v1049 = vpack.c.b16 %v1033, %v1033
  %v1050 = vpack.c.b16 %v1034, %v1034
  %v1051 = vpack.c.b16 %v1035, %v1035
  %v1052 = vpack.c.b16 %v1036, %v1036
  %1069 = vst [vmem:[%s3] sm:$0xf] %v1037
  %1070 = vst [vmem:[%s3 + $0x4] sm:$0xf] %v1038
  %1071 = vst [vmem:[%s3 + $0x8] sm:$0xf] %v1039
  %1072 = vst [vmem:[%s3 + $0xc] sm:$0xf] %v1040
  %1073 = vst [vmem:[%s3 + $0x10] sm:$0xf] %v1041
  %1074 = vst [vmem:[%s3 + $0x14] sm:$0xf] %v1042
  %1075 = vst [vmem:[%s3 + $0x18] sm:$0xf] %v1043
  %1076 = vst [vmem:[%s3 + $0x1c] sm:$0xf] %v1044
  %1077 = vst [vmem:[%s3 + $0x20] sm:$0xf] %v1045
  %1078 = vst [vmem:[%s3 + $0x24] sm:$0xf] %v1046
  %1079 = vst [vmem:[%s3 + $0x28] sm:$0xf] %v1047
  %1080 = vst [vmem:[%s3 + $0x2c] sm:$0xf] %v1048
  %1081 = vst [vmem:[%s3 + $0x30] sm:$0xf] %v1049
  %1082 = vst [vmem:[%s3 + $0x34] sm:$0xf] %v1050
  %1083 = vst [vmem:[%s3 + $0x38] sm:$0xf] %v1051
  %1084 = vst [vmem:[%s3 + $0x3c] sm:$0xf] %v1052
  // Predicated region
  $region14: #{net_forward.4} parent=0 // pred_check
    _
  $region15: #{net_forward.4} parent=0 // pred_check_branch
    %1086 = sbr.rel (0) target = $region17
  $region16: #{net_forward.4} parent=0 // pred_region
    _
  $region17: #{net_forward.4} parent=0 // pred_fallthru
    _
  // Predicated region
  $region18: #{net_forward.4} parent=0 // pred_check
    _
  $region19: #{net_forward.4} parent=0 // pred_check_branch
    %1088 = sbr.rel (0) target = $region21
  $region20: #{net_forward.4} parent=0 // pred_region
    _
  $region21: #{net_forward.4} parent=0 // pred_fallthru
    _

// kernel: net_forward.5
$region0: #{net_forward.5}
  #allocation0 [shape = 'u32[]', space=smem, size = 0x4, offset = 0x4, fixed_abs, tag = 'smem constant byte address 0x4 - core index']
  #allocation1 [shape = 'u32[144,128]{1,0:T(1,128)}', space=vmem, size = 0x12000, scoped, tag = 'internal scratch']
  %s0 = inlined_call_operand.vmem [shape: bf16[8,4096], index: 0, kind: input, shape index: {}]
  %s1 = inlined_call_operand.vmem [shape: bf16[4096,128], index: 1, kind: input, shape index: {}]
  %s2 = inlined_call_operand.vmem [shape: f32[1,128], index: 2, kind: input, shape index: {}]
  %s3 = inlined_call_operand.vmem [shape: bf16[128,128], index: 3, kind: input, shape index: {}]
  %s4 = inlined_call_operand.vmem [shape: f32[1,128], index: 4, kind: input, shape index: {}]
  %s5 = inlined_call_operand.vmem [shape: bf16[128,128], index: 5, kind: input, shape index: {}]
  %s6 = inlined_call_operand.vmem [shape: f32[1,128], index: 6, kind: input, shape index: {}]
  %s7 = inlined_call_operand.vmem [shape: f32[8,128], index: 7, kind: output, shape index: {}]
  %s8 = sld [smem:[#allocation0]]
  $region38: #{net_forward.5} parent=0
    _
  %s10 = ssub.s32 1, %s8
  %s11 = scalar_select 0, %s10, %s8
  // Predicated region
  $region2: #{net_forward.5} parent=0 // pred_check
    _
  $region3: #{net_forward.5} parent=0 // pred_check_branch
    %13 = sbr.rel (0) target = $region5
  $region4: #{net_forward.5} parent=0 // pred_region
    _
  $region5: #{net_forward.5} parent=0 // pred_fallthru
    _
  // Predicated region
  $region6: #{net_forward.5} parent=0 // pred_check
    _
  $region7: #{net_forward.5} parent=0 // pred_check_branch
    %15 = sbr.rel (0) target = $region9
  $region8: #{net_forward.5} parent=0 // pred_region
    _
  $region9: #{net_forward.5} parent=0 // pred_fallthru
    _
  // Predicated region
  $region10: #{net_forward.5} parent=0 // pred_check
    _
  $region11: #{net_forward.5} parent=0 // pred_check_branch
    %17 = sbr.rel (0) target = $region13
  $region12: #{net_forward.5} parent=0 // pred_region
    _
  $region13: #{net_forward.5} parent=0 // pred_fallthru
    _
  // Predicated region
  $region14: #{net_forward.5} parent=0 // pred_check
    _
  $region15: #{net_forward.5} parent=0 // pred_check_branch
    %19 = sbr.rel (0) target = $region17
  $region16: #{net_forward.5} parent=0 // pred_region
    _
  $region17: #{net_forward.5} parent=0 // pred_fallthru
    _
  // Predicated region
  $region18: #{net_forward.5} parent=0 // pred_check
    _
  $region19: #{net_forward.5} parent=0 // pred_check_branch
    %21 = sbr.rel (0) target = $region21
  $region20: #{net_forward.5} parent=0 // pred_region
    _
  $region21: #{net_forward.5} parent=0 // pred_fallthru
    _
  // Predicated region
  $region22: #{net_forward.5} parent=0 // pred_check
    _
  $region23: #{net_forward.5} parent=0 // pred_check_branch
    %23 = sbr.rel (0) target = $region25
  $region24: #{net_forward.5} parent=0 // pred_region
    _
  $region25: #{net_forward.5} parent=0 // pred_fallthru
    _
  // Predicated region
  $region26: #{net_forward.5} parent=0 // pred_check
    _
  $region27: #{net_forward.5} parent=0 // pred_check_branch
    %25 = sbr.rel (0) target = $region29
  $region28: #{net_forward.5} parent=0 // pred_region
    _
  $region29: #{net_forward.5} parent=0 // pred_fallthru
    _
  %v27 = vld [vmem:[%s0] sm:$0xff]
  %v28 = vld [vmem:[%s0 + $0x8] sm:$0xff]
  %v29 = vld [vmem:[%s0 + $0x10] sm:$0xff]
  %v30 = vld [vmem:[%s0 + $0x18] sm:$0xff]
  %v31 = vld [vmem:[%s0 + $0x20] sm:$0xff]
  %v32 = vld [vmem:[%s0 + $0x28] sm:$0xff]
  %v33 = vld [vmem:[%s0 + $0x30] sm:$0xff]
  %v34 = vld [vmem:[%s0 + $0x38] sm:$0xff]
  %v35 = vld [vmem:[%s0 + $0x40] sm:$0xff]
  %v36 = vld [vmem:[%s0 + $0x48] sm:$0xff]
  %v37 = vld [vmem:[%s0 + $0x50] sm:$0xff]
  %v38 = vld [vmem:[%s0 + $0x58] sm:$0xff]
  %v39 = vld [vmem:[%s0 + $0x60] sm:$0xff]
  %v40 = vld [vmem:[%s0 + $0x68] sm:$0xff]
  %v41 = vld [vmem:[%s0 + $0x70] sm:$0xff]
  %v42 = vld [vmem:[%s0 + $0x78] sm:$0xff]
  %v43 = vld [vmem:[%s1] sm:$0xf]
  %v44 = vld [vmem:[%s1 + $0x4] sm:$0xf]
  %v45 = vld [vmem:[%s1 + $0x8] sm:$0xf]
  %v46 = vld [vmem:[%s1 + $0xc] sm:$0xf]
  %v47 = vld [vmem:[%s1 + $0x10] sm:$0xf]
  %v48 = vld [vmem:[%s1 + $0x14] sm:$0xf]
  %v49 = vld [vmem:[%s1 + $0x18] sm:$0xf]
  %v50 = vld [vmem:[%s1 + $0x1c] sm:$0xf]
  %v51 = vld [vmem:[%s1 + $0x20] sm:$0xf]
  %v52 = vld [vmem:[%s1 + $0x24] sm:$0xf]
  %v53 = vld [vmem:[%s1 + $0x28] sm:$0xf]
  %v54 = vld [vmem:[%s1 + $0x2c] sm:$0xf]
  %v55 = vld [vmem:[%s1 + $0x30] sm:$0xf]
  %v56 = vld [vmem:[%s1 + $0x34] sm:$0xf]
  %v57 = vld [vmem:[%s1 + $0x38] sm:$0xf]
  %v58 = vld [vmem:[%s1 + $0x3c] sm:$0xf]
  %v59 = vld [vmem:[%s1 + $0x40] sm:$0xf]
  %v60 = vld [vmem:[%s1 + $0x44] sm:$0xf]
  %v61 = vld [vmem:[%s1 + $0x48] sm:$0xf]
  %v62 = vld [vmem:[%s1 + $0x4c] sm:$0xf]
  %v63 = vld [vmem:[%s1 + $0x50] sm:$0xf]
  %v64 = vld [vmem:[%s1 + $0x54] sm:$0xf]
  %v65 = vld [vmem:[%s1 + $0x58] sm:$0xf]
  %v66 = vld [vmem:[%s1 + $0x5c] sm:$0xf]
  %v67 = vld [vmem:[%s1 + $0x60] sm:$0xf]
  %v68 = vld [vmem:[%s1 + $0x64] sm:$0xf]
  %v69 = vld [vmem:[%s1 + $0x68] sm:$0xf]
  %v70 = vld [vmem:[%s1 + $0x6c] sm:$0xf]
  %v71 = vld [vmem:[%s1 + $0x70] sm:$0xf]
  %v72 = vld [vmem:[%s1 + $0x74] sm:$0xf]
  %v73 = vld [vmem:[%s1 + $0x78] sm:$0xf]
  %v74 = vld [vmem:[%s1 + $0x7c] sm:$0xf]
  %v75 = vld [vmem:[%s1 + $0x80] sm:$0xf]
  %v76 = vld [vmem:[%s1 + $0x84] sm:$0xf]
  %v77 = vld [vmem:[%s1 + $0x88] sm:$0xf]
  %v78 = vld [vmem:[%s1 + $0x8c] sm:$0xf]
  %v79 = vld [vmem:[%s1 + $0x90] sm:$0xf]
  %v80 = vld [vmem:[%s1 + $0x94] sm:$0xf]
  %v81 = vld [vmem:[%s1 + $0x98] sm:$0xf]
  %v82 = vld [vmem:[%s1 + $0x9c] sm:$0xf]
  %v83 = vld [vmem:[%s1 + $0xa0] sm:$0xf]
  %v84 = vld [vmem:[%s1 + $0xa4] sm:$0xf]
  %v85 = vld [vmem:[%s1 + $0xa8] sm:$0xf]
  %v86 = vld [vmem:[%s1 + $0xac] sm:$0xf]
  %v87 = vld [vmem:[%s1 + $0xb0] sm:$0xf]
  %v88 = vld [vmem:[%s1 + $0xb4] sm:$0xf]
  %v89 = vld [vmem:[%s1 + $0xb8] sm:$0xf]
  %v90 = vld [vmem:[%s1 + $0xbc] sm:$0xf]
  %v91 = vld [vmem:[%s1 + $0xc0] sm:$0xf]
  %v92 = vld [vmem:[%s1 + $0xc4] sm:$0xf]
  %v93 = vld [vmem:[%s1 + $0xc8] sm:$0xf]
  %v94 = vld [vmem:[%s1 + $0xcc] sm:$0xf]
  %v95 = vld [vmem:[%s1 + $0xd0] sm:$0xf]
  %v96 = vld [vmem:[%s1 + $0xd4] sm:$0xf]
  %v97 = vld [vmem:[%s1 + $0xd8] sm:$0xf]
  %v98 = vld [vmem:[%s1 + $0xdc] sm:$0xf]
  %v99 = vld [vmem:[%s1 + $0xe0] sm:$0xf]
  %v100 = vld [vmem:[%s1 + $0xe4] sm:$0xf]
  %v101 = vld [vmem:[%s1 + $0xe8] sm:$0xf]
  %v102 = vld [vmem:[%s1 + $0xec] sm:$0xf]
  %v103 = vld [vmem:[%s1 + $0xf0] sm:$0xf]
  %v104 = vld [vmem:[%s1 + $0xf4] sm:$0xf]
  %v105 = vld [vmem:[%s1 + $0xf8] sm:$0xf]
  %v106 = vld [vmem:[%s1 + $0xfc] sm:$0xf]
  %v107 = vld [vmem:[%s1 + $0x100] sm:$0xf]
  %v108 = vld [vmem:[%s1 + $0x104] sm:$0xf]
  %v109 = vld [vmem:[%s1 + $0x108] sm:$0xf]
  %v110 = vld [vmem:[%s1 + $0x10c] sm:$0xf]
  %v111 = vld [vmem:[%s1 + $0x110] sm:$0xf]
  %v112 = vld [vmem:[%s1 + $0x114] sm:$0xf]
  %v113 = vld [vmem:[%s1 + $0x118] sm:$0xf]
  %v114 = vld [vmem:[%s1 + $0x11c] sm:$0xf]
  %v115 = vld [vmem:[%s1 + $0x120] sm:$0xf]
  %v116 = vld [vmem:[%s1 + $0x124] sm:$0xf]
  %v117 = vld [vmem:[%s1 + $0x128] sm:$0xf]
  %v118 = vld [vmem:[%s1 + $0x12c] sm:$0xf]
  %v119 = vld [vmem:[%s1 + $0x130] sm:$0xf]
  %v120 = vld [vmem:[%s1 + $0x134] sm:$0xf]
  %v121 = vld [vmem:[%s1 + $0x138] sm:$0xf]
  %v122 = vld [vmem:[%s1 + $0x13c] sm:$0xf]
  %v123 = vld [vmem:[%s1 + $0x140] sm:$0xf]
  %v124 = vld [vmem:[%s1 + $0x144] sm:$0xf]
  %v125 = vld [vmem:[%s1 + $0x148] sm:$0xf]
  %v126 = vld [vmem:[%s1 + $0x14c] sm:$0xf]
  %v127 = vld [vmem:[%s1 + $0x150] sm:$0xf]
  %v128 = vld [vmem:[%s1 + $0x154] sm:$0xf]
  %v129 = vld [vmem:[%s1 + $0x158] sm:$0xf]
  %v130 = vld [vmem:[%s1 + $0x15c] sm:$0xf]
  %v131 = vld [vmem:[%s1 + $0x160] sm:$0xf]
  %v132 = vld [vmem:[%s1 + $0x164] sm:$0xf]
  %v133 = vld [vmem:[%s1 + $0x168] sm:$0xf]
  %v134 = vld [vmem:[%s1 + $0x16c] sm:$0xf]
  %v135 = vld [vmem:[%s1 + $0x170] sm:$0xf]
  %v136 = vld [vmem:[%s1 + $0x174] sm:$0xf]
  %v137 = vld [vmem:[%s1 + $0x178] sm:$0xf]
  %v138 = vld [vmem:[%s1 + $0x17c] sm:$0xf]
  %v139 = vld [vmem:[%s1 + $0x180] sm:$0xf]
  %v140 = vld [vmem:[%s1 + $0x184] sm:$0xf]
  %v141 = vld [vmem:[%s1 + $0x188] sm:$0xf]
  %v142 = vld [vmem:[%s1 + $0x18c] sm:$0xf]
  %v143 = vld [vmem:[%s1 + $0x190] sm:$0xf]
  %v144 = vld [vmem:[%s1 + $0x194] sm:$0xf]
  %v145 = vld [vmem:[%s1 + $0x198] sm:$0xf]
  %v146 = vld [vmem:[%s1 + $0x19c] sm:$0xf]
  %v147 = vld [vmem:[%s1 + $0x1a0] sm:$0xf]
  %v148 = vld [vmem:[%s1 + $0x1a4] sm:$0xf]
  %v149 = vld [vmem:[%s1 + $0x1a8] sm:$0xf]
  %v150 = vld [vmem:[%s1 + $0x1ac] sm:$0xf]
  %v151 = vld [vmem:[%s1 + $0x1b0] sm:$0xf]
  %v152 = vld [vmem:[%s1 + $0x1b4] sm:$0xf]
  %v153 = vld [vmem:[%s1 + $0x1b8] sm:$0xf]
  %v154 = vld [vmem:[%s1 + $0x1bc] sm:$0xf]
  %v155 = vld [vmem:[%s1 + $0x1c0] sm:$0xf]
  %v156 = vld [vmem:[%s1 + $0x1c4] sm:$0xf]
  %v157 = vld [vmem:[%s1 + $0x1c8] sm:$0xf]
  %v158 = vld [vmem:[%s1 + $0x1cc] sm:$0xf]
  %v159 = vld [vmem:[%s1 + $0x1d0] sm:$0xf]
  %v160 = vld [vmem:[%s1 + $0x1d4] sm:$0xf]
  %v161 = vld [vmem:[%s1 + $0x1d8] sm:$0xf]
  %v162 = vld [vmem:[%s1 + $0x1dc] sm:$0xf]
  %v163 = vld [vmem:[%s1 + $0x1e0] sm:$0xf]
  %v164 = vld [vmem:[%s1 + $0x1e4] sm:$0xf]
  %v165 = vld [vmem:[%s1 + $0x1e8] sm:$0xf]
  %v166 = vld [vmem:[%s1 + $0x1ec] sm:$0xf]
  %v167 = vld [vmem:[%s1 + $0x1f0] sm:$0xf]
  %v168 = vld [vmem:[%s1 + $0x1f4] sm:$0xf]
  %v169 = vld [vmem:[%s1 + $0x1f8] sm:$0xf]
  %v170 = vld [vmem:[%s1 + $0x1fc] sm:$0xf]
  %v171 = vld [vmem:[%s1 + $0x200] sm:$0xf]
  %v172 = vld [vmem:[%s1 + $0x204] sm:$0xf]
  %v173 = vld [vmem:[%s1 + $0x208] sm:$0xf]
  %v174 = vld [vmem:[%s1 + $0x20c] sm:$0xf]
  %v175 = vld [vmem:[%s1 + $0x210] sm:$0xf]
  %v176 = vld [vmem:[%s1 + $0x214] sm:$0xf]
  %v177 = vld [vmem:[%s1 + $0x218] sm:$0xf]
  %v178 = vld [vmem:[%s1 + $0x21c] sm:$0xf]
  %v179 = vld [vmem:[%s1 + $0x220] sm:$0xf]
  %v180 = vld [vmem:[%s1 + $0x224] sm:$0xf]
  %v181 = vld [vmem:[%s1 + $0x228] sm:$0xf]
  %v182 = vld [vmem:[%s1 + $0x22c] sm:$0xf]
  %v183 = vld [vmem:[%s1 + $0x230] sm:$0xf]
  %v184 = vld [vmem:[%s1 + $0x234] sm:$0xf]
  %v185 = vld [vmem:[%s1 + $0x238] sm:$0xf]
  %v186 = vld [vmem:[%s1 + $0x23c] sm:$0xf]
  %v187 = vld [vmem:[%s1 + $0x240] sm:$0xf]
  %v188 = vld [vmem:[%s1 + $0x244] sm:$0xf]
  %v189 = vld [vmem:[%s1 + $0x248] sm:$0xf]
  %v190 = vld [vmem:[%s1 + $0x24c] sm:$0xf]
  %v191 = vld [vmem:[%s1 + $0x250] sm:$0xf]
  %v192 = vld [vmem:[%s1 + $0x254] sm:$0xf]
  %v193 = vld [vmem:[%s1 + $0x258] sm:$0xf]
  %v194 = vld [vmem:[%s1 + $0x25c] sm:$0xf]
  %v195 = vld [vmem:[%s1 + $0x260] sm:$0xf]
  %v196 = vld [vmem:[%s1 + $0x264] sm:$0xf]
  %v197 = vld [vmem:[%s1 + $0x268] sm:$0xf]
  %v198 = vld [vmem:[%s1 + $0x26c] sm:$0xf]
  %v199 = vld [vmem:[%s1 + $0x270] sm:$0xf]
  %v200 = vld [vmem:[%s1 + $0x274] sm:$0xf]
  %v201 = vld [vmem:[%s1 + $0x278] sm:$0xf]
  %v202 = vld [vmem:[%s1 + $0x27c] sm:$0xf]
  %v203 = vld [vmem:[%s1 + $0x280] sm:$0xf]
  %v204 = vld [vmem:[%s1 + $0x284] sm:$0xf]
  %v205 = vld [vmem:[%s1 + $0x288] sm:$0xf]
  %v206 = vld [vmem:[%s1 + $0x28c] sm:$0xf]
  %v207 = vld [vmem:[%s1 + $0x290] sm:$0xf]
  %v208 = vld [vmem:[%s1 + $0x294] sm:$0xf]
  %v209 = vld [vmem:[%s1 + $0x298] sm:$0xf]
  %v210 = vld [vmem:[%s1 + $0x29c] sm:$0xf]
  %v211 = vld [vmem:[%s1 + $0x2a0] sm:$0xf]
  %v212 = vld [vmem:[%s1 + $0x2a4] sm:$0xf]
  %v213 = vld [vmem:[%s1 + $0x2a8] sm:$0xf]
  %v214 = vld [vmem:[%s1 + $0x2ac] sm:$0xf]
  %v215 = vld [vmem:[%s1 + $0x2b0] sm:$0xf]
  %v216 = vld [vmem:[%s1 + $0x2b4] sm:$0xf]
  %v217 = vld [vmem:[%s1 + $0x2b8] sm:$0xf]
  %v218 = vld [vmem:[%s1 + $0x2bc] sm:$0xf]
  %v219 = vld [vmem:[%s1 + $0x2c0] sm:$0xf]
  %v220 = vld [vmem:[%s1 + $0x2c4] sm:$0xf]
  %v221 = vld [vmem:[%s1 + $0x2c8] sm:$0xf]
  %v222 = vld [vmem:[%s1 + $0x2cc] sm:$0xf]
  %v223 = vld [vmem:[%s1 + $0x2d0] sm:$0xf]
  %v224 = vld [vmem:[%s1 + $0x2d4] sm:$0xf]
  %v225 = vld [vmem:[%s1 + $0x2d8] sm:$0xf]
  %v226 = vld [vmem:[%s1 + $0x2dc] sm:$0xf]
  %v227 = vld [vmem:[%s1 + $0x2e0] sm:$0xf]
  %v228 = vld [vmem:[%s1 + $0x2e4] sm:$0xf]
  %v229 = vld [vmem:[%s1 + $0x2e8] sm:$0xf]
  %v230 = vld [vmem:[%s1 + $0x2ec] sm:$0xf]
  %v231 = vld [vmem:[%s1 + $0x2f0] sm:$0xf]
  %v232 = vld [vmem:[%s1 + $0x2f4] sm:$0xf]
  %v233 = vld [vmem:[%s1 + $0x2f8] sm:$0xf]
  %v234 = vld [vmem:[%s1 + $0x2fc] sm:$0xf]
  %v235 = vld [vmem:[%s1 + $0x300] sm:$0xf]
  %v236 = vld [vmem:[%s1 + $0x304] sm:$0xf]
  %v237 = vld [vmem:[%s1 + $0x308] sm:$0xf]
  %v238 = vld [vmem:[%s1 + $0x30c] sm:$0xf]
  %v239 = vld [vmem:[%s1 + $0x310] sm:$0xf]
  %v240 = vld [vmem:[%s1 + $0x314] sm:$0xf]
  %v241 = vld [vmem:[%s1 + $0x318] sm:$0xf]
  %v242 = vld [vmem:[%s1 + $0x31c] sm:$0xf]
  %v243 = vld [vmem:[%s1 + $0x320] sm:$0xf]
  %v244 = vld [vmem:[%s1 + $0x324] sm:$0xf]
  %v245 = vld [vmem:[%s1 + $0x328] sm:$0xf]
  %v246 = vld [vmem:[%s1 + $0x32c] sm:$0xf]
  %v247 = vld [vmem:[%s1 + $0x330] sm:$0xf]
  %v248 = vld [vmem:[%s1 + $0x334] sm:$0xf]
  %v249 = vld [vmem:[%s1 + $0x338] sm:$0xf]
  %v250 = vld [vmem:[%s1 + $0x33c] sm:$0xf]
  %v251 = vld [vmem:[%s1 + $0x340] sm:$0xf]
  %v252 = vld [vmem:[%s1 + $0x344] sm:$0xf]
  %v253 = vld [vmem:[%s1 + $0x348] sm:$0xf]
  %v254 = vld [vmem:[%s1 + $0x34c] sm:$0xf]
  %v255 = vld [vmem:[%s1 + $0x350] sm:$0xf]
  %v256 = vld [vmem:[%s1 + $0x354] sm:$0xf]
  %v257 = vld [vmem:[%s1 + $0x358] sm:$0xf]
  %v258 = vld [vmem:[%s1 + $0x35c] sm:$0xf]
  %v259 = vld [vmem:[%s1 + $0x360] sm:$0xf]
  %v260 = vld [vmem:[%s1 + $0x364] sm:$0xf]
  %v261 = vld [vmem:[%s1 + $0x368] sm:$0xf]
  %v262 = vld [vmem:[%s1 + $0x36c] sm:$0xf]
  %v263 = vld [vmem:[%s1 + $0x370] sm:$0xf]
  %v264 = vld [vmem:[%s1 + $0x374] sm:$0xf]
  %v265 = vld [vmem:[%s1 + $0x378] sm:$0xf]
  %v266 = vld [vmem:[%s1 + $0x37c] sm:$0xf]
  %v267 = vld [vmem:[%s1 + $0x380] sm:$0xf]
  %v268 = vld [vmem:[%s1 + $0x384] sm:$0xf]
  %v269 = vld [vmem:[%s1 + $0x388] sm:$0xf]
  %v270 = vld [vmem:[%s1 + $0x38c] sm:$0xf]
  %v271 = vld [vmem:[%s1 + $0x390] sm:$0xf]
  %v272 = vld [vmem:[%s1 + $0x394] sm:$0xf]
  %v273 = vld [vmem:[%s1 + $0x398] sm:$0xf]
  %v274 = vld [vmem:[%s1 + $0x39c] sm:$0xf]
  %v275 = vld [vmem:[%s1 + $0x3a0] sm:$0xf]
  %v276 = vld [vmem:[%s1 + $0x3a4] sm:$0xf]
  %v277 = vld [vmem:[%s1 + $0x3a8] sm:$0xf]
  %v278 = vld [vmem:[%s1 + $0x3ac] sm:$0xf]
  %v279 = vld [vmem:[%s1 + $0x3b0] sm:$0xf]
  %v280 = vld [vmem:[%s1 + $0x3b4] sm:$0xf]
  %v281 = vld [vmem:[%s1 + $0x3b8] sm:$0xf]
  %v282 = vld [vmem:[%s1 + $0x3bc] sm:$0xf]
  %v283 = vld [vmem:[%s1 + $0x3c0] sm:$0xf]
  %v284 = vld [vmem:[%s1 + $0x3c4] sm:$0xf]
  %v285 = vld [vmem:[%s1 + $0x3c8] sm:$0xf]
  %v286 = vld [vmem:[%s1 + $0x3cc] sm:$0xf]
  %v287 = vld [vmem:[%s1 + $0x3d0] sm:$0xf]
  %v288 = vld [vmem:[%s1 + $0x3d4] sm:$0xf]
  %v289 = vld [vmem:[%s1 + $0x3d8] sm:$0xf]
  %v290 = vld [vmem:[%s1 + $0x3dc] sm:$0xf]
  %v291 = vld [vmem:[%s1 + $0x3e0] sm:$0xf]
  %v292 = vld [vmem:[%s1 + $0x3e4] sm:$0xf]
  %v293 = vld [vmem:[%s1 + $0x3e8] sm:$0xf]
  %v294 = vld [vmem:[%s1 + $0x3ec] sm:$0xf]
  %v295 = vld [vmem:[%s1 + $0x3f0] sm:$0xf]
  %v296 = vld [vmem:[%s1 + $0x3f4] sm:$0xf]
  %v297 = vld [vmem:[%s1 + $0x3f8] sm:$0xf]
  %v298 = vld [vmem:[%s1 + $0x3fc] sm:$0xf]
  %v299 = vld [vmem:[%s1 + $0x400] sm:$0xf]
  %v300 = vld [vmem:[%s1 + $0x404] sm:$0xf]
  %v301 = vld [vmem:[%s1 + $0x408] sm:$0xf]
  %v302 = vld [vmem:[%s1 + $0x40c] sm:$0xf]
  %v303 = vld [vmem:[%s1 + $0x410] sm:$0xf]
  %v304 = vld [vmem:[%s1 + $0x414] sm:$0xf]
  %v305 = vld [vmem:[%s1 + $0x418] sm:$0xf]
  %v306 = vld [vmem:[%s1 + $0x41c] sm:$0xf]
  %v307 = vld [vmem:[%s1 + $0x420] sm:$0xf]
  %v308 = vld [vmem:[%s1 + $0x424] sm:$0xf]
  %v309 = vld [vmem:[%s1 + $0x428] sm:$0xf]
  %v310 = vld [vmem:[%s1 + $0x42c] sm:$0xf]
  %v311 = vld [vmem:[%s1 + $0x430] sm:$0xf]
  %v312 = vld [vmem:[%s1 + $0x434] sm:$0xf]
  %v313 = vld [vmem:[%s1 + $0x438] sm:$0xf]
  %v314 = vld [vmem:[%s1 + $0x43c] sm:$0xf]
  %v315 = vld [vmem:[%s1 + $0x440] sm:$0xf]
  %v316 = vld [vmem:[%s1 + $0x444] sm:$0xf]
  %v317 = vld [vmem:[%s1 + $0x448] sm:$0xf]
  %v318 = vld [vmem:[%s1 + $0x44c] sm:$0xf]
  %v319 = vld [vmem:[%s1 + $0x450] sm:$0xf]
  %v320 = vld [vmem:[%s1 + $0x454] sm:$0xf]
  %v321 = vld [vmem:[%s1 + $0x458] sm:$0xf]
  %v322 = vld [vmem:[%s1 + $0x45c] sm:$0xf]
  %v323 = vld [vmem:[%s1 + $0x460] sm:$0xf]
  %v324 = vld [vmem:[%s1 + $0x464] sm:$0xf]
  %v325 = vld [vmem:[%s1 + $0x468] sm:$0xf]
  %v326 = vld [vmem:[%s1 + $0x46c] sm:$0xf]
  %v327 = vld [vmem:[%s1 + $0x470] sm:$0xf]
  %v328 = vld [vmem:[%s1 + $0x474] sm:$0xf]
  %v329 = vld [vmem:[%s1 + $0x478] sm:$0xf]
  %v330 = vld [vmem:[%s1 + $0x47c] sm:$0xf]
  %v331 = vld [vmem:[%s1 + $0x480] sm:$0xf]
  %v332 = vld [vmem:[%s1 + $0x484] sm:$0xf]
  %v333 = vld [vmem:[%s1 + $0x488] sm:$0xf]
  %v334 = vld [vmem:[%s1 + $0x48c] sm:$0xf]
  %v335 = vld [vmem:[%s1 + $0x490] sm:$0xf]
  %v336 = vld [vmem:[%s1 + $0x494] sm:$0xf]
  %v337 = vld [vmem:[%s1 + $0x498] sm:$0xf]
  %v338 = vld [vmem:[%s1 + $0x49c] sm:$0xf]
  %v339 = vld [vmem:[%s1 + $0x4a0] sm:$0xf]
  %v340 = vld [vmem:[%s1 + $0x4a4] sm:$0xf]
  %v341 = vld [vmem:[%s1 + $0x4a8] sm:$0xf]
  %v342 = vld [vmem:[%s1 + $0x4ac] sm:$0xf]
  %v343 = vld [vmem:[%s1 + $0x4b0] sm:$0xf]
  %v344 = vld [vmem:[%s1 + $0x4b4] sm:$0xf]
  %v345 = vld [vmem:[%s1 + $0x4b8] sm:$0xf]
  %v346 = vld [vmem:[%s1 + $0x4bc] sm:$0xf]
  %v347 = vld [vmem:[%s1 + $0x4c0] sm:$0xf]
  %v348 = vld [vmem:[%s1 + $0x4c4] sm:$0xf]
  %v349 = vld [vmem:[%s1 + $0x4c8] sm:$0xf]
  %v350 = vld [vmem:[%s1 + $0x4cc] sm:$0xf]
  %v351 = vld [vmem:[%s1 + $0x4d0] sm:$0xf]
  %v352 = vld [vmem:[%s1 + $0x4d4] sm:$0xf]
  %v353 = vld [vmem:[%s1 + $0x4d8] sm:$0xf]
  %v354 = vld [vmem:[%s1 + $0x4dc] sm:$0xf]
  %v355 = vld [vmem:[%s1 + $0x4e0] sm:$0xf]
  %v356 = vld [vmem:[%s1 + $0x4e4] sm:$0xf]
  %v357 = vld [vmem:[%s1 + $0x4e8] sm:$0xf]
  %v358 = vld [vmem:[%s1 + $0x4ec] sm:$0xf]
  %v359 = vld [vmem:[%s1 + $0x4f0] sm:$0xf]
  %v360 = vld [vmem:[%s1 + $0x4f4] sm:$0xf]
  %v361 = vld [vmem:[%s1 + $0x4f8] sm:$0xf]
  %v362 = vld [vmem:[%s1 + $0x4fc] sm:$0xf]
  %v363 = vld [vmem:[%s1 + $0x500] sm:$0xf]
  %v364 = vld [vmem:[%s1 + $0x504] sm:$0xf]
  %v365 = vld [vmem:[%s1 + $0x508] sm:$0xf]
  %v366 = vld [vmem:[%s1 + $0x50c] sm:$0xf]
  %v367 = vld [vmem:[%s1 + $0x510] sm:$0xf]
  %v368 = vld [vmem:[%s1 + $0x514] sm:$0xf]
  %v369 = vld [vmem:[%s1 + $0x518] sm:$0xf]
  %v370 = vld [vmem:[%s1 + $0x51c] sm:$0xf]
  %v371 = vld [vmem:[%s1 + $0x520] sm:$0xf]
  %v372 = vld [vmem:[%s1 + $0x524] sm:$0xf]
  %v373 = vld [vmem:[%s1 + $0x528] sm:$0xf]
  %v374 = vld [vmem:[%s1 + $0x52c] sm:$0xf]
  %v375 = vld [vmem:[%s1 + $0x530] sm:$0xf]
  %v376 = vld [vmem:[%s1 + $0x534] sm:$0xf]
  %v377 = vld [vmem:[%s1 + $0x538] sm:$0xf]
  %v378 = vld [vmem:[%s1 + $0x53c] sm:$0xf]
  %v379 = vld [vmem:[%s1 + $0x540] sm:$0xf]
  %v380 = vld [vmem:[%s1 + $0x544] sm:$0xf]
  %v381 = vld [vmem:[%s1 + $0x548] sm:$0xf]
  %v382 = vld [vmem:[%s1 + $0x54c] sm:$0xf]
  %v383 = vld [vmem:[%s1 + $0x550] sm:$0xf]
  %v384 = vld [vmem:[%s1 + $0x554] sm:$0xf]
  %v385 = vld [vmem:[%s1 + $0x558] sm:$0xf]
  %v386 = vld [vmem:[%s1 + $0x55c] sm:$0xf]
  %v387 = vld [vmem:[%s1 + $0x560] sm:$0xf]
  %v388 = vld [vmem:[%s1 + $0x564] sm:$0xf]
  %v389 = vld [vmem:[%s1 + $0x568] sm:$0xf]
  %v390 = vld [vmem:[%s1 + $0x56c] sm:$0xf]
  %v391 = vld [vmem:[%s1 + $0x570] sm:$0xf]
  %v392 = vld [vmem:[%s1 + $0x574] sm:$0xf]
  %v393 = vld [vmem:[%s1 + $0x578] sm:$0xf]
  %v394 = vld [vmem:[%s1 + $0x57c] sm:$0xf]
  %v395 = vld [vmem:[%s1 + $0x580] sm:$0xf]
  %v396 = vld [vmem:[%s1 + $0x584] sm:$0xf]
  %v397 = vld [vmem:[%s1 + $0x588] sm:$0xf]
  %v398 = vld [vmem:[%s1 + $0x58c] sm:$0xf]
  %v399 = vld [vmem:[%s1 + $0x590] sm:$0xf]
  %v400 = vld [vmem:[%s1 + $0x594] sm:$0xf]
  %v401 = vld [vmem:[%s1 + $0x598] sm:$0xf]
  %v402 = vld [vmem:[%s1 + $0x59c] sm:$0xf]
  %v403 = vld [vmem:[%s1 + $0x5a0] sm:$0xf]
  %v404 = vld [vmem:[%s1 + $0x5a4] sm:$0xf]
  %v405 = vld [vmem:[%s1 + $0x5a8] sm:$0xf]
  %v406 = vld [vmem:[%s1 + $0x5ac] sm:$0xf]
  %v407 = vld [vmem:[%s1 + $0x5b0] sm:$0xf]
  %v408 = vld [vmem:[%s1 + $0x5b4] sm:$0xf]
  %v409 = vld [vmem:[%s1 + $0x5b8] sm:$0xf]
  %v410 = vld [vmem:[%s1 + $0x5bc] sm:$0xf]
  %v411 = vld [vmem:[%s1 + $0x5c0] sm:$0xf]
  %v412 = vld [vmem:[%s1 + $0x5c4] sm:$0xf]
  %v413 = vld [vmem:[%s1 + $0x5c8] sm:$0xf]
  %v414 = vld [vmem:[%s1 + $0x5cc] sm:$0xf]
  %v415 = vld [vmem:[%s1 + $0x5d0] sm:$0xf]
  %v416 = vld [vmem:[%s1 + $0x5d4] sm:$0xf]
  %v417 = vld [vmem:[%s1 + $0x5d8] sm:$0xf]
  %v418 = vld [vmem:[%s1 + $0x5dc] sm:$0xf]
  %v419 = vld [vmem:[%s1 + $0x5e0] sm:$0xf]
  %v420 = vld [vmem:[%s1 + $0x5e4] sm:$0xf]
  %v421 = vld [vmem:[%s1 + $0x5e8] sm:$0xf]
  %v422 = vld [vmem:[%s1 + $0x5ec] sm:$0xf]
  %v423 = vld [vmem:[%s1 + $0x5f0] sm:$0xf]
  %v424 = vld [vmem:[%s1 + $0x5f4] sm:$0xf]
  %v425 = vld [vmem:[%s1 + $0x5f8] sm:$0xf]
  %v426 = vld [vmem:[%s1 + $0x5fc] sm:$0xf]
  %v427 = vld [vmem:[%s1 + $0x600] sm:$0xf]
  %v428 = vld [vmem:[%s1 + $0x604] sm:$0xf]
  %v429 = vld [vmem:[%s1 + $0x608] sm:$0xf]
  %v430 = vld [vmem:[%s1 + $0x60c] sm:$0xf]
  %v431 = vld [vmem:[%s1 + $0x610] sm:$0xf]
  %v432 = vld [vmem:[%s1 + $0x614] sm:$0xf]
  %v433 = vld [vmem:[%s1 + $0x618] sm:$0xf]
  %v434 = vld [vmem:[%s1 + $0x61c] sm:$0xf]
  %v435 = vld [vmem:[%s1 + $0x620] sm:$0xf]
  %v436 = vld [vmem:[%s1 + $0x624] sm:$0xf]
  %v437 = vld [vmem:[%s1 + $0x628] sm:$0xf]
  %v438 = vld [vmem:[%s1 + $0x62c] sm:$0xf]
  %v439 = vld [vmem:[%s1 + $0x630] sm:$0xf]
  %v440 = vld [vmem:[%s1 + $0x634] sm:$0xf]
  %v441 = vld [vmem:[%s1 + $0x638] sm:$0xf]
  %v442 = vld [vmem:[%s1 + $0x63c] sm:$0xf]
  %v443 = vld [vmem:[%s1 + $0x640] sm:$0xf]
  %v444 = vld [vmem:[%s1 + $0x644] sm:$0xf]
  %v445 = vld [vmem:[%s1 + $0x648] sm:$0xf]
  %v446 = vld [vmem:[%s1 + $0x64c] sm:$0xf]
  %v447 = vld [vmem:[%s1 + $0x650] sm:$0xf]
  %v448 = vld [vmem:[%s1 + $0x654] sm:$0xf]
  %v449 = vld [vmem:[%s1 + $0x658] sm:$0xf]
  %v450 = vld [vmem:[%s1 + $0x65c] sm:$0xf]
  %v451 = vld [vmem:[%s1 + $0x660] sm:$0xf]
  %v452 = vld [vmem:[%s1 + $0x664] sm:$0xf]
  %v453 = vld [vmem:[%s1 + $0x668] sm:$0xf]
  %v454 = vld [vmem:[%s1 + $0x66c] sm:$0xf]
  %v455 = vld [vmem:[%s1 + $0x670] sm:$0xf]
  %v456 = vld [vmem:[%s1 + $0x674] sm:$0xf]
  %v457 = vld [vmem:[%s1 + $0x678] sm:$0xf]
  %v458 = vld [vmem:[%s1 + $0x67c] sm:$0xf]
  %v459 = vld [vmem:[%s1 + $0x680] sm:$0xf]
  %v460 = vld [vmem:[%s1 + $0x684] sm:$0xf]
  %v461 = vld [vmem:[%s1 + $0x688] sm:$0xf]
  %v462 = vld [vmem:[%s1 + $0x68c] sm:$0xf]
  %v463 = vld [vmem:[%s1 + $0x690] sm:$0xf]
  %v464 = vld [vmem:[%s1 + $0x694] sm:$0xf]
  %v465 = vld [vmem:[%s1 + $0x698] sm:$0xf]
  %v466 = vld [vmem:[%s1 + $0x69c] sm:$0xf]
  %v467 = vld [vmem:[%s1 + $0x6a0] sm:$0xf]
  %v468 = vld [vmem:[%s1 + $0x6a4] sm:$0xf]
  %v469 = vld [vmem:[%s1 + $0x6a8] sm:$0xf]
  %v470 = vld [vmem:[%s1 + $0x6ac] sm:$0xf]
  %v471 = vld [vmem:[%s1 + $0x6b0] sm:$0xf]
  %v472 = vld [vmem:[%s1 + $0x6b4] sm:$0xf]
  %v473 = vld [vmem:[%s1 + $0x6b8] sm:$0xf]
  %v474 = vld [vmem:[%s1 + $0x6bc] sm:$0xf]
  %v475 = vld [vmem:[%s1 + $0x6c0] sm:$0xf]
  %v476 = vld [vmem:[%s1 + $0x6c4] sm:$0xf]
  %v477 = vld [vmem:[%s1 + $0x6c8] sm:$0xf]
  %v478 = vld [vmem:[%s1 + $0x6cc] sm:$0xf]
  %v479 = vld [vmem:[%s1 + $0x6d0] sm:$0xf]
  %v480 = vld [vmem:[%s1 + $0x6d4] sm:$0xf]
  %v481 = vld [vmem:[%s1 + $0x6d8] sm:$0xf]
  %v482 = vld [vmem:[%s1 + $0x6dc] sm:$0xf]
  %v483 = vld [vmem:[%s1 + $0x6e0] sm:$0xf]
  %v484 = vld [vmem:[%s1 + $0x6e4] sm:$0xf]
  %v485 = vld [vmem:[%s1 + $0x6e8] sm:$0xf]
  %v486 = vld [vmem:[%s1 + $0x6ec] sm:$0xf]
  %v487 = vld [vmem:[%s1 + $0x6f0] sm:$0xf]
  %v488 = vld [vmem:[%s1 + $0x6f4] sm:$0xf]
  %v489 = vld [vmem:[%s1 + $0x6f8] sm:$0xf]
  %v490 = vld [vmem:[%s1 + $0x6fc] sm:$0xf]
  %v491 = vld [vmem:[%s1 + $0x700] sm:$0xf]
  %v492 = vld [vmem:[%s1 + $0x704] sm:$0xf]
  %v493 = vld [vmem:[%s1 + $0x708] sm:$0xf]
  %v494 = vld [vmem:[%s1 + $0x70c] sm:$0xf]
  %v495 = vld [vmem:[%s1 + $0x710] sm:$0xf]
  %v496 = vld [vmem:[%s1 + $0x714] sm:$0xf]
  %v497 = vld [vmem:[%s1 + $0x718] sm:$0xf]
  %v498 = vld [vmem:[%s1 + $0x71c] sm:$0xf]
  %v499 = vld [vmem:[%s1 + $0x720] sm:$0xf]
  %v500 = vld [vmem:[%s1 + $0x724] sm:$0xf]
  %v501 = vld [vmem:[%s1 + $0x728] sm:$0xf]
  %v502 = vld [vmem:[%s1 + $0x72c] sm:$0xf]
  %v503 = vld [vmem:[%s1 + $0x730] sm:$0xf]
  %v504 = vld [vmem:[%s1 + $0x734] sm:$0xf]
  %v505 = vld [vmem:[%s1 + $0x738] sm:$0xf]
  %v506 = vld [vmem:[%s1 + $0x73c] sm:$0xf]
  %v507 = vld [vmem:[%s1 + $0x740] sm:$0xf]
  %v508 = vld [vmem:[%s1 + $0x744] sm:$0xf]
  %v509 = vld [vmem:[%s1 + $0x748] sm:$0xf]
  %v510 = vld [vmem:[%s1 + $0x74c] sm:$0xf]
  %v511 = vld [vmem:[%s1 + $0x750] sm:$0xf]
  %v512 = vld [vmem:[%s1 + $0x754] sm:$0xf]
  %v513 = vld [vmem:[%s1 + $0x758] sm:$0xf]
  %v514 = vld [vmem:[%s1 + $0x75c] sm:$0xf]
  %v515 = vld [vmem:[%s1 + $0x760] sm:$0xf]
  %v516 = vld [vmem:[%s1 + $0x764] sm:$0xf]
  %v517 = vld [vmem:[%s1 + $0x768] sm:$0xf]
  %v518 = vld [vmem:[%s1 + $0x76c] sm:$0xf]
  %v519 = vld [vmem:[%s1 + $0x770] sm:$0xf]
  %v520 = vld [vmem:[%s1 + $0x774] sm:$0xf]
  %v521 = vld [vmem:[%s1 + $0x778] sm:$0xf]
  %v522 = vld [vmem:[%s1 + $0x77c] sm:$0xf]
  %v523 = vld [vmem:[%s1 + $0x780] sm:$0xf]
  %v524 = vld [vmem:[%s1 + $0x784] sm:$0xf]
  %v525 = vld [vmem:[%s1 + $0x788] sm:$0xf]
  %v526 = vld [vmem:[%s1 + $0x78c] sm:$0xf]
  %v527 = vld [vmem:[%s1 + $0x790] sm:$0xf]
  %v528 = vld [vmem:[%s1 + $0x794] sm:$0xf]
  %v529 = vld [vmem:[%s1 + $0x798] sm:$0xf]
  %v530 = vld [vmem:[%s1 + $0x79c] sm:$0xf]
  %v531 = vld [vmem:[%s1 + $0x7a0] sm:$0xf]
  %v532 = vld [vmem:[%s1 + $0x7a4] sm:$0xf]
  %v533 = vld [vmem:[%s1 + $0x7a8] sm:$0xf]
  %v534 = vld [vmem:[%s1 + $0x7ac] sm:$0xf]
  %v535 = vld [vmem:[%s1 + $0x7b0] sm:$0xf]
  %v536 = vld [vmem:[%s1 + $0x7b4] sm:$0xf]
  %v537 = vld [vmem:[%s1 + $0x7b8] sm:$0xf]
  %v538 = vld [vmem:[%s1 + $0x7bc] sm:$0xf]
  %v539 = vld [vmem:[%s1 + $0x7c0] sm:$0xf]
  %v540 = vld [vmem:[%s1 + $0x7c4] sm:$0xf]
  %v541 = vld [vmem:[%s1 + $0x7c8] sm:$0xf]
  %v542 = vld [vmem:[%s1 + $0x7cc] sm:$0xf]
  %v543 = vld [vmem:[%s1 + $0x7d0] sm:$0xf]
  %v544 = vld [vmem:[%s1 + $0x7d4] sm:$0xf]
  %v545 = vld [vmem:[%s1 + $0x7d8] sm:$0xf]
  %v546 = vld [vmem:[%s1 + $0x7dc] sm:$0xf]
  %v547 = vld [vmem:[%s1 + $0x7e0] sm:$0xf]
  %v548 = vld [vmem:[%s1 + $0x7e4] sm:$0xf]
  %v549 = vld [vmem:[%s1 + $0x7e8] sm:$0xf]
  %v550 = vld [vmem:[%s1 + $0x7ec] sm:$0xf]
  %v551 = vld [vmem:[%s1 + $0x7f0] sm:$0xf]
  %v552 = vld [vmem:[%s1 + $0x7f4] sm:$0xf]
  %v553 = vld [vmem:[%s1 + $0x7f8] sm:$0xf]
  %v554 = vld [vmem:[%s1 + $0x7fc] sm:$0xf]
  %v555 = vld [vmem:[%s2] sm:$0x1]
  %v557 = vlaneseq
  %v558 = vshrl.u32 %v557, 7
  %v559 = vsub.s32 0, %v558
  %v560 = vrot.slane %v555, %v559
  %v578 = vunpack.c.l.b16 %v27
  %v579 = vunpack.c.h.b16 %v27
  %v580 = vunpack.c.l.b16 %v28
  %v581 = vunpack.c.h.b16 %v28
  %v582 = vunpack.c.l.b16 %v29
  %v583 = vunpack.c.h.b16 %v29
  %v584 = vunpack.c.l.b16 %v30
  %v585 = vunpack.c.h.b16 %v30
  %v586 = vunpack.c.l.b16 %v31
  %v587 = vunpack.c.h.b16 %v31
  %v588 = vunpack.c.l.b16 %v32
  %v589 = vunpack.c.h.b16 %v32
  %v590 = vunpack.c.l.b16 %v33
  %v591 = vunpack.c.h.b16 %v33
  %v592 = vunpack.c.l.b16 %v34
  %v593 = vunpack.c.h.b16 %v34
  %v594 = vunpack.c.l.b16 %v35
  %v595 = vunpack.c.h.b16 %v35
  %v596 = vunpack.c.l.b16 %v36
  %v597 = vunpack.c.h.b16 %v36
  %v598 = vunpack.c.l.b16 %v37
  %v599 = vunpack.c.h.b16 %v37
  %v600 = vunpack.c.l.b16 %v38
  %v601 = vunpack.c.h.b16 %v38
  %v602 = vunpack.c.l.b16 %v39
  %v603 = vunpack.c.h.b16 %v39
  %v604 = vunpack.c.l.b16 %v40
  %v605 = vunpack.c.h.b16 %v40
  %v606 = vunpack.c.l.b16 %v41
  %v607 = vunpack.c.h.b16 %v41
  %v608 = vunpack.c.l.b16 %v42
  %v609 = vunpack.c.h.b16 %v42
  %v610 = vpack.c.b16 %v578, %v578
  %v611 = vpack.c.b16 %v579, %v579
  %v612 = vpack.c.b16 %v580, %v580
  %v613 = vpack.c.b16 %v581, %v581
  %v614 = vpack.c.b16 %v582, %v582
  %v615 = vpack.c.b16 %v583, %v583
  %v616 = vpack.c.b16 %v584, %v584
  %v617 = vpack.c.b16 %v585, %v585
  %v618 = vpack.c.b16 %v586, %v586
  %v619 = vpack.c.b16 %v587, %v587
  %v620 = vpack.c.b16 %v588, %v588
  %v621 = vpack.c.b16 %v589, %v589
  %v622 = vpack.c.b16 %v590, %v590
  %v623 = vpack.c.b16 %v591, %v591
  %v624 = vpack.c.b16 %v592, %v592
  %v625 = vpack.c.b16 %v593, %v593
  %v626 = vpack.c.b16 %v594, %v594
  %v627 = vpack.c.b16 %v595, %v595
  %v628 = vpack.c.b16 %v596, %v596
  %v629 = vpack.c.b16 %v597, %v597
  %v630 = vpack.c.b16 %v598, %v598
  %v631 = vpack.c.b16 %v599, %v599
  %v632 = vpack.c.b16 %v600, %v600
  %v633 = vpack.c.b16 %v601, %v601
  %v634 = vpack.c.b16 %v602, %v602
  %v635 = vpack.c.b16 %v603, %v603
  %v636 = vpack.c.b16 %v604, %v604
  %v637 = vpack.c.b16 %v605, %v605
  %v638 = vpack.c.b16 %v606, %v606
  %v639 = vpack.c.b16 %v607, %v607
  %v640 = vpack.c.b16 %v608, %v608
  %v641 = vpack.c.b16 %v609, %v609
  %v1186 = vunpack.c.l.b16 %v43
  %v1187 = vunpack.c.l.b16 %v44
  %v1188 = vunpack.c.l.b16 %v45
  %v1189 = vunpack.c.l.b16 %v46
  %v1190 = vunpack.c.l.b16 %v47
  %v1191 = vunpack.c.l.b16 %v48
  %v1192 = vunpack.c.l.b16 %v49
  %v1193 = vunpack.c.l.b16 %v50
  %v1194 = vunpack.c.l.b16 %v51
  %v1195 = vunpack.c.l.b16 %v52
  %v1196 = vunpack.c.l.b16 %v53
  %v1197 = vunpack.c.l.b16 %v54
  %v1198 = vunpack.c.l.b16 %v55
  %v1199 = vunpack.c.l.b16 %v56
  %v1200 = vunpack.c.l.b16 %v57
  %v1201 = vunpack.c.l.b16 %v58
  %v1202 = vunpack.c.l.b16 %v59
  %v1203 = vunpack.c.l.b16 %v60
  %v1204 = vunpack.c.l.b16 %v61
  %v1205 = vunpack.c.l.b16 %v62
  %v1206 = vunpack.c.l.b16 %v63
  %v1207 = vunpack.c.l.b16 %v64
  %v1208 = vunpack.c.l.b16 %v65
  %v1209 = vunpack.c.l.b16 %v66
  %v1210 = vunpack.c.l.b16 %v67
  %v1211 = vunpack.c.l.b16 %v68
  %v1212 = vunpack.c.l.b16 %v69
  %v1213 = vunpack.c.l.b16 %v70
  %v1214 = vunpack.c.l.b16 %v71
  %v1215 = vunpack.c.l.b16 %v72
  %v1216 = vunpack.c.l.b16 %v73
  %v1217 = vunpack.c.l.b16 %v74
  %v1218 = vunpack.c.l.b16 %v75
  %v1219 = vunpack.c.l.b16 %v76
  %v1220 = vunpack.c.l.b16 %v77
  %v1221 = vunpack.c.l.b16 %v78
  %v1222 = vunpack.c.l.b16 %v79
  %v1223 = vunpack.c.l.b16 %v80
  %v1224 = vunpack.c.l.b16 %v81
  %v1225 = vunpack.c.l.b16 %v82
  %v1226 = vunpack.c.l.b16 %v83
  %v1227 = vunpack.c.l.b16 %v84
  %v1228 = vunpack.c.l.b16 %v85
  %v1229 = vunpack.c.l.b16 %v86
  %v1230 = vunpack.c.l.b16 %v87
  %v1231 = vunpack.c.l.b16 %v88
  %v1232 = vunpack.c.l.b16 %v89
  %v1233 = vunpack.c.l.b16 %v90
  %v1234 = vunpack.c.l.b16 %v91
  %v1235 = vunpack.c.l.b16 %v92
  %v1236 = vunpack.c.l.b16 %v93
  %v1237 = vunpack.c.l.b16 %v94
  %v1238 = vunpack.c.l.b16 %v95
  %v1239 = vunpack.c.l.b16 %v96
  %v1240 = vunpack.c.l.b16 %v97
  %v1241 = vunpack.c.l.b16 %v98
  %v1242 = vunpack.c.l.b16 %v99
  %v1243 = vunpack.c.l.b16 %v100
  %v1244 = vunpack.c.l.b16 %v101
  %v1245 = vunpack.c.l.b16 %v102
  %v1246 = vunpack.c.l.b16 %v103
  %v1247 = vunpack.c.l.b16 %v104
  %v1248 = vunpack.c.l.b16 %v105
  %v1249 = vunpack.c.l.b16 %v106
  %v1250 = vunpack.c.l.b16 %v107
  %v1251 = vunpack.c.l.b16 %v108
  %v1252 = vunpack.c.l.b16 %v109
  %v1253 = vunpack.c.l.b16 %v110
  %v1254 = vunpack.c.l.b16 %v111
  %v1255 = vunpack.c.l.b16 %v112
  %v1256 = vunpack.c.l.b16 %v113
  %v1257 = vunpack.c.l.b16 %v114
  %v1258 = vunpack.c.l.b16 %v115
  %v1259 = vunpack.c.l.b16 %v116
  %v1260 = vunpack.c.l.b16 %v117
  %v1261 = vunpack.c.l.b16 %v118
  %v1262 = vunpack.c.l.b16 %v119
  %v1263 = vunpack.c.l.b16 %v120
  %v1264 = vunpack.c.l.b16 %v121
  %v1265 = vunpack.c.l.b16 %v122
  %v1266 = vunpack.c.l.b16 %v123
  %v1267 = vunpack.c.l.b16 %v124
  %v1268 = vunpack.c.l.b16 %v125
  %v1269 = vunpack.c.l.b16 %v126
  %v1270 = vunpack.c.l.b16 %v127
  %v1271 = vunpack.c.l.b16 %v128
  %v1272 = vunpack.c.l.b16 %v129
  %v1273 = vunpack.c.l.b16 %v130
  %v1274 = vunpack.c.l.b16 %v131
  %v1275 = vunpack.c.l.b16 %v132
  %v1276 = vunpack.c.l.b16 %v133
  %v1277 = vunpack.c.l.b16 %v134
  %v1278 = vunpack.c.l.b16 %v135
  %v1279 = vunpack.c.l.b16 %v136
  %v1280 = vunpack.c.l.b16 %v137
  %v1281 = vunpack.c.l.b16 %v138
  %v1282 = vunpack.c.l.b16 %v139
  %v1283 = vunpack.c.l.b16 %v140
  %v1284 = vunpack.c.l.b16 %v141
  %v1285 = vunpack.c.l.b16 %v142
  %v1286 = vunpack.c.l.b16 %v143
  %v1287 = vunpack.c.l.b16 %v144
  %v1288 = vunpack.c.l.b16 %v145
  %v1289 = vunpack.c.l.b16 %v146
  %v1290 = vunpack.c.l.b16 %v147
  %v1291 = vunpack.c.l.b16 %v148
  %v1292 = vunpack.c.l.b16 %v149
  %v1293 = vunpack.c.l.b16 %v150
  %v1294 = vunpack.c.l.b16 %v151
  %v1295 = vunpack.c.l.b16 %v152
  %v1296 = vunpack.c.l.b16 %v153
  %v1297 = vunpack.c.l.b16 %v154
  %v1298 = vunpack.c.l.b16 %v155
  %v1299 = vunpack.c.l.b16 %v156
  %v1300 = vunpack.c.l.b16 %v157
  %v1301 = vunpack.c.l.b16 %v158
  %v1302 = vunpack.c.l.b16 %v159
  %v1303 = vunpack.c.l.b16 %v160
  %v1304 = vunpack.c.l.b16 %v161
  %v1305 = vunpack.c.l.b16 %v162
  %v1306 = vunpack.c.l.b16 %v163
  %v1307 = vunpack.c.l.b16 %v164
  %v1308 = vunpack.c.l.b16 %v165
  %v1309 = vunpack.c.l.b16 %v166
  %v1310 = vunpack.c.l.b16 %v167
  %v1311 = vunpack.c.l.b16 %v168
  %v1312 = vunpack.c.l.b16 %v169
  %v1313 = vunpack.c.l.b16 %v170
  %v1314 = vunpack.c.l.b16 %v171
  %v1315 = vunpack.c.l.b16 %v172
  %v1316 = vunpack.c.l.b16 %v173
  %v1317 = vunpack.c.l.b16 %v174
  %v1318 = vunpack.c.l.b16 %v175
  %v1319 = vunpack.c.l.b16 %v176
  %v1320 = vunpack.c.l.b16 %v177
  %v1321 = vunpack.c.l.b16 %v178
  %v1322 = vunpack.c.l.b16 %v179
  %v1323 = vunpack.c.l.b16 %v180
  %v1324 = vunpack.c.l.b16 %v181
  %v1325 = vunpack.c.l.b16 %v182
  %v1326 = vunpack.c.l.b16 %v183
  %v1327 = vunpack.c.l.b16 %v184
  %v1328 = vunpack.c.l.b16 %v185
  %v1329 = vunpack.c.l.b16 %v186
  %v1330 = vunpack.c.l.b16 %v187
  %v1331 = vunpack.c.l.b16 %v188
  %v1332 = vunpack.c.l.b16 %v189
  %v1333 = vunpack.c.l.b16 %v190
  %v1334 = vunpack.c.l.b16 %v191
  %v1335 = vunpack.c.l.b16 %v192
  %v1336 = vunpack.c.l.b16 %v193
  %v1337 = vunpack.c.l.b16 %v194
  %v1338 = vunpack.c.l.b16 %v195
  %v1339 = vunpack.c.l.b16 %v196
  %v1340 = vunpack.c.l.b16 %v197
  %v1341 = vunpack.c.l.b16 %v198
  %v1342 = vunpack.c.l.b16 %v199
  %v1343 = vunpack.c.l.b16 %v200
  %v1344 = vunpack.c.l.b16 %v201
  %v1345 = vunpack.c.l.b16 %v202
  %v1346 = vunpack.c.l.b16 %v203
  %v1347 = vunpack.c.l.b16 %v204
  %v1348 = vunpack.c.l.b16 %v205
  %v1349 = vunpack.c.l.b16 %v206
  %v1350 = vunpack.c.l.b16 %v207
  %v1351 = vunpack.c.l.b16 %v208
  %v1352 = vunpack.c.l.b16 %v209
  %v1353 = vunpack.c.l.b16 %v210
  %v1354 = vunpack.c.l.b16 %v211
  %v1355 = vunpack.c.l.b16 %v212
  %v1356 = vunpack.c.l.b16 %v213
  %v1357 = vunpack.c.l.b16 %v214
  %v1358 = vunpack.c.l.b16 %v215
  %v1359 = vunpack.c.l.b16 %v216
  %v1360 = vunpack.c.l.b16 %v217
  %v1361 = vunpack.c.l.b16 %v218
  %v1362 = vunpack.c.l.b16 %v219
  %v1363 = vunpack.c.l.b16 %v220
  %v1364 = vunpack.c.l.b16 %v221
  %v1365 = vunpack.c.l.b16 %v222
  %v1366 = vunpack.c.l.b16 %v223
  %v1367 = vunpack.c.l.b16 %v224
  %v1368 = vunpack.c.l.b16 %v225
  %v1369 = vunpack.c.l.b16 %v226
  %v1370 = vunpack.c.l.b16 %v227
  %v1371 = vunpack.c.l.b16 %v228
  %v1372 = vunpack.c.l.b16 %v229
  %v1373 = vunpack.c.l.b16 %v230
  %v1374 = vunpack.c.l.b16 %v231
  %v1375 = vunpack.c.l.b16 %v232
  %v1376 = vunpack.c.l.b16 %v233
  %v1377 = vunpack.c.l.b16 %v234
  %v1378 = vunpack.c.l.b16 %v235
  %v1379 = vunpack.c.l.b16 %v236
  %v1380 = vunpack.c.l.b16 %v237
  %v1381 = vunpack.c.l.b16 %v238
  %v1382 = vunpack.c.l.b16 %v239
  %v1383 = vunpack.c.l.b16 %v240
  %v1384 = vunpack.c.l.b16 %v241
  %v1385 = vunpack.c.l.b16 %v242
  %v1386 = vunpack.c.l.b16 %v243
  %v1387 = vunpack.c.l.b16 %v244
  %v1388 = vunpack.c.l.b16 %v245
  %v1389 = vunpack.c.l.b16 %v246
  %v1390 = vunpack.c.l.b16 %v247
  %v1391 = vunpack.c.l.b16 %v248
  %v1392 = vunpack.c.l.b16 %v249
  %v1393 = vunpack.c.l.b16 %v250
  %v1394 = vunpack.c.l.b16 %v251
  %v1395 = vunpack.c.l.b16 %v252
  %v1396 = vunpack.c.l.b16 %v253
  %v1397 = vunpack.c.l.b16 %v254
  %v1398 = vunpack.c.l.b16 %v255
  %v1399 = vunpack.c.l.b16 %v256
  %v1400 = vunpack.c.l.b16 %v257
  %v1401 = vunpack.c.l.b16 %v258
  %v1402 = vunpack.c.l.b16 %v259
  %v1403 = vunpack.c.l.b16 %v260
  %v1404 = vunpack.c.l.b16 %v261
  %v1405 = vunpack.c.l.b16 %v262
  %v1406 = vunpack.c.l.b16 %v263
  %v1407 = vunpack.c.l.b16 %v264
  %v1408 = vunpack.c.l.b16 %v265
  %v1409 = vunpack.c.l.b16 %v266
  %v1410 = vunpack.c.l.b16 %v267
  %v1411 = vunpack.c.l.b16 %v268
  %v1412 = vunpack.c.l.b16 %v269
  %v1413 = vunpack.c.l.b16 %v270
  %v1414 = vunpack.c.l.b16 %v271
  %v1415 = vunpack.c.l.b16 %v272
  %v1416 = vunpack.c.l.b16 %v273
  %v1417 = vunpack.c.l.b16 %v274
  %v1418 = vunpack.c.l.b16 %v275
  %v1419 = vunpack.c.l.b16 %v276
  %v1420 = vunpack.c.l.b16 %v277
  %v1421 = vunpack.c.l.b16 %v278
  %v1422 = vunpack.c.l.b16 %v279
  %v1423 = vunpack.c.l.b16 %v280
  %v1424 = vunpack.c.l.b16 %v281
  %v1425 = vunpack.c.l.b16 %v282
  %v1426 = vunpack.c.l.b16 %v283
  %v1427 = vunpack.c.l.b16 %v284
  %v1428 = vunpack.c.l.b16 %v285
  %v1429 = vunpack.c.l.b16 %v286
  %v1430 = vunpack.c.l.b16 %v287
  %v1431 = vunpack.c.l.b16 %v288
  %v1432 = vunpack.c.l.b16 %v289
  %v1433 = vunpack.c.l.b16 %v290
  %v1434 = vunpack.c.l.b16 %v291
  %v1435 = vunpack.c.l.b16 %v292
  %v1436 = vunpack.c.l.b16 %v293
  %v1437 = vunpack.c.l.b16 %v294
  %v1438 = vunpack.c.l.b16 %v295
  %v1439 = vunpack.c.l.b16 %v296
  %v1440 = vunpack.c.l.b16 %v297
  %v1441 = vunpack.c.l.b16 %v298
  %v1442 = vunpack.c.l.b16 %v299
  %v1443 = vunpack.c.l.b16 %v300
  %v1444 = vunpack.c.l.b16 %v301
  %v1445 = vunpack.c.l.b16 %v302
  %v1446 = vunpack.c.l.b16 %v303
  %v1447 = vunpack.c.l.b16 %v304
  %v1448 = vunpack.c.l.b16 %v305
  %v1449 = vunpack.c.l.b16 %v306
  %v1450 = vunpack.c.l.b16 %v307
  %v1451 = vunpack.c.l.b16 %v308
  %v1452 = vunpack.c.l.b16 %v309
  %v1453 = vunpack.c.l.b16 %v310
  %v1454 = vunpack.c.l.b16 %v311
  %v1455 = vunpack.c.l.b16 %v312
  %v1456 = vunpack.c.l.b16 %v313
  %v1457 = vunpack.c.l.b16 %v314
  %v1458 = vunpack.c.l.b16 %v315
  %v1459 = vunpack.c.l.b16 %v316
  %v1460 = vunpack.c.l.b16 %v317
  %v1461 = vunpack.c.l.b16 %v318
  %v1462 = vunpack.c.l.b16 %v319
  %v1463 = vunpack.c.l.b16 %v320
  %v1464 = vunpack.c.l.b16 %v321
  %v1465 = vunpack.c.l.b16 %v322
  %v1466 = vunpack.c.l.b16 %v323
  %v1467 = vunpack.c.l.b16 %v324
  %v1468 = vunpack.c.l.b16 %v325
  %v1469 = vunpack.c.l.b16 %v326
  %v1470 = vunpack.c.l.b16 %v327
  %v1471 = vunpack.c.l.b16 %v328
  %v1472 = vunpack.c.l.b16 %v329
  %v1473 = vunpack.c.l.b16 %v330
  %v1474 = vunpack.c.l.b16 %v331
  %v1475 = vunpack.c.l.b16 %v332
  %v1476 = vunpack.c.l.b16 %v333
  %v1477 = vunpack.c.l.b16 %v334
  %v1478 = vunpack.c.l.b16 %v335
  %v1479 = vunpack.c.l.b16 %v336
  %v1480 = vunpack.c.l.b16 %v337
  %v1481 = vunpack.c.l.b16 %v338
  %v1482 = vunpack.c.l.b16 %v339
  %v1483 = vunpack.c.l.b16 %v340
  %v1484 = vunpack.c.l.b16 %v341
  %v1485 = vunpack.c.l.b16 %v342
  %v1486 = vunpack.c.l.b16 %v343
  %v1487 = vunpack.c.l.b16 %v344
  %v1488 = vunpack.c.l.b16 %v345
  %v1489 = vunpack.c.l.b16 %v346
  %v1490 = vunpack.c.l.b16 %v347
  %v1491 = vunpack.c.l.b16 %v348
  %v1492 = vunpack.c.l.b16 %v349
  %v1493 = vunpack.c.l.b16 %v350
  %v1494 = vunpack.c.l.b16 %v351
  %v1495 = vunpack.c.l.b16 %v352
  %v1496 = vunpack.c.l.b16 %v353
  %v1497 = vunpack.c.l.b16 %v354
  %v1498 = vunpack.c.l.b16 %v355
  %v1499 = vunpack.c.l.b16 %v356
  %v1500 = vunpack.c.l.b16 %v357
  %v1501 = vunpack.c.l.b16 %v358
  %v1502 = vunpack.c.l.b16 %v359
  %v1503 = vunpack.c.l.b16 %v360
  %v1504 = vunpack.c.l.b16 %v361
  %v1505 = vunpack.c.l.b16 %v362
  %v1506 = vunpack.c.l.b16 %v363
  %v1507 = vunpack.c.l.b16 %v364
  %v1508 = vunpack.c.l.b16 %v365
  %v1509 = vunpack.c.l.b16 %v366
  %v1510 = vunpack.c.l.b16 %v367
  %v1511 = vunpack.c.l.b16 %v368
  %v1512 = vunpack.c.l.b16 %v369
  %v1513 = vunpack.c.l.b16 %v370
  %v1514 = vunpack.c.l.b16 %v371
  %v1515 = vunpack.c.l.b16 %v372
  %v1516 = vunpack.c.l.b16 %v373
  %v1517 = vunpack.c.l.b16 %v374
  %v1518 = vunpack.c.l.b16 %v375
  %v1519 = vunpack.c.l.b16 %v376
  %v1520 = vunpack.c.l.b16 %v377
  %v1521 = vunpack.c.l.b16 %v378
  %v1522 = vunpack.c.l.b16 %v379
  %v1523 = vunpack.c.l.b16 %v380
  %v1524 = vunpack.c.l.b16 %v381
  %v1525 = vunpack.c.l.b16 %v382
  %v1526 = vunpack.c.l.b16 %v383
  %v1527 = vunpack.c.l.b16 %v384
  %v1528 = vunpack.c.l.b16 %v385
  %v1529 = vunpack.c.l.b16 %v386
  %v1530 = vunpack.c.l.b16 %v387
  %v1531 = vunpack.c.l.b16 %v388
  %v1532 = vunpack.c.l.b16 %v389
  %v1533 = vunpack.c.l.b16 %v390
  %v1534 = vunpack.c.l.b16 %v391
  %v1535 = vunpack.c.l.b16 %v392
  %v1536 = vunpack.c.l.b16 %v393
  %v1537 = vunpack.c.l.b16 %v394
  %v1538 = vunpack.c.l.b16 %v395
  %v1539 = vunpack.c.l.b16 %v396
  %v1540 = vunpack.c.l.b16 %v397
  %v1541 = vunpack.c.l.b16 %v398
  %v1542 = vunpack.c.l.b16 %v399
  %v1543 = vunpack.c.l.b16 %v400
  %v1544 = vunpack.c.l.b16 %v401
  %v1545 = vunpack.c.l.b16 %v402
  %v1546 = vunpack.c.l.b16 %v403
  %v1547 = vunpack.c.l.b16 %v404
  %v1548 = vunpack.c.l.b16 %v405
  %v1549 = vunpack.c.l.b16 %v406
  %v1550 = vunpack.c.l.b16 %v407
  %v1551 = vunpack.c.l.b16 %v408
  %v1552 = vunpack.c.l.b16 %v409
  %v1553 = vunpack.c.l.b16 %v410
  %v1554 = vunpack.c.l.b16 %v411
  %v1555 = vunpack.c.l.b16 %v412
  %v1556 = vunpack.c.l.b16 %v413
  %v1557 = vunpack.c.l.b16 %v414
  %v1558 = vunpack.c.l.b16 %v415
  %v1559 = vunpack.c.l.b16 %v416
  %v1560 = vunpack.c.l.b16 %v417
  %v1561 = vunpack.c.l.b16 %v418
  %v1562 = vunpack.c.l.b16 %v419
  %v1563 = vunpack.c.l.b16 %v420
  %v1564 = vunpack.c.l.b16 %v421
  %v1565 = vunpack.c.l.b16 %v422
  %v1566 = vunpack.c.l.b16 %v423
  %v1567 = vunpack.c.l.b16 %v424
  %v1568 = vunpack.c.l.b16 %v425
  %v1569 = vunpack.c.l.b16 %v426
  %v1570 = vunpack.c.l.b16 %v427
  %v1571 = vunpack.c.l.b16 %v428
  %v1572 = vunpack.c.l.b16 %v429
  %v1573 = vunpack.c.l.b16 %v430
  %v1574 = vunpack.c.l.b16 %v431
  %v1575 = vunpack.c.l.b16 %v432
  %v1576 = vunpack.c.l.b16 %v433
  %v1577 = vunpack.c.l.b16 %v434
  %v1578 = vunpack.c.l.b16 %v435
  %v1579 = vunpack.c.l.b16 %v436
  %v1580 = vunpack.c.l.b16 %v437
  %v1581 = vunpack.c.l.b16 %v438
  %v1582 = vunpack.c.l.b16 %v439
  %v1583 = vunpack.c.l.b16 %v440
  %v1584 = vunpack.c.l.b16 %v441
  %v1585 = vunpack.c.l.b16 %v442
  %v1586 = vunpack.c.l.b16 %v443
  %v1587 = vunpack.c.l.b16 %v444
  %v1588 = vunpack.c.l.b16 %v445
  %v1589 = vunpack.c.l.b16 %v446
  %v1590 = vunpack.c.l.b16 %v447
  %v1591 = vunpack.c.l.b16 %v448
  %v1592 = vunpack.c.l.b16 %v449
  %v1593 = vunpack.c.l.b16 %v450
  %v1594 = vunpack.c.l.b16 %v451
  %v1595 = vunpack.c.l.b16 %v452
  %v1596 = vunpack.c.l.b16 %v453
  %v1597 = vunpack.c.l.b16 %v454
  %v1598 = vunpack.c.l.b16 %v455
  %v1599 = vunpack.c.l.b16 %v456
  %v1600 = vunpack.c.l.b16 %v457
  %v1601 = vunpack.c.l.b16 %v458
  %v1602 = vunpack.c.l.b16 %v459
  %v1603 = vunpack.c.l.b16 %v460
  %v1604 = vunpack.c.l.b16 %v461
  %v1605 = vunpack.c.l.b16 %v462
  %v1606 = vunpack.c.l.b16 %v463
  %v1607 = vunpack.c.l.b16 %v464
  %v1608 = vunpack.c.l.b16 %v465
  %v1609 = vunpack.c.l.b16 %v466
  %v1610 = vunpack.c.l.b16 %v467
  %v1611 = vunpack.c.l.b16 %v468
  %v1612 = vunpack.c.l.b16 %v469
  %v1613 = vunpack.c.l.b16 %v470
  %v1614 = vunpack.c.l.b16 %v471
  %v1615 = vunpack.c.l.b16 %v472
  %v1616 = vunpack.c.l.b16 %v473
  %v1617 = vunpack.c.l.b16 %v474
  %v1618 = vunpack.c.l.b16 %v475
  %v1619 = vunpack.c.l.b16 %v476
  %v1620 = vunpack.c.l.b16 %v477
  %v1621 = vunpack.c.l.b16 %v478
  %v1622 = vunpack.c.l.b16 %v479
  %v1623 = vunpack.c.l.b16 %v480
  %v1624 = vunpack.c.l.b16 %v481
  %v1625 = vunpack.c.l.b16 %v482
  %v1626 = vunpack.c.l.b16 %v483
  %v1627 = vunpack.c.l.b16 %v484
  %v1628 = vunpack.c.l.b16 %v485
  %v1629 = vunpack.c.l.b16 %v486
  %v1630 = vunpack.c.l.b16 %v487
  %v1631 = vunpack.c.l.b16 %v488
  %v1632 = vunpack.c.l.b16 %v489
  %v1633 = vunpack.c.l.b16 %v490
  %v1634 = vunpack.c.l.b16 %v491
  %v1635 = vunpack.c.l.b16 %v492
  %v1636 = vunpack.c.l.b16 %v493
  %v1637 = vunpack.c.l.b16 %v494
  %v1638 = vunpack.c.l.b16 %v495
  %v1639 = vunpack.c.l.b16 %v496
  %v1640 = vunpack.c.l.b16 %v497
  %v1641 = vunpack.c.l.b16 %v498
  %v1642 = vunpack.c.l.b16 %v499
  %v1643 = vunpack.c.l.b16 %v500
  %v1644 = vunpack.c.l.b16 %v501
  %v1645 = vunpack.c.l.b16 %v502
  %v1646 = vunpack.c.l.b16 %v503
  %v1647 = vunpack.c.l.b16 %v504
  %v1648 = vunpack.c.l.b16 %v505
  %v1649 = vunpack.c.l.b16 %v506
  %v1650 = vunpack.c.l.b16 %v507
  %v1651 = vunpack.c.l.b16 %v508
  %v1652 = vunpack.c.l.b16 %v509
  %v1653 = vunpack.c.l.b16 %v510
  %v1654 = vunpack.c.l.b16 %v511
  %v1655 = vunpack.c.l.b16 %v512
  %v1656 = vunpack.c.l.b16 %v513
  %v1657 = vunpack.c.l.b16 %v514
  %v1658 = vunpack.c.l.b16 %v515
  %v1659 = vunpack.c.l.b16 %v516
  %v1660 = vunpack.c.l.b16 %v517
  %v1661 = vunpack.c.l.b16 %v518
  %v1662 = vunpack.c.l.b16 %v519
  %v1663 = vunpack.c.l.b16 %v520
  %v1664 = vunpack.c.l.b16 %v521
  %v1665 = vunpack.c.l.b16 %v522
  %v1666 = vunpack.c.l.b16 %v523
  %v1667 = vunpack.c.l.b16 %v524
  %v1668 = vunpack.c.l.b16 %v525
  %v1669 = vunpack.c.l.b16 %v526
  %v1670 = vunpack.c.l.b16 %v527
  %v1671 = vunpack.c.l.b16 %v528
  %v1672 = vunpack.c.l.b16 %v529
  %v1673 = vunpack.c.l.b16 %v530
  %v1674 = vunpack.c.l.b16 %v531
  %v1675 = vunpack.c.l.b16 %v532
  %v1676 = vunpack.c.l.b16 %v533
  %v1677 = vunpack.c.l.b16 %v534
  %v1678 = vunpack.c.l.b16 %v535
  %v1679 = vunpack.c.l.b16 %v536
  %v1680 = vunpack.c.l.b16 %v537
  %v1681 = vunpack.c.l.b16 %v538
  %v1682 = vunpack.c.l.b16 %v539
  %v1683 = vunpack.c.l.b16 %v540
  %v1684 = vunpack.c.l.b16 %v541
  %v1685 = vunpack.c.l.b16 %v542
  %v1686 = vunpack.c.l.b16 %v543
  %v1687 = vunpack.c.l.b16 %v544
  %v1688 = vunpack.c.l.b16 %v545
  %v1689 = vunpack.c.l.b16 %v546
  %v1690 = vunpack.c.l.b16 %v547
  %v1691 = vunpack.c.l.b16 %v548
  %v1692 = vunpack.c.l.b16 %v549
  %v1693 = vunpack.c.l.b16 %v550
  %v1694 = vunpack.c.l.b16 %v551
  %v1695 = vunpack.c.l.b16 %v552
  %v1696 = vunpack.c.l.b16 %v553
  %v1697 = vunpack.c.l.b16 %v554
  %v1698 = vpack.c.b16 %v1187, %v1186
  %v1699 = vpack.c.b16 %v1189, %v1188
  %v1700 = vpack.c.b16 %v1191, %v1190
  %v1701 = vpack.c.b16 %v1193, %v1192
  %v1702 = vpack.c.b16 %v1195, %v1194
  %v1703 = vpack.c.b16 %v1197, %v1196
  %v1704 = vpack.c.b16 %v1199, %v1198
  %v1705 = vpack.c.b16 %v1201, %v1200
  %v1706 = vpack.c.b16 %v1203, %v1202
  %v1707 = vpack.c.b16 %v1205, %v1204
  %v1708 = vpack.c.b16 %v1207, %v1206
  %v1709 = vpack.c.b16 %v1209, %v1208
  %v1710 = vpack.c.b16 %v1211, %v1210
  %v1711 = vpack.c.b16 %v1213, %v1212
  %v1712 = vpack.c.b16 %v1215, %v1214
  %v1713 = vpack.c.b16 %v1217, %v1216
  %v1714 = vpack.c.b16 %v1219, %v1218
  %v1715 = vpack.c.b16 %v1221, %v1220
  %v1716 = vpack.c.b16 %v1223, %v1222
  %v1717 = vpack.c.b16 %v1225, %v1224
  %v1718 = vpack.c.b16 %v1227, %v1226
  %v1719 = vpack.c.b16 %v1229, %v1228
  %v1720 = vpack.c.b16 %v1231, %v1230
  %v1721 = vpack.c.b16 %v1233, %v1232
  %v1722 = vpack.c.b16 %v1235, %v1234
  %v1723 = vpack.c.b16 %v1237, %v1236
  %v1724 = vpack.c.b16 %v1239, %v1238
  %v1725 = vpack.c.b16 %v1241, %v1240
  %v1726 = vpack.c.b16 %v1243, %v1242
  %v1727 = vpack.c.b16 %v1245, %v1244
  %v1728 = vpack.c.b16 %v1247, %v1246
  %v1729 = vpack.c.b16 %v1249, %v1248
  %v1730 = vpack.c.b16 %v1251, %v1250
  %v1731 = vpack.c.b16 %v1253, %v1252
  %v1732 = vpack.c.b16 %v1255, %v1254
  %v1733 = vpack.c.b16 %v1257, %v1256
  %v1734 = vpack.c.b16 %v1259, %v1258
  %v1735 = vpack.c.b16 %v1261, %v1260
  %v1736 = vpack.c.b16 %v1263, %v1262
  %v1737 = vpack.c.b16 %v1265, %v1264
  %v1738 = vpack.c.b16 %v1267, %v1266
  %v1739 = vpack.c.b16 %v1269, %v1268
  %v1740 = vpack.c.b16 %v1271, %v1270
  %v1741 = vpack.c.b16 %v1273, %v1272
  %v1742 = vpack.c.b16 %v1275, %v1274
  %v1743 = vpack.c.b16 %v1277, %v1276
  %v1744 = vpack.c.b16 %v1279, %v1278
  %v1745 = vpack.c.b16 %v1281, %v1280
  %v1746 = vpack.c.b16 %v1283, %v1282
  %v1747 = vpack.c.b16 %v1285, %v1284
  %v1748 = vpack.c.b16 %v1287, %v1286
  %v1749 = vpack.c.b16 %v1289, %v1288
  %v1750 = vpack.c.b16 %v1291, %v1290
  %v1751 = vpack.c.b16 %v1293, %v1292
  %v1752 = vpack.c.b16 %v1295, %v1294
  %v1753 = vpack.c.b16 %v1297, %v1296
  %v1754 = vpack.c.b16 %v1299, %v1298
  %v1755 = vpack.c.b16 %v1301, %v1300
  %v1756 = vpack.c.b16 %v1303, %v1302
  %v1757 = vpack.c.b16 %v1305, %v1304
  %v1758 = vpack.c.b16 %v1307, %v1306
  %v1759 = vpack.c.b16 %v1309, %v1308
  %v1760 = vpack.c.b16 %v1311, %v1310
  %v1761 = vpack.c.b16 %v1313, %v1312
  %v1762 = vpack.c.b16 %v1315, %v1314
  %v1763 = vpack.c.b16 %v1317, %v1316
  %v1764 = vpack.c.b16 %v1319, %v1318
  %v1765 = vpack.c.b16 %v1321, %v1320
  %v1766 = vpack.c.b16 %v1323, %v1322
  %v1767 = vpack.c.b16 %v1325, %v1324
  %v1768 = vpack.c.b16 %v1327, %v1326
  %v1769 = vpack.c.b16 %v1329, %v1328
  %v1770 = vpack.c.b16 %v1331, %v1330
  %v1771 = vpack.c.b16 %v1333, %v1332
  %v1772 = vpack.c.b16 %v1335, %v1334
  %v1773 = vpack.c.b16 %v1337, %v1336
  %v1774 = vpack.c.b16 %v1339, %v1338
  %v1775 = vpack.c.b16 %v1341, %v1340
  %v1776 = vpack.c.b16 %v1343, %v1342
  %v1777 = vpack.c.b16 %v1345, %v1344
  %v1778 = vpack.c.b16 %v1347, %v1346
  %v1779 = vpack.c.b16 %v1349, %v1348
  %v1780 = vpack.c.b16 %v1351, %v1350
  %v1781 = vpack.c.b16 %v1353, %v1352
  %v1782 = vpack.c.b16 %v1355, %v1354
  %v1783 = vpack.c.b16 %v1357, %v1356
  %v1784 = vpack.c.b16 %v1359, %v1358
  %v1785 = vpack.c.b16 %v1361, %v1360
  %v1786 = vpack.c.b16 %v1363, %v1362
  %v1787 = vpack.c.b16 %v1365, %v1364
  %v1788 = vpack.c.b16 %v1367, %v1366
  %v1789 = vpack.c.b16 %v1369, %v1368
  %v1790 = vpack.c.b16 %v1371, %v1370
  %v1791 = vpack.c.b16 %v1373, %v1372
  %v1792 = vpack.c.b16 %v1375, %v1374
  %v1793 = vpack.c.b16 %v1377, %v1376
  %v1794 = vpack.c.b16 %v1379, %v1378
  %v1795 = vpack.c.b16 %v1381, %v1380
  %v1796 = vpack.c.b16 %v1383, %v1382
  %v1797 = vpack.c.b16 %v1385, %v1384
  %v1798 = vpack.c.b16 %v1387, %v1386
  %v1799 = vpack.c.b16 %v1389, %v1388
  %v1800 = vpack.c.b16 %v1391, %v1390
  %v1801 = vpack.c.b16 %v1393, %v1392
  %v1802 = vpack.c.b16 %v1395, %v1394
  %v1803 = vpack.c.b16 %v1397, %v1396
  %v1804 = vpack.c.b16 %v1399, %v1398
  %v1805 = vpack.c.b16 %v1401, %v1400
  %v1806 = vpack.c.b16 %v1403, %v1402
  %v1807 = vpack.c.b16 %v1405, %v1404
  %v1808 = vpack.c.b16 %v1407, %v1406
  %v1809 = vpack.c.b16 %v1409, %v1408
  %v1810 = vpack.c.b16 %v1411, %v1410
  %v1811 = vpack.c.b16 %v1413, %v1412
  %v1812 = vpack.c.b16 %v1415, %v1414
  %v1813 = vpack.c.b16 %v1417, %v1416
  %v1814 = vpack.c.b16 %v1419, %v1418
  %v1815 = vpack.c.b16 %v1421, %v1420
  %v1816 = vpack.c.b16 %v1423, %v1422
  %v1817 = vpack.c.b16 %v1425, %v1424
  %v1818 = vpack.c.b16 %v1427, %v1426
  %v1819 = vpack.c.b16 %v1429, %v1428
  %v1820 = vpack.c.b16 %v1431, %v1430
  %v1821 = vpack.c.b16 %v1433, %v1432
  %v1822 = vpack.c.b16 %v1435, %v1434
  %v1823 = vpack.c.b16 %v1437, %v1436
  %v1824 = vpack.c.b16 %v1439, %v1438
  %v1825 = vpack.c.b16 %v1441, %v1440
  %v1826 = vpack.c.b16 %v1443, %v1442
  %v1827 = vpack.c.b16 %v1445, %v1444
  %v1828 = vpack.c.b16 %v1447, %v1446
  %v1829 = vpack.c.b16 %v1449, %v1448
  %v1830 = vpack.c.b16 %v1451, %v1450
  %v1831 = vpack.c.b16 %v1453, %v1452
  %v1832 = vpack.c.b16 %v1455, %v1454
  %v1833 = vpack.c.b16 %v1457, %v1456
  %v1834 = vpack.c.b16 %v1459, %v1458
  %v1835 = vpack.c.b16 %v1461, %v1460
  %v1836 = vpack.c.b16 %v1463, %v1462
  %v1837 = vpack.c.b16 %v1465, %v1464
  %v1838 = vpack.c.b16 %v1467, %v1466
  %v1839 = vpack.c.b16 %v1469, %v1468
  %v1840 = vpack.c.b16 %v1471, %v1470
  %v1841 = vpack.c.b16 %v1473, %v1472
  %v1842 = vpack.c.b16 %v1475, %v1474
  %v1843 = vpack.c.b16 %v1477, %v1476
  %v1844 = vpack.c.b16 %v1479, %v1478
  %v1845 = vpack.c.b16 %v1481, %v1480
  %v1846 = vpack.c.b16 %v1483, %v1482
  %v1847 = vpack.c.b16 %v1485, %v1484
  %v1848 = vpack.c.b16 %v1487, %v1486
  %v1849 = vpack.c.b16 %v1489, %v1488
  %v1850 = vpack.c.b16 %v1491, %v1490
  %v1851 = vpack.c.b16 %v1493, %v1492
  %v1852 = vpack.c.b16 %v1495, %v1494
  %v1853 = vpack.c.b16 %v1497, %v1496
  %v1854 = vpack.c.b16 %v1499, %v1498
  %v1855 = vpack.c.b16 %v1501, %v1500
  %v1856 = vpack.c.b16 %v1503, %v1502
  %v1857 = vpack.c.b16 %v1505, %v1504
  %v1858 = vpack.c.b16 %v1507, %v1506
  %v1859 = vpack.c.b16 %v1509, %v1508
  %v1860 = vpack.c.b16 %v1511, %v1510
  %v1861 = vpack.c.b16 %v1513, %v1512
  %v1862 = vpack.c.b16 %v1515, %v1514
  %v1863 = vpack.c.b16 %v1517, %v1516
  %v1864 = vpack.c.b16 %v1519, %v1518
  %v1865 = vpack.c.b16 %v1521, %v1520
  %v1866 = vpack.c.b16 %v1523, %v1522
  %v1867 = vpack.c.b16 %v1525, %v1524
  %v1868 = vpack.c.b16 %v1527, %v1526
  %v1869 = vpack.c.b16 %v1529, %v1528
  %v1870 = vpack.c.b16 %v1531, %v1530
  %v1871 = vpack.c.b16 %v1533, %v1532
  %v1872 = vpack.c.b16 %v1535, %v1534
  %v1873 = vpack.c.b16 %v1537, %v1536
  %v1874 = vpack.c.b16 %v1539, %v1538
  %v1875 = vpack.c.b16 %v1541, %v1540
  %v1876 = vpack.c.b16 %v1543, %v1542
  %v1877 = vpack.c.b16 %v1545, %v1544
  %v1878 = vpack.c.b16 %v1547, %v1546
  %v1879 = vpack.c.b16 %v1549, %v1548
  %v1880 = vpack.c.b16 %v1551, %v1550
  %v1881 = vpack.c.b16 %v1553, %v1552
  %v1882 = vpack.c.b16 %v1555, %v1554
  %v1883 = vpack.c.b16 %v1557, %v1556
  %v1884 = vpack.c.b16 %v1559, %v1558
  %v1885 = vpack.c.b16 %v1561, %v1560
  %v1886 = vpack.c.b16 %v1563, %v1562
  %v1887 = vpack.c.b16 %v1565, %v1564
  %v1888 = vpack.c.b16 %v1567, %v1566
  %v1889 = vpack.c.b16 %v1569, %v1568
  %v1890 = vpack.c.b16 %v1571, %v1570
  %v1891 = vpack.c.b16 %v1573, %v1572
  %v1892 = vpack.c.b16 %v1575, %v1574
  %v1893 = vpack.c.b16 %v1577, %v1576
  %v1894 = vpack.c.b16 %v1579, %v1578
  %v1895 = vpack.c.b16 %v1581, %v1580
  %v1896 = vpack.c.b16 %v1583, %v1582
  %v1897 = vpack.c.b16 %v1585, %v1584
  %v1898 = vpack.c.b16 %v1587, %v1586
  %v1899 = vpack.c.b16 %v1589, %v1588
  %v1900 = vpack.c.b16 %v1591, %v1590
  %v1901 = vpack.c.b16 %v1593, %v1592
  %v1902 = vpack.c.b16 %v1595, %v1594
  %v1903 = vpack.c.b16 %v1597, %v1596
  %v1904 = vpack.c.b16 %v1599, %v1598
  %v1905 = vpack.c.b16 %v1601, %v1600
  %v1906 = vpack.c.b16 %v1603, %v1602
  %v1907 = vpack.c.b16 %v1605, %v1604
  %v1908 = vpack.c.b16 %v1607, %v1606
  %v1909 = vpack.c.b16 %v1609, %v1608
  %v1910 = vpack.c.b16 %v1611, %v1610
  %v1911 = vpack.c.b16 %v1613, %v1612
  %v1912 = vpack.c.b16 %v1615, %v1614
  %v1913 = vpack.c.b16 %v1617, %v1616
  %v1914 = vpack.c.b16 %v1619, %v1618
  %v1915 = vpack.c.b16 %v1621, %v1620
  %v1916 = vpack.c.b16 %v1623, %v1622
  %v1917 = vpack.c.b16 %v1625, %v1624
  %v1918 = vpack.c.b16 %v1627, %v1626
  %v1919 = vpack.c.b16 %v1629, %v1628
  %v1920 = vpack.c.b16 %v1631, %v1630
  %v1921 = vpack.c.b16 %v1633, %v1632
  %v1922 = vpack.c.b16 %v1635, %v1634
  %v1923 = vpack.c.b16 %v1637, %v1636
  %v1924 = vpack.c.b16 %v1639, %v1638
  %v1925 = vpack.c.b16 %v1641, %v1640
  %v1926 = vpack.c.b16 %v1643, %v1642
  %v1927 = vpack.c.b16 %v1645, %v1644
  %v1928 = vpack.c.b16 %v1647, %v1646
  %v1929 = vpack.c.b16 %v1649, %v1648
  %v1930 = vpack.c.b16 %v1651, %v1650
  %v1931 = vpack.c.b16 %v1653, %v1652
  %v1932 = vpack.c.b16 %v1655, %v1654
  %v1933 = vpack.c.b16 %v1657, %v1656
  %v1934 = vpack.c.b16 %v1659, %v1658
  %v1935 = vpack.c.b16 %v1661, %v1660
  %v1936 = vpack.c.b16 %v1663, %v1662
  %v1937 = vpack.c.b16 %v1665, %v1664
  %v1938 = vpack.c.b16 %v1667, %v1666
  %v1939 = vpack.c.b16 %v1669, %v1668
  %v1940 = vpack.c.b16 %v1671, %v1670
  %v1941 = vpack.c.b16 %v1673, %v1672
  %v1942 = vpack.c.b16 %v1675, %v1674
  %v1943 = vpack.c.b16 %v1677, %v1676
  %v1944 = vpack.c.b16 %v1679, %v1678
  %v1945 = vpack.c.b16 %v1681, %v1680
  %v1946 = vpack.c.b16 %v1683, %v1682
  %v1947 = vpack.c.b16 %v1685, %v1684
  %v1948 = vpack.c.b16 %v1687, %v1686
  %v1949 = vpack.c.b16 %v1689, %v1688
  %v1950 = vpack.c.b16 %v1691, %v1690
  %v1951 = vpack.c.b16 %v1693, %v1692
  %v1952 = vpack.c.b16 %v1695, %v1694
  %v1953 = vpack.c.b16 %v1697, %v1696
  %2210 = vmatprep.subr.bf16.mxu0 0
  %2211 = vmatpush1.bf16.msra.mxu0 %v1698
  %2212 = vmatprep.subr.bf16.mxu0 0
  %2213 = vmatpush1.bf16.msra.mxu0 %v1699
  %2214 = vmatprep.subr.bf16.mxu0 0
  %2215 = vmatpush1.bf16.msra.mxu0 %v1700
  %2216 = vmatprep.subr.bf16.mxu0 0
  %2217 = vmatpush1.bf16.msra.mxu0 %v1701
  %2218 = vmatprep.subr.bf16.mxu0 0
  %2219 = vmatpush1.bf16.msra.mxu0 %v1702
  %2220 = vmatprep.subr.bf16.mxu0 0
  %2221 = vmatpush1.bf16.msra.mxu0 %v1703
  %2222 = vmatprep.subr.bf16.mxu0 0
  %2223 = vmatpush1.bf16.msra.mxu0 %v1704
  %2224 = vmatprep.subr.bf16.mxu0 0
  %2225 = vmatpush1.bf16.msra.mxu0 %v1705
  %2226 = vmatprep.subr.bf16.mxu0 0
  %2227 = vmatpush1.bf16.msra.mxu0 %v1706
  %2228 = vmatprep.subr.bf16.mxu0 0
  %2229 = vmatpush1.bf16.msra.mxu0 %v1707
  %2230 = vmatprep.subr.bf16.mxu0 0
  %2231 = vmatpush1.bf16.msra.mxu0 %v1708
  %2232 = vmatprep.subr.bf16.mxu0 0
  %2233 = vmatpush1.bf16.msra.mxu0 %v1709
  %2234 = vmatprep.subr.bf16.mxu0 0
  %2235 = vmatpush1.bf16.msra.mxu0 %v1710
  %2236 = vmatprep.subr.bf16.mxu0 0
  %2237 = vmatpush1.bf16.msra.mxu0 %v1711
  %2238 = vmatprep.subr.bf16.mxu0 0
  %2239 = vmatpush1.bf16.msra.mxu0 %v1712
  %2240 = vmatprep.subr.bf16.mxu0 0
  %2241 = vmatpush1.bf16.msra.mxu0 %v1713
  %2242 = vmatprep.mubr.bf16.mxu0 %v611
  %2243 = vmatmul.mubr.bf16.gmra.mrb[0].mxu0 %v610
  %v2244 = vpop.f32.mrb[0].mxu0
  %v2245 = vadd.f32 %v560, %v2244
  %v2246 = vpop.f32.mrb[0].mxu0
  %v2247 = vpop.f32.mrb[0].mxu0
  %v2248 = vpop.f32.mrb[0].mxu0
  %2249 = vdwg.mxu0
  %2250 = vmatprep.subr.bf16.mxu0 0
  %2251 = vmatpush1.bf16.msra.mxu0 %v1714
  %2252 = vmatprep.subr.bf16.mxu0 0
  %2253 = vmatpush1.bf16.msra.mxu0 %v1715
  %2254 = vmatprep.subr.bf16.mxu0 0
  %2255 = vmatpush1.bf16.msra.mxu0 %v1716
  %2256 = vmatprep.subr.bf16.mxu0 0
  %2257 = vmatpush1.bf16.msra.mxu0 %v1717
  %2258 = vmatprep.subr.bf16.mxu0 0
  %2259 = vmatpush1.bf16.msra.mxu0 %v1718
  %2260 = vmatprep.subr.bf16.mxu0 0
  %2261 = vmatpush1.bf16.msra.mxu0 %v1719
  %2262 = vmatprep.subr.bf16.mxu0 0
  %2263 = vmatpush1.bf16.msra.mxu0 %v1720
  %2264 = vmatprep.subr.bf16.mxu0 0
  %2265 = vmatpush1.bf16.msra.mxu0 %v1721
  %2266 = vmatprep.subr.bf16.mxu0 0
  %2267 = vmatpush1.bf16.msra.mxu0 %v1722
  %2268 = vmatprep.subr.bf16.mxu0 0
  %2269 = vmatpush1.bf16.msra.mxu0 %v1723
  %2270 = vmatprep.subr.bf16.mxu0 0
  %2271 = vmatpush1.bf16.msra.mxu0 %v1724
  %2272 = vmatprep.subr.bf16.mxu0 0
  %2273 = vmatpush1.bf16.msra.mxu0 %v1725
  %2274 = vmatprep.subr.bf16.mxu0 0
  %2275 = vmatpush1.bf16.msra.mxu0 %v1726
  %2276 = vmatprep.subr.bf16.mxu0 0
  %2277 = vmatpush1.bf16.msra.mxu0 %v1727
  %2278 = vmatprep.subr.bf16.mxu0 0
  %2279 = vmatpush1.bf16.msra.mxu0 %v1728
  %2280 = vmatprep.subr.bf16.mxu0 0
  %2281 = vmatpush1.bf16.msra.mxu0 %v1729
  %2282 = vmatprep.mubr.bf16.mxu0 %v613
  %2283 = vmatmul.mubr.bf16.gmra.mrb[0].mxu0 %v612
  %v2284 = vpop.f32.mrb[0].mxu0
  %v2285 = vadd.f32 %v2245, %v2284
  %v2286 = vpop.f32.mrb[0].mxu0
  %v2287 = vpop.f32.mrb[0].mxu0
  %v2288 = vpop.f32.mrb[0].mxu0
  %2289 = vdwg.mxu0
  %2290 = vmatprep.subr.bf16.mxu0 0
  %2291 = vmatpush1.bf16.msra.mxu0 %v1730
  %2292 = vmatprep.subr.bf16.mxu0 0
  %2293 = vmatpush1.bf16.msra.mxu0 %v1731
  %2294 = vmatprep.subr.bf16.mxu0 0
  %2295 = vmatpush1.bf16.msra.mxu0 %v1732
  %2296 = vmatprep.subr.bf16.mxu0 0
  %2297 = vmatpush1.bf16.msra.mxu0 %v1733
  %2298 = vmatprep.subr.bf16.mxu0 0
  %2299 = vmatpush1.bf16.msra.mxu0 %v1734
  %2300 = vmatprep.subr.bf16.mxu0 0
  %2301 = vmatpush1.bf16.msra.mxu0 %v1735
  %2302 = vmatprep.subr.bf16.mxu0 0
  %2303 = vmatpush1.bf16.msra.mxu0 %v1736
  %2304 = vmatprep.subr.bf16.mxu0 0
  %2305 = vmatpush1.bf16.msra.mxu0 %v1737
  %2306 = vmatprep.subr.bf16.mxu0 0
  %2307 = vmatpush1.bf16.msra.mxu0 %v1738
  %2308 = vmatprep.subr.bf16.mxu0 0
  %2309 = vmatpush1.bf16.msra.mxu0 %v1739
  %2310 = vmatprep.subr.bf16.mxu0 0
  %2311 = vmatpush1.bf16.msra.mxu0 %v1740
  %2312 = vmatprep.subr.bf16.mxu0 0
  %2313 = vmatpush1.bf16.msra.mxu0 %v1741
  %2314 = vmatprep.subr.bf16.mxu0 0
  %2315 = vmatpush1.bf16.msra.mxu0 %v1742
  %2316 = vmatprep.subr.bf16.mxu0 0
  %2317 = vmatpush1.bf16.msra.mxu0 %v1743
  %2318 = vmatprep.subr.bf16.mxu0 0
  %2319 = vmatpush1.bf16.msra.mxu0 %v1744
  %2320 = vmatprep.subr.bf16.mxu0 0
  %2321 = vmatpush1.bf16.msra.mxu0 %v1745
  %2322 = vmatprep.mubr.bf16.mxu0 %v615
  %2323 = vmatmul.mubr.bf16.gmra.mrb[0].mxu0 %v614
  %v2324 = vpop.f32.mrb[0].mxu0
  %v2325 = vadd.f32 %v2285, %v2324
  %v2326 = vpop.f32.mrb[0].mxu0
  %v2327 = vpop.f32.mrb[0].mxu0
  %v2328 = vpop.f32.mrb[0].mxu0
  %2329 = vdwg.mxu0
  %2330 = vmatprep.subr.bf16.mxu0 0
  %2331 = vmatpush1.bf16.msra.mxu0 %v1746
  %2332 = vmatprep.subr.bf16.mxu0 0
  %2333 = vmatpush1.bf16.msra.mxu0 %v1747
  %2334 = vmatprep.subr.bf16.mxu0 0
  %2335 = vmatpush1.bf16.msra.mxu0 %v1748
  %2336 = vmatprep.subr.bf16.mxu0 0
  %2337 = vmatpush1.bf16.msra.mxu0 %v1749
  %2338 = vmatprep.subr.bf16.mxu0 0
  %2339 = vmatpush1.bf16.msra.mxu0 %v1750
  %2340 = vmatprep.subr.bf16.mxu0 0
  %2341 = vmatpush1.bf16.msra.mxu0 %v1751
  %2342 = vmatprep.subr.bf16.mxu0 0
  %2343 = vmatpush1.bf16.msra.mxu0 %v1752
  %2344 = vmatprep.subr.bf16.mxu0 0
  %2345 = vmatpush1.bf16.msra.mxu0 %v1753
  %2346 = vmatprep.subr.bf16.mxu0 0
  %2347 = vmatpush1.bf16.msra.mxu0 %v1754
  %2348 = vmatprep.subr.bf16.mxu0 0
  %2349 = vmatpush1.bf16.msra.mxu0 %v1755
  %2350 = vmatprep.subr.bf16.mxu0 0
  %2351 = vmatpush1.bf16.msra.mxu0 %v1756
  %2352 = vmatprep.subr.bf16.mxu0 0
  %2353 = vmatpush1.bf16.msra.mxu0 %v1757
  %2354 = vmatprep.subr.bf16.mxu0 0
  %2355 = vmatpush1.bf16.msra.mxu0 %v1758
  %2356 = vmatprep.subr.bf16.mxu0 0
  %2357 = vmatpush1.bf16.msra.mxu0 %v1759
  %2358 = vmatprep.subr.bf16.mxu0 0
  %2359 = vmatpush1.bf16.msra.mxu0 %v1760
  %2360 = vmatprep.subr.bf16.mxu0 0
  %2361 = vmatpush1.bf16.msra.mxu0 %v1761
  %2362 = vmatprep.mubr.bf16.mxu0 %v617
  %2363 = vmatmul.mubr.bf16.gmra.mrb[0].mxu0 %v616
  %v2364 = vpop.f32.mrb[0].mxu0
  %v2365 = vadd.f32 %v2325, %v2364
  %v2366 = vpop.f32.mrb[0].mxu0
  %v2367 = vpop.f32.mrb[0].mxu0
  %v2368 = vpop.f32.mrb[0].mxu0
  %2369 = vdwg.mxu0
  %2370 = vmatprep.subr.bf16.mxu0 0
  %2371 = vmatpush1.bf16.msra.mxu0 %v1762
  %2372 = vmatprep.subr.bf16.mxu0 0
  %2373 = vmatpush1.bf16.msra.mxu0 %v1763
  %2374 = vmatprep.subr.bf16.mxu0 0
  %2375 = vmatpush1.bf16.msra.mxu0 %v1764
  %2376 = vmatprep.subr.bf16.mxu0 0
  %2377 = vmatpush1.bf16.msra.mxu0 %v1765
  %2378 = vmatprep.subr.bf16.mxu0 0
  %2379 = vmatpush1.bf16.msra.mxu0 %v1766
  %2380 = vmatprep.subr.bf16.mxu0 0
  %2381 = vmatpush1.bf16.msra.mxu0 %v1767
  %2382 = vmatprep.subr.bf16.mxu0 0
  %2383 = vmatpush1.bf16.msra.mxu0 %v1768
  %2384 = vmatprep.subr.bf16.mxu0 0
  %2385 = vmatpush1.bf16.msra.mxu0 %v1769
  %2386 = vmatprep.subr.bf16.mxu0 0
  %2387 = vmatpush1.bf16.msra.mxu0 %v1770
  %2388 = vmatprep.subr.bf16.mxu0 0
  %2389 = vmatpush1.bf16.msra.mxu0 %v1771
  %2390 = vmatprep.subr.bf16.mxu0 0
  %2391 = vmatpush1.bf16.msra.mxu0 %v1772
  %2392 = vmatprep.subr.bf16.mxu0 0
  %2393 = vmatpush1.bf16.msra.mxu0 %v1773
  %2394 = vmatprep.subr.bf16.mxu0 0
  %2395 = vmatpush1.bf16.msra.mxu0 %v1774
  %2396 = vmatprep.subr.bf16.mxu0 0
  %2397 = vmatpush1.bf16.msra.mxu0 %v1775
  %2398 = vmatprep.subr.bf16.mxu0 0
  %2399 = vmatpush1.bf16.msra.mxu0 %v1776
  %2400 = vmatprep.subr.bf16.mxu0 0
  %2401 = vmatpush1.bf16.msra.mxu0 %v1777
  %2402 = vmatprep.mubr.bf16.mxu0 %v619
  %2403 = vmatmul.mubr.bf16.gmra.mrb[0].mxu0 %v618
  %v2404 = vpop.f32.mrb[0].mxu0
  %v2405 = vadd.f32 %v2365, %v2404
  %v2406 = vpop.f32.mrb[0].mxu0
  %v2407 = vpop.f32.mrb[0].mxu0
  %v2408 = vpop.f32.mrb[0].mxu0
  %2409 = vdwg.mxu0
  %2410 = vmatprep.subr.bf16.mxu0 0
  %2411 = vmatpush1.bf16.msra.mxu0 %v1778
  %2412 = vmatprep.subr.bf16.mxu0 0
  %2413 = vmatpush1.bf16.msra.mxu0 %v1779
  %2414 = vmatprep.subr.bf16.mxu0 0
  %2415 = vmatpush1.bf16.msra.mxu0 %v1780
  %2416 = vmatprep.subr.bf16.mxu0 0
  %2417 = vmatpush1.bf16.msra.mxu0 %v1781
  %2418 = vmatprep.subr.bf16.mxu0 0
  %2419 = vmatpush1.bf16.msra.mxu0 %v1782
  %2420 = vmatprep.subr.bf16.mxu0 0
  %2421 = vmatpush1.bf16.msra.mxu0 %v1783
  %2422 = vmatprep.subr.bf16.mxu0 0
  %2423 = vmatpush1.bf16.msra.mxu0 %v1784
  %2424 = vmatprep.subr.bf16.mxu0 0
  %2425 = vmatpush1.bf16.msra.mxu0 %v1785
  %2426 = vmatprep.subr.bf16.mxu0 0
  %2427 = vmatpush1.bf16.msra.mxu0 %v1786
  %2428 = vmatprep.subr.bf16.mxu0 0
  %2429 = vmatpush1.bf16.msra.mxu0 %v1787
  %2430 = vmatprep.subr.bf16.mxu0 0
  %2431 = vmatpush1.bf16.msra.mxu0 %v1788
  %2432 = vmatprep.subr.bf16.mxu0 0
  %2433 = vmatpush1.bf16.msra.mxu0 %v1789
  %2434 = vmatprep.subr.bf16.mxu0 0
  %2435 = vmatpush1.bf16.msra.mxu0 %v1790
  %2436 = vmatprep.subr.bf16.mxu0 0
  %2437 = vmatpush1.bf16.msra.mxu0 %v1791
  %2438 = vmatprep.subr.bf16.mxu0 0
  %2439 = vmatpush1.bf16.msra.mxu0 %v1792
  %2440 = vmatprep.subr.bf16.mxu0 0
  %2441 = vmatpush1.bf16.msra.mxu0 %v1793
  %2442 = vmatprep.mubr.bf16.mxu0 %v621
  %2443 = vmatmul.mubr.bf16.gmra.mrb[0].mxu0 %v620
  %v2444 = vpop.f32.mrb[0].mxu0
  %v2445 = vadd.f32 %v2405, %v2444
  %v2446 = vpop.f32.mrb[0].mxu0
  %v2447 = vpop.f32.mrb[0].mxu0
  %v2448 = vpop.f32.mrb[0].mxu0
  %2449 = vdwg.mxu0
  %2450 = vmatprep.subr.bf16.mxu0 0
  %2451 = vmatpush1.bf16.msra.mxu0 %v1794
  %2452 = vmatprep.subr.bf16.mxu0 0
  %2453 = vmatpush1.bf16.msra.mxu0 %v1795
  %2454 = vmatprep.subr.bf16.mxu0 0
  %2455 = vmatpush1.bf16.msra.mxu0 %v1796
  %2456 = vmatprep.subr.bf16.mxu0 0
  %2457 = vmatpush1.bf16.msra.mxu0 %v1797
  %2458 = vmatprep.subr.bf16.mxu0 0
  %2459 = vmatpush1.bf16.msra.mxu0 %v1798
  %2460 = vmatprep.subr.bf16.mxu0 0
  %2461 = vmatpush1.bf16.msra.mxu0 %v1799
  %2462 = vmatprep.subr.bf16.mxu0 0
  %2463 = vmatpush1.bf16.msra.mxu0 %v1800
  %2464 = vmatprep.subr.bf16.mxu0 0
  %2465 = vmatpush1.bf16.msra.mxu0 %v1801
  %2466 = vmatprep.subr.bf16.mxu0 0
  %2467 = vmatpush1.bf16.msra.mxu0 %v1802
  %2468 = vmatprep.subr.bf16.mxu0 0
  %2469 = vmatpush1.bf16.msra.mxu0 %v1803
  %2470 = vmatprep.subr.bf16.mxu0 0
  %2471 = vmatpush1.bf16.msra.mxu0 %v1804
  %2472 = vmatprep.subr.bf16.mxu0 0
  %2473 = vmatpush1.bf16.msra.mxu0 %v1805
  %2474 = vmatprep.subr.bf16.mxu0 0
  %2475 = vmatpush1.bf16.msra.mxu0 %v1806
  %2476 = vmatprep.subr.bf16.mxu0 0
  %2477 = vmatpush1.bf16.msra.mxu0 %v1807
  %2478 = vmatprep.subr.bf16.mxu0 0
  %2479 = vmatpush1.bf16.msra.mxu0 %v1808
  %2480 = vmatprep.subr.bf16.mxu0 0
  %2481 = vmatpush1.bf16.msra.mxu0 %v1809
  %2482 = vmatprep.mubr.bf16.mxu0 %v623
  %2483 = vmatmul.mubr.bf16.gmra.mrb[0].mxu0 %v622
  %v2484 = vpop.f32.mrb[0].mxu0
  %v2485 = vadd.f32 %v2445, %v2484
  %v2486 = vpop.f32.mrb[0].mxu0
  %v2487 = vpop.f32.mrb[0].mxu0
  %v2488 = vpop.f32.mrb[0].mxu0
  %2489 = vdwg.mxu0
  %2490 = vmatprep.subr.bf16.mxu0 0
  %2491 = vmatpush1.bf16.msra.mxu0 %v1810
  %2492 = vmatprep.subr.bf16.mxu0 0
  %2493 = vmatpush1.bf16.msra.mxu0 %v1811
  %2494 = vmatprep.subr.bf16.mxu0 0
  %2495 = vmatpush1.bf16.msra.mxu0 %v1812
  %2496 = vmatprep.subr.bf16.mxu0 0
  %2497 = vmatpush1.bf16.msra.mxu0 %v1813
  %2498 = vmatprep.subr.bf16.mxu0 0
  %2499 = vmatpush1.bf16.msra.mxu0 %v1814
  %2500 = vmatprep.subr.bf16.mxu0 0
  %2501 = vmatpush1.bf16.msra.mxu0 %v1815
  %2502 = vmatprep.subr.bf16.mxu0 0
  %2503 = vmatpush1.bf16.msra.mxu0 %v1816
  %2504 = vmatprep.subr.bf16.mxu0 0
  %2505 = vmatpush1.bf16.msra.mxu0 %v1817
  %2506 = vmatprep.subr.bf16.mxu0 0
  %2507 = vmatpush1.bf16.msra.mxu0 %v1818
  %2508 = vmatprep.subr.bf16.mxu0 0
  %2509 = vmatpush1.bf16.msra.mxu0 %v1819
  %2510 = vmatprep.subr.bf16.mxu0 0
  %2511 = vmatpush1.bf16.msra.mxu0 %v1820
  %2512 = vmatprep.subr.bf16.mxu0 0
  %2513 = vmatpush1.bf16.msra.mxu0 %v1821
  %2514 = vmatprep.subr.bf16.mxu0 0
  %2515 = vmatpush1.bf16.msra.mxu0 %v1822
  %2516 = vmatprep.subr.bf16.mxu0 0
  %2517 = vmatpush1.bf16.msra.mxu0 %v1823
  %2518 = vmatprep.subr.bf16.mxu0 0
  %2519 = vmatpush1.bf16.msra.mxu0 %v1824
  %2520 = vmatprep.subr.bf16.mxu0 0
  %2521 = vmatpush1.bf16.msra.mxu0 %v1825
  %2522 = vmatprep.mubr.bf16.mxu0 %v625
  %2523 = vmatmul.mubr.bf16.gmra.mrb[0].mxu0 %v624
  %v2524 = vpop.f32.mrb[0].mxu0
  %v2525 = vadd.f32 %v2485, %v2524
  %v2526 = vpop.f32.mrb[0].mxu0
  %v2527 = vpop.f32.mrb[0].mxu0
  %v2528 = vpop.f32.mrb[0].mxu0
  %2529 = vdwg.mxu0
  %2530 = vmatprep.subr.bf16.mxu0 0
  %2531 = vmatpush1.bf16.msra.mxu0 %v1826
  %2532 = vmatprep.subr.bf16.mxu0 0
  %2533 = vmatpush1.bf16.msra.mxu0 %v1827
  %2534 = vmatprep.subr.bf16.mxu0 0
  %2535 = vmatpush1.bf16.msra.mxu0 %v1828
  %2536 = vmatprep.subr.bf16.mxu0 0
  %2537 = vmatpush1.bf16.msra.mxu0 %v1829
  %2538 = vmatprep.subr.bf16.mxu0 0
  %2539 = vmatpush1.bf16.msra.mxu0 %v1830
  %2540 = vmatprep.subr.bf16.mxu0 0
  %2541 = vmatpush1.bf16.msra.mxu0 %v1831
  %2542 = vmatprep.subr.bf16.mxu0 0
  %2543 = vmatpush1.bf16.msra.mxu0 %v1832
  %2544 = vmatprep.subr.bf16.mxu0 0
  %2545 = vmatpush1.bf16.msra.mxu0 %v1833
  %2546 = vmatprep.subr.bf16.mxu0 0
  %2547 = vmatpush1.bf16.msra.mxu0 %v1834
  %2548 = vmatprep.subr.bf16.mxu0 0
  %2549 = vmatpush1.bf16.msra.mxu0 %v1835
  %2550 = vmatprep.subr.bf16.mxu0 0
  %2551 = vmatpush1.bf16.msra.mxu0 %v1836
  %2552 = vmatprep.subr.bf16.mxu0 0
  %2553 = vmatpush1.bf16.msra.mxu0 %v1837
  %2554 = vmatprep.subr.bf16.mxu0 0
  %2555 = vmatpush1.bf16.msra.mxu0 %v1838
  %2556 = vmatprep.subr.bf16.mxu0 0
  %2557 = vmatpush1.bf16.msra.mxu0 %v1839
  %2558 = vmatprep.subr.bf16.mxu0 0
  %2559 = vmatpush1.bf16.msra.mxu0 %v1840
  %2560 = vmatprep.subr.bf16.mxu0 0
  %2561 = vmatpush1.bf16.msra.mxu0 %v1841
  %2562 = vmatprep.mubr.bf16.mxu0 %v627
  %2563 = vmatmul.mubr.bf16.gmra.mrb[0].mxu0 %v626
  %v2564 = vpop.f32.mrb[0].mxu0
  %v2565 = vadd.f32 %v2525, %v2564
  %v2566 = vpop.f32.mrb[0].mxu0
  %v2567 = vpop.f32.mrb[0].mxu0
  %v2568 = vpop.f32.mrb[0].mxu0
  %2569 = vdwg.mxu0
  %2570 = vmatprep.subr.bf16.mxu0 0
  %2571 = vmatpush1.bf16.msra.mxu0 %v1842
  %2572 = vmatprep.subr.bf16.mxu0 0
  %2573 = vmatpush1.bf16.msra.mxu0 %v1843
  %2574 = vmatprep.subr.bf16.mxu0 0
  %2575 = vmatpush1.bf16.msra.mxu0 %v1844
  %2576 = vmatprep.subr.bf16.mxu0 0
  %2577 = vmatpush1.bf16.msra.mxu0 %v1845
  %2578 = vmatprep.subr.bf16.mxu0 0
  %2579 = vmatpush1.bf16.msra.mxu0 %v1846
  %2580 = vmatprep.subr.bf16.mxu0 0
  %2581 = vmatpush1.bf16.msra.mxu0 %v1847
  %2582 = vmatprep.subr.bf16.mxu0 0
  %2583 = vmatpush1.bf16.msra.mxu0 %v1848
  %2584 = vmatprep.subr.bf16.mxu0 0
  %2585 = vmatpush1.bf16.msra.mxu0 %v1849
  %2586 = vmatprep.subr.bf16.mxu0 0
  %2587 = vmatpush1.bf16.msra.mxu0 %v1850
  %2588 = vmatprep.subr.bf16.mxu0 0
  %2589 = vmatpush1.bf16.msra.mxu0 %v1851
  %2590 = vmatprep.subr.bf16.mxu0 0
  %2591 = vmatpush1.bf16.msra.mxu0 %v1852
  %2592 = vmatprep.subr.bf16.mxu0 0
  %2593 = vmatpush1.bf16.msra.mxu0 %v1853
  %2594 = vmatprep.subr.bf16.mxu0 0
  %2595 = vmatpush1.bf16.msra.mxu0 %v1854
  %2596 = vmatprep.subr.bf16.mxu0 0
  %2597 = vmatpush1.bf16.msra.mxu0 %v1855
  %2598 = vmatprep.subr.bf16.mxu0 0
  %2599 = vmatpush1.bf16.msra.mxu0 %v1856
  %2600 = vmatprep.subr.bf16.mxu0 0
  %2601 = vmatpush1.bf16.msra.mxu0 %v1857
  %2602 = vmatprep.mubr.bf16.mxu0 %v629
  %2603 = vmatmul.mubr.bf16.gmra.mrb[0].mxu0 %v628
  %v2604 = vpop.f32.mrb[0].mxu0
  %v2605 = vadd.f32 %v2565, %v2604
  %v2606 = vpop.f32.mrb[0].mxu0
  %v2607 = vpop.f32.mrb[0].mxu0
  %v2608 = vpop.f32.mrb[0].mxu0
  %2609 = vdwg.mxu0
  %2610 = vmatprep.subr.bf16.mxu0 0
  %2611 = vmatpush1.bf16.msra.mxu0 %v1858
  %2612 = vmatprep.subr.bf16.mxu0 0
  %2613 = vmatpush1.bf16.msra.mxu0 %v1859
  %2614 = vmatprep.subr.bf16.mxu0 0
  %2615 = vmatpush1.bf16.msra.mxu0 %v1860
  %2616 = vmatprep.subr.bf16.mxu0 0
  %2617 = vmatpush1.bf16.msra.mxu0 %v1861
  %2618 = vmatprep.subr.bf16.mxu0 0
  %2619 = vmatpush1.bf16.msra.mxu0 %v1862
  %2620 = vmatprep.subr.bf16.mxu0 0
  %2621 = vmatpush1.bf16.msra.mxu0 %v1863
  %2622 = vmatprep.subr.bf16.mxu0 0
  %2623 = vmatpush1.bf16.msra.mxu0 %v1864
  %2624 = vmatprep.subr.bf16.mxu0 0
  %2625 = vmatpush1.bf16.msra.mxu0 %v1865
  %2626 = vmatprep.subr.bf16.mxu0 0
  %2627 = vmatpush1.bf16.msra.mxu0 %v1866
  %2628 = vmatprep.subr.bf16.mxu0 0
  %2629 = vmatpush1.bf16.msra.mxu0 %v1867
  %2630 = vmatprep.subr.bf16.mxu0 0
  %2631 = vmatpush1.bf16.msra.mxu0 %v1868
  %2632 = vmatprep.subr.bf16.mxu0 0
  %2633 = vmatpush1.bf16.msra.mxu0 %v1869
  %2634 = vmatprep.subr.bf16.mxu0 0
  %2635 = vmatpush1.bf16.msra.mxu0 %v1870
  %2636 = vmatprep.subr.bf16.mxu0 0
  %2637 = vmatpush1.bf16.msra.mxu0 %v1871
  %2638 = vmatprep.subr.bf16.mxu0 0
  %2639 = vmatpush1.bf16.msra.mxu0 %v1872
  %2640 = vmatprep.subr.bf16.mxu0 0
  %2641 = vmatpush1.bf16.msra.mxu0 %v1873
  %2642 = vmatprep.mubr.bf16.mxu0 %v631
  %2643 = vmatmul.mubr.bf16.gmra.mrb[0].mxu0 %v630
  %v2644 = vpop.f32.mrb[0].mxu0
  %v2645 = vadd.f32 %v2605, %v2644
  %v2646 = vpop.f32.mrb[0].mxu0
  %v2647 = vpop.f32.mrb[0].mxu0
  %v2648 = vpop.f32.mrb[0].mxu0
  %2649 = vdwg.mxu0
  %2650 = vmatprep.subr.bf16.mxu0 0
  %2651 = vmatpush1.bf16.msra.mxu0 %v1874
  %2652 = vmatprep.subr.bf16.mxu0 0
  %2653 = vmatpush1.bf16.msra.mxu0 %v1875
  %2654 = vmatprep.subr.bf16.mxu0 0
  %2655 = vmatpush1.bf16.msra.mxu0 %v1876
  %2656 = vmatprep.subr.bf16.mxu0 0
  %2657 = vmatpush1.bf16.msra.mxu0 %v1877
  %2658 = vmatprep.subr.bf16.mxu0 0
  %2659 = vmatpush1.bf16.msra.mxu0 %v1878
  %2660 = vmatprep.subr.bf16.mxu0 0
  %2661 = vmatpush1.bf16.msra.mxu0 %v1879
  %2662 = vmatprep.subr.bf16.mxu0 0
  %2663 = vmatpush1.bf16.msra.mxu0 %v1880
  %2664 = vmatprep.subr.bf16.mxu0 0
  %2665 = vmatpush1.bf16.msra.mxu0 %v1881
  %2666 = vmatprep.subr.bf16.mxu0 0
  %2667 = vmatpush1.bf16.msra.mxu0 %v1882
  %2668 = vmatprep.subr.bf16.mxu0 0
  %2669 = vmatpush1.bf16.msra.mxu0 %v1883
  %2670 = vmatprep.subr.bf16.mxu0 0
  %2671 = vmatpush1.bf16.msra.mxu0 %v1884
  %2672 = vmatprep.subr.bf16.mxu0 0
  %2673 = vmatpush1.bf16.msra.mxu0 %v1885
  %2674 = vmatprep.subr.bf16.mxu0 0
  %2675 = vmatpush1.bf16.msra.mxu0 %v1886
  %2676 = vmatprep.subr.bf16.mxu0 0
  %2677 = vmatpush1.bf16.msra.mxu0 %v1887
  %2678 = vmatprep.subr.bf16.mxu0 0
  %2679 = vmatpush1.bf16.msra.mxu0 %v1888
  %2680 = vmatprep.subr.bf16.mxu0 0
  %2681 = vmatpush1.bf16.msra.mxu0 %v1889
  %2682 = vmatprep.mubr.bf16.mxu0 %v633
  %2683 = vmatmul.mubr.bf16.gmra.mrb[0].mxu0 %v632
  %v2684 = vpop.f32.mrb[0].mxu0
  %v2685 = vadd.f32 %v2645, %v2684
  %v2686 = vpop.f32.mrb[0].mxu0
  %v2687 = vpop.f32.mrb[0].mxu0
  %v2688 = vpop.f32.mrb[0].mxu0
  %2689 = vdwg.mxu0
  %2690 = vmatprep.subr.bf16.mxu0 0
  %2691 = vmatpush1.bf16.msra.mxu0 %v1890
  %2692 = vmatprep.subr.bf16.mxu0 0
  %2693 = vmatpush1.bf16.msra.mxu0 %v1891
  %2694 = vmatprep.subr.bf16.mxu0 0
  %2695 = vmatpush1.bf16.msra.mxu0 %v1892
  %2696 = vmatprep.subr.bf16.mxu0 0
  %2697 = vmatpush1.bf16.msra.mxu0 %v1893
  %2698 = vmatprep.subr.bf16.mxu0 0
  %2699 = vmatpush1.bf16.msra.mxu0 %v1894
  %2700 = vmatprep.subr.bf16.mxu0 0
  %2701 = vmatpush1.bf16.msra.mxu0 %v1895
  %2702 = vmatprep.subr.bf16.mxu0 0
  %2703 = vmatpush1.bf16.msra.mxu0 %v1896
  %2704 = vmatprep.subr.bf16.mxu0 0
  %2705 = vmatpush1.bf16.msra.mxu0 %v1897
  %2706 = vmatprep.subr.bf16.mxu0 0
  %2707 = vmatpush1.bf16.msra.mxu0 %v1898
  %2708 = vmatprep.subr.bf16.mxu0 0
  %2709 = vmatpush1.bf16.msra.mxu0 %v1899
  %2710 = vmatprep.subr.bf16.mxu0 0
  %2711 = vmatpush1.bf16.msra.mxu0 %v1900
  %2712 = vmatprep.subr.bf16.mxu0 0
  %2713 = vmatpush1.bf16.msra.mxu0 %v1901
  %2714 = vmatprep.subr.bf16.mxu0 0
  %2715 = vmatpush1.bf16.msra.mxu0 %v1902
  %2716 = vmatprep.subr.bf16.mxu0 0
  %2717 = vmatpush1.bf16.msra.mxu0 %v1903
  %2718 = vmatprep.subr.bf16.mxu0 0
  %2719 = vmatpush1.bf16.msra.mxu0 %v1904
  %2720 = vmatprep.subr.bf16.mxu0 0
  %2721 = vmatpush1.bf16.msra.mxu0 %v1905
  %2722 = vmatprep.mubr.bf16.mxu0 %v635
  %2723 = vmatmul.mubr.bf16.gmra.mrb[0].mxu0 %v634
  %v2724 = vpop.f32.mrb[0].mxu0
  %v2725 = vadd.f32 %v2685, %v2724
  %v2726 = vpop.f32.mrb[0].mxu0
  %v2727 = vpop.f32.mrb[0].mxu0
  %v2728 = vpop.f32.mrb[0].mxu0
  %2729 = vdwg.mxu0
  %2730 = vmatprep.subr.bf16.mxu0 0
  %2731 = vmatpush1.bf16.msra.mxu0 %v1906
  %2732 = vmatprep.subr.bf16.mxu0 0
  %2733 = vmatpush1.bf16.msra.mxu0 %v1907
  %2734 = vmatprep.subr.bf16.mxu0 0
  %2735 = vmatpush1.bf16.msra.mxu0 %v1908
  %2736 = vmatprep.subr.bf16.mxu0 0
  %2737 = vmatpush1.bf16.msra.mxu0 %v1909
  %2738 = vmatprep.subr.bf16.mxu0 0
  %2739 = vmatpush1.bf16.msra.mxu0 %v1910
  %2740 = vmatprep.subr.bf16.mxu0 0
  %2741 = vmatpush1.bf16.msra.mxu0 %v1911
  %2742 = vmatprep.subr.bf16.mxu0 0
  %2743 = vmatpush1.bf16.msra.mxu0 %v1912
  %2744 = vmatprep.subr.bf16.mxu0 0
  %2745 = vmatpush1.bf16.msra.mxu0 %v1913
  %2746 = vmatprep.subr.bf16.mxu0 0
  %2747 = vmatpush1.bf16.msra.mxu0 %v1914
  %2748 = vmatprep.subr.bf16.mxu0 0
  %2749 = vmatpush1.bf16.msra.mxu0 %v1915
  %2750 = vmatprep.subr.bf16.mxu0 0
  %2751 = vmatpush1.bf16.msra.mxu0 %v1916
  %2752 = vmatprep.subr.bf16.mxu0 0
  %2753 = vmatpush1.bf16.msra.mxu0 %v1917
  %2754 = vmatprep.subr.bf16.mxu0 0
  %2755 = vmatpush1.bf16.msra.mxu0 %v1918
  %2756 = vmatprep.subr.bf16.mxu0 0
  %2757 = vmatpush1.bf16.msra.mxu0 %v1919
  %2758 = vmatprep.subr.bf16.mxu0 0
  %2759 = vmatpush1.bf16.msra.mxu0 %v1920
  %2760 = vmatprep.subr.bf16.mxu0 0
  %2761 = vmatpush1.bf16.msra.mxu0 %v1921
  %2762 = vmatprep.mubr.bf16.mxu0 %v637
  %2763 = vmatmul.mubr.bf16.gmra.mrb[0].mxu0 %v636
  %v2764 = vpop.f32.mrb[0].mxu0
  %v2765 = vadd.f32 %v2725, %v2764
  %v2766 = vpop.f32.mrb[0].mxu0
  %v2767 = vpop.f32.mrb[0].mxu0
  %v2768 = vpop.f32.mrb[0].mxu0
  %2769 = vdwg.mxu0
  %2770 = vmatprep.subr.bf16.mxu0 0
  %2771 = vmatpush1.bf16.msra.mxu0 %v1922
  %2772 = vmatprep.subr.bf16.mxu0 0
  %2773 = vmatpush1.bf16.msra.mxu0 %v1923
  %2774 = vmatprep.subr.bf16.mxu0 0
  %2775 = vmatpush1.bf16.msra.mxu0 %v1924
  %2776 = vmatprep.subr.bf16.mxu0 0
  %2777 = vmatpush1.bf16.msra.mxu0 %v1925
  %2778 = vmatprep.subr.bf16.mxu0 0
  %2779 = vmatpush1.bf16.msra.mxu0 %v1926
  %2780 = vmatprep.subr.bf16.mxu0 0
  %2781 = vmatpush1.bf16.msra.mxu0 %v1927
  %2782 = vmatprep.subr.bf16.mxu0 0
  %2783 = vmatpush1.bf16.msra.mxu0 %v1928
  %2784 = vmatprep.subr.bf16.mxu0 0
  %2785 = vmatpush1.bf16.msra.mxu0 %v1929
  %2786 = vmatprep.subr.bf16.mxu0 0
  %2787 = vmatpush1.bf16.msra.mxu0 %v1930
  %2788 = vmatprep.subr.bf16.mxu0 0
  %2789 = vmatpush1.bf16.msra.mxu0 %v1931
  %2790 = vmatprep.subr.bf16.mxu0 0
  %2791 = vmatpush1.bf16.msra.mxu0 %v1932
  %2792 = vmatprep.subr.bf16.mxu0 0
  %2793 = vmatpush1.bf16.msra.mxu0 %v1933
  %2794 = vmatprep.subr.bf16.mxu0 0
  %2795 = vmatpush1.bf16.msra.mxu0 %v1934
  %2796 = vmatprep.subr.bf16.mxu0 0
  %2797 = vmatpush1.bf16.msra.mxu0 %v1935
  %2798 = vmatprep.subr.bf16.mxu0 0
  %2799 = vmatpush1.bf16.msra.mxu0 %v1936
  %2800 = vmatprep.subr.bf16.mxu0 0
  %2801 = vmatpush1.bf16.msra.mxu0 %v1937
  %2802 = vmatprep.mubr.bf16.mxu0 %v639
  %2803 = vmatmul.mubr.bf16.gmra.mrb[0].mxu0 %v638
  %v2804 = vpop.f32.mrb[0].mxu0
  %v2805 = vadd.f32 %v2765, %v2804
  %v2806 = vpop.f32.mrb[0].mxu0
  %v2807 = vpop.f32.mrb[0].mxu0
  %v2808 = vpop.f32.mrb[0].mxu0
  %2809 = vdwg.mxu0
  %2810 = vmatprep.subr.bf16.mxu0 0
  %2811 = vmatpush1.bf16.msra.mxu0 %v1938
  %2812 = vmatprep.subr.bf16.mxu0 0
  %2813 = vmatpush1.bf16.msra.mxu0 %v1939
  %2814 = vmatprep.subr.bf16.mxu0 0
  %2815 = vmatpush1.bf16.msra.mxu0 %v1940
  %2816 = vmatprep.subr.bf16.mxu0 0
  %2817 = vmatpush1.bf16.msra.mxu0 %v1941
  %2818 = vmatprep.subr.bf16.mxu0 0
  %2819 = vmatpush1.bf16.msra.mxu0 %v1942
  %2820 = vmatprep.subr.bf16.mxu0 0
  %2821 = vmatpush1.bf16.msra.mxu0 %v1943
  %2822 = vmatprep.subr.bf16.mxu0 0
  %2823 = vmatpush1.bf16.msra.mxu0 %v1944
  %2824 = vmatprep.subr.bf16.mxu0 0
  %2825 = vmatpush1.bf16.msra.mxu0 %v1945
  %2826 = vmatprep.subr.bf16.mxu0 0
  %2827 = vmatpush1.bf16.msra.mxu0 %v1946
  %2828 = vmatprep.subr.bf16.mxu0 0
  %2829 = vmatpush1.bf16.msra.mxu0 %v1947
  %2830 = vmatprep.subr.bf16.mxu0 0
  %2831 = vmatpush1.bf16.msra.mxu0 %v1948
  %2832 = vmatprep.subr.bf16.mxu0 0
  %2833 = vmatpush1.bf16.msra.mxu0 %v1949
  %2834 = vmatprep.subr.bf16.mxu0 0
  %2835 = vmatpush1.bf16.msra.mxu0 %v1950
  %2836 = vmatprep.subr.bf16.mxu0 0
  %2837 = vmatpush1.bf16.msra.mxu0 %v1951
  %2838 = vmatprep.subr.bf16.mxu0 0
  %2839 = vmatpush1.bf16.msra.mxu0 %v1952
  %2840 = vmatprep.subr.bf16.mxu0 0
  %2841 = vmatpush1.bf16.msra.mxu0 %v1953
  %2842 = vmatprep.mubr.bf16.mxu0 %v641
  %2843 = vmatmul.mubr.bf16.gmra.mrb[0].mxu0 %v640
  %v2844 = vpop.f32.mrb[0].mxu0
  %v2845 = vadd.f32 %v2805, %v2844
  %v2846 = vpop.f32.mrb[0].mxu0
  %v2847 = vpop.f32.mrb[0].mxu0
  %v2848 = vpop.f32.mrb[0].mxu0
  %2849 = vdwg.mxu0
  %v2850 = vmax.f32 %v2845, 0.0
  %v2851 = vpack.c.bf16 %v2850, %v2850
  %v2852 = vld [vmem:[%s3] sm:$0xf]
  %v2853 = vld [vmem:[%s3 + $0x4] sm:$0xf]
  %v2854 = vld [vmem:[%s3 + $0x8] sm:$0xf]
  %v2855 = vld [vmem:[%s3 + $0xc] sm:$0xf]
  %v2856 = vld [vmem:[%s3 + $0x10] sm:$0xf]
  %v2857 = vld [vmem:[%s3 + $0x14] sm:$0xf]
  %v2858 = vld [vmem:[%s3 + $0x18] sm:$0xf]
  %v2859 = vld [vmem:[%s3 + $0x1c] sm:$0xf]
  %v2860 = vld [vmem:[%s3 + $0x20] sm:$0xf]
  %v2861 = vld [vmem:[%s3 + $0x24] sm:$0xf]
  %v2862 = vld [vmem:[%s3 + $0x28] sm:$0xf]
  %v2863 = vld [vmem:[%s3 + $0x2c] sm:$0xf]
  %v2864 = vld [vmem:[%s3 + $0x30] sm:$0xf]
  %v2865 = vld [vmem:[%s3 + $0x34] sm:$0xf]
  %v2866 = vld [vmem:[%s3 + $0x38] sm:$0xf]
  %v2867 = vld [vmem:[%s3 + $0x3c] sm:$0xf]
  %v2868 = vld [vmem:[%s4] sm:$0x1]
  %v2870 = vlaneseq
  %v2871 = vshrl.u32 %v2870, 7
  %v2872 = vsub.s32 0, %v2871
  %v2873 = vrot.slane %v2868, %v2872
  %v2891 = vunpack.c.l.b16 %v2852
  %v2892 = vunpack.c.l.b16 %v2853
  %v2893 = vunpack.c.l.b16 %v2854
  %v2894 = vunpack.c.l.b16 %v2855
  %v2895 = vunpack.c.l.b16 %v2856
  %v2896 = vunpack.c.l.b16 %v2857
  %v2897 = vunpack.c.l.b16 %v2858
  %v2898 = vunpack.c.l.b16 %v2859
  %v2899 = vunpack.c.l.b16 %v2860
  %v2900 = vunpack.c.l.b16 %v2861
  %v2901 = vunpack.c.l.b16 %v2862
  %v2902 = vunpack.c.l.b16 %v2863
  %v2903 = vunpack.c.l.b16 %v2864
  %v2904 = vunpack.c.l.b16 %v2865
  %v2905 = vunpack.c.l.b16 %v2866
  %v2906 = vunpack.c.l.b16 %v2867
  %v2907 = vpack.c.b16 %v2892, %v2891
  %v2908 = vpack.c.b16 %v2894, %v2893
  %v2909 = vpack.c.b16 %v2896, %v2895
  %v2910 = vpack.c.b16 %v2898, %v2897
  %v2911 = vpack.c.b16 %v2900, %v2899
  %v2912 = vpack.c.b16 %v2902, %v2901
  %v2913 = vpack.c.b16 %v2904, %v2903
  %v2914 = vpack.c.b16 %v2906, %v2905
  %2923 = vmatprep.subr.bf16.mxu0 0
  %2924 = vmatpush1.bf16.msra.mxu0 %v2907
  %2925 = vmatprep.subr.bf16.mxu0 0
  %2926 = vmatpush1.bf16.msra.mxu0 %v2908
  %2927 = vmatprep.subr.bf16.mxu0 0
  %2928 = vmatpush1.bf16.msra.mxu0 %v2909
  %2929 = vmatprep.subr.bf16.mxu0 0
  %2930 = vmatpush1.bf16.msra.mxu0 %v2910
  %2931 = vmatprep.subr.bf16.mxu0 0
  %2932 = vmatpush1.bf16.msra.mxu0 %v2911
  %2933 = vmatprep.subr.bf16.mxu0 0
  %2934 = vmatpush1.bf16.msra.mxu0 %v2912
  %2935 = vmatprep.subr.bf16.mxu0 0
  %2936 = vmatpush1.bf16.msra.mxu0 %v2913
  %2937 = vmatprep.subr.bf16.mxu0 0
  %2938 = vmatpush1.bf16.msra.mxu0 %v2914
  %2939 = vmatprep.subr.bf16.mxu0 0
  %2940 = vmatpush1.bf16.msra.mxu0 0
  %2941 = vmatprep.subr.bf16.mxu0 0
  %2942 = vmatpush1.bf16.msra.mxu0 0
  %2943 = vmatprep.subr.bf16.mxu0 0
  %2944 = vmatpush1.bf16.msra.mxu0 0
  %2945 = vmatprep.subr.bf16.mxu0 0
  %2946 = vmatpush1.bf16.msra.mxu0 0
  %2947 = vmatprep.subr.bf16.mxu0 0
  %2948 = vmatpush1.bf16.msra.mxu0 0
  %2949 = vmatprep.subr.bf16.mxu0 0
  %2950 = vmatpush1.bf16.msra.mxu0 0
  %2951 = vmatprep.subr.bf16.mxu0 0
  %2952 = vmatpush1.bf16.msra.mxu0 0
  %2953 = vmatprep.subr.bf16.mxu0 0
  %2954 = vmatpush1.bf16.msra.mxu0 0
  %2955 = vmatprep.mubr.bf16.mxu0 0
  %2956 = vmatmul.mubr.bf16.gmra.mrb[0].mxu0 %v2851
  %v2957 = vpop.f32.mrb[0].mxu0
  %v2958 = vadd.f32 %v2873, %v2957
  %v2959 = vpop.f32.mrb[0].mxu0
  %v2960 = vpop.f32.mrb[0].mxu0
  %v2961 = vpop.f32.mrb[0].mxu0
  %2962 = vdwg.mxu0
  %v2963 = vmax.f32 %v2958, 0.0
  %v2964 = vpack.c.bf16 %v2963, %v2963
  %v2965 = vld [vmem:[%s5] sm:$0xf]
  %v2966 = vld [vmem:[%s5 + $0x4] sm:$0xf]
  %v2967 = vld [vmem:[%s5 + $0x8] sm:$0xf]
  %v2968 = vld [vmem:[%s5 + $0xc] sm:$0xf]
  %v2969 = vld [vmem:[%s5 + $0x10] sm:$0xf]
  %v2970 = vld [vmem:[%s5 + $0x14] sm:$0xf]
  %v2971 = vld [vmem:[%s5 + $0x18] sm:$0xf]
  %v2972 = vld [vmem:[%s5 + $0x1c] sm:$0xf]
  %v2973 = vld [vmem:[%s5 + $0x20] sm:$0xf]
  %v2974 = vld [vmem:[%s5 + $0x24] sm:$0xf]
  %v2975 = vld [vmem:[%s5 + $0x28] sm:$0xf]
  %v2976 = vld [vmem:[%s5 + $0x2c] sm:$0xf]
  %v2977 = vld [vmem:[%s5 + $0x30] sm:$0xf]
  %v2978 = vld [vmem:[%s5 + $0x34] sm:$0xf]
  %v2979 = vld [vmem:[%s5 + $0x38] sm:$0xf]
  %v2980 = vld [vmem:[%s5 + $0x3c] sm:$0xf]
  %v2981 = vld [vmem:[%s6] sm:$0x1]
  %v2983 = vlaneseq
  %v2984 = vshrl.u32 %v2983, 7
  %v2985 = vsub.s32 0, %v2984
  %v2986 = vrot.slane %v2981, %v2985
  %v3004 = vunpack.c.l.b16 %v2965
  %v3005 = vunpack.c.l.b16 %v2966
  %v3006 = vunpack.c.l.b16 %v2967
  %v3007 = vunpack.c.l.b16 %v2968
  %v3008 = vunpack.c.l.b16 %v2969
  %v3009 = vunpack.c.l.b16 %v2970
  %v3010 = vunpack.c.l.b16 %v2971
  %v3011 = vunpack.c.l.b16 %v2972
  %v3012 = vunpack.c.l.b16 %v2973
  %v3013 = vunpack.c.l.b16 %v2974
  %v3014 = vunpack.c.l.b16 %v2975
  %v3015 = vunpack.c.l.b16 %v2976
  %v3016 = vunpack.c.l.b16 %v2977
  %v3017 = vunpack.c.l.b16 %v2978
  %v3018 = vunpack.c.l.b16 %v2979
  %v3019 = vunpack.c.l.b16 %v2980
  %v3020 = vpack.c.b16 %v3005, %v3004
  %v3021 = vpack.c.b16 %v3007, %v3006
  %v3022 = vpack.c.b16 %v3009, %v3008
  %v3023 = vpack.c.b16 %v3011, %v3010
  %v3024 = vpack.c.b16 %v3013, %v3012
  %v3025 = vpack.c.b16 %v3015, %v3014
  %v3026 = vpack.c.b16 %v3017, %v3016
  %v3027 = vpack.c.b16 %v3019, %v3018
  %3036 = vmatprep.subr.bf16.mxu0 0
  %3037 = vmatpush1.bf16.msra.mxu0 %v3020
  %3038 = vmatprep.subr.bf16.mxu0 0
  %3039 = vmatpush1.bf16.msra.mxu0 %v3021
  %3040 = vmatprep.subr.bf16.mxu0 0
  %3041 = vmatpush1.bf16.msra.mxu0 %v3022
  %3042 = vmatprep.subr.bf16.mxu0 0
  %3043 = vmatpush1.bf16.msra.mxu0 %v3023
  %3044 = vmatprep.subr.bf16.mxu0 0
  %3045 = vmatpush1.bf16.msra.mxu0 %v3024
  %3046 = vmatprep.subr.bf16.mxu0 0
  %3047 = vmatpush1.bf16.msra.mxu0 %v3025
  %3048 = vmatprep.subr.bf16.mxu0 0
  %3049 = vmatpush1.bf16.msra.mxu0 %v3026
  %3050 = vmatprep.subr.bf16.mxu0 0
  %3051 = vmatpush1.bf16.msra.mxu0 %v3027
  %3052 = vmatprep.subr.bf16.mxu0 0
  %3053 = vmatpush1.bf16.msra.mxu0 0
  %3054 = vmatprep.subr.bf16.mxu0 0
  %3055 = vmatpush1.bf16.msra.mxu0 0
  %3056 = vmatprep.subr.bf16.mxu0 0
  %3057 = vmatpush1.bf16.msra.mxu0 0
  %3058 = vmatprep.subr.bf16.mxu0 0
  %3059 = vmatpush1.bf16.msra.mxu0 0
  %3060 = vmatprep.subr.bf16.mxu0 0
  %3061 = vmatpush1.bf16.msra.mxu0 0
  %3062 = vmatprep.subr.bf16.mxu0 0
  %3063 = vmatpush1.bf16.msra.mxu0 0
  %3064 = vmatprep.subr.bf16.mxu0 0
  %3065 = vmatpush1.bf16.msra.mxu0 0
  %3066 = vmatprep.subr.bf16.mxu0 0
  %3067 = vmatpush1.bf16.msra.mxu0 0
  %3068 = vmatprep.mubr.bf16.mxu0 0
  %3069 = vmatmul.mubr.bf16.gmra.mrb[0].mxu0 %v2964
  %v3070 = vpop.f32.mrb[0].mxu0
  %v3071 = vadd.f32 %v2986, %v3070
  %v3072 = vpop.f32.mrb[0].mxu0
  %v3073 = vpop.f32.mrb[0].mxu0
  %v3074 = vpop.f32.mrb[0].mxu0
  %3075 = vdwg.mxu0
  %3076 = vst [vmem:[%s7] sm:$0xff] %v3071
  // Predicated region
  $region30: #{net_forward.5} parent=0 // pred_check
    _
  $region31: #{net_forward.5} parent=0 // pred_check_branch
    %3078 = sbr.rel (0) target = $region33
  $region32: #{net_forward.5} parent=0 // pred_region
    _
  $region33: #{net_forward.5} parent=0 // pred_fallthru
    _
  // Predicated region
  $region34: #{net_forward.5} parent=0 // pred_check
    _
  $region35: #{net_forward.5} parent=0 // pred_check_branch
    %3080 = sbr.rel (0) target = $region37
  $region36: #{net_forward.5} parent=0 // pred_region
    _
  $region37: #{net_forward.5} parent=0 // pred_fallthru
    _

</llo_original>
